<compile_context>
chip_gen: v7x
topology: tpu7x:2x2x1
jax: 0.10.0
libtpu: 0.0.40
codegen_flags: <defaults>
</compile_context>

<pallas_src>
import jax
import jax.numpy as jnp
from jax.experimental import pallas as pl
from jax.experimental.pallas import tpu as pltpu


IN_FEATURES = 3 * 32 * 32
LAYER_DIMS = [(IN_FEATURES, 256), (256, 512), (512, 1024), (1024, 512), (512, 10)]
LANE = 128
BF16_SUBLANE = 16   # bf16 packs 16 rows per sublane group


def _round_up(x, m):
    return (x + m - 1) // m * m


def _pick_tile(B):
    """Batch tile: 16-row multiples for tiny B; else 128/256 minimizing padding."""
    if B < LANE:
        return _round_up(max(B, 1), BF16_SUBLANE)
    waste128 = _round_up(B, 128) - B
    waste256 = _round_up(B, 256) - B
    # Prefer 256 on ties: fills the 2x256 MXU rows on v6e/v7x and halves the
    # number of grid steps.
    return 256 if waste256 <= waste128 else 128


# ---------------------------------------------------------------------------
# Fused kernel: h0 = x;  h_i = relu(h_{i-1} @ W_i + b_i)  for i = 1..5
# x_ref: (tb, 3072) bf16, W_i bf16 (K, N), b_i f32 (1, N), o_ref f32 (tb, 128)
# ---------------------------------------------------------------------------
def _fused_mlp_kernel(x_ref,
                      w1_ref, b1_ref, w2_ref, b2_ref, w3_ref, b3_ref,
                      w4_ref, b4_ref, w5_ref, b5_ref,
                      o_ref):
    h = x_ref[...]                                   # bf16 activations
    acc = None
    for w_ref, b_ref in ((w1_ref, b1_ref), (w2_ref, b2_ref), (w3_ref, b3_ref),
                         (w4_ref, b4_ref), (w5_ref, b5_ref)):
        acc = jnp.dot(h, w_ref[...], preferred_element_type=jnp.float32)
        acc = jnp.maximum(acc + b_ref[...], 0.0)     # Linear + ReLU (every layer)
        h = acc.astype(jnp.bfloat16)                 # bf16 input to next MXU matmul
    o_ref[...] = acc                                 # f32, lane-dense (tb, 128)


# ---------------------------------------------------------------------------
# Parameters: f32 init mimicking PyTorch nn.Linear, then prepared for the
# kernel (bf16 weights stored (in, out), f32 (1, N) biases, last layer padded
# from N=10 to N=128 lanes with zeros).
# ---------------------------------------------------------------------------
def init_params(key, dims=LAYER_DIMS, dtype=jnp.float32):
    params = []
    for (fan_in, fan_out) in dims:
        key, kw, kb = jax.random.split(key, 3)
        bound = 1.0 / float(fan_in) ** 0.5
        w = jax.random.uniform(kw, (fan_in, fan_out), dtype, -bound, bound)
        b = jax.random.uniform(kb, (fan_out,), dtype, -bound, bound)
        params.append((w, b))
    return params


def prepare_params(params):
    prepared = []
    for (w, b) in params:
        fan_in, fan_out = w.shape
        n_pad = _round_up(fan_out, LANE)
        if n_pad != fan_out:
            w = jnp.pad(w, ((0, 0), (0, n_pad - fan_out)))
            b = jnp.pad(b, ((0, n_pad - fan_out),))
        prepared.append((w.astype(jnp.bfloat16),
                         b.reshape(1, n_pad).astype(jnp.float32)))
    return prepared


# ---------------------------------------------------------------------------
# Forward pass: flatten (NCHW, row-major == nn.Flatten) + single fused kernel
# ---------------------------------------------------------------------------
@jax.jit
def simple_nn_forward(x, prepared):
    B = x.shape[0]
    xf = x.reshape(B, -1).astype(jnp.bfloat16)       # (B, 3072)
    K0 = xf.shape[1]

    tb = _pick_tile(B)
    b_pad = _round_up(B, tb)
    if b_pad != B:
        xf = jnp.pad(xf, ((0, b_pad - B), (0, 0)))

    n_out_pad = prepared[-1][0].shape[1]             # 128 (padded logits width)
    n_classes = LAYER_DIMS[-1][1]                    # 10
    n_tiles = b_pad // tb

    # x is the only streamed input: default double-buffering.
    in_specs = [pl.BlockSpec((tb, K0), lambda i: (i, 0))]
    flat_args = [xf]
    # Weights / biases have a constant index_map -> fetched once; single buffer
    # so the resident footprint is ~3.9 MiB instead of ~7.75 MiB.
    for (w, b2d) in prepared:
        kw, nw = w.shape
        in_specs.append(pl.BlockSpec((kw, nw), lambda i: (0, 0),
                                     pipeline_mode=pl.Buffered(1)))
        in_specs.append(pl.BlockSpec((1, nw), lambda i: (0, 0),
                                     pipeline_mode=pl.Buffered(1)))
        flat_args.append(w)
        flat_args.append(b2d)

    # Only shard the batch-tile axis across TensorCores when there is real
    # parallel work; a 1-tile grid would just duplicate the weight DMA.
    semantics = ("parallel",) if n_tiles >= 2 else ("arbitrary",)

    out = pl.pallas_call(
        _fused_mlp_kernel,
        out_shape=jax.ShapeDtypeStruct((b_pad, n_out_pad), jnp.float32),
        grid=(n_tiles,),
        in_specs=in_specs,
        out_specs=pl.BlockSpec((tb, n_out_pad), lambda i: (i, 0)),
        compiler_params=pltpu.CompilerParams(
            dimension_semantics=semantics,
            vmem_limit_bytes=32 * 1024 * 1024,       # > v5e's 16 MiB scoped default
        ),
    )(*flat_args)

    return out[:B, :n_classes]


# Pure-JAX reference using the same bf16-staged weights/activations.
def simple_nn_ref(x, prepared):
    h = x.reshape(x.shape[0], -1).astype(jnp.bfloat16)
    acc = None
    for (w, b2d) in prepared:
        acc = jnp.dot(h, w, preferred_element_type=jnp.float32) + b2d
        acc = jnp.maximum(acc, 0.0)
        h = acc.astype(jnp.bfloat16)
    return acc[:, :LAYER_DIMS[-1][1]]


if __name__ == "__main__":
    key = jax.random.PRNGKey(0)
    kx, kp = jax.random.split(key)

    # Batch=2, NCHW CIFAR-like shape implied by in_features = 3*32*32
    x = jax.random.normal(kx, (2, 3, 32, 32), dtype=jnp.float32)
    params = init_params(kp)
    prepared = prepare_params(params)

    out = jax.block_until_ready(simple_nn_forward(x, prepared))
    ref = simple_nn_ref(x, prepared)

    assert out.shape == (2, 10), out.shape
    assert jnp.allclose(out, ref, atol=2e-2, rtol=2e-2), "mismatch vs reference"

    print("KERNEL_OK")
</pallas_src>

<mosaic_0001>
module attributes {stable_mosaic.version = 11 : i64} {
  func.func @_fused_mlp_kernel(%arg0: i32, %arg1: memref<16x3072xbf16, #tpu.memory_space<vmem>>, %arg2: memref<3072x256xbf16, #tpu.memory_space<vmem>>, %arg3: memref<1x256xf32, #tpu.memory_space<vmem>>, %arg4: memref<256x512xbf16, #tpu.memory_space<vmem>>, %arg5: memref<1x512xf32, #tpu.memory_space<vmem>>, %arg6: memref<512x1024xbf16, #tpu.memory_space<vmem>>, %arg7: memref<1x1024xf32, #tpu.memory_space<vmem>>, %arg8: memref<1024x512xbf16, #tpu.memory_space<vmem>>, %arg9: memref<1x512xf32, #tpu.memory_space<vmem>>, %arg10: memref<512x128xbf16, #tpu.memory_space<vmem>>, %arg11: memref<1x128xf32, #tpu.memory_space<vmem>>, %arg12: memref<16x128xf32, #tpu.memory_space<vmem>>) attributes {dimension_semantics = [#tpu.dimension_semantics<arbitrary>], iteration_bounds = array<i64: 1>, scalar_prefetch = 0 : i64, scratch_operands = 0 : i64, tpu.core_type = #tpu.core_type<tc>, window_params = [{transform_indices = @transform_0, window_bounds = array<i64: 16, 3072>}, {pipeline_mode = #tpu.pipeline_mode<synchronous>, transform_indices = @transform_1, window_bounds = array<i64: 3072, 256>}, {pipeline_mode = #tpu.pipeline_mode<synchronous>, transform_indices = @transform_2, window_bounds = array<i64: 1, 256>}, {pipeline_mode = #tpu.pipeline_mode<synchronous>, transform_indices = @transform_3, window_bounds = array<i64: 256, 512>}, {pipeline_mode = #tpu.pipeline_mode<synchronous>, transform_indices = @transform_4, window_bounds = array<i64: 1, 512>}, {pipeline_mode = #tpu.pipeline_mode<synchronous>, transform_indices = @transform_5, window_bounds = array<i64: 512, 1024>}, {pipeline_mode = #tpu.pipeline_mode<synchronous>, transform_indices = @transform_6, window_bounds = array<i64: 1, 1024>}, {pipeline_mode = #tpu.pipeline_mode<synchronous>, transform_indices = @transform_7, window_bounds = array<i64: 1024, 512>}, {pipeline_mode = #tpu.pipeline_mode<synchronous>, transform_indices = @transform_8, window_bounds = array<i64: 1, 512>}, {pipeline_mode = #tpu.pipeline_mode<synchronous>, transform_indices = @transform_9, window_bounds = array<i64: 512, 128>}, {pipeline_mode = #tpu.pipeline_mode<synchronous>, transform_indices = @transform_10, window_bounds = array<i64: 1, 128>}, {transform_indices = @transform_11, window_bounds = array<i64: 16, 128>}]} {
    %c0 = arith.constant 0 : index
    %c0_0 = arith.constant 0 : index
    %0 = vector.load %arg1[%c0, %c0_0] : memref<16x3072xbf16, #tpu.memory_space<vmem>>, vector<16x3072xbf16>
    %c0_1 = arith.constant 0 : index
    %c0_2 = arith.constant 0 : index
    %1 = vector.load %arg2[%c0_1, %c0_2] : memref<3072x256xbf16, #tpu.memory_space<vmem>>, vector<3072x256xbf16>
    %cst = arith.constant dense<0.000000e+00> : vector<16x256xf32>
    %2 = tpu.matmul %0, %1, %cst {dimension_numbers = #tpu.dot_dimension_numbers<[1], [0], [0], [1], [0, 0, 1, 1], [], []>} : vector<16x3072xbf16>, vector<3072x256xbf16>, vector<16x256xf32> -> vector<16x256xf32>
    %c0_3 = arith.constant 0 : index
    %c0_4 = arith.constant 0 : index
    %3 = vector.load %arg3[%c0_3, %c0_4] : memref<1x256xf32, #tpu.memory_space<vmem>>, vector<1x256xf32>
    %4 = vector.broadcast %3 : vector<1x256xf32> to vector<16x256xf32>
    %5 = arith.addf %2, %4 : vector<16x256xf32>
    %cst_5 = arith.constant 0.000000e+00 : f32
    %6 = vector.broadcast %cst_5 : f32 to vector<16x256xf32>
    %7 = arith.maximumf %5, %6 : vector<16x256xf32>
    %8 = arith.truncf %7 : vector<16x256xf32> to vector<16x256xbf16>
    %c0_6 = arith.constant 0 : index
    %c0_7 = arith.constant 0 : index
    %9 = vector.load %arg4[%c0_6, %c0_7] : memref<256x512xbf16, #tpu.memory_space<vmem>>, vector<256x512xbf16>
    %cst_8 = arith.constant dense<0.000000e+00> : vector<16x512xf32>
    %10 = tpu.matmul %8, %9, %cst_8 {dimension_numbers = #tpu.dot_dimension_numbers<[1], [0], [0], [1], [0, 0, 1, 1], [], []>} : vector<16x256xbf16>, vector<256x512xbf16>, vector<16x512xf32> -> vector<16x512xf32>
    %c0_9 = arith.constant 0 : index
    %c0_10 = arith.constant 0 : index
    %11 = vector.load %arg5[%c0_9, %c0_10] : memref<1x512xf32, #tpu.memory_space<vmem>>, vector<1x512xf32>
    %12 = vector.broadcast %11 : vector<1x512xf32> to vector<16x512xf32>
    %13 = arith.addf %10, %12 : vector<16x512xf32>
    %cst_11 = arith.constant 0.000000e+00 : f32
    %14 = vector.broadcast %cst_11 : f32 to vector<16x512xf32>
    %15 = arith.maximumf %13, %14 : vector<16x512xf32>
    %16 = arith.truncf %15 : vector<16x512xf32> to vector<16x512xbf16>
    %c0_12 = arith.constant 0 : index
    %c0_13 = arith.constant 0 : index
    %17 = vector.load %arg6[%c0_12, %c0_13] : memref<512x1024xbf16, #tpu.memory_space<vmem>>, vector<512x1024xbf16>
    %cst_14 = arith.constant dense<0.000000e+00> : vector<16x1024xf32>
    %18 = tpu.matmul %16, %17, %cst_14 {dimension_numbers = #tpu.dot_dimension_numbers<[1], [0], [0], [1], [0, 0, 1, 1], [], []>} : vector<16x512xbf16>, vector<512x1024xbf16>, vector<16x1024xf32> -> vector<16x1024xf32>
    %c0_15 = arith.constant 0 : index
    %c0_16 = arith.constant 0 : index
    %19 = vector.load %arg7[%c0_15, %c0_16] : memref<1x1024xf32, #tpu.memory_space<vmem>>, vector<1x1024xf32>
    %20 = vector.broadcast %19 : vector<1x1024xf32> to vector<16x1024xf32>
    %21 = arith.addf %18, %20 : vector<16x1024xf32>
    %cst_17 = arith.constant 0.000000e+00 : f32
    %22 = vector.broadcast %cst_17 : f32 to vector<16x1024xf32>
    %23 = arith.maximumf %21, %22 : vector<16x1024xf32>
    %24 = arith.truncf %23 : vector<16x1024xf32> to vector<16x1024xbf16>
    %c0_18 = arith.constant 0 : index
    %c0_19 = arith.constant 0 : index
    %25 = vector.load %arg8[%c0_18, %c0_19] : memref<1024x512xbf16, #tpu.memory_space<vmem>>, vector<1024x512xbf16>
    %cst_20 = arith.constant dense<0.000000e+00> : vector<16x512xf32>
    %26 = tpu.matmul %24, %25, %cst_20 {dimension_numbers = #tpu.dot_dimension_numbers<[1], [0], [0], [1], [0, 0, 1, 1], [], []>} : vector<16x1024xbf16>, vector<1024x512xbf16>, vector<16x512xf32> -> vector<16x512xf32>
    %c0_21 = arith.constant 0 : index
    %c0_22 = arith.constant 0 : index
    %27 = vector.load %arg9[%c0_21, %c0_22] : memref<1x512xf32, #tpu.memory_space<vmem>>, vector<1x512xf32>
    %28 = vector.broadcast %27 : vector<1x512xf32> to vector<16x512xf32>
    %29 = arith.addf %26, %28 : vector<16x512xf32>
    %cst_23 = arith.constant 0.000000e+00 : f32
    %30 = vector.broadcast %cst_23 : f32 to vector<16x512xf32>
    %31 = arith.maximumf %29, %30 : vector<16x512xf32>
    %32 = arith.truncf %31 : vector<16x512xf32> to vector<16x512xbf16>
    %c0_24 = arith.constant 0 : index
    %c0_25 = arith.constant 0 : index
    %33 = vector.load %arg10[%c0_24, %c0_25] : memref<512x128xbf16, #tpu.memory_space<vmem>>, vector<512x128xbf16>
    %cst_26 = arith.constant dense<0.000000e+00> : vector<16x128xf32>
    %34 = tpu.matmul %32, %33, %cst_26 {dimension_numbers = #tpu.dot_dimension_numbers<[1], [0], [0], [1], [0, 0, 1, 1], [], []>} : vector<16x512xbf16>, vector<512x128xbf16>, vector<16x128xf32> -> vector<16x128xf32>
    %c0_27 = arith.constant 0 : index
    %c0_28 = arith.constant 0 : index
    %35 = vector.load %arg11[%c0_27, %c0_28] : memref<1x128xf32, #tpu.memory_space<vmem>>, vector<1x128xf32>
    %36 = vector.broadcast %35 : vector<1x128xf32> to vector<16x128xf32>
    %37 = arith.addf %34, %36 : vector<16x128xf32>
    %cst_29 = arith.constant 0.000000e+00 : f32
    %38 = vector.broadcast %cst_29 : f32 to vector<16x128xf32>
    %39 = arith.maximumf %37, %38 : vector<16x128xf32>
    %c0_30 = arith.constant 0 : index
    %c0_31 = arith.constant 0 : index
    %40 = vector.load %arg12[%c0_30, %c0_31] : memref<16x128xf32, #tpu.memory_space<vmem>>, vector<16x128xf32>
    tpu.vector_store %arg12[%c0_30, %c0_31], %39 {strides = array<i32>} : memref<16x128xf32, #tpu.memory_space<vmem>>, vector<16x128xf32>,
    return
  }
  func.func @transform_0(%arg0: i32) -> (i32, i32) {
    %c0_i32 = arith.constant 0 : i32
    %c0_i32_0 = arith.constant 0 : i32
    return %arg0, %c0_i32 : i32, i32
  }
  func.func @transform_1(%arg0: i32) -> (i32, i32) {
    %c0_i32 = arith.constant 0 : i32
    %c0_i32_0 = arith.constant 0 : i32
    %c0_i32_1 = arith.constant 0 : i32
    return %c0_i32, %c0_i32_0 : i32, i32
  }
  func.func @transform_2(%arg0: i32) -> (i32, i32) {
    %c0_i32 = arith.constant 0 : i32
    %c0_i32_0 = arith.constant 0 : i32
    %c0_i32_1 = arith.constant 0 : i32
    return %c0_i32, %c0_i32_0 : i32, i32
  }
  func.func @transform_3(%arg0: i32) -> (i32, i32) {
    %c0_i32 = arith.constant 0 : i32
    %c0_i32_0 = arith.constant 0 : i32
    %c0_i32_1 = arith.constant 0 : i32
    return %c0_i32, %c0_i32_0 : i32, i32
  }
  func.func @transform_4(%arg0: i32) -> (i32, i32) {
    %c0_i32 = arith.constant 0 : i32
    %c0_i32_0 = arith.constant 0 : i32
    %c0_i32_1 = arith.constant 0 : i32
    return %c0_i32, %c0_i32_0 : i32, i32
  }
  func.func @transform_5(%arg0: i32) -> (i32, i32) {
    %c0_i32 = arith.constant 0 : i32
    %c0_i32_0 = arith.constant 0 : i32
    %c0_i32_1 = arith.constant 0 : i32
    return %c0_i32, %c0_i32_0 : i32, i32
  }
  func.func @transform_6(%arg0: i32) -> (i32, i32) {
    %c0_i32 = arith.constant 0 : i32
    %c0_i32_0 = arith.constant 0 : i32
    %c0_i32_1 = arith.constant 0 : i32
    return %c0_i32, %c0_i32_0 : i32, i32
  }
  func.func @transform_7(%arg0: i32) -> (i32, i32) {
    %c0_i32 = arith.constant 0 : i32
    %c0_i32_0 = arith.constant 0 : i32
    %c0_i32_1 = arith.constant 0 : i32
    return %c0_i32, %c0_i32_0 : i32, i32
  }
  func.func @transform_8(%arg0: i32) -> (i32, i32) {
    %c0_i32 = arith.constant 0 : i32
    %c0_i32_0 = arith.constant 0 : i32
    %c0_i32_1 = arith.constant 0 : i32
    return %c0_i32, %c0_i32_0 : i32, i32
  }
  func.func @transform_9(%arg0: i32) -> (i32, i32) {
    %c0_i32 = arith.constant 0 : i32
    %c0_i32_0 = arith.constant 0 : i32
    %c0_i32_1 = arith.constant 0 : i32
    return %c0_i32, %c0_i32_0 : i32, i32
  }
  func.func @transform_10(%arg0: i32) -> (i32, i32) {
    %c0_i32 = arith.constant 0 : i32
    %c0_i32_0 = arith.constant 0 : i32
    %c0_i32_1 = arith.constant 0 : i32
    return %c0_i32, %c0_i32_0 : i32, i32
  }
  func.func @transform_11(%arg0: i32) -> (i32, i32) {
    %c0_i32 = arith.constant 0 : i32
    %c0_i32_0 = arith.constant 0 : i32
    return %arg0, %c0_i32 : i32, i32
  }
}

</mosaic_0001>

<llo_original>
// kernel: simple_nn_forward.1
$region0: #{simple_nn_forward.1}
  #allocation0 [shape = 'u32[]', space=smem, size = 0x4, offset = 0x4, fixed_abs, tag = 'smem constant byte address 0x4 - core index']
  #allocation1 [shape = 'u32[144,128]{1,0:T(1,128)}', space=vmem, size = 0x12000, scoped, tag = 'internal scratch']
  %s0 = inlined_call_operand.vmem [shape: bf16[16,3072], index: 0, kind: input, shape index: {}]
  %s1 = inlined_call_operand.hbm [shape: bf16[3072,256], index: 1, kind: input, shape index: {}]
  %s2 = inlined_call_operand.hbm [shape: f32[1,256], index: 2, kind: input, shape index: {}]
  %s3 = inlined_call_operand.hbm [shape: bf16[256,512], index: 3, kind: input, shape index: {}]
  %s4 = inlined_call_operand.hbm [shape: f32[1,512], index: 4, kind: input, shape index: {}]
  %s5 = inlined_call_operand.hbm [shape: bf16[512,1024], index: 5, kind: input, shape index: {}]
  %s6 = inlined_call_operand.hbm [shape: f32[1,1024], index: 6, kind: input, shape index: {}]
  %s7 = inlined_call_operand.hbm [shape: bf16[1024,512], index: 7, kind: input, shape index: {}]
  %s8 = inlined_call_operand.hbm [shape: f32[1,512], index: 8, kind: input, shape index: {}]
  %s9 = inlined_call_operand.hbm [shape: bf16[512,128], index: 9, kind: input, shape index: {}]
  %s10 = inlined_call_operand.hbm [shape: f32[1,128], index: 10, kind: input, shape index: {}]
  %s11 = inlined_call_operand.vmem [shape: f32[16,128], index: 11, kind: output, shape index: {}]
  %s12 = sld [smem:[#allocation0]]
  $region94: #{simple_nn_forward.1} parent=0
    _
  %s14 = ssub.s32 1, %s12
  %s15 = scalar_select 0, %s14, %s12
  $region1: #{simple_nn_forward.1} parent=0
    #allocation2 [shape = 'u8[1572864]{0}', space=vmem, size = 0x180000, scoped, tag = 'input window, operand 1, single buffered']
    #allocation3 [shape = 's32[1]{0}', space=sflag, size = 0x4, scoped, tag = 'scoped memory for simple_nn_forward.1']
    #allocation4 [shape = 'u8[1024]{0}', space=vmem, size = 0x400, scoped, tag = 'input window, operand 2, single buffered']
    #allocation5 [shape = 's32[1]{0}', space=sflag, size = 0x4, scoped, tag = 'scoped memory for simple_nn_forward.1']
    #allocation6 [shape = 'u8[262144]{0}', space=vmem, size = 0x40000, scoped, tag = 'input window, operand 3, single buffered']
    #allocation7 [shape = 'u8[2048]{0}', space=vmem, size = 0x800, scoped, tag = 'input window, operand 4, single buffered']
    #allocation8 [shape = 's32[1]{0}', space=sflag, size = 0x4, scoped, tag = 'scoped memory for simple_nn_forward.1']
    #allocation9 [shape = 'u8[1048576]{0}', space=vmem, size = 0x100000, scoped, tag = 'input window, operand 5, single buffered']
    #allocation10 [shape = 'u8[4096]{0}', space=vmem, size = 0x1000, scoped, tag = 'input window, operand 6, single buffered']
    #allocation11 [shape = 's32[1]{0}', space=sflag, size = 0x4, scoped, tag = 'scoped memory for simple_nn_forward.1']
    #allocation12 [shape = 'u8[1048576]{0}', space=vmem, size = 0x100000, scoped, tag = 'input window, operand 7, single buffered']
    #allocation13 [shape = 'u8[2048]{0}', space=vmem, size = 0x800, scoped, tag = 'input window, operand 8, single buffered']
    #allocation14 [shape = 's32[1]{0}', space=sflag, size = 0x4, scoped, tag = 'scoped memory for simple_nn_forward.1']
    #allocation15 [shape = 'u8[131072]{0}', space=vmem, size = 0x20000, scoped, tag = 'input window, operand 9, single buffered']
    #allocation16 [shape = 'u8[512]{0}', space=vmem, size = 0x400, scoped, tag = 'input window, operand 10, single buffered']
    #allocation17 [shape = 's32[1]{0}', space=sflag, size = 0x4, scoped, tag = 'scoped memory for simple_nn_forward.1']
    %16 = vsyncpa [#allocation3], 0
    %17 = vsyncpa [#allocation5], 0
    %18 = vsyncpa [#allocation8], 0
    %19 = vsyncpa [#allocation11], 0
    %20 = vsyncpa [#allocation14], 0
    %21 = vsyncpa [#allocation17], 0
    // Predicated region
    $region2: #{simple_nn_forward.1} parent=1 // pred_check
      _
    $region3: #{simple_nn_forward.1} parent=1 // pred_check_branch
      %23 = sbr.rel (0) target = $region5
    $region4: #{simple_nn_forward.1} parent=1 // pred_region
      _
    $region5: #{simple_nn_forward.1} parent=1 // pred_fallthru
      _
    // Predicated region
    $region6: #{simple_nn_forward.1} parent=1 // pred_check
      _
    $region7: #{simple_nn_forward.1} parent=1 // pred_check_branch
      %25 = sbr.rel (0) target = $region9
    $region8: #{simple_nn_forward.1} parent=1 // pred_region
      %s27 = ssub.s32 49152, 49152
      %28 = vsyncadd [#allocation3], %s27
      %s29 = sshll.u32 [#allocation2], 4
      %s30 = int_to_ptr.vmem [resolvable:$true] %s29
      %35 = dma.hbm_to_vmem [thread:$0]  %s1, 49152, %s30, [#allocation3], 128, 128, 8
    $region9: #{simple_nn_forward.1} parent=1 // pred_fallthru
      _
    // Predicated region
    $region10: #{simple_nn_forward.1} parent=1 // pred_check
      _
    $region11: #{simple_nn_forward.1} parent=1 // pred_check_branch
      %37 = sbr.rel (0) target = $region13
    $region12: #{simple_nn_forward.1} parent=1 // pred_region
      %s39 = ssub.s32 32, 32
      %40 = vsyncadd [#allocation5], %s39
      %s42 = sshll.u32 [#allocation4], 4
      %s43 = int_to_ptr.vmem [resolvable:$true] %s42
      %45 = dma.hbm_to_vmem [thread:$0]  %s2, 32, %s43, [#allocation5]
    $region13: #{simple_nn_forward.1} parent=1 // pred_fallthru
      _
    // Predicated region
    $region14: #{simple_nn_forward.1} parent=1 // pred_check
      _
    $region15: #{simple_nn_forward.1} parent=1 // pred_check_branch
      %47 = sbr.rel (0) target = $region17
    $region16: #{simple_nn_forward.1} parent=1 // pred_region
      %s49 = ssub.s32 8192, 8192
      %50 = vsyncadd [#allocation5], %s49
      %s51 = sshll.u32 [#allocation6], 4
      %s52 = int_to_ptr.vmem [resolvable:$true] %s51
      %57 = dma.hbm_to_vmem [thread:$0]  %s3, 8192, %s52, [#allocation5], 256, 256, 16
    $region17: #{simple_nn_forward.1} parent=1 // pred_fallthru
      _
    // Predicated region
    $region18: #{simple_nn_forward.1} parent=1 // pred_check
      _
    $region19: #{simple_nn_forward.1} parent=1 // pred_check_branch
      %59 = sbr.rel (0) target = $region21
    $region20: #{simple_nn_forward.1} parent=1 // pred_region
      %s61 = ssub.s32 64, 64
      %62 = vsyncadd [#allocation8], %s61
      %s64 = sshll.u32 [#allocation7], 4
      %s65 = int_to_ptr.vmem [resolvable:$true] %s64
      %67 = dma.hbm_to_vmem [thread:$0]  %s4, 64, %s65, [#allocation8]
    $region21: #{simple_nn_forward.1} parent=1 // pred_fallthru
      _
    // Predicated region
    $region22: #{simple_nn_forward.1} parent=1 // pred_check
      _
    $region23: #{simple_nn_forward.1} parent=1 // pred_check_branch
      %69 = sbr.rel (0) target = $region25
    $region24: #{simple_nn_forward.1} parent=1 // pred_region
      %s71 = ssub.s32 32768, 32768
      %72 = vsyncadd [#allocation8], %s71
      %s73 = sshll.u32 [#allocation9], 4
      %s74 = int_to_ptr.vmem [resolvable:$true] %s73
      %79 = dma.hbm_to_vmem [thread:$0]  %s5, 32768, %s74, [#allocation8], 512, 512, 32
    $region25: #{simple_nn_forward.1} parent=1 // pred_fallthru
      _
    // Predicated region
    $region26: #{simple_nn_forward.1} parent=1 // pred_check
      _
    $region27: #{simple_nn_forward.1} parent=1 // pred_check_branch
      %81 = sbr.rel (0) target = $region29
    $region28: #{simple_nn_forward.1} parent=1 // pred_region
      %s83 = ssub.s32 128, 128
      %84 = vsyncadd [#allocation11], %s83
      %s86 = sshll.u32 [#allocation10], 4
      %s87 = int_to_ptr.vmem [resolvable:$true] %s86
      %89 = dma.hbm_to_vmem [thread:$0]  %s6, 128, %s87, [#allocation11]
    $region29: #{simple_nn_forward.1} parent=1 // pred_fallthru
      _
    // Predicated region
    $region30: #{simple_nn_forward.1} parent=1 // pred_check
      _
    $region31: #{simple_nn_forward.1} parent=1 // pred_check_branch
      %91 = sbr.rel (0) target = $region33
    $region32: #{simple_nn_forward.1} parent=1 // pred_region
      %s93 = ssub.s32 32768, 32768
      %94 = vsyncadd [#allocation11], %s93
      %s95 = sshll.u32 [#allocation12], 4
      %s96 = int_to_ptr.vmem [resolvable:$true] %s95
      %101 = dma.hbm_to_vmem [thread:$0]  %s7, 32768, %s96, [#allocation11], 256, 256, 16
    $region33: #{simple_nn_forward.1} parent=1 // pred_fallthru
      _
    // Predicated region
    $region34: #{simple_nn_forward.1} parent=1 // pred_check
      _
    $region35: #{simple_nn_forward.1} parent=1 // pred_check_branch
      %103 = sbr.rel (0) target = $region37
    $region36: #{simple_nn_forward.1} parent=1 // pred_region
      %s105 = ssub.s32 64, 64
      %106 = vsyncadd [#allocation14], %s105
      %s108 = sshll.u32 [#allocation13], 4
      %s109 = int_to_ptr.vmem [resolvable:$true] %s108
      %111 = dma.hbm_to_vmem [thread:$0]  %s8, 64, %s109, [#allocation14]
    $region37: #{simple_nn_forward.1} parent=1 // pred_fallthru
      _
    // Predicated region
    $region38: #{simple_nn_forward.1} parent=1 // pred_check
      _
    $region39: #{simple_nn_forward.1} parent=1 // pred_check_branch
      %113 = sbr.rel (0) target = $region41
    $region40: #{simple_nn_forward.1} parent=1 // pred_region
      %s115 = ssub.s32 4096, 4096
      %116 = vsyncadd [#allocation14], %s115
      %s117 = sshll.u32 [#allocation15], 4
      %s118 = int_to_ptr.vmem [resolvable:$true] %s117
      %123 = dma.hbm_to_vmem [thread:$0]  %s9, 4096, %s118, [#allocation14], 64, 64, 4
    $region41: #{simple_nn_forward.1} parent=1 // pred_fallthru
      _
    // Predicated region
    $region42: #{simple_nn_forward.1} parent=1 // pred_check
      _
    $region43: #{simple_nn_forward.1} parent=1 // pred_check_branch
      %125 = sbr.rel (0) target = $region45
    $region44: #{simple_nn_forward.1} parent=1 // pred_region
      %s127 = ssub.s32 16, 16
      %128 = vsyncadd [#allocation17], %s127
      %s130 = sshll.u32 [#allocation16], 4
      %s131 = int_to_ptr.vmem [resolvable:$true] %s130
      %133 = dma.hbm_to_vmem [thread:$0]  %s10, 16, %s131, [#allocation17]
    $region45: #{simple_nn_forward.1} parent=1 // pred_fallthru
      _
    // Predicated region
    $region46: #{simple_nn_forward.1} parent=1 // pred_check
      _
    $region47: #{simple_nn_forward.1} parent=1 // pred_check_branch
      %135 = sbr.rel (0) target = $region49
    $region48: #{simple_nn_forward.1} parent=1 // pred_region
      %136 = dma.done [#allocation3], 49152
    $region49: #{simple_nn_forward.1} parent=1 // pred_fallthru
      _
    // Predicated region
    $region50: #{simple_nn_forward.1} parent=1 // pred_check
      _
    $region51: #{simple_nn_forward.1} parent=1 // pred_check_branch
      %138 = sbr.rel (0) target = $region53
    $region52: #{simple_nn_forward.1} parent=1 // pred_region
      %139 = dma.done [#allocation5], 32
    $region53: #{simple_nn_forward.1} parent=1 // pred_fallthru
      _
    // Predicated region
    $region54: #{simple_nn_forward.1} parent=1 // pred_check
      _
    $region55: #{simple_nn_forward.1} parent=1 // pred_check_branch
      %141 = sbr.rel (0) target = $region57
    $region56: #{simple_nn_forward.1} parent=1 // pred_region
      %142 = dma.done [#allocation5], 8192
    $region57: #{simple_nn_forward.1} parent=1 // pred_fallthru
      _
    // Predicated region
    $region58: #{simple_nn_forward.1} parent=1 // pred_check
      _
    $region59: #{simple_nn_forward.1} parent=1 // pred_check_branch
      %144 = sbr.rel (0) target = $region61
    $region60: #{simple_nn_forward.1} parent=1 // pred_region
      %145 = dma.done [#allocation8], 64
    $region61: #{simple_nn_forward.1} parent=1 // pred_fallthru
      _
    // Predicated region
    $region62: #{simple_nn_forward.1} parent=1 // pred_check
      _
    $region63: #{simple_nn_forward.1} parent=1 // pred_check_branch
      %147 = sbr.rel (0) target = $region65
    $region64: #{simple_nn_forward.1} parent=1 // pred_region
      %148 = dma.done [#allocation8], 32768
    $region65: #{simple_nn_forward.1} parent=1 // pred_fallthru
      _
    // Predicated region
    $region66: #{simple_nn_forward.1} parent=1 // pred_check
      _
    $region67: #{simple_nn_forward.1} parent=1 // pred_check_branch
      %150 = sbr.rel (0) target = $region69
    $region68: #{simple_nn_forward.1} parent=1 // pred_region
      %151 = dma.done [#allocation11], 128
    $region69: #{simple_nn_forward.1} parent=1 // pred_fallthru
      _
    // Predicated region
    $region70: #{simple_nn_forward.1} parent=1 // pred_check
      _
    $region71: #{simple_nn_forward.1} parent=1 // pred_check_branch
      %153 = sbr.rel (0) target = $region73
    $region72: #{simple_nn_forward.1} parent=1 // pred_region
      %154 = dma.done [#allocation11], 32768
    $region73: #{simple_nn_forward.1} parent=1 // pred_fallthru
      _
    // Predicated region
    $region74: #{simple_nn_forward.1} parent=1 // pred_check
      _
    $region75: #{simple_nn_forward.1} parent=1 // pred_check_branch
      %156 = sbr.rel (0) target = $region77
    $region76: #{simple_nn_forward.1} parent=1 // pred_region
      %157 = dma.done [#allocation14], 64
    $region77: #{simple_nn_forward.1} parent=1 // pred_fallthru
      _
    // Predicated region
    $region78: #{simple_nn_forward.1} parent=1 // pred_check
      _
    $region79: #{simple_nn_forward.1} parent=1 // pred_check_branch
      %159 = sbr.rel (0) target = $region81
    $region80: #{simple_nn_forward.1} parent=1 // pred_region
      %160 = dma.done [#allocation14], 4096
    $region81: #{simple_nn_forward.1} parent=1 // pred_fallthru
      _
    // Predicated region
    $region82: #{simple_nn_forward.1} parent=1 // pred_check
      _
    $region83: #{simple_nn_forward.1} parent=1 // pred_check_branch
      %162 = sbr.rel (0) target = $region85
    $region84: #{simple_nn_forward.1} parent=1 // pred_region
      %163 = dma.done [#allocation17], 16
    $region85: #{simple_nn_forward.1} parent=1 // pred_fallthru
      _
    %v165 = vld [vmem:[%s0] sm:$0xff]
    %v166 = vld [vmem:[%s0 + $0x8] sm:$0xff]
    %v167 = vld [vmem:[%s0 + $0x10] sm:$0xff]
    %v168 = vld [vmem:[%s0 + $0x18] sm:$0xff]
    %v169 = vld [vmem:[%s0 + $0x20] sm:$0xff]
    %v170 = vld [vmem:[%s0 + $0x28] sm:$0xff]
    %v171 = vld [vmem:[%s0 + $0x30] sm:$0xff]
    %v172 = vld [vmem:[%s0 + $0x38] sm:$0xff]
    %v173 = vld [vmem:[%s0 + $0x40] sm:$0xff]
    %v174 = vld [vmem:[%s0 + $0x48] sm:$0xff]
    %v175 = vld [vmem:[%s0 + $0x50] sm:$0xff]
    %v176 = vld [vmem:[%s0 + $0x58] sm:$0xff]
    %v177 = vld [vmem:[%s0 + $0x60] sm:$0xff]
    %v178 = vld [vmem:[%s0 + $0x68] sm:$0xff]
    %v179 = vld [vmem:[%s0 + $0x70] sm:$0xff]
    %v180 = vld [vmem:[%s0 + $0x78] sm:$0xff]
    %v181 = vld [vmem:[%s0 + $0x80] sm:$0xff]
    %v182 = vld [vmem:[%s0 + $0x88] sm:$0xff]
    %v183 = vld [vmem:[%s0 + $0x90] sm:$0xff]
    %v184 = vld [vmem:[%s0 + $0x98] sm:$0xff]
    %v185 = vld [vmem:[%s0 + $0xa0] sm:$0xff]
    %v186 = vld [vmem:[%s0 + $0xa8] sm:$0xff]
    %v187 = vld [vmem:[%s0 + $0xb0] sm:$0xff]
    %v188 = vld [vmem:[%s0 + $0xb8] sm:$0xff]
    %v189 = vld [vmem:[#allocation2] sm:$0xff]
    %v190 = vld [vmem:[#allocation2 + $0x8] sm:$0xff]
    %v191 = vld [vmem:[#allocation2 + $0x10] sm:$0xff]
    %v192 = vld [vmem:[#allocation2 + $0x18] sm:$0xff]
    %v193 = vld [vmem:[#allocation2 + $0x20] sm:$0xff]
    %v194 = vld [vmem:[#allocation2 + $0x28] sm:$0xff]
    %v195 = vld [vmem:[#allocation2 + $0x30] sm:$0xff]
    %v196 = vld [vmem:[#allocation2 + $0x38] sm:$0xff]
    %v197 = vld [vmem:[#allocation2 + $0x40] sm:$0xff]
    %v198 = vld [vmem:[#allocation2 + $0x48] sm:$0xff]
    %v199 = vld [vmem:[#allocation2 + $0x50] sm:$0xff]
    %v200 = vld [vmem:[#allocation2 + $0x58] sm:$0xff]
    %v201 = vld [vmem:[#allocation2 + $0x60] sm:$0xff]
    %v202 = vld [vmem:[#allocation2 + $0x68] sm:$0xff]
    %v203 = vld [vmem:[#allocation2 + $0x70] sm:$0xff]
    %v204 = vld [vmem:[#allocation2 + $0x78] sm:$0xff]
    %v205 = vld [vmem:[#allocation2 + $0x80] sm:$0xff]
    %v206 = vld [vmem:[#allocation2 + $0x88] sm:$0xff]
    %v207 = vld [vmem:[#allocation2 + $0x90] sm:$0xff]
    %v208 = vld [vmem:[#allocation2 + $0x98] sm:$0xff]
    %v209 = vld [vmem:[#allocation2 + $0xa0] sm:$0xff]
    %v210 = vld [vmem:[#allocation2 + $0xa8] sm:$0xff]
    %v211 = vld [vmem:[#allocation2 + $0xb0] sm:$0xff]
    %v212 = vld [vmem:[#allocation2 + $0xb8] sm:$0xff]
    %v213 = vld [vmem:[#allocation2 + $0xc0] sm:$0xff]
    %v214 = vld [vmem:[#allocation2 + $0xc8] sm:$0xff]
    %v215 = vld [vmem:[#allocation2 + $0xd0] sm:$0xff]
    %v216 = vld [vmem:[#allocation2 + $0xd8] sm:$0xff]
    %v217 = vld [vmem:[#allocation2 + $0xe0] sm:$0xff]
    %v218 = vld [vmem:[#allocation2 + $0xe8] sm:$0xff]
    %v219 = vld [vmem:[#allocation2 + $0xf0] sm:$0xff]
    %v220 = vld [vmem:[#allocation2 + $0xf8] sm:$0xff]
    %v221 = vld [vmem:[#allocation2 + $0x100] sm:$0xff]
    %v222 = vld [vmem:[#allocation2 + $0x108] sm:$0xff]
    %v223 = vld [vmem:[#allocation2 + $0x110] sm:$0xff]
    %v224 = vld [vmem:[#allocation2 + $0x118] sm:$0xff]
    %v225 = vld [vmem:[#allocation2 + $0x120] sm:$0xff]
    %v226 = vld [vmem:[#allocation2 + $0x128] sm:$0xff]
    %v227 = vld [vmem:[#allocation2 + $0x130] sm:$0xff]
    %v228 = vld [vmem:[#allocation2 + $0x138] sm:$0xff]
    %v229 = vld [vmem:[#allocation2 + $0x140] sm:$0xff]
    %v230 = vld [vmem:[#allocation2 + $0x148] sm:$0xff]
    %v231 = vld [vmem:[#allocation2 + $0x150] sm:$0xff]
    %v232 = vld [vmem:[#allocation2 + $0x158] sm:$0xff]
    %v233 = vld [vmem:[#allocation2 + $0x160] sm:$0xff]
    %v234 = vld [vmem:[#allocation2 + $0x168] sm:$0xff]
    %v235 = vld [vmem:[#allocation2 + $0x170] sm:$0xff]
    %v236 = vld [vmem:[#allocation2 + $0x178] sm:$0xff]
    %v237 = vld [vmem:[#allocation2 + $0x180] sm:$0xff]
    %v238 = vld [vmem:[#allocation2 + $0x188] sm:$0xff]
    %v239 = vld [vmem:[#allocation2 + $0x190] sm:$0xff]
    %v240 = vld [vmem:[#allocation2 + $0x198] sm:$0xff]
    %v241 = vld [vmem:[#allocation2 + $0x1a0] sm:$0xff]
    %v242 = vld [vmem:[#allocation2 + $0x1a8] sm:$0xff]
    %v243 = vld [vmem:[#allocation2 + $0x1b0] sm:$0xff]
    %v244 = vld [vmem:[#allocation2 + $0x1b8] sm:$0xff]
    %v245 = vld [vmem:[#allocation2 + $0x1c0] sm:$0xff]
    %v246 = vld [vmem:[#allocation2 + $0x1c8] sm:$0xff]
    %v247 = vld [vmem:[#allocation2 + $0x1d0] sm:$0xff]
    %v248 = vld [vmem:[#allocation2 + $0x1d8] sm:$0xff]
    %v249 = vld [vmem:[#allocation2 + $0x1e0] sm:$0xff]
    %v250 = vld [vmem:[#allocation2 + $0x1e8] sm:$0xff]
    %v251 = vld [vmem:[#allocation2 + $0x1f0] sm:$0xff]
    %v252 = vld [vmem:[#allocation2 + $0x1f8] sm:$0xff]
    %v253 = vld [vmem:[#allocation2 + $0x200] sm:$0xff]
    %v254 = vld [vmem:[#allocation2 + $0x208] sm:$0xff]
    %v255 = vld [vmem:[#allocation2 + $0x210] sm:$0xff]
    %v256 = vld [vmem:[#allocation2 + $0x218] sm:$0xff]
    %v257 = vld [vmem:[#allocation2 + $0x220] sm:$0xff]
    %v258 = vld [vmem:[#allocation2 + $0x228] sm:$0xff]
    %v259 = vld [vmem:[#allocation2 + $0x230] sm:$0xff]
    %v260 = vld [vmem:[#allocation2 + $0x238] sm:$0xff]
    %v261 = vld [vmem:[#allocation2 + $0x240] sm:$0xff]
    %v262 = vld [vmem:[#allocation2 + $0x248] sm:$0xff]
    %v263 = vld [vmem:[#allocation2 + $0x250] sm:$0xff]
    %v264 = vld [vmem:[#allocation2 + $0x258] sm:$0xff]
    %v265 = vld [vmem:[#allocation2 + $0x260] sm:$0xff]
    %v266 = vld [vmem:[#allocation2 + $0x268] sm:$0xff]
    %v267 = vld [vmem:[#allocation2 + $0x270] sm:$0xff]
    %v268 = vld [vmem:[#allocation2 + $0x278] sm:$0xff]
    %v269 = vld [vmem:[#allocation2 + $0x280] sm:$0xff]
    %v270 = vld [vmem:[#allocation2 + $0x288] sm:$0xff]
    %v271 = vld [vmem:[#allocation2 + $0x290] sm:$0xff]
    %v272 = vld [vmem:[#allocation2 + $0x298] sm:$0xff]
    %v273 = vld [vmem:[#allocation2 + $0x2a0] sm:$0xff]
    %v274 = vld [vmem:[#allocation2 + $0x2a8] sm:$0xff]
    %v275 = vld [vmem:[#allocation2 + $0x2b0] sm:$0xff]
    %v276 = vld [vmem:[#allocation2 + $0x2b8] sm:$0xff]
    %v277 = vld [vmem:[#allocation2 + $0x2c0] sm:$0xff]
    %v278 = vld [vmem:[#allocation2 + $0x2c8] sm:$0xff]
    %v279 = vld [vmem:[#allocation2 + $0x2d0] sm:$0xff]
    %v280 = vld [vmem:[#allocation2 + $0x2d8] sm:$0xff]
    %v281 = vld [vmem:[#allocation2 + $0x2e0] sm:$0xff]
    %v282 = vld [vmem:[#allocation2 + $0x2e8] sm:$0xff]
    %v283 = vld [vmem:[#allocation2 + $0x2f0] sm:$0xff]
    %v284 = vld [vmem:[#allocation2 + $0x2f8] sm:$0xff]
    %v285 = vld [vmem:[#allocation2 + $0x300] sm:$0xff]
    %v286 = vld [vmem:[#allocation2 + $0x308] sm:$0xff]
    %v287 = vld [vmem:[#allocation2 + $0x310] sm:$0xff]
    %v288 = vld [vmem:[#allocation2 + $0x318] sm:$0xff]
    %v289 = vld [vmem:[#allocation2 + $0x320] sm:$0xff]
    %v290 = vld [vmem:[#allocation2 + $0x328] sm:$0xff]
    %v291 = vld [vmem:[#allocation2 + $0x330] sm:$0xff]
    %v292 = vld [vmem:[#allocation2 + $0x338] sm:$0xff]
    %v293 = vld [vmem:[#allocation2 + $0x340] sm:$0xff]
    %v294 = vld [vmem:[#allocation2 + $0x348] sm:$0xff]
    %v295 = vld [vmem:[#allocation2 + $0x350] sm:$0xff]
    %v296 = vld [vmem:[#allocation2 + $0x358] sm:$0xff]
    %v297 = vld [vmem:[#allocation2 + $0x360] sm:$0xff]
    %v298 = vld [vmem:[#allocation2 + $0x368] sm:$0xff]
    %v299 = vld [vmem:[#allocation2 + $0x370] sm:$0xff]
    %v300 = vld [vmem:[#allocation2 + $0x378] sm:$0xff]
    %v301 = vld [vmem:[#allocation2 + $0x380] sm:$0xff]
    %v302 = vld [vmem:[#allocation2 + $0x388] sm:$0xff]
    %v303 = vld [vmem:[#allocation2 + $0x390] sm:$0xff]
    %v304 = vld [vmem:[#allocation2 + $0x398] sm:$0xff]
    %v305 = vld [vmem:[#allocation2 + $0x3a0] sm:$0xff]
    %v306 = vld [vmem:[#allocation2 + $0x3a8] sm:$0xff]
    %v307 = vld [vmem:[#allocation2 + $0x3b0] sm:$0xff]
    %v308 = vld [vmem:[#allocation2 + $0x3b8] sm:$0xff]
    %v309 = vld [vmem:[#allocation2 + $0x3c0] sm:$0xff]
    %v310 = vld [vmem:[#allocation2 + $0x3c8] sm:$0xff]
    %v311 = vld [vmem:[#allocation2 + $0x3d0] sm:$0xff]
    %v312 = vld [vmem:[#allocation2 + $0x3d8] sm:$0xff]
    %v313 = vld [vmem:[#allocation2 + $0x3e0] sm:$0xff]
    %v314 = vld [vmem:[#allocation2 + $0x3e8] sm:$0xff]
    %v315 = vld [vmem:[#allocation2 + $0x3f0] sm:$0xff]
    %v316 = vld [vmem:[#allocation2 + $0x3f8] sm:$0xff]
    %v317 = vld [vmem:[#allocation2 + $0x400] sm:$0xff]
    %v318 = vld [vmem:[#allocation2 + $0x408] sm:$0xff]
    %v319 = vld [vmem:[#allocation2 + $0x410] sm:$0xff]
    %v320 = vld [vmem:[#allocation2 + $0x418] sm:$0xff]
    %v321 = vld [vmem:[#allocation2 + $0x420] sm:$0xff]
    %v322 = vld [vmem:[#allocation2 + $0x428] sm:$0xff]
    %v323 = vld [vmem:[#allocation2 + $0x430] sm:$0xff]
    %v324 = vld [vmem:[#allocation2 + $0x438] sm:$0xff]
    %v325 = vld [vmem:[#allocation2 + $0x440] sm:$0xff]
    %v326 = vld [vmem:[#allocation2 + $0x448] sm:$0xff]
    %v327 = vld [vmem:[#allocation2 + $0x450] sm:$0xff]
    %v328 = vld [vmem:[#allocation2 + $0x458] sm:$0xff]
    %v329 = vld [vmem:[#allocation2 + $0x460] sm:$0xff]
    %v330 = vld [vmem:[#allocation2 + $0x468] sm:$0xff]
    %v331 = vld [vmem:[#allocation2 + $0x470] sm:$0xff]
    %v332 = vld [vmem:[#allocation2 + $0x478] sm:$0xff]
    %v333 = vld [vmem:[#allocation2 + $0x480] sm:$0xff]
    %v334 = vld [vmem:[#allocation2 + $0x488] sm:$0xff]
    %v335 = vld [vmem:[#allocation2 + $0x490] sm:$0xff]
    %v336 = vld [vmem:[#allocation2 + $0x498] sm:$0xff]
    %v337 = vld [vmem:[#allocation2 + $0x4a0] sm:$0xff]
    %v338 = vld [vmem:[#allocation2 + $0x4a8] sm:$0xff]
    %v339 = vld [vmem:[#allocation2 + $0x4b0] sm:$0xff]
    %v340 = vld [vmem:[#allocation2 + $0x4b8] sm:$0xff]
    %v341 = vld [vmem:[#allocation2 + $0x4c0] sm:$0xff]
    %v342 = vld [vmem:[#allocation2 + $0x4c8] sm:$0xff]
    %v343 = vld [vmem:[#allocation2 + $0x4d0] sm:$0xff]
    %v344 = vld [vmem:[#allocation2 + $0x4d8] sm:$0xff]
    %v345 = vld [vmem:[#allocation2 + $0x4e0] sm:$0xff]
    %v346 = vld [vmem:[#allocation2 + $0x4e8] sm:$0xff]
    %v347 = vld [vmem:[#allocation2 + $0x4f0] sm:$0xff]
    %v348 = vld [vmem:[#allocation2 + $0x4f8] sm:$0xff]
    %v349 = vld [vmem:[#allocation2 + $0x500] sm:$0xff]
    %v350 = vld [vmem:[#allocation2 + $0x508] sm:$0xff]
    %v351 = vld [vmem:[#allocation2 + $0x510] sm:$0xff]
    %v352 = vld [vmem:[#allocation2 + $0x518] sm:$0xff]
    %v353 = vld [vmem:[#allocation2 + $0x520] sm:$0xff]
    %v354 = vld [vmem:[#allocation2 + $0x528] sm:$0xff]
    %v355 = vld [vmem:[#allocation2 + $0x530] sm:$0xff]
    %v356 = vld [vmem:[#allocation2 + $0x538] sm:$0xff]
    %v357 = vld [vmem:[#allocation2 + $0x540] sm:$0xff]
    %v358 = vld [vmem:[#allocation2 + $0x548] sm:$0xff]
    %v359 = vld [vmem:[#allocation2 + $0x550] sm:$0xff]
    %v360 = vld [vmem:[#allocation2 + $0x558] sm:$0xff]
    %v361 = vld [vmem:[#allocation2 + $0x560] sm:$0xff]
    %v362 = vld [vmem:[#allocation2 + $0x568] sm:$0xff]
    %v363 = vld [vmem:[#allocation2 + $0x570] sm:$0xff]
    %v364 = vld [vmem:[#allocation2 + $0x578] sm:$0xff]
    %v365 = vld [vmem:[#allocation2 + $0x580] sm:$0xff]
    %v366 = vld [vmem:[#allocation2 + $0x588] sm:$0xff]
    %v367 = vld [vmem:[#allocation2 + $0x590] sm:$0xff]
    %v368 = vld [vmem:[#allocation2 + $0x598] sm:$0xff]
    %v369 = vld [vmem:[#allocation2 + $0x5a0] sm:$0xff]
    %v370 = vld [vmem:[#allocation2 + $0x5a8] sm:$0xff]
    %v371 = vld [vmem:[#allocation2 + $0x5b0] sm:$0xff]
    %v372 = vld [vmem:[#allocation2 + $0x5b8] sm:$0xff]
    %v373 = vld [vmem:[#allocation2 + $0x5c0] sm:$0xff]
    %v374 = vld [vmem:[#allocation2 + $0x5c8] sm:$0xff]
    %v375 = vld [vmem:[#allocation2 + $0x5d0] sm:$0xff]
    %v376 = vld [vmem:[#allocation2 + $0x5d8] sm:$0xff]
    %v377 = vld [vmem:[#allocation2 + $0x5e0] sm:$0xff]
    %v378 = vld [vmem:[#allocation2 + $0x5e8] sm:$0xff]
    %v379 = vld [vmem:[#allocation2 + $0x5f0] sm:$0xff]
    %v380 = vld [vmem:[#allocation2 + $0x5f8] sm:$0xff]
    %v381 = vld [vmem:[#allocation2 + $0x600] sm:$0xff]
    %v382 = vld [vmem:[#allocation2 + $0x608] sm:$0xff]
    %v383 = vld [vmem:[#allocation2 + $0x610] sm:$0xff]
    %v384 = vld [vmem:[#allocation2 + $0x618] sm:$0xff]
    %v385 = vld [vmem:[#allocation2 + $0x620] sm:$0xff]
    %v386 = vld [vmem:[#allocation2 + $0x628] sm:$0xff]
    %v387 = vld [vmem:[#allocation2 + $0x630] sm:$0xff]
    %v388 = vld [vmem:[#allocation2 + $0x638] sm:$0xff]
    %v389 = vld [vmem:[#allocation2 + $0x640] sm:$0xff]
    %v390 = vld [vmem:[#allocation2 + $0x648] sm:$0xff]
    %v391 = vld [vmem:[#allocation2 + $0x650] sm:$0xff]
    %v392 = vld [vmem:[#allocation2 + $0x658] sm:$0xff]
    %v393 = vld [vmem:[#allocation2 + $0x660] sm:$0xff]
    %v394 = vld [vmem:[#allocation2 + $0x668] sm:$0xff]
    %v395 = vld [vmem:[#allocation2 + $0x670] sm:$0xff]
    %v396 = vld [vmem:[#allocation2 + $0x678] sm:$0xff]
    %v397 = vld [vmem:[#allocation2 + $0x680] sm:$0xff]
    %v398 = vld [vmem:[#allocation2 + $0x688] sm:$0xff]
    %v399 = vld [vmem:[#allocation2 + $0x690] sm:$0xff]
    %v400 = vld [vmem:[#allocation2 + $0x698] sm:$0xff]
    %v401 = vld [vmem:[#allocation2 + $0x6a0] sm:$0xff]
    %v402 = vld [vmem:[#allocation2 + $0x6a8] sm:$0xff]
    %v403 = vld [vmem:[#allocation2 + $0x6b0] sm:$0xff]
    %v404 = vld [vmem:[#allocation2 + $0x6b8] sm:$0xff]
    %v405 = vld [vmem:[#allocation2 + $0x6c0] sm:$0xff]
    %v406 = vld [vmem:[#allocation2 + $0x6c8] sm:$0xff]
    %v407 = vld [vmem:[#allocation2 + $0x6d0] sm:$0xff]
    %v408 = vld [vmem:[#allocation2 + $0x6d8] sm:$0xff]
    %v409 = vld [vmem:[#allocation2 + $0x6e0] sm:$0xff]
    %v410 = vld [vmem:[#allocation2 + $0x6e8] sm:$0xff]
    %v411 = vld [vmem:[#allocation2 + $0x6f0] sm:$0xff]
    %v412 = vld [vmem:[#allocation2 + $0x6f8] sm:$0xff]
    %v413 = vld [vmem:[#allocation2 + $0x700] sm:$0xff]
    %v414 = vld [vmem:[#allocation2 + $0x708] sm:$0xff]
    %v415 = vld [vmem:[#allocation2 + $0x710] sm:$0xff]
    %v416 = vld [vmem:[#allocation2 + $0x718] sm:$0xff]
    %v417 = vld [vmem:[#allocation2 + $0x720] sm:$0xff]
    %v418 = vld [vmem:[#allocation2 + $0x728] sm:$0xff]
    %v419 = vld [vmem:[#allocation2 + $0x730] sm:$0xff]
    %v420 = vld [vmem:[#allocation2 + $0x738] sm:$0xff]
    %v421 = vld [vmem:[#allocation2 + $0x740] sm:$0xff]
    %v422 = vld [vmem:[#allocation2 + $0x748] sm:$0xff]
    %v423 = vld [vmem:[#allocation2 + $0x750] sm:$0xff]
    %v424 = vld [vmem:[#allocation2 + $0x758] sm:$0xff]
    %v425 = vld [vmem:[#allocation2 + $0x760] sm:$0xff]
    %v426 = vld [vmem:[#allocation2 + $0x768] sm:$0xff]
    %v427 = vld [vmem:[#allocation2 + $0x770] sm:$0xff]
    %v428 = vld [vmem:[#allocation2 + $0x778] sm:$0xff]
    %v429 = vld [vmem:[#allocation2 + $0x780] sm:$0xff]
    %v430 = vld [vmem:[#allocation2 + $0x788] sm:$0xff]
    %v431 = vld [vmem:[#allocation2 + $0x790] sm:$0xff]
    %v432 = vld [vmem:[#allocation2 + $0x798] sm:$0xff]
    %v433 = vld [vmem:[#allocation2 + $0x7a0] sm:$0xff]
    %v434 = vld [vmem:[#allocation2 + $0x7a8] sm:$0xff]
    %v435 = vld [vmem:[#allocation2 + $0x7b0] sm:$0xff]
    %v436 = vld [vmem:[#allocation2 + $0x7b8] sm:$0xff]
    %v437 = vld [vmem:[#allocation2 + $0x7c0] sm:$0xff]
    %v438 = vld [vmem:[#allocation2 + $0x7c8] sm:$0xff]
    %v439 = vld [vmem:[#allocation2 + $0x7d0] sm:$0xff]
    %v440 = vld [vmem:[#allocation2 + $0x7d8] sm:$0xff]
    %v441 = vld [vmem:[#allocation2 + $0x7e0] sm:$0xff]
    %v442 = vld [vmem:[#allocation2 + $0x7e8] sm:$0xff]
    %v443 = vld [vmem:[#allocation2 + $0x7f0] sm:$0xff]
    %v444 = vld [vmem:[#allocation2 + $0x7f8] sm:$0xff]
    %v445 = vld [vmem:[#allocation2 + $0x800] sm:$0xff]
    %v446 = vld [vmem:[#allocation2 + $0x808] sm:$0xff]
    %v447 = vld [vmem:[#allocation2 + $0x810] sm:$0xff]
    %v448 = vld [vmem:[#allocation2 + $0x818] sm:$0xff]
    %v449 = vld [vmem:[#allocation2 + $0x820] sm:$0xff]
    %v450 = vld [vmem:[#allocation2 + $0x828] sm:$0xff]
    %v451 = vld [vmem:[#allocation2 + $0x830] sm:$0xff]
    %v452 = vld [vmem:[#allocation2 + $0x838] sm:$0xff]
    %v453 = vld [vmem:[#allocation2 + $0x840] sm:$0xff]
    %v454 = vld [vmem:[#allocation2 + $0x848] sm:$0xff]
    %v455 = vld [vmem:[#allocation2 + $0x850] sm:$0xff]
    %v456 = vld [vmem:[#allocation2 + $0x858] sm:$0xff]
    %v457 = vld [vmem:[#allocation2 + $0x860] sm:$0xff]
    %v458 = vld [vmem:[#allocation2 + $0x868] sm:$0xff]
    %v459 = vld [vmem:[#allocation2 + $0x870] sm:$0xff]
    %v460 = vld [vmem:[#allocation2 + $0x878] sm:$0xff]
    %v461 = vld [vmem:[#allocation2 + $0x880] sm:$0xff]
    %v462 = vld [vmem:[#allocation2 + $0x888] sm:$0xff]
    %v463 = vld [vmem:[#allocation2 + $0x890] sm:$0xff]
    %v464 = vld [vmem:[#allocation2 + $0x898] sm:$0xff]
    %v465 = vld [vmem:[#allocation2 + $0x8a0] sm:$0xff]
    %v466 = vld [vmem:[#allocation2 + $0x8a8] sm:$0xff]
    %v467 = vld [vmem:[#allocation2 + $0x8b0] sm:$0xff]
    %v468 = vld [vmem:[#allocation2 + $0x8b8] sm:$0xff]
    %v469 = vld [vmem:[#allocation2 + $0x8c0] sm:$0xff]
    %v470 = vld [vmem:[#allocation2 + $0x8c8] sm:$0xff]
    %v471 = vld [vmem:[#allocation2 + $0x8d0] sm:$0xff]
    %v472 = vld [vmem:[#allocation2 + $0x8d8] sm:$0xff]
    %v473 = vld [vmem:[#allocation2 + $0x8e0] sm:$0xff]
    %v474 = vld [vmem:[#allocation2 + $0x8e8] sm:$0xff]
    %v475 = vld [vmem:[#allocation2 + $0x8f0] sm:$0xff]
    %v476 = vld [vmem:[#allocation2 + $0x8f8] sm:$0xff]
    %v477 = vld [vmem:[#allocation2 + $0x900] sm:$0xff]
    %v478 = vld [vmem:[#allocation2 + $0x908] sm:$0xff]
    %v479 = vld [vmem:[#allocation2 + $0x910] sm:$0xff]
    %v480 = vld [vmem:[#allocation2 + $0x918] sm:$0xff]
    %v481 = vld [vmem:[#allocation2 + $0x920] sm:$0xff]
    %v482 = vld [vmem:[#allocation2 + $0x928] sm:$0xff]
    %v483 = vld [vmem:[#allocation2 + $0x930] sm:$0xff]
    %v484 = vld [vmem:[#allocation2 + $0x938] sm:$0xff]
    %v485 = vld [vmem:[#allocation2 + $0x940] sm:$0xff]
    %v486 = vld [vmem:[#allocation2 + $0x948] sm:$0xff]
    %v487 = vld [vmem:[#allocation2 + $0x950] sm:$0xff]
    %v488 = vld [vmem:[#allocation2 + $0x958] sm:$0xff]
    %v489 = vld [vmem:[#allocation2 + $0x960] sm:$0xff]
    %v490 = vld [vmem:[#allocation2 + $0x968] sm:$0xff]
    %v491 = vld [vmem:[#allocation2 + $0x970] sm:$0xff]
    %v492 = vld [vmem:[#allocation2 + $0x978] sm:$0xff]
    %v493 = vld [vmem:[#allocation2 + $0x980] sm:$0xff]
    %v494 = vld [vmem:[#allocation2 + $0x988] sm:$0xff]
    %v495 = vld [vmem:[#allocation2 + $0x990] sm:$0xff]
    %v496 = vld [vmem:[#allocation2 + $0x998] sm:$0xff]
    %v497 = vld [vmem:[#allocation2 + $0x9a0] sm:$0xff]
    %v498 = vld [vmem:[#allocation2 + $0x9a8] sm:$0xff]
    %v499 = vld [vmem:[#allocation2 + $0x9b0] sm:$0xff]
    %v500 = vld [vmem:[#allocation2 + $0x9b8] sm:$0xff]
    %v501 = vld [vmem:[#allocation2 + $0x9c0] sm:$0xff]
    %v502 = vld [vmem:[#allocation2 + $0x9c8] sm:$0xff]
    %v503 = vld [vmem:[#allocation2 + $0x9d0] sm:$0xff]
    %v504 = vld [vmem:[#allocation2 + $0x9d8] sm:$0xff]
    %v505 = vld [vmem:[#allocation2 + $0x9e0] sm:$0xff]
    %v506 = vld [vmem:[#allocation2 + $0x9e8] sm:$0xff]
    %v507 = vld [vmem:[#allocation2 + $0x9f0] sm:$0xff]
    %v508 = vld [vmem:[#allocation2 + $0x9f8] sm:$0xff]
    %v509 = vld [vmem:[#allocation2 + $0xa00] sm:$0xff]
    %v510 = vld [vmem:[#allocation2 + $0xa08] sm:$0xff]
    %v511 = vld [vmem:[#allocation2 + $0xa10] sm:$0xff]
    %v512 = vld [vmem:[#allocation2 + $0xa18] sm:$0xff]
    %v513 = vld [vmem:[#allocation2 + $0xa20] sm:$0xff]
    %v514 = vld [vmem:[#allocation2 + $0xa28] sm:$0xff]
    %v515 = vld [vmem:[#allocation2 + $0xa30] sm:$0xff]
    %v516 = vld [vmem:[#allocation2 + $0xa38] sm:$0xff]
    %v517 = vld [vmem:[#allocation2 + $0xa40] sm:$0xff]
    %v518 = vld [vmem:[#allocation2 + $0xa48] sm:$0xff]
    %v519 = vld [vmem:[#allocation2 + $0xa50] sm:$0xff]
    %v520 = vld [vmem:[#allocation2 + $0xa58] sm:$0xff]
    %v521 = vld [vmem:[#allocation2 + $0xa60] sm:$0xff]
    %v522 = vld [vmem:[#allocation2 + $0xa68] sm:$0xff]
    %v523 = vld [vmem:[#allocation2 + $0xa70] sm:$0xff]
    %v524 = vld [vmem:[#allocation2 + $0xa78] sm:$0xff]
    %v525 = vld [vmem:[#allocation2 + $0xa80] sm:$0xff]
    %v526 = vld [vmem:[#allocation2 + $0xa88] sm:$0xff]
    %v527 = vld [vmem:[#allocation2 + $0xa90] sm:$0xff]
    %v528 = vld [vmem:[#allocation2 + $0xa98] sm:$0xff]
    %v529 = vld [vmem:[#allocation2 + $0xaa0] sm:$0xff]
    %v530 = vld [vmem:[#allocation2 + $0xaa8] sm:$0xff]
    %v531 = vld [vmem:[#allocation2 + $0xab0] sm:$0xff]
    %v532 = vld [vmem:[#allocation2 + $0xab8] sm:$0xff]
    %v533 = vld [vmem:[#allocation2 + $0xac0] sm:$0xff]
    %v534 = vld [vmem:[#allocation2 + $0xac8] sm:$0xff]
    %v535 = vld [vmem:[#allocation2 + $0xad0] sm:$0xff]
    %v536 = vld [vmem:[#allocation2 + $0xad8] sm:$0xff]
    %v537 = vld [vmem:[#allocation2 + $0xae0] sm:$0xff]
    %v538 = vld [vmem:[#allocation2 + $0xae8] sm:$0xff]
    %v539 = vld [vmem:[#allocation2 + $0xaf0] sm:$0xff]
    %v540 = vld [vmem:[#allocation2 + $0xaf8] sm:$0xff]
    %v541 = vld [vmem:[#allocation2 + $0xb00] sm:$0xff]
    %v542 = vld [vmem:[#allocation2 + $0xb08] sm:$0xff]
    %v543 = vld [vmem:[#allocation2 + $0xb10] sm:$0xff]
    %v544 = vld [vmem:[#allocation2 + $0xb18] sm:$0xff]
    %v545 = vld [vmem:[#allocation2 + $0xb20] sm:$0xff]
    %v546 = vld [vmem:[#allocation2 + $0xb28] sm:$0xff]
    %v547 = vld [vmem:[#allocation2 + $0xb30] sm:$0xff]
    %v548 = vld [vmem:[#allocation2 + $0xb38] sm:$0xff]
    %v549 = vld [vmem:[#allocation2 + $0xb40] sm:$0xff]
    %v550 = vld [vmem:[#allocation2 + $0xb48] sm:$0xff]
    %v551 = vld [vmem:[#allocation2 + $0xb50] sm:$0xff]
    %v552 = vld [vmem:[#allocation2 + $0xb58] sm:$0xff]
    %v553 = vld [vmem:[#allocation2 + $0xb60] sm:$0xff]
    %v554 = vld [vmem:[#allocation2 + $0xb68] sm:$0xff]
    %v555 = vld [vmem:[#allocation2 + $0xb70] sm:$0xff]
    %v556 = vld [vmem:[#allocation2 + $0xb78] sm:$0xff]
    %v557 = vld [vmem:[#allocation2 + $0xb80] sm:$0xff]
    %v558 = vld [vmem:[#allocation2 + $0xb88] sm:$0xff]
    %v559 = vld [vmem:[#allocation2 + $0xb90] sm:$0xff]
    %v560 = vld [vmem:[#allocation2 + $0xb98] sm:$0xff]
    %v561 = vld [vmem:[#allocation2 + $0xba0] sm:$0xff]
    %v562 = vld [vmem:[#allocation2 + $0xba8] sm:$0xff]
    %v563 = vld [vmem:[#allocation2 + $0xbb0] sm:$0xff]
    %v564 = vld [vmem:[#allocation2 + $0xbb8] sm:$0xff]
    %v565 = vld [vmem:[#allocation2 + $0xbc0] sm:$0xff]
    %v566 = vld [vmem:[#allocation2 + $0xbc8] sm:$0xff]
    %v567 = vld [vmem:[#allocation2 + $0xbd0] sm:$0xff]
    %v568 = vld [vmem:[#allocation2 + $0xbd8] sm:$0xff]
    %v569 = vld [vmem:[#allocation2 + $0xbe0] sm:$0xff]
    %v570 = vld [vmem:[#allocation2 + $0xbe8] sm:$0xff]
    %v571 = vld [vmem:[#allocation2 + $0xbf0] sm:$0xff]
    %v572 = vld [vmem:[#allocation2 + $0xbf8] sm:$0xff]
    %v573 = vld [vmem:[#allocation4] sm:$0x3]
    %v575 = vlaneseq
    %v576 = vshrl.u32 %v575, 7
    %v577 = vsub.s32 0, %v576
    %v578 = vrot.slane %v573, %v577
    %v579 = vlaneseq
    %v580 = vshrl.u32 %v579, 7
    %v581 = vsub.s32 1, %v580
    %v582 = vrot.slane %v573, %v581
    %v609 = vunpack.c.l.b16 %v165
    %v610 = vunpack.c.h.b16 %v165
    %v611 = vunpack.c.l.b16 %v166
    %v612 = vunpack.c.h.b16 %v166
    %v613 = vunpack.c.l.b16 %v167
    %v614 = vunpack.c.h.b16 %v167
    %v615 = vunpack.c.l.b16 %v168
    %v616 = vunpack.c.h.b16 %v168
    %v617 = vunpack.c.l.b16 %v169
    %v618 = vunpack.c.h.b16 %v169
    %v619 = vunpack.c.l.b16 %v170
    %v620 = vunpack.c.h.b16 %v170
    %v621 = vunpack.c.l.b16 %v171
    %v622 = vunpack.c.h.b16 %v171
    %v623 = vunpack.c.l.b16 %v172
    %v624 = vunpack.c.h.b16 %v172
    %v625 = vunpack.c.l.b16 %v173
    %v626 = vunpack.c.h.b16 %v173
    %v627 = vunpack.c.l.b16 %v174
    %v628 = vunpack.c.h.b16 %v174
    %v629 = vunpack.c.l.b16 %v175
    %v630 = vunpack.c.h.b16 %v175
    %v631 = vunpack.c.l.b16 %v176
    %v632 = vunpack.c.h.b16 %v176
    %v633 = vunpack.c.l.b16 %v177
    %v634 = vunpack.c.h.b16 %v177
    %v635 = vunpack.c.l.b16 %v178
    %v636 = vunpack.c.h.b16 %v178
    %v637 = vunpack.c.l.b16 %v179
    %v638 = vunpack.c.h.b16 %v179
    %v639 = vunpack.c.l.b16 %v180
    %v640 = vunpack.c.h.b16 %v180
    %v641 = vunpack.c.l.b16 %v181
    %v642 = vunpack.c.h.b16 %v181
    %v643 = vunpack.c.l.b16 %v182
    %v644 = vunpack.c.h.b16 %v182
    %v645 = vunpack.c.l.b16 %v183
    %v646 = vunpack.c.h.b16 %v183
    %v647 = vunpack.c.l.b16 %v184
    %v648 = vunpack.c.h.b16 %v184
    %v649 = vunpack.c.l.b16 %v185
    %v650 = vunpack.c.h.b16 %v185
    %v651 = vunpack.c.l.b16 %v186
    %v652 = vunpack.c.h.b16 %v186
    %v653 = vunpack.c.l.b16 %v187
    %v654 = vunpack.c.h.b16 %v187
    %v655 = vunpack.c.l.b16 %v188
    %v656 = vunpack.c.h.b16 %v188
    %v657 = vpack.c.b16 %v633, %v609
    %v658 = vpack.c.b16 %v634, %v610
    %v659 = vpack.c.b16 %v635, %v611
    %v660 = vpack.c.b16 %v636, %v612
    %v661 = vpack.c.b16 %v637, %v613
    %v662 = vpack.c.b16 %v638, %v614
    %v663 = vpack.c.b16 %v639, %v615
    %v664 = vpack.c.b16 %v640, %v616
    %v665 = vpack.c.b16 %v641, %v617
    %v666 = vpack.c.b16 %v642, %v618
    %v667 = vpack.c.b16 %v643, %v619
    %v668 = vpack.c.b16 %v644, %v620
    %v669 = vpack.c.b16 %v645, %v621
    %v670 = vpack.c.b16 %v646, %v622
    %v671 = vpack.c.b16 %v647, %v623
    %v672 = vpack.c.b16 %v648, %v624
    %v673 = vpack.c.b16 %v649, %v625
    %v674 = vpack.c.b16 %v650, %v626
    %v675 = vpack.c.b16 %v651, %v627
    %v676 = vpack.c.b16 %v652, %v628
    %v677 = vpack.c.b16 %v653, %v629
    %v678 = vpack.c.b16 %v654, %v630
    %v679 = vpack.c.b16 %v655, %v631
    %v680 = vpack.c.b16 %v656, %v632
    %v1089 = vunpack.c.l.b16 %v189
    %v1090 = vunpack.c.h.b16 %v189
    %v1091 = vunpack.c.l.b16 %v190
    %v1092 = vunpack.c.h.b16 %v190
    %v1093 = vunpack.c.l.b16 %v191
    %v1094 = vunpack.c.h.b16 %v191
    %v1095 = vunpack.c.l.b16 %v192
    %v1096 = vunpack.c.h.b16 %v192
    %v1097 = vunpack.c.l.b16 %v193
    %v1098 = vunpack.c.h.b16 %v193
    %v1099 = vunpack.c.l.b16 %v194
    %v1100 = vunpack.c.h.b16 %v194
    %v1101 = vunpack.c.l.b16 %v195
    %v1102 = vunpack.c.h.b16 %v195
    %v1103 = vunpack.c.l.b16 %v196
    %v1104 = vunpack.c.h.b16 %v196
    %v1105 = vunpack.c.l.b16 %v197
    %v1106 = vunpack.c.h.b16 %v197
    %v1107 = vunpack.c.l.b16 %v198
    %v1108 = vunpack.c.h.b16 %v198
    %v1109 = vunpack.c.l.b16 %v199
    %v1110 = vunpack.c.h.b16 %v199
    %v1111 = vunpack.c.l.b16 %v200
    %v1112 = vunpack.c.h.b16 %v200
    %v1113 = vunpack.c.l.b16 %v201
    %v1114 = vunpack.c.h.b16 %v201
    %v1115 = vunpack.c.l.b16 %v202
    %v1116 = vunpack.c.h.b16 %v202
    %v1117 = vunpack.c.l.b16 %v203
    %v1118 = vunpack.c.h.b16 %v203
    %v1119 = vunpack.c.l.b16 %v204
    %v1120 = vunpack.c.h.b16 %v204
    %v1121 = vunpack.c.l.b16 %v205
    %v1122 = vunpack.c.h.b16 %v205
    %v1123 = vunpack.c.l.b16 %v206
    %v1124 = vunpack.c.h.b16 %v206
    %v1125 = vunpack.c.l.b16 %v207
    %v1126 = vunpack.c.h.b16 %v207
    %v1127 = vunpack.c.l.b16 %v208
    %v1128 = vunpack.c.h.b16 %v208
    %v1129 = vunpack.c.l.b16 %v209
    %v1130 = vunpack.c.h.b16 %v209
    %v1131 = vunpack.c.l.b16 %v210
    %v1132 = vunpack.c.h.b16 %v210
    %v1133 = vunpack.c.l.b16 %v211
    %v1134 = vunpack.c.h.b16 %v211
    %v1135 = vunpack.c.l.b16 %v212
    %v1136 = vunpack.c.h.b16 %v212
    %v1137 = vunpack.c.l.b16 %v213
    %v1138 = vunpack.c.h.b16 %v213
    %v1139 = vunpack.c.l.b16 %v214
    %v1140 = vunpack.c.h.b16 %v214
    %v1141 = vunpack.c.l.b16 %v215
    %v1142 = vunpack.c.h.b16 %v215
    %v1143 = vunpack.c.l.b16 %v216
    %v1144 = vunpack.c.h.b16 %v216
    %v1145 = vunpack.c.l.b16 %v217
    %v1146 = vunpack.c.h.b16 %v217
    %v1147 = vunpack.c.l.b16 %v218
    %v1148 = vunpack.c.h.b16 %v218
    %v1149 = vunpack.c.l.b16 %v219
    %v1150 = vunpack.c.h.b16 %v219
    %v1151 = vunpack.c.l.b16 %v220
    %v1152 = vunpack.c.h.b16 %v220
    %v1153 = vunpack.c.l.b16 %v221
    %v1154 = vunpack.c.h.b16 %v221
    %v1155 = vunpack.c.l.b16 %v222
    %v1156 = vunpack.c.h.b16 %v222
    %v1157 = vunpack.c.l.b16 %v223
    %v1158 = vunpack.c.h.b16 %v223
    %v1159 = vunpack.c.l.b16 %v224
    %v1160 = vunpack.c.h.b16 %v224
    %v1161 = vunpack.c.l.b16 %v225
    %v1162 = vunpack.c.h.b16 %v225
    %v1163 = vunpack.c.l.b16 %v226
    %v1164 = vunpack.c.h.b16 %v226
    %v1165 = vunpack.c.l.b16 %v227
    %v1166 = vunpack.c.h.b16 %v227
    %v1167 = vunpack.c.l.b16 %v228
    %v1168 = vunpack.c.h.b16 %v228
    %v1169 = vunpack.c.l.b16 %v229
    %v1170 = vunpack.c.h.b16 %v229
    %v1171 = vunpack.c.l.b16 %v230
    %v1172 = vunpack.c.h.b16 %v230
    %v1173 = vunpack.c.l.b16 %v231
    %v1174 = vunpack.c.h.b16 %v231
    %v1175 = vunpack.c.l.b16 %v232
    %v1176 = vunpack.c.h.b16 %v232
    %v1177 = vunpack.c.l.b16 %v233
    %v1178 = vunpack.c.h.b16 %v233
    %v1179 = vunpack.c.l.b16 %v234
    %v1180 = vunpack.c.h.b16 %v234
    %v1181 = vunpack.c.l.b16 %v235
    %v1182 = vunpack.c.h.b16 %v235
    %v1183 = vunpack.c.l.b16 %v236
    %v1184 = vunpack.c.h.b16 %v236
    %v1185 = vunpack.c.l.b16 %v237
    %v1186 = vunpack.c.h.b16 %v237
    %v1187 = vunpack.c.l.b16 %v238
    %v1188 = vunpack.c.h.b16 %v238
    %v1189 = vunpack.c.l.b16 %v239
    %v1190 = vunpack.c.h.b16 %v239
    %v1191 = vunpack.c.l.b16 %v240
    %v1192 = vunpack.c.h.b16 %v240
    %v1193 = vunpack.c.l.b16 %v241
    %v1194 = vunpack.c.h.b16 %v241
    %v1195 = vunpack.c.l.b16 %v242
    %v1196 = vunpack.c.h.b16 %v242
    %v1197 = vunpack.c.l.b16 %v243
    %v1198 = vunpack.c.h.b16 %v243
    %v1199 = vunpack.c.l.b16 %v244
    %v1200 = vunpack.c.h.b16 %v244
    %v1201 = vunpack.c.l.b16 %v245
    %v1202 = vunpack.c.h.b16 %v245
    %v1203 = vunpack.c.l.b16 %v246
    %v1204 = vunpack.c.h.b16 %v246
    %v1205 = vunpack.c.l.b16 %v247
    %v1206 = vunpack.c.h.b16 %v247
    %v1207 = vunpack.c.l.b16 %v248
    %v1208 = vunpack.c.h.b16 %v248
    %v1209 = vunpack.c.l.b16 %v249
    %v1210 = vunpack.c.h.b16 %v249
    %v1211 = vunpack.c.l.b16 %v250
    %v1212 = vunpack.c.h.b16 %v250
    %v1213 = vunpack.c.l.b16 %v251
    %v1214 = vunpack.c.h.b16 %v251
    %v1215 = vunpack.c.l.b16 %v252
    %v1216 = vunpack.c.h.b16 %v252
    %v1217 = vunpack.c.l.b16 %v253
    %v1218 = vunpack.c.h.b16 %v253
    %v1219 = vunpack.c.l.b16 %v254
    %v1220 = vunpack.c.h.b16 %v254
    %v1221 = vunpack.c.l.b16 %v255
    %v1222 = vunpack.c.h.b16 %v255
    %v1223 = vunpack.c.l.b16 %v256
    %v1224 = vunpack.c.h.b16 %v256
    %v1225 = vunpack.c.l.b16 %v257
    %v1226 = vunpack.c.h.b16 %v257
    %v1227 = vunpack.c.l.b16 %v258
    %v1228 = vunpack.c.h.b16 %v258
    %v1229 = vunpack.c.l.b16 %v259
    %v1230 = vunpack.c.h.b16 %v259
    %v1231 = vunpack.c.l.b16 %v260
    %v1232 = vunpack.c.h.b16 %v260
    %v1233 = vunpack.c.l.b16 %v261
    %v1234 = vunpack.c.h.b16 %v261
    %v1235 = vunpack.c.l.b16 %v262
    %v1236 = vunpack.c.h.b16 %v262
    %v1237 = vunpack.c.l.b16 %v263
    %v1238 = vunpack.c.h.b16 %v263
    %v1239 = vunpack.c.l.b16 %v264
    %v1240 = vunpack.c.h.b16 %v264
    %v1241 = vunpack.c.l.b16 %v265
    %v1242 = vunpack.c.h.b16 %v265
    %v1243 = vunpack.c.l.b16 %v266
    %v1244 = vunpack.c.h.b16 %v266
    %v1245 = vunpack.c.l.b16 %v267
    %v1246 = vunpack.c.h.b16 %v267
    %v1247 = vunpack.c.l.b16 %v268
    %v1248 = vunpack.c.h.b16 %v268
    %v1249 = vunpack.c.l.b16 %v269
    %v1250 = vunpack.c.h.b16 %v269
    %v1251 = vunpack.c.l.b16 %v270
    %v1252 = vunpack.c.h.b16 %v270
    %v1253 = vunpack.c.l.b16 %v271
    %v1254 = vunpack.c.h.b16 %v271
    %v1255 = vunpack.c.l.b16 %v272
    %v1256 = vunpack.c.h.b16 %v272
    %v1257 = vunpack.c.l.b16 %v273
    %v1258 = vunpack.c.h.b16 %v273
    %v1259 = vunpack.c.l.b16 %v274
    %v1260 = vunpack.c.h.b16 %v274
    %v1261 = vunpack.c.l.b16 %v275
    %v1262 = vunpack.c.h.b16 %v275
    %v1263 = vunpack.c.l.b16 %v276
    %v1264 = vunpack.c.h.b16 %v276
    %v1265 = vunpack.c.l.b16 %v277
    %v1266 = vunpack.c.h.b16 %v277
    %v1267 = vunpack.c.l.b16 %v278
    %v1268 = vunpack.c.h.b16 %v278
    %v1269 = vunpack.c.l.b16 %v279
    %v1270 = vunpack.c.h.b16 %v279
    %v1271 = vunpack.c.l.b16 %v280
    %v1272 = vunpack.c.h.b16 %v280
    %v1273 = vunpack.c.l.b16 %v281
    %v1274 = vunpack.c.h.b16 %v281
    %v1275 = vunpack.c.l.b16 %v282
    %v1276 = vunpack.c.h.b16 %v282
    %v1277 = vunpack.c.l.b16 %v283
    %v1278 = vunpack.c.h.b16 %v283
    %v1279 = vunpack.c.l.b16 %v284
    %v1280 = vunpack.c.h.b16 %v284
    %v1281 = vunpack.c.l.b16 %v285
    %v1282 = vunpack.c.h.b16 %v285
    %v1283 = vunpack.c.l.b16 %v286
    %v1284 = vunpack.c.h.b16 %v286
    %v1285 = vunpack.c.l.b16 %v287
    %v1286 = vunpack.c.h.b16 %v287
    %v1287 = vunpack.c.l.b16 %v288
    %v1288 = vunpack.c.h.b16 %v288
    %v1289 = vunpack.c.l.b16 %v289
    %v1290 = vunpack.c.h.b16 %v289
    %v1291 = vunpack.c.l.b16 %v290
    %v1292 = vunpack.c.h.b16 %v290
    %v1293 = vunpack.c.l.b16 %v291
    %v1294 = vunpack.c.h.b16 %v291
    %v1295 = vunpack.c.l.b16 %v292
    %v1296 = vunpack.c.h.b16 %v292
    %v1297 = vunpack.c.l.b16 %v293
    %v1298 = vunpack.c.h.b16 %v293
    %v1299 = vunpack.c.l.b16 %v294
    %v1300 = vunpack.c.h.b16 %v294
    %v1301 = vunpack.c.l.b16 %v295
    %v1302 = vunpack.c.h.b16 %v295
    %v1303 = vunpack.c.l.b16 %v296
    %v1304 = vunpack.c.h.b16 %v296
    %v1305 = vunpack.c.l.b16 %v297
    %v1306 = vunpack.c.h.b16 %v297
    %v1307 = vunpack.c.l.b16 %v298
    %v1308 = vunpack.c.h.b16 %v298
    %v1309 = vunpack.c.l.b16 %v299
    %v1310 = vunpack.c.h.b16 %v299
    %v1311 = vunpack.c.l.b16 %v300
    %v1312 = vunpack.c.h.b16 %v300
    %v1313 = vunpack.c.l.b16 %v301
    %v1314 = vunpack.c.h.b16 %v301
    %v1315 = vunpack.c.l.b16 %v302
    %v1316 = vunpack.c.h.b16 %v302
    %v1317 = vunpack.c.l.b16 %v303
    %v1318 = vunpack.c.h.b16 %v303
    %v1319 = vunpack.c.l.b16 %v304
    %v1320 = vunpack.c.h.b16 %v304
    %v1321 = vunpack.c.l.b16 %v305
    %v1322 = vunpack.c.h.b16 %v305
    %v1323 = vunpack.c.l.b16 %v306
    %v1324 = vunpack.c.h.b16 %v306
    %v1325 = vunpack.c.l.b16 %v307
    %v1326 = vunpack.c.h.b16 %v307
    %v1327 = vunpack.c.l.b16 %v308
    %v1328 = vunpack.c.h.b16 %v308
    %v1329 = vunpack.c.l.b16 %v309
    %v1330 = vunpack.c.h.b16 %v309
    %v1331 = vunpack.c.l.b16 %v310
    %v1332 = vunpack.c.h.b16 %v310
    %v1333 = vunpack.c.l.b16 %v311
    %v1334 = vunpack.c.h.b16 %v311
    %v1335 = vunpack.c.l.b16 %v312
    %v1336 = vunpack.c.h.b16 %v312
    %v1337 = vunpack.c.l.b16 %v313
    %v1338 = vunpack.c.h.b16 %v313
    %v1339 = vunpack.c.l.b16 %v314
    %v1340 = vunpack.c.h.b16 %v314
    %v1341 = vunpack.c.l.b16 %v315
    %v1342 = vunpack.c.h.b16 %v315
    %v1343 = vunpack.c.l.b16 %v316
    %v1344 = vunpack.c.h.b16 %v316
    %v1345 = vunpack.c.l.b16 %v317
    %v1346 = vunpack.c.h.b16 %v317
    %v1347 = vunpack.c.l.b16 %v318
    %v1348 = vunpack.c.h.b16 %v318
    %v1349 = vunpack.c.l.b16 %v319
    %v1350 = vunpack.c.h.b16 %v319
    %v1351 = vunpack.c.l.b16 %v320
    %v1352 = vunpack.c.h.b16 %v320
    %v1353 = vunpack.c.l.b16 %v321
    %v1354 = vunpack.c.h.b16 %v321
    %v1355 = vunpack.c.l.b16 %v322
    %v1356 = vunpack.c.h.b16 %v322
    %v1357 = vunpack.c.l.b16 %v323
    %v1358 = vunpack.c.h.b16 %v323
    %v1359 = vunpack.c.l.b16 %v324
    %v1360 = vunpack.c.h.b16 %v324
    %v1361 = vunpack.c.l.b16 %v325
    %v1362 = vunpack.c.h.b16 %v325
    %v1363 = vunpack.c.l.b16 %v326
    %v1364 = vunpack.c.h.b16 %v326
    %v1365 = vunpack.c.l.b16 %v327
    %v1366 = vunpack.c.h.b16 %v327
    %v1367 = vunpack.c.l.b16 %v328
    %v1368 = vunpack.c.h.b16 %v328
    %v1369 = vunpack.c.l.b16 %v329
    %v1370 = vunpack.c.h.b16 %v329
    %v1371 = vunpack.c.l.b16 %v330
    %v1372 = vunpack.c.h.b16 %v330
    %v1373 = vunpack.c.l.b16 %v331
    %v1374 = vunpack.c.h.b16 %v331
    %v1375 = vunpack.c.l.b16 %v332
    %v1376 = vunpack.c.h.b16 %v332
    %v1377 = vunpack.c.l.b16 %v333
    %v1378 = vunpack.c.h.b16 %v333
    %v1379 = vunpack.c.l.b16 %v334
    %v1380 = vunpack.c.h.b16 %v334
    %v1381 = vunpack.c.l.b16 %v335
    %v1382 = vunpack.c.h.b16 %v335
    %v1383 = vunpack.c.l.b16 %v336
    %v1384 = vunpack.c.h.b16 %v336
    %v1385 = vunpack.c.l.b16 %v337
    %v1386 = vunpack.c.h.b16 %v337
    %v1387 = vunpack.c.l.b16 %v338
    %v1388 = vunpack.c.h.b16 %v338
    %v1389 = vunpack.c.l.b16 %v339
    %v1390 = vunpack.c.h.b16 %v339
    %v1391 = vunpack.c.l.b16 %v340
    %v1392 = vunpack.c.h.b16 %v340
    %v1393 = vunpack.c.l.b16 %v341
    %v1394 = vunpack.c.h.b16 %v341
    %v1395 = vunpack.c.l.b16 %v342
    %v1396 = vunpack.c.h.b16 %v342
    %v1397 = vunpack.c.l.b16 %v343
    %v1398 = vunpack.c.h.b16 %v343
    %v1399 = vunpack.c.l.b16 %v344
    %v1400 = vunpack.c.h.b16 %v344
    %v1401 = vunpack.c.l.b16 %v345
    %v1402 = vunpack.c.h.b16 %v345
    %v1403 = vunpack.c.l.b16 %v346
    %v1404 = vunpack.c.h.b16 %v346
    %v1405 = vunpack.c.l.b16 %v347
    %v1406 = vunpack.c.h.b16 %v347
    %v1407 = vunpack.c.l.b16 %v348
    %v1408 = vunpack.c.h.b16 %v348
    %v1409 = vunpack.c.l.b16 %v349
    %v1410 = vunpack.c.h.b16 %v349
    %v1411 = vunpack.c.l.b16 %v350
    %v1412 = vunpack.c.h.b16 %v350
    %v1413 = vunpack.c.l.b16 %v351
    %v1414 = vunpack.c.h.b16 %v351
    %v1415 = vunpack.c.l.b16 %v352
    %v1416 = vunpack.c.h.b16 %v352
    %v1417 = vunpack.c.l.b16 %v353
    %v1418 = vunpack.c.h.b16 %v353
    %v1419 = vunpack.c.l.b16 %v354
    %v1420 = vunpack.c.h.b16 %v354
    %v1421 = vunpack.c.l.b16 %v355
    %v1422 = vunpack.c.h.b16 %v355
    %v1423 = vunpack.c.l.b16 %v356
    %v1424 = vunpack.c.h.b16 %v356
    %v1425 = vunpack.c.l.b16 %v357
    %v1426 = vunpack.c.h.b16 %v357
    %v1427 = vunpack.c.l.b16 %v358
    %v1428 = vunpack.c.h.b16 %v358
    %v1429 = vunpack.c.l.b16 %v359
    %v1430 = vunpack.c.h.b16 %v359
    %v1431 = vunpack.c.l.b16 %v360
    %v1432 = vunpack.c.h.b16 %v360
    %v1433 = vunpack.c.l.b16 %v361
    %v1434 = vunpack.c.h.b16 %v361
    %v1435 = vunpack.c.l.b16 %v362
    %v1436 = vunpack.c.h.b16 %v362
    %v1437 = vunpack.c.l.b16 %v363
    %v1438 = vunpack.c.h.b16 %v363
    %v1439 = vunpack.c.l.b16 %v364
    %v1440 = vunpack.c.h.b16 %v364
    %v1441 = vunpack.c.l.b16 %v365
    %v1442 = vunpack.c.h.b16 %v365
    %v1443 = vunpack.c.l.b16 %v366
    %v1444 = vunpack.c.h.b16 %v366
    %v1445 = vunpack.c.l.b16 %v367
    %v1446 = vunpack.c.h.b16 %v367
    %v1447 = vunpack.c.l.b16 %v368
    %v1448 = vunpack.c.h.b16 %v368
    %v1449 = vunpack.c.l.b16 %v369
    %v1450 = vunpack.c.h.b16 %v369
    %v1451 = vunpack.c.l.b16 %v370
    %v1452 = vunpack.c.h.b16 %v370
    %v1453 = vunpack.c.l.b16 %v371
    %v1454 = vunpack.c.h.b16 %v371
    %v1455 = vunpack.c.l.b16 %v372
    %v1456 = vunpack.c.h.b16 %v372
    %v1457 = vunpack.c.l.b16 %v373
    %v1458 = vunpack.c.h.b16 %v373
    %v1459 = vunpack.c.l.b16 %v374
    %v1460 = vunpack.c.h.b16 %v374
    %v1461 = vunpack.c.l.b16 %v375
    %v1462 = vunpack.c.h.b16 %v375
    %v1463 = vunpack.c.l.b16 %v376
    %v1464 = vunpack.c.h.b16 %v376
    %v1465 = vunpack.c.l.b16 %v377
    %v1466 = vunpack.c.h.b16 %v377
    %v1467 = vunpack.c.l.b16 %v378
    %v1468 = vunpack.c.h.b16 %v378
    %v1469 = vunpack.c.l.b16 %v379
    %v1470 = vunpack.c.h.b16 %v379
    %v1471 = vunpack.c.l.b16 %v380
    %v1472 = vunpack.c.h.b16 %v380
    %v1473 = vunpack.c.l.b16 %v381
    %v1474 = vunpack.c.h.b16 %v381
    %v1475 = vunpack.c.l.b16 %v382
    %v1476 = vunpack.c.h.b16 %v382
    %v1477 = vunpack.c.l.b16 %v383
    %v1478 = vunpack.c.h.b16 %v383
    %v1479 = vunpack.c.l.b16 %v384
    %v1480 = vunpack.c.h.b16 %v384
    %v1481 = vunpack.c.l.b16 %v385
    %v1482 = vunpack.c.h.b16 %v385
    %v1483 = vunpack.c.l.b16 %v386
    %v1484 = vunpack.c.h.b16 %v386
    %v1485 = vunpack.c.l.b16 %v387
    %v1486 = vunpack.c.h.b16 %v387
    %v1487 = vunpack.c.l.b16 %v388
    %v1488 = vunpack.c.h.b16 %v388
    %v1489 = vunpack.c.l.b16 %v389
    %v1490 = vunpack.c.h.b16 %v389
    %v1491 = vunpack.c.l.b16 %v390
    %v1492 = vunpack.c.h.b16 %v390
    %v1493 = vunpack.c.l.b16 %v391
    %v1494 = vunpack.c.h.b16 %v391
    %v1495 = vunpack.c.l.b16 %v392
    %v1496 = vunpack.c.h.b16 %v392
    %v1497 = vunpack.c.l.b16 %v393
    %v1498 = vunpack.c.h.b16 %v393
    %v1499 = vunpack.c.l.b16 %v394
    %v1500 = vunpack.c.h.b16 %v394
    %v1501 = vunpack.c.l.b16 %v395
    %v1502 = vunpack.c.h.b16 %v395
    %v1503 = vunpack.c.l.b16 %v396
    %v1504 = vunpack.c.h.b16 %v396
    %v1505 = vunpack.c.l.b16 %v397
    %v1506 = vunpack.c.h.b16 %v397
    %v1507 = vunpack.c.l.b16 %v398
    %v1508 = vunpack.c.h.b16 %v398
    %v1509 = vunpack.c.l.b16 %v399
    %v1510 = vunpack.c.h.b16 %v399
    %v1511 = vunpack.c.l.b16 %v400
    %v1512 = vunpack.c.h.b16 %v400
    %v1513 = vunpack.c.l.b16 %v401
    %v1514 = vunpack.c.h.b16 %v401
    %v1515 = vunpack.c.l.b16 %v402
    %v1516 = vunpack.c.h.b16 %v402
    %v1517 = vunpack.c.l.b16 %v403
    %v1518 = vunpack.c.h.b16 %v403
    %v1519 = vunpack.c.l.b16 %v404
    %v1520 = vunpack.c.h.b16 %v404
    %v1521 = vunpack.c.l.b16 %v405
    %v1522 = vunpack.c.h.b16 %v405
    %v1523 = vunpack.c.l.b16 %v406
    %v1524 = vunpack.c.h.b16 %v406
    %v1525 = vunpack.c.l.b16 %v407
    %v1526 = vunpack.c.h.b16 %v407
    %v1527 = vunpack.c.l.b16 %v408
    %v1528 = vunpack.c.h.b16 %v408
    %v1529 = vunpack.c.l.b16 %v409
    %v1530 = vunpack.c.h.b16 %v409
    %v1531 = vunpack.c.l.b16 %v410
    %v1532 = vunpack.c.h.b16 %v410
    %v1533 = vunpack.c.l.b16 %v411
    %v1534 = vunpack.c.h.b16 %v411
    %v1535 = vunpack.c.l.b16 %v412
    %v1536 = vunpack.c.h.b16 %v412
    %v1537 = vunpack.c.l.b16 %v413
    %v1538 = vunpack.c.h.b16 %v413
    %v1539 = vunpack.c.l.b16 %v414
    %v1540 = vunpack.c.h.b16 %v414
    %v1541 = vunpack.c.l.b16 %v415
    %v1542 = vunpack.c.h.b16 %v415
    %v1543 = vunpack.c.l.b16 %v416
    %v1544 = vunpack.c.h.b16 %v416
    %v1545 = vunpack.c.l.b16 %v417
    %v1546 = vunpack.c.h.b16 %v417
    %v1547 = vunpack.c.l.b16 %v418
    %v1548 = vunpack.c.h.b16 %v418
    %v1549 = vunpack.c.l.b16 %v419
    %v1550 = vunpack.c.h.b16 %v419
    %v1551 = vunpack.c.l.b16 %v420
    %v1552 = vunpack.c.h.b16 %v420
    %v1553 = vunpack.c.l.b16 %v421
    %v1554 = vunpack.c.h.b16 %v421
    %v1555 = vunpack.c.l.b16 %v422
    %v1556 = vunpack.c.h.b16 %v422
    %v1557 = vunpack.c.l.b16 %v423
    %v1558 = vunpack.c.h.b16 %v423
    %v1559 = vunpack.c.l.b16 %v424
    %v1560 = vunpack.c.h.b16 %v424
    %v1561 = vunpack.c.l.b16 %v425
    %v1562 = vunpack.c.h.b16 %v425
    %v1563 = vunpack.c.l.b16 %v426
    %v1564 = vunpack.c.h.b16 %v426
    %v1565 = vunpack.c.l.b16 %v427
    %v1566 = vunpack.c.h.b16 %v427
    %v1567 = vunpack.c.l.b16 %v428
    %v1568 = vunpack.c.h.b16 %v428
    %v1569 = vunpack.c.l.b16 %v429
    %v1570 = vunpack.c.h.b16 %v429
    %v1571 = vunpack.c.l.b16 %v430
    %v1572 = vunpack.c.h.b16 %v430
    %v1573 = vunpack.c.l.b16 %v431
    %v1574 = vunpack.c.h.b16 %v431
    %v1575 = vunpack.c.l.b16 %v432
    %v1576 = vunpack.c.h.b16 %v432
    %v1577 = vunpack.c.l.b16 %v433
    %v1578 = vunpack.c.h.b16 %v433
    %v1579 = vunpack.c.l.b16 %v434
    %v1580 = vunpack.c.h.b16 %v434
    %v1581 = vunpack.c.l.b16 %v435
    %v1582 = vunpack.c.h.b16 %v435
    %v1583 = vunpack.c.l.b16 %v436
    %v1584 = vunpack.c.h.b16 %v436
    %v1585 = vunpack.c.l.b16 %v437
    %v1586 = vunpack.c.h.b16 %v437
    %v1587 = vunpack.c.l.b16 %v438
    %v1588 = vunpack.c.h.b16 %v438
    %v1589 = vunpack.c.l.b16 %v439
    %v1590 = vunpack.c.h.b16 %v439
    %v1591 = vunpack.c.l.b16 %v440
    %v1592 = vunpack.c.h.b16 %v440
    %v1593 = vunpack.c.l.b16 %v441
    %v1594 = vunpack.c.h.b16 %v441
    %v1595 = vunpack.c.l.b16 %v442
    %v1596 = vunpack.c.h.b16 %v442
    %v1597 = vunpack.c.l.b16 %v443
    %v1598 = vunpack.c.h.b16 %v443
    %v1599 = vunpack.c.l.b16 %v444
    %v1600 = vunpack.c.h.b16 %v444
    %v1601 = vunpack.c.l.b16 %v445
    %v1602 = vunpack.c.h.b16 %v445
    %v1603 = vunpack.c.l.b16 %v446
    %v1604 = vunpack.c.h.b16 %v446
    %v1605 = vunpack.c.l.b16 %v447
    %v1606 = vunpack.c.h.b16 %v447
    %v1607 = vunpack.c.l.b16 %v448
    %v1608 = vunpack.c.h.b16 %v448
    %v1609 = vunpack.c.l.b16 %v449
    %v1610 = vunpack.c.h.b16 %v449
    %v1611 = vunpack.c.l.b16 %v450
    %v1612 = vunpack.c.h.b16 %v450
    %v1613 = vunpack.c.l.b16 %v451
    %v1614 = vunpack.c.h.b16 %v451
    %v1615 = vunpack.c.l.b16 %v452
    %v1616 = vunpack.c.h.b16 %v452
    %v1617 = vunpack.c.l.b16 %v453
    %v1618 = vunpack.c.h.b16 %v453
    %v1619 = vunpack.c.l.b16 %v454
    %v1620 = vunpack.c.h.b16 %v454
    %v1621 = vunpack.c.l.b16 %v455
    %v1622 = vunpack.c.h.b16 %v455
    %v1623 = vunpack.c.l.b16 %v456
    %v1624 = vunpack.c.h.b16 %v456
    %v1625 = vunpack.c.l.b16 %v457
    %v1626 = vunpack.c.h.b16 %v457
    %v1627 = vunpack.c.l.b16 %v458
    %v1628 = vunpack.c.h.b16 %v458
    %v1629 = vunpack.c.l.b16 %v459
    %v1630 = vunpack.c.h.b16 %v459
    %v1631 = vunpack.c.l.b16 %v460
    %v1632 = vunpack.c.h.b16 %v460
    %v1633 = vunpack.c.l.b16 %v461
    %v1634 = vunpack.c.h.b16 %v461
    %v1635 = vunpack.c.l.b16 %v462
    %v1636 = vunpack.c.h.b16 %v462
    %v1637 = vunpack.c.l.b16 %v463
    %v1638 = vunpack.c.h.b16 %v463
    %v1639 = vunpack.c.l.b16 %v464
    %v1640 = vunpack.c.h.b16 %v464
    %v1641 = vunpack.c.l.b16 %v465
    %v1642 = vunpack.c.h.b16 %v465
    %v1643 = vunpack.c.l.b16 %v466
    %v1644 = vunpack.c.h.b16 %v466
    %v1645 = vunpack.c.l.b16 %v467
    %v1646 = vunpack.c.h.b16 %v467
    %v1647 = vunpack.c.l.b16 %v468
    %v1648 = vunpack.c.h.b16 %v468
    %v1649 = vunpack.c.l.b16 %v469
    %v1650 = vunpack.c.h.b16 %v469
    %v1651 = vunpack.c.l.b16 %v470
    %v1652 = vunpack.c.h.b16 %v470
    %v1653 = vunpack.c.l.b16 %v471
    %v1654 = vunpack.c.h.b16 %v471
    %v1655 = vunpack.c.l.b16 %v472
    %v1656 = vunpack.c.h.b16 %v472
    %v1657 = vunpack.c.l.b16 %v473
    %v1658 = vunpack.c.h.b16 %v473
    %v1659 = vunpack.c.l.b16 %v474
    %v1660 = vunpack.c.h.b16 %v474
    %v1661 = vunpack.c.l.b16 %v475
    %v1662 = vunpack.c.h.b16 %v475
    %v1663 = vunpack.c.l.b16 %v476
    %v1664 = vunpack.c.h.b16 %v476
    %v1665 = vunpack.c.l.b16 %v477
    %v1666 = vunpack.c.h.b16 %v477
    %v1667 = vunpack.c.l.b16 %v478
    %v1668 = vunpack.c.h.b16 %v478
    %v1669 = vunpack.c.l.b16 %v479
    %v1670 = vunpack.c.h.b16 %v479
    %v1671 = vunpack.c.l.b16 %v480
    %v1672 = vunpack.c.h.b16 %v480
    %v1673 = vunpack.c.l.b16 %v481
    %v1674 = vunpack.c.h.b16 %v481
    %v1675 = vunpack.c.l.b16 %v482
    %v1676 = vunpack.c.h.b16 %v482
    %v1677 = vunpack.c.l.b16 %v483
    %v1678 = vunpack.c.h.b16 %v483
    %v1679 = vunpack.c.l.b16 %v484
    %v1680 = vunpack.c.h.b16 %v484
    %v1681 = vunpack.c.l.b16 %v485
    %v1682 = vunpack.c.h.b16 %v485
    %v1683 = vunpack.c.l.b16 %v486
    %v1684 = vunpack.c.h.b16 %v486
    %v1685 = vunpack.c.l.b16 %v487
    %v1686 = vunpack.c.h.b16 %v487
    %v1687 = vunpack.c.l.b16 %v488
    %v1688 = vunpack.c.h.b16 %v488
    %v1689 = vunpack.c.l.b16 %v489
    %v1690 = vunpack.c.h.b16 %v489
    %v1691 = vunpack.c.l.b16 %v490
    %v1692 = vunpack.c.h.b16 %v490
    %v1693 = vunpack.c.l.b16 %v491
    %v1694 = vunpack.c.h.b16 %v491
    %v1695 = vunpack.c.l.b16 %v492
    %v1696 = vunpack.c.h.b16 %v492
    %v1697 = vunpack.c.l.b16 %v493
    %v1698 = vunpack.c.h.b16 %v493
    %v1699 = vunpack.c.l.b16 %v494
    %v1700 = vunpack.c.h.b16 %v494
    %v1701 = vunpack.c.l.b16 %v495
    %v1702 = vunpack.c.h.b16 %v495
    %v1703 = vunpack.c.l.b16 %v496
    %v1704 = vunpack.c.h.b16 %v496
    %v1705 = vunpack.c.l.b16 %v497
    %v1706 = vunpack.c.h.b16 %v497
    %v1707 = vunpack.c.l.b16 %v498
    %v1708 = vunpack.c.h.b16 %v498
    %v1709 = vunpack.c.l.b16 %v499
    %v1710 = vunpack.c.h.b16 %v499
    %v1711 = vunpack.c.l.b16 %v500
    %v1712 = vunpack.c.h.b16 %v500
    %v1713 = vunpack.c.l.b16 %v501
    %v1714 = vunpack.c.h.b16 %v501
    %v1715 = vunpack.c.l.b16 %v502
    %v1716 = vunpack.c.h.b16 %v502
    %v1717 = vunpack.c.l.b16 %v503
    %v1718 = vunpack.c.h.b16 %v503
    %v1719 = vunpack.c.l.b16 %v504
    %v1720 = vunpack.c.h.b16 %v504
    %v1721 = vunpack.c.l.b16 %v505
    %v1722 = vunpack.c.h.b16 %v505
    %v1723 = vunpack.c.l.b16 %v506
    %v1724 = vunpack.c.h.b16 %v506
    %v1725 = vunpack.c.l.b16 %v507
    %v1726 = vunpack.c.h.b16 %v507
    %v1727 = vunpack.c.l.b16 %v508
    %v1728 = vunpack.c.h.b16 %v508
    %v1729 = vunpack.c.l.b16 %v509
    %v1730 = vunpack.c.h.b16 %v509
    %v1731 = vunpack.c.l.b16 %v510
    %v1732 = vunpack.c.h.b16 %v510
    %v1733 = vunpack.c.l.b16 %v511
    %v1734 = vunpack.c.h.b16 %v511
    %v1735 = vunpack.c.l.b16 %v512
    %v1736 = vunpack.c.h.b16 %v512
    %v1737 = vunpack.c.l.b16 %v513
    %v1738 = vunpack.c.h.b16 %v513
    %v1739 = vunpack.c.l.b16 %v514
    %v1740 = vunpack.c.h.b16 %v514
    %v1741 = vunpack.c.l.b16 %v515
    %v1742 = vunpack.c.h.b16 %v515
    %v1743 = vunpack.c.l.b16 %v516
    %v1744 = vunpack.c.h.b16 %v516
    %v1745 = vunpack.c.l.b16 %v517
    %v1746 = vunpack.c.h.b16 %v517
    %v1747 = vunpack.c.l.b16 %v518
    %v1748 = vunpack.c.h.b16 %v518
    %v1749 = vunpack.c.l.b16 %v519
    %v1750 = vunpack.c.h.b16 %v519
    %v1751 = vunpack.c.l.b16 %v520
    %v1752 = vunpack.c.h.b16 %v520
    %v1753 = vunpack.c.l.b16 %v521
    %v1754 = vunpack.c.h.b16 %v521
    %v1755 = vunpack.c.l.b16 %v522
    %v1756 = vunpack.c.h.b16 %v522
    %v1757 = vunpack.c.l.b16 %v523
    %v1758 = vunpack.c.h.b16 %v523
    %v1759 = vunpack.c.l.b16 %v524
    %v1760 = vunpack.c.h.b16 %v524
    %v1761 = vunpack.c.l.b16 %v525
    %v1762 = vunpack.c.h.b16 %v525
    %v1763 = vunpack.c.l.b16 %v526
    %v1764 = vunpack.c.h.b16 %v526
    %v1765 = vunpack.c.l.b16 %v527
    %v1766 = vunpack.c.h.b16 %v527
    %v1767 = vunpack.c.l.b16 %v528
    %v1768 = vunpack.c.h.b16 %v528
    %v1769 = vunpack.c.l.b16 %v529
    %v1770 = vunpack.c.h.b16 %v529
    %v1771 = vunpack.c.l.b16 %v530
    %v1772 = vunpack.c.h.b16 %v530
    %v1773 = vunpack.c.l.b16 %v531
    %v1774 = vunpack.c.h.b16 %v531
    %v1775 = vunpack.c.l.b16 %v532
    %v1776 = vunpack.c.h.b16 %v532
    %v1777 = vunpack.c.l.b16 %v533
    %v1778 = vunpack.c.h.b16 %v533
    %v1779 = vunpack.c.l.b16 %v534
    %v1780 = vunpack.c.h.b16 %v534
    %v1781 = vunpack.c.l.b16 %v535
    %v1782 = vunpack.c.h.b16 %v535
    %v1783 = vunpack.c.l.b16 %v536
    %v1784 = vunpack.c.h.b16 %v536
    %v1785 = vunpack.c.l.b16 %v537
    %v1786 = vunpack.c.h.b16 %v537
    %v1787 = vunpack.c.l.b16 %v538
    %v1788 = vunpack.c.h.b16 %v538
    %v1789 = vunpack.c.l.b16 %v539
    %v1790 = vunpack.c.h.b16 %v539
    %v1791 = vunpack.c.l.b16 %v540
    %v1792 = vunpack.c.h.b16 %v540
    %v1793 = vunpack.c.l.b16 %v541
    %v1794 = vunpack.c.h.b16 %v541
    %v1795 = vunpack.c.l.b16 %v542
    %v1796 = vunpack.c.h.b16 %v542
    %v1797 = vunpack.c.l.b16 %v543
    %v1798 = vunpack.c.h.b16 %v543
    %v1799 = vunpack.c.l.b16 %v544
    %v1800 = vunpack.c.h.b16 %v544
    %v1801 = vunpack.c.l.b16 %v545
    %v1802 = vunpack.c.h.b16 %v545
    %v1803 = vunpack.c.l.b16 %v546
    %v1804 = vunpack.c.h.b16 %v546
    %v1805 = vunpack.c.l.b16 %v547
    %v1806 = vunpack.c.h.b16 %v547
    %v1807 = vunpack.c.l.b16 %v548
    %v1808 = vunpack.c.h.b16 %v548
    %v1809 = vunpack.c.l.b16 %v549
    %v1810 = vunpack.c.h.b16 %v549
    %v1811 = vunpack.c.l.b16 %v550
    %v1812 = vunpack.c.h.b16 %v550
    %v1813 = vunpack.c.l.b16 %v551
    %v1814 = vunpack.c.h.b16 %v551
    %v1815 = vunpack.c.l.b16 %v552
    %v1816 = vunpack.c.h.b16 %v552
    %v1817 = vunpack.c.l.b16 %v553
    %v1818 = vunpack.c.h.b16 %v553
    %v1819 = vunpack.c.l.b16 %v554
    %v1820 = vunpack.c.h.b16 %v554
    %v1821 = vunpack.c.l.b16 %v555
    %v1822 = vunpack.c.h.b16 %v555
    %v1823 = vunpack.c.l.b16 %v556
    %v1824 = vunpack.c.h.b16 %v556
    %v1825 = vunpack.c.l.b16 %v557
    %v1826 = vunpack.c.h.b16 %v557
    %v1827 = vunpack.c.l.b16 %v558
    %v1828 = vunpack.c.h.b16 %v558
    %v1829 = vunpack.c.l.b16 %v559
    %v1830 = vunpack.c.h.b16 %v559
    %v1831 = vunpack.c.l.b16 %v560
    %v1832 = vunpack.c.h.b16 %v560
    %v1833 = vunpack.c.l.b16 %v561
    %v1834 = vunpack.c.h.b16 %v561
    %v1835 = vunpack.c.l.b16 %v562
    %v1836 = vunpack.c.h.b16 %v562
    %v1837 = vunpack.c.l.b16 %v563
    %v1838 = vunpack.c.h.b16 %v563
    %v1839 = vunpack.c.l.b16 %v564
    %v1840 = vunpack.c.h.b16 %v564
    %v1841 = vunpack.c.l.b16 %v565
    %v1842 = vunpack.c.h.b16 %v565
    %v1843 = vunpack.c.l.b16 %v566
    %v1844 = vunpack.c.h.b16 %v566
    %v1845 = vunpack.c.l.b16 %v567
    %v1846 = vunpack.c.h.b16 %v567
    %v1847 = vunpack.c.l.b16 %v568
    %v1848 = vunpack.c.h.b16 %v568
    %v1849 = vunpack.c.l.b16 %v569
    %v1850 = vunpack.c.h.b16 %v569
    %v1851 = vunpack.c.l.b16 %v570
    %v1852 = vunpack.c.h.b16 %v570
    %v1853 = vunpack.c.l.b16 %v571
    %v1854 = vunpack.c.h.b16 %v571
    %v1855 = vunpack.c.l.b16 %v572
    %v1856 = vunpack.c.h.b16 %v572
    %v1857 = vpack.c.b16 %v1091, %v1089
    %v1858 = vpack.c.b16 %v1092, %v1090
    %v1859 = vpack.c.b16 %v1095, %v1093
    %v1860 = vpack.c.b16 %v1096, %v1094
    %v1861 = vpack.c.b16 %v1099, %v1097
    %v1862 = vpack.c.b16 %v1100, %v1098
    %v1863 = vpack.c.b16 %v1103, %v1101
    %v1864 = vpack.c.b16 %v1104, %v1102
    %v1865 = vpack.c.b16 %v1107, %v1105
    %v1866 = vpack.c.b16 %v1108, %v1106
    %v1867 = vpack.c.b16 %v1111, %v1109
    %v1868 = vpack.c.b16 %v1112, %v1110
    %v1869 = vpack.c.b16 %v1115, %v1113
    %v1870 = vpack.c.b16 %v1116, %v1114
    %v1871 = vpack.c.b16 %v1119, %v1117
    %v1872 = vpack.c.b16 %v1120, %v1118
    %v1873 = vpack.c.b16 %v1123, %v1121
    %v1874 = vpack.c.b16 %v1124, %v1122
    %v1875 = vpack.c.b16 %v1127, %v1125
    %v1876 = vpack.c.b16 %v1128, %v1126
    %v1877 = vpack.c.b16 %v1131, %v1129
    %v1878 = vpack.c.b16 %v1132, %v1130
    %v1879 = vpack.c.b16 %v1135, %v1133
    %v1880 = vpack.c.b16 %v1136, %v1134
    %v1881 = vpack.c.b16 %v1139, %v1137
    %v1882 = vpack.c.b16 %v1140, %v1138
    %v1883 = vpack.c.b16 %v1143, %v1141
    %v1884 = vpack.c.b16 %v1144, %v1142
    %v1885 = vpack.c.b16 %v1147, %v1145
    %v1886 = vpack.c.b16 %v1148, %v1146
    %v1887 = vpack.c.b16 %v1151, %v1149
    %v1888 = vpack.c.b16 %v1152, %v1150
    %v1889 = vpack.c.b16 %v1155, %v1153
    %v1890 = vpack.c.b16 %v1156, %v1154
    %v1891 = vpack.c.b16 %v1159, %v1157
    %v1892 = vpack.c.b16 %v1160, %v1158
    %v1893 = vpack.c.b16 %v1163, %v1161
    %v1894 = vpack.c.b16 %v1164, %v1162
    %v1895 = vpack.c.b16 %v1167, %v1165
    %v1896 = vpack.c.b16 %v1168, %v1166
    %v1897 = vpack.c.b16 %v1171, %v1169
    %v1898 = vpack.c.b16 %v1172, %v1170
    %v1899 = vpack.c.b16 %v1175, %v1173
    %v1900 = vpack.c.b16 %v1176, %v1174
    %v1901 = vpack.c.b16 %v1179, %v1177
    %v1902 = vpack.c.b16 %v1180, %v1178
    %v1903 = vpack.c.b16 %v1183, %v1181
    %v1904 = vpack.c.b16 %v1184, %v1182
    %v1905 = vpack.c.b16 %v1187, %v1185
    %v1906 = vpack.c.b16 %v1188, %v1186
    %v1907 = vpack.c.b16 %v1191, %v1189
    %v1908 = vpack.c.b16 %v1192, %v1190
    %v1909 = vpack.c.b16 %v1195, %v1193
    %v1910 = vpack.c.b16 %v1196, %v1194
    %v1911 = vpack.c.b16 %v1199, %v1197
    %v1912 = vpack.c.b16 %v1200, %v1198
    %v1913 = vpack.c.b16 %v1203, %v1201
    %v1914 = vpack.c.b16 %v1204, %v1202
    %v1915 = vpack.c.b16 %v1207, %v1205
    %v1916 = vpack.c.b16 %v1208, %v1206
    %v1917 = vpack.c.b16 %v1211, %v1209
    %v1918 = vpack.c.b16 %v1212, %v1210
    %v1919 = vpack.c.b16 %v1215, %v1213
    %v1920 = vpack.c.b16 %v1216, %v1214
    %v1921 = vpack.c.b16 %v1219, %v1217
    %v1922 = vpack.c.b16 %v1220, %v1218
    %v1923 = vpack.c.b16 %v1223, %v1221
    %v1924 = vpack.c.b16 %v1224, %v1222
    %v1925 = vpack.c.b16 %v1227, %v1225
    %v1926 = vpack.c.b16 %v1228, %v1226
    %v1927 = vpack.c.b16 %v1231, %v1229
    %v1928 = vpack.c.b16 %v1232, %v1230
    %v1929 = vpack.c.b16 %v1235, %v1233
    %v1930 = vpack.c.b16 %v1236, %v1234
    %v1931 = vpack.c.b16 %v1239, %v1237
    %v1932 = vpack.c.b16 %v1240, %v1238
    %v1933 = vpack.c.b16 %v1243, %v1241
    %v1934 = vpack.c.b16 %v1244, %v1242
    %v1935 = vpack.c.b16 %v1247, %v1245
    %v1936 = vpack.c.b16 %v1248, %v1246
    %v1937 = vpack.c.b16 %v1251, %v1249
    %v1938 = vpack.c.b16 %v1252, %v1250
    %v1939 = vpack.c.b16 %v1255, %v1253
    %v1940 = vpack.c.b16 %v1256, %v1254
    %v1941 = vpack.c.b16 %v1259, %v1257
    %v1942 = vpack.c.b16 %v1260, %v1258
    %v1943 = vpack.c.b16 %v1263, %v1261
    %v1944 = vpack.c.b16 %v1264, %v1262
    %v1945 = vpack.c.b16 %v1267, %v1265
    %v1946 = vpack.c.b16 %v1268, %v1266
    %v1947 = vpack.c.b16 %v1271, %v1269
    %v1948 = vpack.c.b16 %v1272, %v1270
    %v1949 = vpack.c.b16 %v1275, %v1273
    %v1950 = vpack.c.b16 %v1276, %v1274
    %v1951 = vpack.c.b16 %v1279, %v1277
    %v1952 = vpack.c.b16 %v1280, %v1278
    %v1953 = vpack.c.b16 %v1283, %v1281
    %v1954 = vpack.c.b16 %v1284, %v1282
    %v1955 = vpack.c.b16 %v1287, %v1285
    %v1956 = vpack.c.b16 %v1288, %v1286
    %v1957 = vpack.c.b16 %v1291, %v1289
    %v1958 = vpack.c.b16 %v1292, %v1290
    %v1959 = vpack.c.b16 %v1295, %v1293
    %v1960 = vpack.c.b16 %v1296, %v1294
    %v1961 = vpack.c.b16 %v1299, %v1297
    %v1962 = vpack.c.b16 %v1300, %v1298
    %v1963 = vpack.c.b16 %v1303, %v1301
    %v1964 = vpack.c.b16 %v1304, %v1302
    %v1965 = vpack.c.b16 %v1307, %v1305
    %v1966 = vpack.c.b16 %v1308, %v1306
    %v1967 = vpack.c.b16 %v1311, %v1309
    %v1968 = vpack.c.b16 %v1312, %v1310
    %v1969 = vpack.c.b16 %v1315, %v1313
    %v1970 = vpack.c.b16 %v1316, %v1314
    %v1971 = vpack.c.b16 %v1319, %v1317
    %v1972 = vpack.c.b16 %v1320, %v1318
    %v1973 = vpack.c.b16 %v1323, %v1321
    %v1974 = vpack.c.b16 %v1324, %v1322
    %v1975 = vpack.c.b16 %v1327, %v1325
    %v1976 = vpack.c.b16 %v1328, %v1326
    %v1977 = vpack.c.b16 %v1331, %v1329
    %v1978 = vpack.c.b16 %v1332, %v1330
    %v1979 = vpack.c.b16 %v1335, %v1333
    %v1980 = vpack.c.b16 %v1336, %v1334
    %v1981 = vpack.c.b16 %v1339, %v1337
    %v1982 = vpack.c.b16 %v1340, %v1338
    %v1983 = vpack.c.b16 %v1343, %v1341
    %v1984 = vpack.c.b16 %v1344, %v1342
    %v1985 = vpack.c.b16 %v1347, %v1345
    %v1986 = vpack.c.b16 %v1348, %v1346
    %v1987 = vpack.c.b16 %v1351, %v1349
    %v1988 = vpack.c.b16 %v1352, %v1350
    %v1989 = vpack.c.b16 %v1355, %v1353
    %v1990 = vpack.c.b16 %v1356, %v1354
    %v1991 = vpack.c.b16 %v1359, %v1357
    %v1992 = vpack.c.b16 %v1360, %v1358
    %v1993 = vpack.c.b16 %v1363, %v1361
    %v1994 = vpack.c.b16 %v1364, %v1362
    %v1995 = vpack.c.b16 %v1367, %v1365
    %v1996 = vpack.c.b16 %v1368, %v1366
    %v1997 = vpack.c.b16 %v1371, %v1369
    %v1998 = vpack.c.b16 %v1372, %v1370
    %v1999 = vpack.c.b16 %v1375, %v1373
    %v2000 = vpack.c.b16 %v1376, %v1374
    %v2001 = vpack.c.b16 %v1379, %v1377
    %v2002 = vpack.c.b16 %v1380, %v1378
    %v2003 = vpack.c.b16 %v1383, %v1381
    %v2004 = vpack.c.b16 %v1384, %v1382
    %v2005 = vpack.c.b16 %v1387, %v1385
    %v2006 = vpack.c.b16 %v1388, %v1386
    %v2007 = vpack.c.b16 %v1391, %v1389
    %v2008 = vpack.c.b16 %v1392, %v1390
    %v2009 = vpack.c.b16 %v1395, %v1393
    %v2010 = vpack.c.b16 %v1396, %v1394
    %v2011 = vpack.c.b16 %v1399, %v1397
    %v2012 = vpack.c.b16 %v1400, %v1398
    %v2013 = vpack.c.b16 %v1403, %v1401
    %v2014 = vpack.c.b16 %v1404, %v1402
    %v2015 = vpack.c.b16 %v1407, %v1405
    %v2016 = vpack.c.b16 %v1408, %v1406
    %v2017 = vpack.c.b16 %v1411, %v1409
    %v2018 = vpack.c.b16 %v1412, %v1410
    %v2019 = vpack.c.b16 %v1415, %v1413
    %v2020 = vpack.c.b16 %v1416, %v1414
    %v2021 = vpack.c.b16 %v1419, %v1417
    %v2022 = vpack.c.b16 %v1420, %v1418
    %v2023 = vpack.c.b16 %v1423, %v1421
    %v2024 = vpack.c.b16 %v1424, %v1422
    %v2025 = vpack.c.b16 %v1427, %v1425
    %v2026 = vpack.c.b16 %v1428, %v1426
    %v2027 = vpack.c.b16 %v1431, %v1429
    %v2028 = vpack.c.b16 %v1432, %v1430
    %v2029 = vpack.c.b16 %v1435, %v1433
    %v2030 = vpack.c.b16 %v1436, %v1434
    %v2031 = vpack.c.b16 %v1439, %v1437
    %v2032 = vpack.c.b16 %v1440, %v1438
    %v2033 = vpack.c.b16 %v1443, %v1441
    %v2034 = vpack.c.b16 %v1444, %v1442
    %v2035 = vpack.c.b16 %v1447, %v1445
    %v2036 = vpack.c.b16 %v1448, %v1446
    %v2037 = vpack.c.b16 %v1451, %v1449
    %v2038 = vpack.c.b16 %v1452, %v1450
    %v2039 = vpack.c.b16 %v1455, %v1453
    %v2040 = vpack.c.b16 %v1456, %v1454
    %v2041 = vpack.c.b16 %v1459, %v1457
    %v2042 = vpack.c.b16 %v1460, %v1458
    %v2043 = vpack.c.b16 %v1463, %v1461
    %v2044 = vpack.c.b16 %v1464, %v1462
    %v2045 = vpack.c.b16 %v1467, %v1465
    %v2046 = vpack.c.b16 %v1468, %v1466
    %v2047 = vpack.c.b16 %v1471, %v1469
    %v2048 = vpack.c.b16 %v1472, %v1470
    %v2049 = vpack.c.b16 %v1475, %v1473
    %v2050 = vpack.c.b16 %v1476, %v1474
    %v2051 = vpack.c.b16 %v1479, %v1477
    %v2052 = vpack.c.b16 %v1480, %v1478
    %v2053 = vpack.c.b16 %v1483, %v1481
    %v2054 = vpack.c.b16 %v1484, %v1482
    %v2055 = vpack.c.b16 %v1487, %v1485
    %v2056 = vpack.c.b16 %v1488, %v1486
    %v2057 = vpack.c.b16 %v1491, %v1489
    %v2058 = vpack.c.b16 %v1492, %v1490
    %v2059 = vpack.c.b16 %v1495, %v1493
    %v2060 = vpack.c.b16 %v1496, %v1494
    %v2061 = vpack.c.b16 %v1499, %v1497
    %v2062 = vpack.c.b16 %v1500, %v1498
    %v2063 = vpack.c.b16 %v1503, %v1501
    %v2064 = vpack.c.b16 %v1504, %v1502
    %v2065 = vpack.c.b16 %v1507, %v1505
    %v2066 = vpack.c.b16 %v1508, %v1506
    %v2067 = vpack.c.b16 %v1511, %v1509
    %v2068 = vpack.c.b16 %v1512, %v1510
    %v2069 = vpack.c.b16 %v1515, %v1513
    %v2070 = vpack.c.b16 %v1516, %v1514
    %v2071 = vpack.c.b16 %v1519, %v1517
    %v2072 = vpack.c.b16 %v1520, %v1518
    %v2073 = vpack.c.b16 %v1523, %v1521
    %v2074 = vpack.c.b16 %v1524, %v1522
    %v2075 = vpack.c.b16 %v1527, %v1525
    %v2076 = vpack.c.b16 %v1528, %v1526
    %v2077 = vpack.c.b16 %v1531, %v1529
    %v2078 = vpack.c.b16 %v1532, %v1530
    %v2079 = vpack.c.b16 %v1535, %v1533
    %v2080 = vpack.c.b16 %v1536, %v1534
    %v2081 = vpack.c.b16 %v1539, %v1537
    %v2082 = vpack.c.b16 %v1540, %v1538
    %v2083 = vpack.c.b16 %v1543, %v1541
    %v2084 = vpack.c.b16 %v1544, %v1542
    %v2085 = vpack.c.b16 %v1547, %v1545
    %v2086 = vpack.c.b16 %v1548, %v1546
    %v2087 = vpack.c.b16 %v1551, %v1549
    %v2088 = vpack.c.b16 %v1552, %v1550
    %v2089 = vpack.c.b16 %v1555, %v1553
    %v2090 = vpack.c.b16 %v1556, %v1554
    %v2091 = vpack.c.b16 %v1559, %v1557
    %v2092 = vpack.c.b16 %v1560, %v1558
    %v2093 = vpack.c.b16 %v1563, %v1561
    %v2094 = vpack.c.b16 %v1564, %v1562
    %v2095 = vpack.c.b16 %v1567, %v1565
    %v2096 = vpack.c.b16 %v1568, %v1566
    %v2097 = vpack.c.b16 %v1571, %v1569
    %v2098 = vpack.c.b16 %v1572, %v1570
    %v2099 = vpack.c.b16 %v1575, %v1573
    %v2100 = vpack.c.b16 %v1576, %v1574
    %v2101 = vpack.c.b16 %v1579, %v1577
    %v2102 = vpack.c.b16 %v1580, %v1578
    %v2103 = vpack.c.b16 %v1583, %v1581
    %v2104 = vpack.c.b16 %v1584, %v1582
    %v2105 = vpack.c.b16 %v1587, %v1585
    %v2106 = vpack.c.b16 %v1588, %v1586
    %v2107 = vpack.c.b16 %v1591, %v1589
    %v2108 = vpack.c.b16 %v1592, %v1590
    %v2109 = vpack.c.b16 %v1595, %v1593
    %v2110 = vpack.c.b16 %v1596, %v1594
    %v2111 = vpack.c.b16 %v1599, %v1597
    %v2112 = vpack.c.b16 %v1600, %v1598
    %v2113 = vpack.c.b16 %v1603, %v1601
    %v2114 = vpack.c.b16 %v1604, %v1602
    %v2115 = vpack.c.b16 %v1607, %v1605
    %v2116 = vpack.c.b16 %v1608, %v1606
    %v2117 = vpack.c.b16 %v1611, %v1609
    %v2118 = vpack.c.b16 %v1612, %v1610
    %v2119 = vpack.c.b16 %v1615, %v1613
    %v2120 = vpack.c.b16 %v1616, %v1614
    %v2121 = vpack.c.b16 %v1619, %v1617
    %v2122 = vpack.c.b16 %v1620, %v1618
    %v2123 = vpack.c.b16 %v1623, %v1621
    %v2124 = vpack.c.b16 %v1624, %v1622
    %v2125 = vpack.c.b16 %v1627, %v1625
    %v2126 = vpack.c.b16 %v1628, %v1626
    %v2127 = vpack.c.b16 %v1631, %v1629
    %v2128 = vpack.c.b16 %v1632, %v1630
    %v2129 = vpack.c.b16 %v1635, %v1633
    %v2130 = vpack.c.b16 %v1636, %v1634
    %v2131 = vpack.c.b16 %v1639, %v1637
    %v2132 = vpack.c.b16 %v1640, %v1638
    %v2133 = vpack.c.b16 %v1643, %v1641
    %v2134 = vpack.c.b16 %v1644, %v1642
    %v2135 = vpack.c.b16 %v1647, %v1645
    %v2136 = vpack.c.b16 %v1648, %v1646
    %v2137 = vpack.c.b16 %v1651, %v1649
    %v2138 = vpack.c.b16 %v1652, %v1650
    %v2139 = vpack.c.b16 %v1655, %v1653
    %v2140 = vpack.c.b16 %v1656, %v1654
    %v2141 = vpack.c.b16 %v1659, %v1657
    %v2142 = vpack.c.b16 %v1660, %v1658
    %v2143 = vpack.c.b16 %v1663, %v1661
    %v2144 = vpack.c.b16 %v1664, %v1662
    %v2145 = vpack.c.b16 %v1667, %v1665
    %v2146 = vpack.c.b16 %v1668, %v1666
    %v2147 = vpack.c.b16 %v1671, %v1669
    %v2148 = vpack.c.b16 %v1672, %v1670
    %v2149 = vpack.c.b16 %v1675, %v1673
    %v2150 = vpack.c.b16 %v1676, %v1674
    %v2151 = vpack.c.b16 %v1679, %v1677
    %v2152 = vpack.c.b16 %v1680, %v1678
    %v2153 = vpack.c.b16 %v1683, %v1681
    %v2154 = vpack.c.b16 %v1684, %v1682
    %v2155 = vpack.c.b16 %v1687, %v1685
    %v2156 = vpack.c.b16 %v1688, %v1686
    %v2157 = vpack.c.b16 %v1691, %v1689
    %v2158 = vpack.c.b16 %v1692, %v1690
    %v2159 = vpack.c.b16 %v1695, %v1693
    %v2160 = vpack.c.b16 %v1696, %v1694
    %v2161 = vpack.c.b16 %v1699, %v1697
    %v2162 = vpack.c.b16 %v1700, %v1698
    %v2163 = vpack.c.b16 %v1703, %v1701
    %v2164 = vpack.c.b16 %v1704, %v1702
    %v2165 = vpack.c.b16 %v1707, %v1705
    %v2166 = vpack.c.b16 %v1708, %v1706
    %v2167 = vpack.c.b16 %v1711, %v1709
    %v2168 = vpack.c.b16 %v1712, %v1710
    %v2169 = vpack.c.b16 %v1715, %v1713
    %v2170 = vpack.c.b16 %v1716, %v1714
    %v2171 = vpack.c.b16 %v1719, %v1717
    %v2172 = vpack.c.b16 %v1720, %v1718
    %v2173 = vpack.c.b16 %v1723, %v1721
    %v2174 = vpack.c.b16 %v1724, %v1722
    %v2175 = vpack.c.b16 %v1727, %v1725
    %v2176 = vpack.c.b16 %v1728, %v1726
    %v2177 = vpack.c.b16 %v1731, %v1729
    %v2178 = vpack.c.b16 %v1732, %v1730
    %v2179 = vpack.c.b16 %v1735, %v1733
    %v2180 = vpack.c.b16 %v1736, %v1734
    %v2181 = vpack.c.b16 %v1739, %v1737
    %v2182 = vpack.c.b16 %v1740, %v1738
    %v2183 = vpack.c.b16 %v1743, %v1741
    %v2184 = vpack.c.b16 %v1744, %v1742
    %v2185 = vpack.c.b16 %v1747, %v1745
    %v2186 = vpack.c.b16 %v1748, %v1746
    %v2187 = vpack.c.b16 %v1751, %v1749
    %v2188 = vpack.c.b16 %v1752, %v1750
    %v2189 = vpack.c.b16 %v1755, %v1753
    %v2190 = vpack.c.b16 %v1756, %v1754
    %v2191 = vpack.c.b16 %v1759, %v1757
    %v2192 = vpack.c.b16 %v1760, %v1758
    %v2193 = vpack.c.b16 %v1763, %v1761
    %v2194 = vpack.c.b16 %v1764, %v1762
    %v2195 = vpack.c.b16 %v1767, %v1765
    %v2196 = vpack.c.b16 %v1768, %v1766
    %v2197 = vpack.c.b16 %v1771, %v1769
    %v2198 = vpack.c.b16 %v1772, %v1770
    %v2199 = vpack.c.b16 %v1775, %v1773
    %v2200 = vpack.c.b16 %v1776, %v1774
    %v2201 = vpack.c.b16 %v1779, %v1777
    %v2202 = vpack.c.b16 %v1780, %v1778
    %v2203 = vpack.c.b16 %v1783, %v1781
    %v2204 = vpack.c.b16 %v1784, %v1782
    %v2205 = vpack.c.b16 %v1787, %v1785
    %v2206 = vpack.c.b16 %v1788, %v1786
    %v2207 = vpack.c.b16 %v1791, %v1789
    %v2208 = vpack.c.b16 %v1792, %v1790
    %v2209 = vpack.c.b16 %v1795, %v1793
    %v2210 = vpack.c.b16 %v1796, %v1794
    %v2211 = vpack.c.b16 %v1799, %v1797
    %v2212 = vpack.c.b16 %v1800, %v1798
    %v2213 = vpack.c.b16 %v1803, %v1801
    %v2214 = vpack.c.b16 %v1804, %v1802
    %v2215 = vpack.c.b16 %v1807, %v1805
    %v2216 = vpack.c.b16 %v1808, %v1806
    %v2217 = vpack.c.b16 %v1811, %v1809
    %v2218 = vpack.c.b16 %v1812, %v1810
    %v2219 = vpack.c.b16 %v1815, %v1813
    %v2220 = vpack.c.b16 %v1816, %v1814
    %v2221 = vpack.c.b16 %v1819, %v1817
    %v2222 = vpack.c.b16 %v1820, %v1818
    %v2223 = vpack.c.b16 %v1823, %v1821
    %v2224 = vpack.c.b16 %v1824, %v1822
    %v2225 = vpack.c.b16 %v1827, %v1825
    %v2226 = vpack.c.b16 %v1828, %v1826
    %v2227 = vpack.c.b16 %v1831, %v1829
    %v2228 = vpack.c.b16 %v1832, %v1830
    %v2229 = vpack.c.b16 %v1835, %v1833
    %v2230 = vpack.c.b16 %v1836, %v1834
    %v2231 = vpack.c.b16 %v1839, %v1837
    %v2232 = vpack.c.b16 %v1840, %v1838
    %v2233 = vpack.c.b16 %v1843, %v1841
    %v2234 = vpack.c.b16 %v1844, %v1842
    %v2235 = vpack.c.b16 %v1847, %v1845
    %v2236 = vpack.c.b16 %v1848, %v1846
    %v2237 = vpack.c.b16 %v1851, %v1849
    %v2238 = vpack.c.b16 %v1852, %v1850
    %v2239 = vpack.c.b16 %v1855, %v1853
    %v2240 = vpack.c.b16 %v1856, %v1854
    %2625 = vmatprep.subr.bf16.mxu0 %v1858
    %2626 = vmatpush1.bf16.msra.mxu0 %v1857
    %2627 = vmatprep.subr.bf16.mxu0 %v1860
    %2628 = vmatpush1.bf16.msra.mxu0 %v1859
    %2629 = vmatprep.subr.bf16.mxu0 %v1862
    %2630 = vmatpush1.bf16.msra.mxu0 %v1861
    %2631 = vmatprep.subr.bf16.mxu0 %v1864
    %2632 = vmatpush1.bf16.msra.mxu0 %v1863
    %2633 = vmatprep.subr.bf16.mxu0 %v1866
    %2634 = vmatpush1.bf16.msra.mxu0 %v1865
    %2635 = vmatprep.subr.bf16.mxu0 %v1868
    %2636 = vmatpush1.bf16.msra.mxu0 %v1867
    %2637 = vmatprep.subr.bf16.mxu0 %v1870
    %2638 = vmatpush1.bf16.msra.mxu0 %v1869
    %2639 = vmatprep.subr.bf16.mxu0 %v1872
    %2640 = vmatpush1.bf16.msra.mxu0 %v1871
    %2641 = vmatprep.subr.bf16.mxu0 %v1874
    %2642 = vmatpush1.bf16.msra.mxu0 %v1873
    %2643 = vmatprep.subr.bf16.mxu0 %v1876
    %2644 = vmatpush1.bf16.msra.mxu0 %v1875
    %2645 = vmatprep.subr.bf16.mxu0 %v1878
    %2646 = vmatpush1.bf16.msra.mxu0 %v1877
    %2647 = vmatprep.subr.bf16.mxu0 %v1880
    %2648 = vmatpush1.bf16.msra.mxu0 %v1879
    %2649 = vmatprep.subr.bf16.mxu0 %v1882
    %2650 = vmatpush1.bf16.msra.mxu0 %v1881
    %2651 = vmatprep.subr.bf16.mxu0 %v1884
    %2652 = vmatpush1.bf16.msra.mxu0 %v1883
    %2653 = vmatprep.subr.bf16.mxu0 %v1886
    %2654 = vmatpush1.bf16.msra.mxu0 %v1885
    %2655 = vmatprep.subr.bf16.mxu0 %v1888
    %2656 = vmatpush1.bf16.msra.mxu0 %v1887
    %2657 = vmatprep.mubr.bf16.mxu0 %v658
    %2658 = vmatmul.mubr.bf16.gmra.mrb[0].mxu0 %v657
    %v2659 = vpop.f32.mrb[0].mxu0
    %v2660 = vadd.f32 %v578, %v2659
    %v2661 = vpop.f32.mrb[0].mxu0
    %v2662 = vadd.f32 %v582, %v2661
    %v2663 = vpop.f32.mrb[0].mxu0
    %v2664 = vadd.f32 %v578, %v2663
    %v2665 = vpop.f32.mrb[0].mxu0
    %v2666 = vadd.f32 %v582, %v2665
    %2667 = vdwg.mxu0
    %2668 = vmatprep.subr.bf16.mxu0 %v1890
    %2669 = vmatpush1.bf16.msra.mxu0 %v1889
    %2670 = vmatprep.subr.bf16.mxu0 %v1892
    %2671 = vmatpush1.bf16.msra.mxu0 %v1891
    %2672 = vmatprep.subr.bf16.mxu0 %v1894
    %2673 = vmatpush1.bf16.msra.mxu0 %v1893
    %2674 = vmatprep.subr.bf16.mxu0 %v1896
    %2675 = vmatpush1.bf16.msra.mxu0 %v1895
    %2676 = vmatprep.subr.bf16.mxu0 %v1898
    %2677 = vmatpush1.bf16.msra.mxu0 %v1897
    %2678 = vmatprep.subr.bf16.mxu0 %v1900
    %2679 = vmatpush1.bf16.msra.mxu0 %v1899
    %2680 = vmatprep.subr.bf16.mxu0 %v1902
    %2681 = vmatpush1.bf16.msra.mxu0 %v1901
    %2682 = vmatprep.subr.bf16.mxu0 %v1904
    %2683 = vmatpush1.bf16.msra.mxu0 %v1903
    %2684 = vmatprep.subr.bf16.mxu0 %v1906
    %2685 = vmatpush1.bf16.msra.mxu0 %v1905
    %2686 = vmatprep.subr.bf16.mxu0 %v1908
    %2687 = vmatpush1.bf16.msra.mxu0 %v1907
    %2688 = vmatprep.subr.bf16.mxu0 %v1910
    %2689 = vmatpush1.bf16.msra.mxu0 %v1909
    %2690 = vmatprep.subr.bf16.mxu0 %v1912
    %2691 = vmatpush1.bf16.msra.mxu0 %v1911
    %2692 = vmatprep.subr.bf16.mxu0 %v1914
    %2693 = vmatpush1.bf16.msra.mxu0 %v1913
    %2694 = vmatprep.subr.bf16.mxu0 %v1916
    %2695 = vmatpush1.bf16.msra.mxu0 %v1915
    %2696 = vmatprep.subr.bf16.mxu0 %v1918
    %2697 = vmatpush1.bf16.msra.mxu0 %v1917
    %2698 = vmatprep.subr.bf16.mxu0 %v1920
    %2699 = vmatpush1.bf16.msra.mxu0 %v1919
    %2700 = vmatprep.mubr.bf16.mxu0 %v660
    %2701 = vmatmul.mubr.bf16.gmra.mrb[0].mxu0 %v659
    %v2702 = vpop.f32.mrb[0].mxu0
    %v2703 = vadd.f32 %v2660, %v2702
    %v2704 = vpop.f32.mrb[0].mxu0
    %v2705 = vadd.f32 %v2662, %v2704
    %v2706 = vpop.f32.mrb[0].mxu0
    %v2707 = vadd.f32 %v2664, %v2706
    %v2708 = vpop.f32.mrb[0].mxu0
    %v2709 = vadd.f32 %v2666, %v2708
    %2710 = vdwg.mxu0
    %2711 = vmatprep.subr.bf16.mxu0 %v1922
    %2712 = vmatpush1.bf16.msra.mxu0 %v1921
    %2713 = vmatprep.subr.bf16.mxu0 %v1924
    %2714 = vmatpush1.bf16.msra.mxu0 %v1923
    %2715 = vmatprep.subr.bf16.mxu0 %v1926
    %2716 = vmatpush1.bf16.msra.mxu0 %v1925
    %2717 = vmatprep.subr.bf16.mxu0 %v1928
    %2718 = vmatpush1.bf16.msra.mxu0 %v1927
    %2719 = vmatprep.subr.bf16.mxu0 %v1930
    %2720 = vmatpush1.bf16.msra.mxu0 %v1929
    %2721 = vmatprep.subr.bf16.mxu0 %v1932
    %2722 = vmatpush1.bf16.msra.mxu0 %v1931
    %2723 = vmatprep.subr.bf16.mxu0 %v1934
    %2724 = vmatpush1.bf16.msra.mxu0 %v1933
    %2725 = vmatprep.subr.bf16.mxu0 %v1936
    %2726 = vmatpush1.bf16.msra.mxu0 %v1935
    %2727 = vmatprep.subr.bf16.mxu0 %v1938
    %2728 = vmatpush1.bf16.msra.mxu0 %v1937
    %2729 = vmatprep.subr.bf16.mxu0 %v1940
    %2730 = vmatpush1.bf16.msra.mxu0 %v1939
    %2731 = vmatprep.subr.bf16.mxu0 %v1942
    %2732 = vmatpush1.bf16.msra.mxu0 %v1941
    %2733 = vmatprep.subr.bf16.mxu0 %v1944
    %2734 = vmatpush1.bf16.msra.mxu0 %v1943
    %2735 = vmatprep.subr.bf16.mxu0 %v1946
    %2736 = vmatpush1.bf16.msra.mxu0 %v1945
    %2737 = vmatprep.subr.bf16.mxu0 %v1948
    %2738 = vmatpush1.bf16.msra.mxu0 %v1947
    %2739 = vmatprep.subr.bf16.mxu0 %v1950
    %2740 = vmatpush1.bf16.msra.mxu0 %v1949
    %2741 = vmatprep.subr.bf16.mxu0 %v1952
    %2742 = vmatpush1.bf16.msra.mxu0 %v1951
    %2743 = vmatprep.mubr.bf16.mxu0 %v662
    %2744 = vmatmul.mubr.bf16.gmra.mrb[0].mxu0 %v661
    %v2745 = vpop.f32.mrb[0].mxu0
    %v2746 = vadd.f32 %v2703, %v2745
    %v2747 = vpop.f32.mrb[0].mxu0
    %v2748 = vadd.f32 %v2705, %v2747
    %v2749 = vpop.f32.mrb[0].mxu0
    %v2750 = vadd.f32 %v2707, %v2749
    %v2751 = vpop.f32.mrb[0].mxu0
    %v2752 = vadd.f32 %v2709, %v2751
    %2753 = vdwg.mxu0
    %2754 = vmatprep.subr.bf16.mxu0 %v1954
    %2755 = vmatpush1.bf16.msra.mxu0 %v1953
    %2756 = vmatprep.subr.bf16.mxu0 %v1956
    %2757 = vmatpush1.bf16.msra.mxu0 %v1955
    %2758 = vmatprep.subr.bf16.mxu0 %v1958
    %2759 = vmatpush1.bf16.msra.mxu0 %v1957
    %2760 = vmatprep.subr.bf16.mxu0 %v1960
    %2761 = vmatpush1.bf16.msra.mxu0 %v1959
    %2762 = vmatprep.subr.bf16.mxu0 %v1962
    %2763 = vmatpush1.bf16.msra.mxu0 %v1961
    %2764 = vmatprep.subr.bf16.mxu0 %v1964
    %2765 = vmatpush1.bf16.msra.mxu0 %v1963
    %2766 = vmatprep.subr.bf16.mxu0 %v1966
    %2767 = vmatpush1.bf16.msra.mxu0 %v1965
    %2768 = vmatprep.subr.bf16.mxu0 %v1968
    %2769 = vmatpush1.bf16.msra.mxu0 %v1967
    %2770 = vmatprep.subr.bf16.mxu0 %v1970
    %2771 = vmatpush1.bf16.msra.mxu0 %v1969
    %2772 = vmatprep.subr.bf16.mxu0 %v1972
    %2773 = vmatpush1.bf16.msra.mxu0 %v1971
    %2774 = vmatprep.subr.bf16.mxu0 %v1974
    %2775 = vmatpush1.bf16.msra.mxu0 %v1973
    %2776 = vmatprep.subr.bf16.mxu0 %v1976
    %2777 = vmatpush1.bf16.msra.mxu0 %v1975
    %2778 = vmatprep.subr.bf16.mxu0 %v1978
    %2779 = vmatpush1.bf16.msra.mxu0 %v1977
    %2780 = vmatprep.subr.bf16.mxu0 %v1980
    %2781 = vmatpush1.bf16.msra.mxu0 %v1979
    %2782 = vmatprep.subr.bf16.mxu0 %v1982
    %2783 = vmatpush1.bf16.msra.mxu0 %v1981
    %2784 = vmatprep.subr.bf16.mxu0 %v1984
    %2785 = vmatpush1.bf16.msra.mxu0 %v1983
    %2786 = vmatprep.mubr.bf16.mxu0 %v664
    %2787 = vmatmul.mubr.bf16.gmra.mrb[0].mxu0 %v663
    %v2788 = vpop.f32.mrb[0].mxu0
    %v2789 = vadd.f32 %v2746, %v2788
    %v2790 = vpop.f32.mrb[0].mxu0
    %v2791 = vadd.f32 %v2748, %v2790
    %v2792 = vpop.f32.mrb[0].mxu0
    %v2793 = vadd.f32 %v2750, %v2792
    %v2794 = vpop.f32.mrb[0].mxu0
    %v2795 = vadd.f32 %v2752, %v2794
    %2796 = vdwg.mxu0
    %2797 = vmatprep.subr.bf16.mxu0 %v1986
    %2798 = vmatpush1.bf16.msra.mxu0 %v1985
    %2799 = vmatprep.subr.bf16.mxu0 %v1988
    %2800 = vmatpush1.bf16.msra.mxu0 %v1987
    %2801 = vmatprep.subr.bf16.mxu0 %v1990
    %2802 = vmatpush1.bf16.msra.mxu0 %v1989
    %2803 = vmatprep.subr.bf16.mxu0 %v1992
    %2804 = vmatpush1.bf16.msra.mxu0 %v1991
    %2805 = vmatprep.subr.bf16.mxu0 %v1994
    %2806 = vmatpush1.bf16.msra.mxu0 %v1993
    %2807 = vmatprep.subr.bf16.mxu0 %v1996
    %2808 = vmatpush1.bf16.msra.mxu0 %v1995
    %2809 = vmatprep.subr.bf16.mxu0 %v1998
    %2810 = vmatpush1.bf16.msra.mxu0 %v1997
    %2811 = vmatprep.subr.bf16.mxu0 %v2000
    %2812 = vmatpush1.bf16.msra.mxu0 %v1999
    %2813 = vmatprep.subr.bf16.mxu0 %v2002
    %2814 = vmatpush1.bf16.msra.mxu0 %v2001
    %2815 = vmatprep.subr.bf16.mxu0 %v2004
    %2816 = vmatpush1.bf16.msra.mxu0 %v2003
    %2817 = vmatprep.subr.bf16.mxu0 %v2006
    %2818 = vmatpush1.bf16.msra.mxu0 %v2005
    %2819 = vmatprep.subr.bf16.mxu0 %v2008
    %2820 = vmatpush1.bf16.msra.mxu0 %v2007
    %2821 = vmatprep.subr.bf16.mxu0 %v2010
    %2822 = vmatpush1.bf16.msra.mxu0 %v2009
    %2823 = vmatprep.subr.bf16.mxu0 %v2012
    %2824 = vmatpush1.bf16.msra.mxu0 %v2011
    %2825 = vmatprep.subr.bf16.mxu0 %v2014
    %2826 = vmatpush1.bf16.msra.mxu0 %v2013
    %2827 = vmatprep.subr.bf16.mxu0 %v2016
    %2828 = vmatpush1.bf16.msra.mxu0 %v2015
    %2829 = vmatprep.mubr.bf16.mxu0 %v666
    %2830 = vmatmul.mubr.bf16.gmra.mrb[0].mxu0 %v665
    %v2831 = vpop.f32.mrb[0].mxu0
    %v2832 = vadd.f32 %v2789, %v2831
    %v2833 = vpop.f32.mrb[0].mxu0
    %v2834 = vadd.f32 %v2791, %v2833
    %v2835 = vpop.f32.mrb[0].mxu0
    %v2836 = vadd.f32 %v2793, %v2835
    %v2837 = vpop.f32.mrb[0].mxu0
    %v2838 = vadd.f32 %v2795, %v2837
    %2839 = vdwg.mxu0
    %2840 = vmatprep.subr.bf16.mxu0 %v2018
    %2841 = vmatpush1.bf16.msra.mxu0 %v2017
    %2842 = vmatprep.subr.bf16.mxu0 %v2020
    %2843 = vmatpush1.bf16.msra.mxu0 %v2019
    %2844 = vmatprep.subr.bf16.mxu0 %v2022
    %2845 = vmatpush1.bf16.msra.mxu0 %v2021
    %2846 = vmatprep.subr.bf16.mxu0 %v2024
    %2847 = vmatpush1.bf16.msra.mxu0 %v2023
    %2848 = vmatprep.subr.bf16.mxu0 %v2026
    %2849 = vmatpush1.bf16.msra.mxu0 %v2025
    %2850 = vmatprep.subr.bf16.mxu0 %v2028
    %2851 = vmatpush1.bf16.msra.mxu0 %v2027
    %2852 = vmatprep.subr.bf16.mxu0 %v2030
    %2853 = vmatpush1.bf16.msra.mxu0 %v2029
    %2854 = vmatprep.subr.bf16.mxu0 %v2032
    %2855 = vmatpush1.bf16.msra.mxu0 %v2031
    %2856 = vmatprep.subr.bf16.mxu0 %v2034
    %2857 = vmatpush1.bf16.msra.mxu0 %v2033
    %2858 = vmatprep.subr.bf16.mxu0 %v2036
    %2859 = vmatpush1.bf16.msra.mxu0 %v2035
    %2860 = vmatprep.subr.bf16.mxu0 %v2038
    %2861 = vmatpush1.bf16.msra.mxu0 %v2037
    %2862 = vmatprep.subr.bf16.mxu0 %v2040
    %2863 = vmatpush1.bf16.msra.mxu0 %v2039
    %2864 = vmatprep.subr.bf16.mxu0 %v2042
    %2865 = vmatpush1.bf16.msra.mxu0 %v2041
    %2866 = vmatprep.subr.bf16.mxu0 %v2044
    %2867 = vmatpush1.bf16.msra.mxu0 %v2043
    %2868 = vmatprep.subr.bf16.mxu0 %v2046
    %2869 = vmatpush1.bf16.msra.mxu0 %v2045
    %2870 = vmatprep.subr.bf16.mxu0 %v2048
    %2871 = vmatpush1.bf16.msra.mxu0 %v2047
    %2872 = vmatprep.mubr.bf16.mxu0 %v668
    %2873 = vmatmul.mubr.bf16.gmra.mrb[0].mxu0 %v667
    %v2874 = vpop.f32.mrb[0].mxu0
    %v2875 = vadd.f32 %v2832, %v2874
    %v2876 = vpop.f32.mrb[0].mxu0
    %v2877 = vadd.f32 %v2834, %v2876
    %v2878 = vpop.f32.mrb[0].mxu0
    %v2879 = vadd.f32 %v2836, %v2878
    %v2880 = vpop.f32.mrb[0].mxu0
    %v2881 = vadd.f32 %v2838, %v2880
    %2882 = vdwg.mxu0
    %2883 = vmatprep.subr.bf16.mxu0 %v2050
    %2884 = vmatpush1.bf16.msra.mxu0 %v2049
    %2885 = vmatprep.subr.bf16.mxu0 %v2052
    %2886 = vmatpush1.bf16.msra.mxu0 %v2051
    %2887 = vmatprep.subr.bf16.mxu0 %v2054
    %2888 = vmatpush1.bf16.msra.mxu0 %v2053
    %2889 = vmatprep.subr.bf16.mxu0 %v2056
    %2890 = vmatpush1.bf16.msra.mxu0 %v2055
    %2891 = vmatprep.subr.bf16.mxu0 %v2058
    %2892 = vmatpush1.bf16.msra.mxu0 %v2057
    %2893 = vmatprep.subr.bf16.mxu0 %v2060
    %2894 = vmatpush1.bf16.msra.mxu0 %v2059
    %2895 = vmatprep.subr.bf16.mxu0 %v2062
    %2896 = vmatpush1.bf16.msra.mxu0 %v2061
    %2897 = vmatprep.subr.bf16.mxu0 %v2064
    %2898 = vmatpush1.bf16.msra.mxu0 %v2063
    %2899 = vmatprep.subr.bf16.mxu0 %v2066
    %2900 = vmatpush1.bf16.msra.mxu0 %v2065
    %2901 = vmatprep.subr.bf16.mxu0 %v2068
    %2902 = vmatpush1.bf16.msra.mxu0 %v2067
    %2903 = vmatprep.subr.bf16.mxu0 %v2070
    %2904 = vmatpush1.bf16.msra.mxu0 %v2069
    %2905 = vmatprep.subr.bf16.mxu0 %v2072
    %2906 = vmatpush1.bf16.msra.mxu0 %v2071
    %2907 = vmatprep.subr.bf16.mxu0 %v2074
    %2908 = vmatpush1.bf16.msra.mxu0 %v2073
    %2909 = vmatprep.subr.bf16.mxu0 %v2076
    %2910 = vmatpush1.bf16.msra.mxu0 %v2075
    %2911 = vmatprep.subr.bf16.mxu0 %v2078
    %2912 = vmatpush1.bf16.msra.mxu0 %v2077
    %2913 = vmatprep.subr.bf16.mxu0 %v2080
    %2914 = vmatpush1.bf16.msra.mxu0 %v2079
    %2915 = vmatprep.mubr.bf16.mxu0 %v670
    %2916 = vmatmul.mubr.bf16.gmra.mrb[0].mxu0 %v669
    %v2917 = vpop.f32.mrb[0].mxu0
    %v2918 = vadd.f32 %v2875, %v2917
    %v2919 = vpop.f32.mrb[0].mxu0
    %v2920 = vadd.f32 %v2877, %v2919
    %v2921 = vpop.f32.mrb[0].mxu0
    %v2922 = vadd.f32 %v2879, %v2921
    %v2923 = vpop.f32.mrb[0].mxu0
    %v2924 = vadd.f32 %v2881, %v2923
    %2925 = vdwg.mxu0
    %2926 = vmatprep.subr.bf16.mxu0 %v2082
    %2927 = vmatpush1.bf16.msra.mxu0 %v2081
    %2928 = vmatprep.subr.bf16.mxu0 %v2084
    %2929 = vmatpush1.bf16.msra.mxu0 %v2083
    %2930 = vmatprep.subr.bf16.mxu0 %v2086
    %2931 = vmatpush1.bf16.msra.mxu0 %v2085
    %2932 = vmatprep.subr.bf16.mxu0 %v2088
    %2933 = vmatpush1.bf16.msra.mxu0 %v2087
    %2934 = vmatprep.subr.bf16.mxu0 %v2090
    %2935 = vmatpush1.bf16.msra.mxu0 %v2089
    %2936 = vmatprep.subr.bf16.mxu0 %v2092
    %2937 = vmatpush1.bf16.msra.mxu0 %v2091
    %2938 = vmatprep.subr.bf16.mxu0 %v2094
    %2939 = vmatpush1.bf16.msra.mxu0 %v2093
    %2940 = vmatprep.subr.bf16.mxu0 %v2096
    %2941 = vmatpush1.bf16.msra.mxu0 %v2095
    %2942 = vmatprep.subr.bf16.mxu0 %v2098
    %2943 = vmatpush1.bf16.msra.mxu0 %v2097
    %2944 = vmatprep.subr.bf16.mxu0 %v2100
    %2945 = vmatpush1.bf16.msra.mxu0 %v2099
    %2946 = vmatprep.subr.bf16.mxu0 %v2102
    %2947 = vmatpush1.bf16.msra.mxu0 %v2101
    %2948 = vmatprep.subr.bf16.mxu0 %v2104
    %2949 = vmatpush1.bf16.msra.mxu0 %v2103
    %2950 = vmatprep.subr.bf16.mxu0 %v2106
    %2951 = vmatpush1.bf16.msra.mxu0 %v2105
    %2952 = vmatprep.subr.bf16.mxu0 %v2108
    %2953 = vmatpush1.bf16.msra.mxu0 %v2107
    %2954 = vmatprep.subr.bf16.mxu0 %v2110
    %2955 = vmatpush1.bf16.msra.mxu0 %v2109
    %2956 = vmatprep.subr.bf16.mxu0 %v2112
    %2957 = vmatpush1.bf16.msra.mxu0 %v2111
    %2958 = vmatprep.mubr.bf16.mxu0 %v672
    %2959 = vmatmul.mubr.bf16.gmra.mrb[0].mxu0 %v671
    %v2960 = vpop.f32.mrb[0].mxu0
    %v2961 = vadd.f32 %v2918, %v2960
    %v2962 = vpop.f32.mrb[0].mxu0
    %v2963 = vadd.f32 %v2920, %v2962
    %v2964 = vpop.f32.mrb[0].mxu0
    %v2965 = vadd.f32 %v2922, %v2964
    %v2966 = vpop.f32.mrb[0].mxu0
    %v2967 = vadd.f32 %v2924, %v2966
    %2968 = vdwg.mxu0
    %2969 = vmatprep.subr.bf16.mxu0 %v2114
    %2970 = vmatpush1.bf16.msra.mxu0 %v2113
    %2971 = vmatprep.subr.bf16.mxu0 %v2116
    %2972 = vmatpush1.bf16.msra.mxu0 %v2115
    %2973 = vmatprep.subr.bf16.mxu0 %v2118
    %2974 = vmatpush1.bf16.msra.mxu0 %v2117
    %2975 = vmatprep.subr.bf16.mxu0 %v2120
    %2976 = vmatpush1.bf16.msra.mxu0 %v2119
    %2977 = vmatprep.subr.bf16.mxu0 %v2122
    %2978 = vmatpush1.bf16.msra.mxu0 %v2121
    %2979 = vmatprep.subr.bf16.mxu0 %v2124
    %2980 = vmatpush1.bf16.msra.mxu0 %v2123
    %2981 = vmatprep.subr.bf16.mxu0 %v2126
    %2982 = vmatpush1.bf16.msra.mxu0 %v2125
    %2983 = vmatprep.subr.bf16.mxu0 %v2128
    %2984 = vmatpush1.bf16.msra.mxu0 %v2127
    %2985 = vmatprep.subr.bf16.mxu0 %v2130
    %2986 = vmatpush1.bf16.msra.mxu0 %v2129
    %2987 = vmatprep.subr.bf16.mxu0 %v2132
    %2988 = vmatpush1.bf16.msra.mxu0 %v2131
    %2989 = vmatprep.subr.bf16.mxu0 %v2134
    %2990 = vmatpush1.bf16.msra.mxu0 %v2133
    %2991 = vmatprep.subr.bf16.mxu0 %v2136
    %2992 = vmatpush1.bf16.msra.mxu0 %v2135
    %2993 = vmatprep.subr.bf16.mxu0 %v2138
    %2994 = vmatpush1.bf16.msra.mxu0 %v2137
    %2995 = vmatprep.subr.bf16.mxu0 %v2140
    %2996 = vmatpush1.bf16.msra.mxu0 %v2139
    %2997 = vmatprep.subr.bf16.mxu0 %v2142
    %2998 = vmatpush1.bf16.msra.mxu0 %v2141
    %2999 = vmatprep.subr.bf16.mxu0 %v2144
    %3000 = vmatpush1.bf16.msra.mxu0 %v2143
    %3001 = vmatprep.mubr.bf16.mxu0 %v674
    %3002 = vmatmul.mubr.bf16.gmra.mrb[0].mxu0 %v673
    %v3003 = vpop.f32.mrb[0].mxu0
    %v3004 = vadd.f32 %v2961, %v3003
    %v3005 = vpop.f32.mrb[0].mxu0
    %v3006 = vadd.f32 %v2963, %v3005
    %v3007 = vpop.f32.mrb[0].mxu0
    %v3008 = vadd.f32 %v2965, %v3007
    %v3009 = vpop.f32.mrb[0].mxu0
    %v3010 = vadd.f32 %v2967, %v3009
    %3011 = vdwg.mxu0
    %3012 = vmatprep.subr.bf16.mxu0 %v2146
    %3013 = vmatpush1.bf16.msra.mxu0 %v2145
    %3014 = vmatprep.subr.bf16.mxu0 %v2148
    %3015 = vmatpush1.bf16.msra.mxu0 %v2147
    %3016 = vmatprep.subr.bf16.mxu0 %v2150
    %3017 = vmatpush1.bf16.msra.mxu0 %v2149
    %3018 = vmatprep.subr.bf16.mxu0 %v2152
    %3019 = vmatpush1.bf16.msra.mxu0 %v2151
    %3020 = vmatprep.subr.bf16.mxu0 %v2154
    %3021 = vmatpush1.bf16.msra.mxu0 %v2153
    %3022 = vmatprep.subr.bf16.mxu0 %v2156
    %3023 = vmatpush1.bf16.msra.mxu0 %v2155
    %3024 = vmatprep.subr.bf16.mxu0 %v2158
    %3025 = vmatpush1.bf16.msra.mxu0 %v2157
    %3026 = vmatprep.subr.bf16.mxu0 %v2160
    %3027 = vmatpush1.bf16.msra.mxu0 %v2159
    %3028 = vmatprep.subr.bf16.mxu0 %v2162
    %3029 = vmatpush1.bf16.msra.mxu0 %v2161
    %3030 = vmatprep.subr.bf16.mxu0 %v2164
    %3031 = vmatpush1.bf16.msra.mxu0 %v2163
    %3032 = vmatprep.subr.bf16.mxu0 %v2166
    %3033 = vmatpush1.bf16.msra.mxu0 %v2165
    %3034 = vmatprep.subr.bf16.mxu0 %v2168
    %3035 = vmatpush1.bf16.msra.mxu0 %v2167
    %3036 = vmatprep.subr.bf16.mxu0 %v2170
    %3037 = vmatpush1.bf16.msra.mxu0 %v2169
    %3038 = vmatprep.subr.bf16.mxu0 %v2172
    %3039 = vmatpush1.bf16.msra.mxu0 %v2171
    %3040 = vmatprep.subr.bf16.mxu0 %v2174
    %3041 = vmatpush1.bf16.msra.mxu0 %v2173
    %3042 = vmatprep.subr.bf16.mxu0 %v2176
    %3043 = vmatpush1.bf16.msra.mxu0 %v2175
    %3044 = vmatprep.mubr.bf16.mxu0 %v676
    %3045 = vmatmul.mubr.bf16.gmra.mrb[0].mxu0 %v675
    %v3046 = vpop.f32.mrb[0].mxu0
    %v3047 = vadd.f32 %v3004, %v3046
    %v3048 = vpop.f32.mrb[0].mxu0
    %v3049 = vadd.f32 %v3006, %v3048
    %v3050 = vpop.f32.mrb[0].mxu0
    %v3051 = vadd.f32 %v3008, %v3050
    %v3052 = vpop.f32.mrb[0].mxu0
    %v3053 = vadd.f32 %v3010, %v3052
    %3054 = vdwg.mxu0
    %3055 = vmatprep.subr.bf16.mxu0 %v2178
    %3056 = vmatpush1.bf16.msra.mxu0 %v2177
    %3057 = vmatprep.subr.bf16.mxu0 %v2180
    %3058 = vmatpush1.bf16.msra.mxu0 %v2179
    %3059 = vmatprep.subr.bf16.mxu0 %v2182
    %3060 = vmatpush1.bf16.msra.mxu0 %v2181
    %3061 = vmatprep.subr.bf16.mxu0 %v2184
    %3062 = vmatpush1.bf16.msra.mxu0 %v2183
    %3063 = vmatprep.subr.bf16.mxu0 %v2186
    %3064 = vmatpush1.bf16.msra.mxu0 %v2185
    %3065 = vmatprep.subr.bf16.mxu0 %v2188
    %3066 = vmatpush1.bf16.msra.mxu0 %v2187
    %3067 = vmatprep.subr.bf16.mxu0 %v2190
    %3068 = vmatpush1.bf16.msra.mxu0 %v2189
    %3069 = vmatprep.subr.bf16.mxu0 %v2192
    %3070 = vmatpush1.bf16.msra.mxu0 %v2191
    %3071 = vmatprep.subr.bf16.mxu0 %v2194
    %3072 = vmatpush1.bf16.msra.mxu0 %v2193
    %3073 = vmatprep.subr.bf16.mxu0 %v2196
    %3074 = vmatpush1.bf16.msra.mxu0 %v2195
    %3075 = vmatprep.subr.bf16.mxu0 %v2198
    %3076 = vmatpush1.bf16.msra.mxu0 %v2197
    %3077 = vmatprep.subr.bf16.mxu0 %v2200
    %3078 = vmatpush1.bf16.msra.mxu0 %v2199
    %3079 = vmatprep.subr.bf16.mxu0 %v2202
    %3080 = vmatpush1.bf16.msra.mxu0 %v2201
    %3081 = vmatprep.subr.bf16.mxu0 %v2204
    %3082 = vmatpush1.bf16.msra.mxu0 %v2203
    %3083 = vmatprep.subr.bf16.mxu0 %v2206
    %3084 = vmatpush1.bf16.msra.mxu0 %v2205
    %3085 = vmatprep.subr.bf16.mxu0 %v2208
    %3086 = vmatpush1.bf16.msra.mxu0 %v2207
    %3087 = vmatprep.mubr.bf16.mxu0 %v678
    %3088 = vmatmul.mubr.bf16.gmra.mrb[0].mxu0 %v677
    %v3089 = vpop.f32.mrb[0].mxu0
    %v3090 = vadd.f32 %v3047, %v3089
    %v3091 = vpop.f32.mrb[0].mxu0
    %v3092 = vadd.f32 %v3049, %v3091
    %v3093 = vpop.f32.mrb[0].mxu0
    %v3094 = vadd.f32 %v3051, %v3093
    %v3095 = vpop.f32.mrb[0].mxu0
    %v3096 = vadd.f32 %v3053, %v3095
    %3097 = vdwg.mxu0
    %3098 = vmatprep.subr.bf16.mxu0 %v2210
    %3099 = vmatpush1.bf16.msra.mxu0 %v2209
    %3100 = vmatprep.subr.bf16.mxu0 %v2212
    %3101 = vmatpush1.bf16.msra.mxu0 %v2211
    %3102 = vmatprep.subr.bf16.mxu0 %v2214
    %3103 = vmatpush1.bf16.msra.mxu0 %v2213
    %3104 = vmatprep.subr.bf16.mxu0 %v2216
    %3105 = vmatpush1.bf16.msra.mxu0 %v2215
    %3106 = vmatprep.subr.bf16.mxu0 %v2218
    %3107 = vmatpush1.bf16.msra.mxu0 %v2217
    %3108 = vmatprep.subr.bf16.mxu0 %v2220
    %3109 = vmatpush1.bf16.msra.mxu0 %v2219
    %3110 = vmatprep.subr.bf16.mxu0 %v2222
    %3111 = vmatpush1.bf16.msra.mxu0 %v2221
    %3112 = vmatprep.subr.bf16.mxu0 %v2224
    %3113 = vmatpush1.bf16.msra.mxu0 %v2223
    %3114 = vmatprep.subr.bf16.mxu0 %v2226
    %3115 = vmatpush1.bf16.msra.mxu0 %v2225
    %3116 = vmatprep.subr.bf16.mxu0 %v2228
    %3117 = vmatpush1.bf16.msra.mxu0 %v2227
    %3118 = vmatprep.subr.bf16.mxu0 %v2230
    %3119 = vmatpush1.bf16.msra.mxu0 %v2229
    %3120 = vmatprep.subr.bf16.mxu0 %v2232
    %3121 = vmatpush1.bf16.msra.mxu0 %v2231
    %3122 = vmatprep.subr.bf16.mxu0 %v2234
    %3123 = vmatpush1.bf16.msra.mxu0 %v2233
    %3124 = vmatprep.subr.bf16.mxu0 %v2236
    %3125 = vmatpush1.bf16.msra.mxu0 %v2235
    %3126 = vmatprep.subr.bf16.mxu0 %v2238
    %3127 = vmatpush1.bf16.msra.mxu0 %v2237
    %3128 = vmatprep.subr.bf16.mxu0 %v2240
    %3129 = vmatpush1.bf16.msra.mxu0 %v2239
    %3130 = vmatprep.mubr.bf16.mxu0 %v680
    %3131 = vmatmul.mubr.bf16.gmra.mrb[0].mxu0 %v679
    %v3132 = vpop.f32.mrb[0].mxu0
    %v3133 = vadd.f32 %v3090, %v3132
    %v3134 = vpop.f32.mrb[0].mxu0
    %v3135 = vadd.f32 %v3092, %v3134
    %v3136 = vpop.f32.mrb[0].mxu0
    %v3137 = vadd.f32 %v3094, %v3136
    %v3138 = vpop.f32.mrb[0].mxu0
    %v3139 = vadd.f32 %v3096, %v3138
    %3140 = vdwg.mxu0
    %v3141 = vmax.f32 %v3133, 0.0
    %v3142 = vmax.f32 %v3135, 0.0
    %v3143 = vmax.f32 %v3137, 0.0
    %v3144 = vmax.f32 %v3139, 0.0
    %v3145 = vpack.c.bf16 %v3143, %v3141
    %v3146 = vpack.c.bf16 %v3144, %v3142
    %v3147 = vld [vmem:[#allocation6] sm:$0xff]
    %v3148 = vld [vmem:[#allocation6 + $0x8] sm:$0xff]
    %v3149 = vld [vmem:[#allocation6 + $0x10] sm:$0xff]
    %v3150 = vld [vmem:[#allocation6 + $0x18] sm:$0xff]
    %v3151 = vld [vmem:[#allocation6 + $0x20] sm:$0xff]
    %v3152 = vld [vmem:[#allocation6 + $0x28] sm:$0xff]
    %v3153 = vld [vmem:[#allocation6 + $0x30] sm:$0xff]
    %v3154 = vld [vmem:[#allocation6 + $0x38] sm:$0xff]
    %v3155 = vld [vmem:[#allocation6 + $0x40] sm:$0xff]
    %v3156 = vld [vmem:[#allocation6 + $0x48] sm:$0xff]
    %v3157 = vld [vmem:[#allocation6 + $0x50] sm:$0xff]
    %v3158 = vld [vmem:[#allocation6 + $0x58] sm:$0xff]
    %v3159 = vld [vmem:[#allocation6 + $0x60] sm:$0xff]
    %v3160 = vld [vmem:[#allocation6 + $0x68] sm:$0xff]
    %v3161 = vld [vmem:[#allocation6 + $0x70] sm:$0xff]
    %v3162 = vld [vmem:[#allocation6 + $0x78] sm:$0xff]
    %v3163 = vld [vmem:[#allocation6 + $0x80] sm:$0xff]
    %v3164 = vld [vmem:[#allocation6 + $0x88] sm:$0xff]
    %v3165 = vld [vmem:[#allocation6 + $0x90] sm:$0xff]
    %v3166 = vld [vmem:[#allocation6 + $0x98] sm:$0xff]
    %v3167 = vld [vmem:[#allocation6 + $0xa0] sm:$0xff]
    %v3168 = vld [vmem:[#allocation6 + $0xa8] sm:$0xff]
    %v3169 = vld [vmem:[#allocation6 + $0xb0] sm:$0xff]
    %v3170 = vld [vmem:[#allocation6 + $0xb8] sm:$0xff]
    %v3171 = vld [vmem:[#allocation6 + $0xc0] sm:$0xff]
    %v3172 = vld [vmem:[#allocation6 + $0xc8] sm:$0xff]
    %v3173 = vld [vmem:[#allocation6 + $0xd0] sm:$0xff]
    %v3174 = vld [vmem:[#allocation6 + $0xd8] sm:$0xff]
    %v3175 = vld [vmem:[#allocation6 + $0xe0] sm:$0xff]
    %v3176 = vld [vmem:[#allocation6 + $0xe8] sm:$0xff]
    %v3177 = vld [vmem:[#allocation6 + $0xf0] sm:$0xff]
    %v3178 = vld [vmem:[#allocation6 + $0xf8] sm:$0xff]
    %v3179 = vld [vmem:[#allocation6 + $0x100] sm:$0xff]
    %v3180 = vld [vmem:[#allocation6 + $0x108] sm:$0xff]
    %v3181 = vld [vmem:[#allocation6 + $0x110] sm:$0xff]
    %v3182 = vld [vmem:[#allocation6 + $0x118] sm:$0xff]
    %v3183 = vld [vmem:[#allocation6 + $0x120] sm:$0xff]
    %v3184 = vld [vmem:[#allocation6 + $0x128] sm:$0xff]
    %v3185 = vld [vmem:[#allocation6 + $0x130] sm:$0xff]
    %v3186 = vld [vmem:[#allocation6 + $0x138] sm:$0xff]
    %v3187 = vld [vmem:[#allocation6 + $0x140] sm:$0xff]
    %v3188 = vld [vmem:[#allocation6 + $0x148] sm:$0xff]
    %v3189 = vld [vmem:[#allocation6 + $0x150] sm:$0xff]
    %v3190 = vld [vmem:[#allocation6 + $0x158] sm:$0xff]
    %v3191 = vld [vmem:[#allocation6 + $0x160] sm:$0xff]
    %v3192 = vld [vmem:[#allocation6 + $0x168] sm:$0xff]
    %v3193 = vld [vmem:[#allocation6 + $0x170] sm:$0xff]
    %v3194 = vld [vmem:[#allocation6 + $0x178] sm:$0xff]
    %v3195 = vld [vmem:[#allocation6 + $0x180] sm:$0xff]
    %v3196 = vld [vmem:[#allocation6 + $0x188] sm:$0xff]
    %v3197 = vld [vmem:[#allocation6 + $0x190] sm:$0xff]
    %v3198 = vld [vmem:[#allocation6 + $0x198] sm:$0xff]
    %v3199 = vld [vmem:[#allocation6 + $0x1a0] sm:$0xff]
    %v3200 = vld [vmem:[#allocation6 + $0x1a8] sm:$0xff]
    %v3201 = vld [vmem:[#allocation6 + $0x1b0] sm:$0xff]
    %v3202 = vld [vmem:[#allocation6 + $0x1b8] sm:$0xff]
    %v3203 = vld [vmem:[#allocation6 + $0x1c0] sm:$0xff]
    %v3204 = vld [vmem:[#allocation6 + $0x1c8] sm:$0xff]
    %v3205 = vld [vmem:[#allocation6 + $0x1d0] sm:$0xff]
    %v3206 = vld [vmem:[#allocation6 + $0x1d8] sm:$0xff]
    %v3207 = vld [vmem:[#allocation6 + $0x1e0] sm:$0xff]
    %v3208 = vld [vmem:[#allocation6 + $0x1e8] sm:$0xff]
    %v3209 = vld [vmem:[#allocation6 + $0x1f0] sm:$0xff]
    %v3210 = vld [vmem:[#allocation6 + $0x1f8] sm:$0xff]
    %v3211 = vld [vmem:[#allocation7] sm:$0xf]
    %v3213 = vlaneseq
    %v3214 = vshrl.u32 %v3213, 7
    %v3215 = vsub.s32 0, %v3214
    %v3216 = vrot.slane %v3211, %v3215
    %v3217 = vlaneseq
    %v3218 = vshrl.u32 %v3217, 7
    %v3219 = vsub.s32 1, %v3218
    %v3220 = vrot.slane %v3211, %v3219
    %v3221 = vlaneseq
    %v3222 = vshrl.u32 %v3221, 7
    %v3223 = vsub.s32 2, %v3222
    %v3224 = vrot.slane %v3211, %v3223
    %v3225 = vlaneseq
    %v3226 = vshrl.u32 %v3225, 7
    %v3227 = vsub.s32 3, %v3226
    %v3228 = vrot.slane %v3211, %v3227
    %v3297 = vunpack.c.l.b16 %v3147
    %v3298 = vunpack.c.h.b16 %v3147
    %v3299 = vunpack.c.l.b16 %v3148
    %v3300 = vunpack.c.h.b16 %v3148
    %v3301 = vunpack.c.l.b16 %v3149
    %v3302 = vunpack.c.h.b16 %v3149
    %v3303 = vunpack.c.l.b16 %v3150
    %v3304 = vunpack.c.h.b16 %v3150
    %v3305 = vunpack.c.l.b16 %v3151
    %v3306 = vunpack.c.h.b16 %v3151
    %v3307 = vunpack.c.l.b16 %v3152
    %v3308 = vunpack.c.h.b16 %v3152
    %v3309 = vunpack.c.l.b16 %v3153
    %v3310 = vunpack.c.h.b16 %v3153
    %v3311 = vunpack.c.l.b16 %v3154
    %v3312 = vunpack.c.h.b16 %v3154
    %v3313 = vunpack.c.l.b16 %v3155
    %v3314 = vunpack.c.h.b16 %v3155
    %v3315 = vunpack.c.l.b16 %v3156
    %v3316 = vunpack.c.h.b16 %v3156
    %v3317 = vunpack.c.l.b16 %v3157
    %v3318 = vunpack.c.h.b16 %v3157
    %v3319 = vunpack.c.l.b16 %v3158
    %v3320 = vunpack.c.h.b16 %v3158
    %v3321 = vunpack.c.l.b16 %v3159
    %v3322 = vunpack.c.h.b16 %v3159
    %v3323 = vunpack.c.l.b16 %v3160
    %v3324 = vunpack.c.h.b16 %v3160
    %v3325 = vunpack.c.l.b16 %v3161
    %v3326 = vunpack.c.h.b16 %v3161
    %v3327 = vunpack.c.l.b16 %v3162
    %v3328 = vunpack.c.h.b16 %v3162
    %v3329 = vunpack.c.l.b16 %v3163
    %v3330 = vunpack.c.h.b16 %v3163
    %v3331 = vunpack.c.l.b16 %v3164
    %v3332 = vunpack.c.h.b16 %v3164
    %v3333 = vunpack.c.l.b16 %v3165
    %v3334 = vunpack.c.h.b16 %v3165
    %v3335 = vunpack.c.l.b16 %v3166
    %v3336 = vunpack.c.h.b16 %v3166
    %v3337 = vunpack.c.l.b16 %v3167
    %v3338 = vunpack.c.h.b16 %v3167
    %v3339 = vunpack.c.l.b16 %v3168
    %v3340 = vunpack.c.h.b16 %v3168
    %v3341 = vunpack.c.l.b16 %v3169
    %v3342 = vunpack.c.h.b16 %v3169
    %v3343 = vunpack.c.l.b16 %v3170
    %v3344 = vunpack.c.h.b16 %v3170
    %v3345 = vunpack.c.l.b16 %v3171
    %v3346 = vunpack.c.h.b16 %v3171
    %v3347 = vunpack.c.l.b16 %v3172
    %v3348 = vunpack.c.h.b16 %v3172
    %v3349 = vunpack.c.l.b16 %v3173
    %v3350 = vunpack.c.h.b16 %v3173
    %v3351 = vunpack.c.l.b16 %v3174
    %v3352 = vunpack.c.h.b16 %v3174
    %v3353 = vunpack.c.l.b16 %v3175
    %v3354 = vunpack.c.h.b16 %v3175
    %v3355 = vunpack.c.l.b16 %v3176
    %v3356 = vunpack.c.h.b16 %v3176
    %v3357 = vunpack.c.l.b16 %v3177
    %v3358 = vunpack.c.h.b16 %v3177
    %v3359 = vunpack.c.l.b16 %v3178
    %v3360 = vunpack.c.h.b16 %v3178
    %v3361 = vunpack.c.l.b16 %v3179
    %v3362 = vunpack.c.h.b16 %v3179
    %v3363 = vunpack.c.l.b16 %v3180
    %v3364 = vunpack.c.h.b16 %v3180
    %v3365 = vunpack.c.l.b16 %v3181
    %v3366 = vunpack.c.h.b16 %v3181
    %v3367 = vunpack.c.l.b16 %v3182
    %v3368 = vunpack.c.h.b16 %v3182
    %v3369 = vunpack.c.l.b16 %v3183
    %v3370 = vunpack.c.h.b16 %v3183
    %v3371 = vunpack.c.l.b16 %v3184
    %v3372 = vunpack.c.h.b16 %v3184
    %v3373 = vunpack.c.l.b16 %v3185
    %v3374 = vunpack.c.h.b16 %v3185
    %v3375 = vunpack.c.l.b16 %v3186
    %v3376 = vunpack.c.h.b16 %v3186
    %v3377 = vunpack.c.l.b16 %v3187
    %v3378 = vunpack.c.h.b16 %v3187
    %v3379 = vunpack.c.l.b16 %v3188
    %v3380 = vunpack.c.h.b16 %v3188
    %v3381 = vunpack.c.l.b16 %v3189
    %v3382 = vunpack.c.h.b16 %v3189
    %v3383 = vunpack.c.l.b16 %v3190
    %v3384 = vunpack.c.h.b16 %v3190
    %v3385 = vunpack.c.l.b16 %v3191
    %v3386 = vunpack.c.h.b16 %v3191
    %v3387 = vunpack.c.l.b16 %v3192
    %v3388 = vunpack.c.h.b16 %v3192
    %v3389 = vunpack.c.l.b16 %v3193
    %v3390 = vunpack.c.h.b16 %v3193
    %v3391 = vunpack.c.l.b16 %v3194
    %v3392 = vunpack.c.h.b16 %v3194
    %v3393 = vunpack.c.l.b16 %v3195
    %v3394 = vunpack.c.h.b16 %v3195
    %v3395 = vunpack.c.l.b16 %v3196
    %v3396 = vunpack.c.h.b16 %v3196
    %v3397 = vunpack.c.l.b16 %v3197
    %v3398 = vunpack.c.h.b16 %v3197
    %v3399 = vunpack.c.l.b16 %v3198
    %v3400 = vunpack.c.h.b16 %v3198
    %v3401 = vunpack.c.l.b16 %v3199
    %v3402 = vunpack.c.h.b16 %v3199
    %v3403 = vunpack.c.l.b16 %v3200
    %v3404 = vunpack.c.h.b16 %v3200
    %v3405 = vunpack.c.l.b16 %v3201
    %v3406 = vunpack.c.h.b16 %v3201
    %v3407 = vunpack.c.l.b16 %v3202
    %v3408 = vunpack.c.h.b16 %v3202
    %v3409 = vunpack.c.l.b16 %v3203
    %v3410 = vunpack.c.h.b16 %v3203
    %v3411 = vunpack.c.l.b16 %v3204
    %v3412 = vunpack.c.h.b16 %v3204
    %v3413 = vunpack.c.l.b16 %v3205
    %v3414 = vunpack.c.h.b16 %v3205
    %v3415 = vunpack.c.l.b16 %v3206
    %v3416 = vunpack.c.h.b16 %v3206
    %v3417 = vunpack.c.l.b16 %v3207
    %v3418 = vunpack.c.h.b16 %v3207
    %v3419 = vunpack.c.l.b16 %v3208
    %v3420 = vunpack.c.h.b16 %v3208
    %v3421 = vunpack.c.l.b16 %v3209
    %v3422 = vunpack.c.h.b16 %v3209
    %v3423 = vunpack.c.l.b16 %v3210
    %v3424 = vunpack.c.h.b16 %v3210
    %v3425 = vpack.c.b16 %v3301, %v3297
    %v3426 = vpack.c.b16 %v3302, %v3298
    %v3427 = vpack.c.b16 %v3303, %v3299
    %v3428 = vpack.c.b16 %v3304, %v3300
    %v3429 = vpack.c.b16 %v3309, %v3305
    %v3430 = vpack.c.b16 %v3310, %v3306
    %v3431 = vpack.c.b16 %v3311, %v3307
    %v3432 = vpack.c.b16 %v3312, %v3308
    %v3433 = vpack.c.b16 %v3317, %v3313
    %v3434 = vpack.c.b16 %v3318, %v3314
    %v3435 = vpack.c.b16 %v3319, %v3315
    %v3436 = vpack.c.b16 %v3320, %v3316
    %v3437 = vpack.c.b16 %v3325, %v3321
    %v3438 = vpack.c.b16 %v3326, %v3322
    %v3439 = vpack.c.b16 %v3327, %v3323
    %v3440 = vpack.c.b16 %v3328, %v3324
    %v3441 = vpack.c.b16 %v3333, %v3329
    %v3442 = vpack.c.b16 %v3334, %v3330
    %v3443 = vpack.c.b16 %v3335, %v3331
    %v3444 = vpack.c.b16 %v3336, %v3332
    %v3445 = vpack.c.b16 %v3341, %v3337
    %v3446 = vpack.c.b16 %v3342, %v3338
    %v3447 = vpack.c.b16 %v3343, %v3339
    %v3448 = vpack.c.b16 %v3344, %v3340
    %v3449 = vpack.c.b16 %v3349, %v3345
    %v3450 = vpack.c.b16 %v3350, %v3346
    %v3451 = vpack.c.b16 %v3351, %v3347
    %v3452 = vpack.c.b16 %v3352, %v3348
    %v3453 = vpack.c.b16 %v3357, %v3353
    %v3454 = vpack.c.b16 %v3358, %v3354
    %v3455 = vpack.c.b16 %v3359, %v3355
    %v3456 = vpack.c.b16 %v3360, %v3356
    %v3457 = vpack.c.b16 %v3365, %v3361
    %v3458 = vpack.c.b16 %v3366, %v3362
    %v3459 = vpack.c.b16 %v3367, %v3363
    %v3460 = vpack.c.b16 %v3368, %v3364
    %v3461 = vpack.c.b16 %v3373, %v3369
    %v3462 = vpack.c.b16 %v3374, %v3370
    %v3463 = vpack.c.b16 %v3375, %v3371
    %v3464 = vpack.c.b16 %v3376, %v3372
    %v3465 = vpack.c.b16 %v3381, %v3377
    %v3466 = vpack.c.b16 %v3382, %v3378
    %v3467 = vpack.c.b16 %v3383, %v3379
    %v3468 = vpack.c.b16 %v3384, %v3380
    %v3469 = vpack.c.b16 %v3389, %v3385
    %v3470 = vpack.c.b16 %v3390, %v3386
    %v3471 = vpack.c.b16 %v3391, %v3387
    %v3472 = vpack.c.b16 %v3392, %v3388
    %v3473 = vpack.c.b16 %v3397, %v3393
    %v3474 = vpack.c.b16 %v3398, %v3394
    %v3475 = vpack.c.b16 %v3399, %v3395
    %v3476 = vpack.c.b16 %v3400, %v3396
    %v3477 = vpack.c.b16 %v3405, %v3401
    %v3478 = vpack.c.b16 %v3406, %v3402
    %v3479 = vpack.c.b16 %v3407, %v3403
    %v3480 = vpack.c.b16 %v3408, %v3404
    %v3481 = vpack.c.b16 %v3413, %v3409
    %v3482 = vpack.c.b16 %v3414, %v3410
    %v3483 = vpack.c.b16 %v3415, %v3411
    %v3484 = vpack.c.b16 %v3416, %v3412
    %v3485 = vpack.c.b16 %v3421, %v3417
    %v3486 = vpack.c.b16 %v3422, %v3418
    %v3487 = vpack.c.b16 %v3423, %v3419
    %v3488 = vpack.c.b16 %v3424, %v3420
    %3553 = vmatprep.subr.bf16.mxu0 %v3426
    %3554 = vmatpush1.bf16.msra.mxu0 %v3425
    %3555 = vmatprep.subr.bf16.mxu0 %v3430
    %3556 = vmatpush1.bf16.msra.mxu0 %v3429
    %3557 = vmatprep.subr.bf16.mxu0 %v3434
    %3558 = vmatpush1.bf16.msra.mxu0 %v3433
    %3559 = vmatprep.subr.bf16.mxu0 %v3438
    %3560 = vmatpush1.bf16.msra.mxu0 %v3437
    %3561 = vmatprep.subr.bf16.mxu0 %v3442
    %3562 = vmatpush1.bf16.msra.mxu0 %v3441
    %3563 = vmatprep.subr.bf16.mxu0 %v3446
    %3564 = vmatpush1.bf16.msra.mxu0 %v3445
    %3565 = vmatprep.subr.bf16.mxu0 %v3450
    %3566 = vmatpush1.bf16.msra.mxu0 %v3449
    %3567 = vmatprep.subr.bf16.mxu0 %v3454
    %3568 = vmatpush1.bf16.msra.mxu0 %v3453
    %3569 = vmatprep.subr.bf16.mxu0 %v3458
    %3570 = vmatpush1.bf16.msra.mxu0 %v3457
    %3571 = vmatprep.subr.bf16.mxu0 %v3462
    %3572 = vmatpush1.bf16.msra.mxu0 %v3461
    %3573 = vmatprep.subr.bf16.mxu0 %v3466
    %3574 = vmatpush1.bf16.msra.mxu0 %v3465
    %3575 = vmatprep.subr.bf16.mxu0 %v3470
    %3576 = vmatpush1.bf16.msra.mxu0 %v3469
    %3577 = vmatprep.subr.bf16.mxu0 %v3474
    %3578 = vmatpush1.bf16.msra.mxu0 %v3473
    %3579 = vmatprep.subr.bf16.mxu0 %v3478
    %3580 = vmatpush1.bf16.msra.mxu0 %v3477
    %3581 = vmatprep.subr.bf16.mxu0 %v3482
    %3582 = vmatpush1.bf16.msra.mxu0 %v3481
    %3583 = vmatprep.subr.bf16.mxu0 %v3486
    %3584 = vmatpush1.bf16.msra.mxu0 %v3485
    %3585 = vmatprep.mubr.bf16.mxu0 %v3146
    %3586 = vmatmul.mubr.bf16.gmra.mrb[0].mxu0 %v3145
    %v3587 = vpop.f32.mrb[0].mxu0
    %v3588 = vadd.f32 %v3216, %v3587
    %v3589 = vpop.f32.mrb[0].mxu0
    %v3590 = vadd.f32 %v3220, %v3589
    %v3591 = vpop.f32.mrb[0].mxu0
    %v3592 = vadd.f32 %v3216, %v3591
    %v3593 = vpop.f32.mrb[0].mxu0
    %v3594 = vadd.f32 %v3220, %v3593
    %3595 = vdwg.mxu0
    %3596 = vmatprep.subr.bf16.mxu0 %v3428
    %3597 = vmatpush1.bf16.msra.mxu0 %v3427
    %3598 = vmatprep.subr.bf16.mxu0 %v3432
    %3599 = vmatpush1.bf16.msra.mxu0 %v3431
    %3600 = vmatprep.subr.bf16.mxu0 %v3436
    %3601 = vmatpush1.bf16.msra.mxu0 %v3435
    %3602 = vmatprep.subr.bf16.mxu0 %v3440
    %3603 = vmatpush1.bf16.msra.mxu0 %v3439
    %3604 = vmatprep.subr.bf16.mxu0 %v3444
    %3605 = vmatpush1.bf16.msra.mxu0 %v3443
    %3606 = vmatprep.subr.bf16.mxu0 %v3448
    %3607 = vmatpush1.bf16.msra.mxu0 %v3447
    %3608 = vmatprep.subr.bf16.mxu0 %v3452
    %3609 = vmatpush1.bf16.msra.mxu0 %v3451
    %3610 = vmatprep.subr.bf16.mxu0 %v3456
    %3611 = vmatpush1.bf16.msra.mxu0 %v3455
    %3612 = vmatprep.subr.bf16.mxu0 %v3460
    %3613 = vmatpush1.bf16.msra.mxu0 %v3459
    %3614 = vmatprep.subr.bf16.mxu0 %v3464
    %3615 = vmatpush1.bf16.msra.mxu0 %v3463
    %3616 = vmatprep.subr.bf16.mxu0 %v3468
    %3617 = vmatpush1.bf16.msra.mxu0 %v3467
    %3618 = vmatprep.subr.bf16.mxu0 %v3472
    %3619 = vmatpush1.bf16.msra.mxu0 %v3471
    %3620 = vmatprep.subr.bf16.mxu0 %v3476
    %3621 = vmatpush1.bf16.msra.mxu0 %v3475
    %3622 = vmatprep.subr.bf16.mxu0 %v3480
    %3623 = vmatpush1.bf16.msra.mxu0 %v3479
    %3624 = vmatprep.subr.bf16.mxu0 %v3484
    %3625 = vmatpush1.bf16.msra.mxu0 %v3483
    %3626 = vmatprep.subr.bf16.mxu0 %v3488
    %3627 = vmatpush1.bf16.msra.mxu0 %v3487
    %3628 = vmatprep.mubr.bf16.mxu0 %v3146
    %3629 = vmatmul.mubr.bf16.gmra.mrb[0].mxu0 %v3145
    %v3630 = vpop.f32.mrb[0].mxu0
    %v3631 = vadd.f32 %v3224, %v3630
    %v3632 = vpop.f32.mrb[0].mxu0
    %v3633 = vadd.f32 %v3228, %v3632
    %v3634 = vpop.f32.mrb[0].mxu0
    %v3635 = vadd.f32 %v3224, %v3634
    %v3636 = vpop.f32.mrb[0].mxu0
    %v3637 = vadd.f32 %v3228, %v3636
    %3638 = vdwg.mxu0
    %v3639 = vmax.f32 %v3588, 0.0
    %v3640 = vmax.f32 %v3590, 0.0
    %v3641 = vmax.f32 %v3631, 0.0
    %v3642 = vmax.f32 %v3633, 0.0
    %v3643 = vmax.f32 %v3592, 0.0
    %v3644 = vmax.f32 %v3594, 0.0
    %v3645 = vmax.f32 %v3635, 0.0
    %v3646 = vmax.f32 %v3637, 0.0
    %v3647 = vpack.c.bf16 %v3643, %v3639
    %v3648 = vpack.c.bf16 %v3644, %v3640
    %v3649 = vpack.c.bf16 %v3645, %v3641
    %v3650 = vpack.c.bf16 %v3646, %v3642
    %v3651 = vld [vmem:[#allocation9] sm:$0xff]
    %v3652 = vld [vmem:[#allocation9 + $0x8] sm:$0xff]
    %v3653 = vld [vmem:[#allocation9 + $0x10] sm:$0xff]
    %v3654 = vld [vmem:[#allocation9 + $0x18] sm:$0xff]
    %v3655 = vld [vmem:[#allocation9 + $0x20] sm:$0xff]
    %v3656 = vld [vmem:[#allocation9 + $0x28] sm:$0xff]
    %v3657 = vld [vmem:[#allocation9 + $0x30] sm:$0xff]
    %v3658 = vld [vmem:[#allocation9 + $0x38] sm:$0xff]
    %v3659 = vld [vmem:[#allocation9 + $0x40] sm:$0xff]
    %v3660 = vld [vmem:[#allocation9 + $0x48] sm:$0xff]
    %v3661 = vld [vmem:[#allocation9 + $0x50] sm:$0xff]
    %v3662 = vld [vmem:[#allocation9 + $0x58] sm:$0xff]
    %v3663 = vld [vmem:[#allocation9 + $0x60] sm:$0xff]
    %v3664 = vld [vmem:[#allocation9 + $0x68] sm:$0xff]
    %v3665 = vld [vmem:[#allocation9 + $0x70] sm:$0xff]
    %v3666 = vld [vmem:[#allocation9 + $0x78] sm:$0xff]
    %v3667 = vld [vmem:[#allocation9 + $0x80] sm:$0xff]
    %v3668 = vld [vmem:[#allocation9 + $0x88] sm:$0xff]
    %v3669 = vld [vmem:[#allocation9 + $0x90] sm:$0xff]
    %v3670 = vld [vmem:[#allocation9 + $0x98] sm:$0xff]
    %v3671 = vld [vmem:[#allocation9 + $0xa0] sm:$0xff]
    %v3672 = vld [vmem:[#allocation9 + $0xa8] sm:$0xff]
    %v3673 = vld [vmem:[#allocation9 + $0xb0] sm:$0xff]
    %v3674 = vld [vmem:[#allocation9 + $0xb8] sm:$0xff]
    %v3675 = vld [vmem:[#allocation9 + $0xc0] sm:$0xff]
    %v3676 = vld [vmem:[#allocation9 + $0xc8] sm:$0xff]
    %v3677 = vld [vmem:[#allocation9 + $0xd0] sm:$0xff]
    %v3678 = vld [vmem:[#allocation9 + $0xd8] sm:$0xff]
    %v3679 = vld [vmem:[#allocation9 + $0xe0] sm:$0xff]
    %v3680 = vld [vmem:[#allocation9 + $0xe8] sm:$0xff]
    %v3681 = vld [vmem:[#allocation9 + $0xf0] sm:$0xff]
    %v3682 = vld [vmem:[#allocation9 + $0xf8] sm:$0xff]
    %v3683 = vld [vmem:[#allocation9 + $0x100] sm:$0xff]
    %v3684 = vld [vmem:[#allocation9 + $0x108] sm:$0xff]
    %v3685 = vld [vmem:[#allocation9 + $0x110] sm:$0xff]
    %v3686 = vld [vmem:[#allocation9 + $0x118] sm:$0xff]
    %v3687 = vld [vmem:[#allocation9 + $0x120] sm:$0xff]
    %v3688 = vld [vmem:[#allocation9 + $0x128] sm:$0xff]
    %v3689 = vld [vmem:[#allocation9 + $0x130] sm:$0xff]
    %v3690 = vld [vmem:[#allocation9 + $0x138] sm:$0xff]
    %v3691 = vld [vmem:[#allocation9 + $0x140] sm:$0xff]
    %v3692 = vld [vmem:[#allocation9 + $0x148] sm:$0xff]
    %v3693 = vld [vmem:[#allocation9 + $0x150] sm:$0xff]
    %v3694 = vld [vmem:[#allocation9 + $0x158] sm:$0xff]
    %v3695 = vld [vmem:[#allocation9 + $0x160] sm:$0xff]
    %v3696 = vld [vmem:[#allocation9 + $0x168] sm:$0xff]
    %v3697 = vld [vmem:[#allocation9 + $0x170] sm:$0xff]
    %v3698 = vld [vmem:[#allocation9 + $0x178] sm:$0xff]
    %v3699 = vld [vmem:[#allocation9 + $0x180] sm:$0xff]
    %v3700 = vld [vmem:[#allocation9 + $0x188] sm:$0xff]
    %v3701 = vld [vmem:[#allocation9 + $0x190] sm:$0xff]
    %v3702 = vld [vmem:[#allocation9 + $0x198] sm:$0xff]
    %v3703 = vld [vmem:[#allocation9 + $0x1a0] sm:$0xff]
    %v3704 = vld [vmem:[#allocation9 + $0x1a8] sm:$0xff]
    %v3705 = vld [vmem:[#allocation9 + $0x1b0] sm:$0xff]
    %v3706 = vld [vmem:[#allocation9 + $0x1b8] sm:$0xff]
    %v3707 = vld [vmem:[#allocation9 + $0x1c0] sm:$0xff]
    %v3708 = vld [vmem:[#allocation9 + $0x1c8] sm:$0xff]
    %v3709 = vld [vmem:[#allocation9 + $0x1d0] sm:$0xff]
    %v3710 = vld [vmem:[#allocation9 + $0x1d8] sm:$0xff]
    %v3711 = vld [vmem:[#allocation9 + $0x1e0] sm:$0xff]
    %v3712 = vld [vmem:[#allocation9 + $0x1e8] sm:$0xff]
    %v3713 = vld [vmem:[#allocation9 + $0x1f0] sm:$0xff]
    %v3714 = vld [vmem:[#allocation9 + $0x1f8] sm:$0xff]
    %v3715 = vld [vmem:[#allocation9 + $0x200] sm:$0xff]
    %v3716 = vld [vmem:[#allocation9 + $0x208] sm:$0xff]
    %v3717 = vld [vmem:[#allocation9 + $0x210] sm:$0xff]
    %v3718 = vld [vmem:[#allocation9 + $0x218] sm:$0xff]
    %v3719 = vld [vmem:[#allocation9 + $0x220] sm:$0xff]
    %v3720 = vld [vmem:[#allocation9 + $0x228] sm:$0xff]
    %v3721 = vld [vmem:[#allocation9 + $0x230] sm:$0xff]
    %v3722 = vld [vmem:[#allocation9 + $0x238] sm:$0xff]
    %v3723 = vld [vmem:[#allocation9 + $0x240] sm:$0xff]
    %v3724 = vld [vmem:[#allocation9 + $0x248] sm:$0xff]
    %v3725 = vld [vmem:[#allocation9 + $0x250] sm:$0xff]
    %v3726 = vld [vmem:[#allocation9 + $0x258] sm:$0xff]
    %v3727 = vld [vmem:[#allocation9 + $0x260] sm:$0xff]
    %v3728 = vld [vmem:[#allocation9 + $0x268] sm:$0xff]
    %v3729 = vld [vmem:[#allocation9 + $0x270] sm:$0xff]
    %v3730 = vld [vmem:[#allocation9 + $0x278] sm:$0xff]
    %v3731 = vld [vmem:[#allocation9 + $0x280] sm:$0xff]
    %v3732 = vld [vmem:[#allocation9 + $0x288] sm:$0xff]
    %v3733 = vld [vmem:[#allocation9 + $0x290] sm:$0xff]
    %v3734 = vld [vmem:[#allocation9 + $0x298] sm:$0xff]
    %v3735 = vld [vmem:[#allocation9 + $0x2a0] sm:$0xff]
    %v3736 = vld [vmem:[#allocation9 + $0x2a8] sm:$0xff]
    %v3737 = vld [vmem:[#allocation9 + $0x2b0] sm:$0xff]
    %v3738 = vld [vmem:[#allocation9 + $0x2b8] sm:$0xff]
    %v3739 = vld [vmem:[#allocation9 + $0x2c0] sm:$0xff]
    %v3740 = vld [vmem:[#allocation9 + $0x2c8] sm:$0xff]
    %v3741 = vld [vmem:[#allocation9 + $0x2d0] sm:$0xff]
    %v3742 = vld [vmem:[#allocation9 + $0x2d8] sm:$0xff]
    %v3743 = vld [vmem:[#allocation9 + $0x2e0] sm:$0xff]
    %v3744 = vld [vmem:[#allocation9 + $0x2e8] sm:$0xff]
    %v3745 = vld [vmem:[#allocation9 + $0x2f0] sm:$0xff]
    %v3746 = vld [vmem:[#allocation9 + $0x2f8] sm:$0xff]
    %v3747 = vld [vmem:[#allocation9 + $0x300] sm:$0xff]
    %v3748 = vld [vmem:[#allocation9 + $0x308] sm:$0xff]
    %v3749 = vld [vmem:[#allocation9 + $0x310] sm:$0xff]
    %v3750 = vld [vmem:[#allocation9 + $0x318] sm:$0xff]
    %v3751 = vld [vmem:[#allocation9 + $0x320] sm:$0xff]
    %v3752 = vld [vmem:[#allocation9 + $0x328] sm:$0xff]
    %v3753 = vld [vmem:[#allocation9 + $0x330] sm:$0xff]
    %v3754 = vld [vmem:[#allocation9 + $0x338] sm:$0xff]
    %v3755 = vld [vmem:[#allocation9 + $0x340] sm:$0xff]
    %v3756 = vld [vmem:[#allocation9 + $0x348] sm:$0xff]
    %v3757 = vld [vmem:[#allocation9 + $0x350] sm:$0xff]
    %v3758 = vld [vmem:[#allocation9 + $0x358] sm:$0xff]
    %v3759 = vld [vmem:[#allocation9 + $0x360] sm:$0xff]
    %v3760 = vld [vmem:[#allocation9 + $0x368] sm:$0xff]
    %v3761 = vld [vmem:[#allocation9 + $0x370] sm:$0xff]
    %v3762 = vld [vmem:[#allocation9 + $0x378] sm:$0xff]
    %v3763 = vld [vmem:[#allocation9 + $0x380] sm:$0xff]
    %v3764 = vld [vmem:[#allocation9 + $0x388] sm:$0xff]
    %v3765 = vld [vmem:[#allocation9 + $0x390] sm:$0xff]
    %v3766 = vld [vmem:[#allocation9 + $0x398] sm:$0xff]
    %v3767 = vld [vmem:[#allocation9 + $0x3a0] sm:$0xff]
    %v3768 = vld [vmem:[#allocation9 + $0x3a8] sm:$0xff]
    %v3769 = vld [vmem:[#allocation9 + $0x3b0] sm:$0xff]
    %v3770 = vld [vmem:[#allocation9 + $0x3b8] sm:$0xff]
    %v3771 = vld [vmem:[#allocation9 + $0x3c0] sm:$0xff]
    %v3772 = vld [vmem:[#allocation9 + $0x3c8] sm:$0xff]
    %v3773 = vld [vmem:[#allocation9 + $0x3d0] sm:$0xff]
    %v3774 = vld [vmem:[#allocation9 + $0x3d8] sm:$0xff]
    %v3775 = vld [vmem:[#allocation9 + $0x3e0] sm:$0xff]
    %v3776 = vld [vmem:[#allocation9 + $0x3e8] sm:$0xff]
    %v3777 = vld [vmem:[#allocation9 + $0x3f0] sm:$0xff]
    %v3778 = vld [vmem:[#allocation9 + $0x3f8] sm:$0xff]
    %v3779 = vld [vmem:[#allocation9 + $0x400] sm:$0xff]
    %v3780 = vld [vmem:[#allocation9 + $0x408] sm:$0xff]
    %v3781 = vld [vmem:[#allocation9 + $0x410] sm:$0xff]
    %v3782 = vld [vmem:[#allocation9 + $0x418] sm:$0xff]
    %v3783 = vld [vmem:[#allocation9 + $0x420] sm:$0xff]
    %v3784 = vld [vmem:[#allocation9 + $0x428] sm:$0xff]
    %v3785 = vld [vmem:[#allocation9 + $0x430] sm:$0xff]
    %v3786 = vld [vmem:[#allocation9 + $0x438] sm:$0xff]
    %v3787 = vld [vmem:[#allocation9 + $0x440] sm:$0xff]
    %v3788 = vld [vmem:[#allocation9 + $0x448] sm:$0xff]
    %v3789 = vld [vmem:[#allocation9 + $0x450] sm:$0xff]
    %v3790 = vld [vmem:[#allocation9 + $0x458] sm:$0xff]
    %v3791 = vld [vmem:[#allocation9 + $0x460] sm:$0xff]
    %v3792 = vld [vmem:[#allocation9 + $0x468] sm:$0xff]
    %v3793 = vld [vmem:[#allocation9 + $0x470] sm:$0xff]
    %v3794 = vld [vmem:[#allocation9 + $0x478] sm:$0xff]
    %v3795 = vld [vmem:[#allocation9 + $0x480] sm:$0xff]
    %v3796 = vld [vmem:[#allocation9 + $0x488] sm:$0xff]
    %v3797 = vld [vmem:[#allocation9 + $0x490] sm:$0xff]
    %v3798 = vld [vmem:[#allocation9 + $0x498] sm:$0xff]
    %v3799 = vld [vmem:[#allocation9 + $0x4a0] sm:$0xff]
    %v3800 = vld [vmem:[#allocation9 + $0x4a8] sm:$0xff]
    %v3801 = vld [vmem:[#allocation9 + $0x4b0] sm:$0xff]
    %v3802 = vld [vmem:[#allocation9 + $0x4b8] sm:$0xff]
    %v3803 = vld [vmem:[#allocation9 + $0x4c0] sm:$0xff]
    %v3804 = vld [vmem:[#allocation9 + $0x4c8] sm:$0xff]
    %v3805 = vld [vmem:[#allocation9 + $0x4d0] sm:$0xff]
    %v3806 = vld [vmem:[#allocation9 + $0x4d8] sm:$0xff]
    %v3807 = vld [vmem:[#allocation9 + $0x4e0] sm:$0xff]
    %v3808 = vld [vmem:[#allocation9 + $0x4e8] sm:$0xff]
    %v3809 = vld [vmem:[#allocation9 + $0x4f0] sm:$0xff]
    %v3810 = vld [vmem:[#allocation9 + $0x4f8] sm:$0xff]
    %v3811 = vld [vmem:[#allocation9 + $0x500] sm:$0xff]
    %v3812 = vld [vmem:[#allocation9 + $0x508] sm:$0xff]
    %v3813 = vld [vmem:[#allocation9 + $0x510] sm:$0xff]
    %v3814 = vld [vmem:[#allocation9 + $0x518] sm:$0xff]
    %v3815 = vld [vmem:[#allocation9 + $0x520] sm:$0xff]
    %v3816 = vld [vmem:[#allocation9 + $0x528] sm:$0xff]
    %v3817 = vld [vmem:[#allocation9 + $0x530] sm:$0xff]
    %v3818 = vld [vmem:[#allocation9 + $0x538] sm:$0xff]
    %v3819 = vld [vmem:[#allocation9 + $0x540] sm:$0xff]
    %v3820 = vld [vmem:[#allocation9 + $0x548] sm:$0xff]
    %v3821 = vld [vmem:[#allocation9 + $0x550] sm:$0xff]
    %v3822 = vld [vmem:[#allocation9 + $0x558] sm:$0xff]
    %v3823 = vld [vmem:[#allocation9 + $0x560] sm:$0xff]
    %v3824 = vld [vmem:[#allocation9 + $0x568] sm:$0xff]
    %v3825 = vld [vmem:[#allocation9 + $0x570] sm:$0xff]
    %v3826 = vld [vmem:[#allocation9 + $0x578] sm:$0xff]
    %v3827 = vld [vmem:[#allocation9 + $0x580] sm:$0xff]
    %v3828 = vld [vmem:[#allocation9 + $0x588] sm:$0xff]
    %v3829 = vld [vmem:[#allocation9 + $0x590] sm:$0xff]
    %v3830 = vld [vmem:[#allocation9 + $0x598] sm:$0xff]
    %v3831 = vld [vmem:[#allocation9 + $0x5a0] sm:$0xff]
    %v3832 = vld [vmem:[#allocation9 + $0x5a8] sm:$0xff]
    %v3833 = vld [vmem:[#allocation9 + $0x5b0] sm:$0xff]
    %v3834 = vld [vmem:[#allocation9 + $0x5b8] sm:$0xff]
    %v3835 = vld [vmem:[#allocation9 + $0x5c0] sm:$0xff]
    %v3836 = vld [vmem:[#allocation9 + $0x5c8] sm:$0xff]
    %v3837 = vld [vmem:[#allocation9 + $0x5d0] sm:$0xff]
    %v3838 = vld [vmem:[#allocation9 + $0x5d8] sm:$0xff]
    %v3839 = vld [vmem:[#allocation9 + $0x5e0] sm:$0xff]
    %v3840 = vld [vmem:[#allocation9 + $0x5e8] sm:$0xff]
    %v3841 = vld [vmem:[#allocation9 + $0x5f0] sm:$0xff]
    %v3842 = vld [vmem:[#allocation9 + $0x5f8] sm:$0xff]
    %v3843 = vld [vmem:[#allocation9 + $0x600] sm:$0xff]
    %v3844 = vld [vmem:[#allocation9 + $0x608] sm:$0xff]
    %v3845 = vld [vmem:[#allocation9 + $0x610] sm:$0xff]
    %v3846 = vld [vmem:[#allocation9 + $0x618] sm:$0xff]
    %v3847 = vld [vmem:[#allocation9 + $0x620] sm:$0xff]
    %v3848 = vld [vmem:[#allocation9 + $0x628] sm:$0xff]
    %v3849 = vld [vmem:[#allocation9 + $0x630] sm:$0xff]
    %v3850 = vld [vmem:[#allocation9 + $0x638] sm:$0xff]
    %v3851 = vld [vmem:[#allocation9 + $0x640] sm:$0xff]
    %v3852 = vld [vmem:[#allocation9 + $0x648] sm:$0xff]
    %v3853 = vld [vmem:[#allocation9 + $0x650] sm:$0xff]
    %v3854 = vld [vmem:[#allocation9 + $0x658] sm:$0xff]
    %v3855 = vld [vmem:[#allocation9 + $0x660] sm:$0xff]
    %v3856 = vld [vmem:[#allocation9 + $0x668] sm:$0xff]
    %v3857 = vld [vmem:[#allocation9 + $0x670] sm:$0xff]
    %v3858 = vld [vmem:[#allocation9 + $0x678] sm:$0xff]
    %v3859 = vld [vmem:[#allocation9 + $0x680] sm:$0xff]
    %v3860 = vld [vmem:[#allocation9 + $0x688] sm:$0xff]
    %v3861 = vld [vmem:[#allocation9 + $0x690] sm:$0xff]
    %v3862 = vld [vmem:[#allocation9 + $0x698] sm:$0xff]
    %v3863 = vld [vmem:[#allocation9 + $0x6a0] sm:$0xff]
    %v3864 = vld [vmem:[#allocation9 + $0x6a8] sm:$0xff]
    %v3865 = vld [vmem:[#allocation9 + $0x6b0] sm:$0xff]
    %v3866 = vld [vmem:[#allocation9 + $0x6b8] sm:$0xff]
    %v3867 = vld [vmem:[#allocation9 + $0x6c0] sm:$0xff]
    %v3868 = vld [vmem:[#allocation9 + $0x6c8] sm:$0xff]
    %v3869 = vld [vmem:[#allocation9 + $0x6d0] sm:$0xff]
    %v3870 = vld [vmem:[#allocation9 + $0x6d8] sm:$0xff]
    %v3871 = vld [vmem:[#allocation9 + $0x6e0] sm:$0xff]
    %v3872 = vld [vmem:[#allocation9 + $0x6e8] sm:$0xff]
    %v3873 = vld [vmem:[#allocation9 + $0x6f0] sm:$0xff]
    %v3874 = vld [vmem:[#allocation9 + $0x6f8] sm:$0xff]
    %v3875 = vld [vmem:[#allocation9 + $0x700] sm:$0xff]
    %v3876 = vld [vmem:[#allocation9 + $0x708] sm:$0xff]
    %v3877 = vld [vmem:[#allocation9 + $0x710] sm:$0xff]
    %v3878 = vld [vmem:[#allocation9 + $0x718] sm:$0xff]
    %v3879 = vld [vmem:[#allocation9 + $0x720] sm:$0xff]
    %v3880 = vld [vmem:[#allocation9 + $0x728] sm:$0xff]
    %v3881 = vld [vmem:[#allocation9 + $0x730] sm:$0xff]
    %v3882 = vld [vmem:[#allocation9 + $0x738] sm:$0xff]
    %v3883 = vld [vmem:[#allocation9 + $0x740] sm:$0xff]
    %v3884 = vld [vmem:[#allocation9 + $0x748] sm:$0xff]
    %v3885 = vld [vmem:[#allocation9 + $0x750] sm:$0xff]
    %v3886 = vld [vmem:[#allocation9 + $0x758] sm:$0xff]
    %v3887 = vld [vmem:[#allocation9 + $0x760] sm:$0xff]
    %v3888 = vld [vmem:[#allocation9 + $0x768] sm:$0xff]
    %v3889 = vld [vmem:[#allocation9 + $0x770] sm:$0xff]
    %v3890 = vld [vmem:[#allocation9 + $0x778] sm:$0xff]
    %v3891 = vld [vmem:[#allocation9 + $0x780] sm:$0xff]
    %v3892 = vld [vmem:[#allocation9 + $0x788] sm:$0xff]
    %v3893 = vld [vmem:[#allocation9 + $0x790] sm:$0xff]
    %v3894 = vld [vmem:[#allocation9 + $0x798] sm:$0xff]
    %v3895 = vld [vmem:[#allocation9 + $0x7a0] sm:$0xff]
    %v3896 = vld [vmem:[#allocation9 + $0x7a8] sm:$0xff]
    %v3897 = vld [vmem:[#allocation9 + $0x7b0] sm:$0xff]
    %v3898 = vld [vmem:[#allocation9 + $0x7b8] sm:$0xff]
    %v3899 = vld [vmem:[#allocation9 + $0x7c0] sm:$0xff]
    %v3900 = vld [vmem:[#allocation9 + $0x7c8] sm:$0xff]
    %v3901 = vld [vmem:[#allocation9 + $0x7d0] sm:$0xff]
    %v3902 = vld [vmem:[#allocation9 + $0x7d8] sm:$0xff]
    %v3903 = vld [vmem:[#allocation9 + $0x7e0] sm:$0xff]
    %v3904 = vld [vmem:[#allocation9 + $0x7e8] sm:$0xff]
    %v3905 = vld [vmem:[#allocation9 + $0x7f0] sm:$0xff]
    %v3906 = vld [vmem:[#allocation9 + $0x7f8] sm:$0xff]
    %v3907 = vld [vmem:[#allocation10] sm:$0xff]
    %v3909 = vlaneseq
    %v3910 = vshrl.u32 %v3909, 7
    %v3911 = vsub.s32 0, %v3910
    %v3912 = vrot.slane %v3907, %v3911
    %v3913 = vlaneseq
    %v3914 = vshrl.u32 %v3913, 7
    %v3915 = vsub.s32 1, %v3914
    %v3916 = vrot.slane %v3907, %v3915
    %v3917 = vlaneseq
    %v3918 = vshrl.u32 %v3917, 7
    %v3919 = vsub.s32 2, %v3918
    %v3920 = vrot.slane %v3907, %v3919
    %v3921 = vlaneseq
    %v3922 = vshrl.u32 %v3921, 7
    %v3923 = vsub.s32 3, %v3922
    %v3924 = vrot.slane %v3907, %v3923
    %v3925 = vlaneseq
    %v3926 = vshrl.u32 %v3925, 7
    %v3927 = vsub.s32 4, %v3926
    %v3928 = vrot.slane %v3907, %v3927
    %v3929 = vlaneseq
    %v3930 = vshrl.u32 %v3929, 7
    %v3931 = vsub.s32 5, %v3930
    %v3932 = vrot.slane %v3907, %v3931
    %v3933 = vlaneseq
    %v3934 = vshrl.u32 %v3933, 7
    %v3935 = vsub.s32 6, %v3934
    %v3936 = vrot.slane %v3907, %v3935
    %v3937 = vlaneseq
    %v3938 = vshrl.u32 %v3937, 7
    %v3939 = vsub.s32 7, %v3938
    %v3940 = vrot.slane %v3907, %v3939
    %v4205 = vunpack.c.l.b16 %v3651
    %v4206 = vunpack.c.h.b16 %v3651
    %v4207 = vunpack.c.l.b16 %v3652
    %v4208 = vunpack.c.h.b16 %v3652
    %v4209 = vunpack.c.l.b16 %v3653
    %v4210 = vunpack.c.h.b16 %v3653
    %v4211 = vunpack.c.l.b16 %v3654
    %v4212 = vunpack.c.h.b16 %v3654
    %v4213 = vunpack.c.l.b16 %v3655
    %v4214 = vunpack.c.h.b16 %v3655
    %v4215 = vunpack.c.l.b16 %v3656
    %v4216 = vunpack.c.h.b16 %v3656
    %v4217 = vunpack.c.l.b16 %v3657
    %v4218 = vunpack.c.h.b16 %v3657
    %v4219 = vunpack.c.l.b16 %v3658
    %v4220 = vunpack.c.h.b16 %v3658
    %v4221 = vunpack.c.l.b16 %v3659
    %v4222 = vunpack.c.h.b16 %v3659
    %v4223 = vunpack.c.l.b16 %v3660
    %v4224 = vunpack.c.h.b16 %v3660
    %v4225 = vunpack.c.l.b16 %v3661
    %v4226 = vunpack.c.h.b16 %v3661
    %v4227 = vunpack.c.l.b16 %v3662
    %v4228 = vunpack.c.h.b16 %v3662
    %v4229 = vunpack.c.l.b16 %v3663
    %v4230 = vunpack.c.h.b16 %v3663
    %v4231 = vunpack.c.l.b16 %v3664
    %v4232 = vunpack.c.h.b16 %v3664
    %v4233 = vunpack.c.l.b16 %v3665
    %v4234 = vunpack.c.h.b16 %v3665
    %v4235 = vunpack.c.l.b16 %v3666
    %v4236 = vunpack.c.h.b16 %v3666
    %v4237 = vunpack.c.l.b16 %v3667
    %v4238 = vunpack.c.h.b16 %v3667
    %v4239 = vunpack.c.l.b16 %v3668
    %v4240 = vunpack.c.h.b16 %v3668
    %v4241 = vunpack.c.l.b16 %v3669
    %v4242 = vunpack.c.h.b16 %v3669
    %v4243 = vunpack.c.l.b16 %v3670
    %v4244 = vunpack.c.h.b16 %v3670
    %v4245 = vunpack.c.l.b16 %v3671
    %v4246 = vunpack.c.h.b16 %v3671
    %v4247 = vunpack.c.l.b16 %v3672
    %v4248 = vunpack.c.h.b16 %v3672
    %v4249 = vunpack.c.l.b16 %v3673
    %v4250 = vunpack.c.h.b16 %v3673
    %v4251 = vunpack.c.l.b16 %v3674
    %v4252 = vunpack.c.h.b16 %v3674
    %v4253 = vunpack.c.l.b16 %v3675
    %v4254 = vunpack.c.h.b16 %v3675
    %v4255 = vunpack.c.l.b16 %v3676
    %v4256 = vunpack.c.h.b16 %v3676
    %v4257 = vunpack.c.l.b16 %v3677
    %v4258 = vunpack.c.h.b16 %v3677
    %v4259 = vunpack.c.l.b16 %v3678
    %v4260 = vunpack.c.h.b16 %v3678
    %v4261 = vunpack.c.l.b16 %v3679
    %v4262 = vunpack.c.h.b16 %v3679
    %v4263 = vunpack.c.l.b16 %v3680
    %v4264 = vunpack.c.h.b16 %v3680
    %v4265 = vunpack.c.l.b16 %v3681
    %v4266 = vunpack.c.h.b16 %v3681
    %v4267 = vunpack.c.l.b16 %v3682
    %v4268 = vunpack.c.h.b16 %v3682
    %v4269 = vunpack.c.l.b16 %v3683
    %v4270 = vunpack.c.h.b16 %v3683
    %v4271 = vunpack.c.l.b16 %v3684
    %v4272 = vunpack.c.h.b16 %v3684
    %v4273 = vunpack.c.l.b16 %v3685
    %v4274 = vunpack.c.h.b16 %v3685
    %v4275 = vunpack.c.l.b16 %v3686
    %v4276 = vunpack.c.h.b16 %v3686
    %v4277 = vunpack.c.l.b16 %v3687
    %v4278 = vunpack.c.h.b16 %v3687
    %v4279 = vunpack.c.l.b16 %v3688
    %v4280 = vunpack.c.h.b16 %v3688
    %v4281 = vunpack.c.l.b16 %v3689
    %v4282 = vunpack.c.h.b16 %v3689
    %v4283 = vunpack.c.l.b16 %v3690
    %v4284 = vunpack.c.h.b16 %v3690
    %v4285 = vunpack.c.l.b16 %v3691
    %v4286 = vunpack.c.h.b16 %v3691
    %v4287 = vunpack.c.l.b16 %v3692
    %v4288 = vunpack.c.h.b16 %v3692
    %v4289 = vunpack.c.l.b16 %v3693
    %v4290 = vunpack.c.h.b16 %v3693
    %v4291 = vunpack.c.l.b16 %v3694
    %v4292 = vunpack.c.h.b16 %v3694
    %v4293 = vunpack.c.l.b16 %v3695
    %v4294 = vunpack.c.h.b16 %v3695
    %v4295 = vunpack.c.l.b16 %v3696
    %v4296 = vunpack.c.h.b16 %v3696
    %v4297 = vunpack.c.l.b16 %v3697
    %v4298 = vunpack.c.h.b16 %v3697
    %v4299 = vunpack.c.l.b16 %v3698
    %v4300 = vunpack.c.h.b16 %v3698
    %v4301 = vunpack.c.l.b16 %v3699
    %v4302 = vunpack.c.h.b16 %v3699
    %v4303 = vunpack.c.l.b16 %v3700
    %v4304 = vunpack.c.h.b16 %v3700
    %v4305 = vunpack.c.l.b16 %v3701
    %v4306 = vunpack.c.h.b16 %v3701
    %v4307 = vunpack.c.l.b16 %v3702
    %v4308 = vunpack.c.h.b16 %v3702
    %v4309 = vunpack.c.l.b16 %v3703
    %v4310 = vunpack.c.h.b16 %v3703
    %v4311 = vunpack.c.l.b16 %v3704
    %v4312 = vunpack.c.h.b16 %v3704
    %v4313 = vunpack.c.l.b16 %v3705
    %v4314 = vunpack.c.h.b16 %v3705
    %v4315 = vunpack.c.l.b16 %v3706
    %v4316 = vunpack.c.h.b16 %v3706
    %v4317 = vunpack.c.l.b16 %v3707
    %v4318 = vunpack.c.h.b16 %v3707
    %v4319 = vunpack.c.l.b16 %v3708
    %v4320 = vunpack.c.h.b16 %v3708
    %v4321 = vunpack.c.l.b16 %v3709
    %v4322 = vunpack.c.h.b16 %v3709
    %v4323 = vunpack.c.l.b16 %v3710
    %v4324 = vunpack.c.h.b16 %v3710
    %v4325 = vunpack.c.l.b16 %v3711
    %v4326 = vunpack.c.h.b16 %v3711
    %v4327 = vunpack.c.l.b16 %v3712
    %v4328 = vunpack.c.h.b16 %v3712
    %v4329 = vunpack.c.l.b16 %v3713
    %v4330 = vunpack.c.h.b16 %v3713
    %v4331 = vunpack.c.l.b16 %v3714
    %v4332 = vunpack.c.h.b16 %v3714
    %v4333 = vunpack.c.l.b16 %v3715
    %v4334 = vunpack.c.h.b16 %v3715
    %v4335 = vunpack.c.l.b16 %v3716
    %v4336 = vunpack.c.h.b16 %v3716
    %v4337 = vunpack.c.l.b16 %v3717
    %v4338 = vunpack.c.h.b16 %v3717
    %v4339 = vunpack.c.l.b16 %v3718
    %v4340 = vunpack.c.h.b16 %v3718
    %v4341 = vunpack.c.l.b16 %v3719
    %v4342 = vunpack.c.h.b16 %v3719
    %v4343 = vunpack.c.l.b16 %v3720
    %v4344 = vunpack.c.h.b16 %v3720
    %v4345 = vunpack.c.l.b16 %v3721
    %v4346 = vunpack.c.h.b16 %v3721
    %v4347 = vunpack.c.l.b16 %v3722
    %v4348 = vunpack.c.h.b16 %v3722
    %v4349 = vunpack.c.l.b16 %v3723
    %v4350 = vunpack.c.h.b16 %v3723
    %v4351 = vunpack.c.l.b16 %v3724
    %v4352 = vunpack.c.h.b16 %v3724
    %v4353 = vunpack.c.l.b16 %v3725
    %v4354 = vunpack.c.h.b16 %v3725
    %v4355 = vunpack.c.l.b16 %v3726
    %v4356 = vunpack.c.h.b16 %v3726
    %v4357 = vunpack.c.l.b16 %v3727
    %v4358 = vunpack.c.h.b16 %v3727
    %v4359 = vunpack.c.l.b16 %v3728
    %v4360 = vunpack.c.h.b16 %v3728
    %v4361 = vunpack.c.l.b16 %v3729
    %v4362 = vunpack.c.h.b16 %v3729
    %v4363 = vunpack.c.l.b16 %v3730
    %v4364 = vunpack.c.h.b16 %v3730
    %v4365 = vunpack.c.l.b16 %v3731
    %v4366 = vunpack.c.h.b16 %v3731
    %v4367 = vunpack.c.l.b16 %v3732
    %v4368 = vunpack.c.h.b16 %v3732
    %v4369 = vunpack.c.l.b16 %v3733
    %v4370 = vunpack.c.h.b16 %v3733
    %v4371 = vunpack.c.l.b16 %v3734
    %v4372 = vunpack.c.h.b16 %v3734
    %v4373 = vunpack.c.l.b16 %v3735
    %v4374 = vunpack.c.h.b16 %v3735
    %v4375 = vunpack.c.l.b16 %v3736
    %v4376 = vunpack.c.h.b16 %v3736
    %v4377 = vunpack.c.l.b16 %v3737
    %v4378 = vunpack.c.h.b16 %v3737
    %v4379 = vunpack.c.l.b16 %v3738
    %v4380 = vunpack.c.h.b16 %v3738
    %v4381 = vunpack.c.l.b16 %v3739
    %v4382 = vunpack.c.h.b16 %v3739
    %v4383 = vunpack.c.l.b16 %v3740
    %v4384 = vunpack.c.h.b16 %v3740
    %v4385 = vunpack.c.l.b16 %v3741
    %v4386 = vunpack.c.h.b16 %v3741
    %v4387 = vunpack.c.l.b16 %v3742
    %v4388 = vunpack.c.h.b16 %v3742
    %v4389 = vunpack.c.l.b16 %v3743
    %v4390 = vunpack.c.h.b16 %v3743
    %v4391 = vunpack.c.l.b16 %v3744
    %v4392 = vunpack.c.h.b16 %v3744
    %v4393 = vunpack.c.l.b16 %v3745
    %v4394 = vunpack.c.h.b16 %v3745
    %v4395 = vunpack.c.l.b16 %v3746
    %v4396 = vunpack.c.h.b16 %v3746
    %v4397 = vunpack.c.l.b16 %v3747
    %v4398 = vunpack.c.h.b16 %v3747
    %v4399 = vunpack.c.l.b16 %v3748
    %v4400 = vunpack.c.h.b16 %v3748
    %v4401 = vunpack.c.l.b16 %v3749
    %v4402 = vunpack.c.h.b16 %v3749
    %v4403 = vunpack.c.l.b16 %v3750
    %v4404 = vunpack.c.h.b16 %v3750
    %v4405 = vunpack.c.l.b16 %v3751
    %v4406 = vunpack.c.h.b16 %v3751
    %v4407 = vunpack.c.l.b16 %v3752
    %v4408 = vunpack.c.h.b16 %v3752
    %v4409 = vunpack.c.l.b16 %v3753
    %v4410 = vunpack.c.h.b16 %v3753
    %v4411 = vunpack.c.l.b16 %v3754
    %v4412 = vunpack.c.h.b16 %v3754
    %v4413 = vunpack.c.l.b16 %v3755
    %v4414 = vunpack.c.h.b16 %v3755
    %v4415 = vunpack.c.l.b16 %v3756
    %v4416 = vunpack.c.h.b16 %v3756
    %v4417 = vunpack.c.l.b16 %v3757
    %v4418 = vunpack.c.h.b16 %v3757
    %v4419 = vunpack.c.l.b16 %v3758
    %v4420 = vunpack.c.h.b16 %v3758
    %v4421 = vunpack.c.l.b16 %v3759
    %v4422 = vunpack.c.h.b16 %v3759
    %v4423 = vunpack.c.l.b16 %v3760
    %v4424 = vunpack.c.h.b16 %v3760
    %v4425 = vunpack.c.l.b16 %v3761
    %v4426 = vunpack.c.h.b16 %v3761
    %v4427 = vunpack.c.l.b16 %v3762
    %v4428 = vunpack.c.h.b16 %v3762
    %v4429 = vunpack.c.l.b16 %v3763
    %v4430 = vunpack.c.h.b16 %v3763
    %v4431 = vunpack.c.l.b16 %v3764
    %v4432 = vunpack.c.h.b16 %v3764
    %v4433 = vunpack.c.l.b16 %v3765
    %v4434 = vunpack.c.h.b16 %v3765
    %v4435 = vunpack.c.l.b16 %v3766
    %v4436 = vunpack.c.h.b16 %v3766
    %v4437 = vunpack.c.l.b16 %v3767
    %v4438 = vunpack.c.h.b16 %v3767
    %v4439 = vunpack.c.l.b16 %v3768
    %v4440 = vunpack.c.h.b16 %v3768
    %v4441 = vunpack.c.l.b16 %v3769
    %v4442 = vunpack.c.h.b16 %v3769
    %v4443 = vunpack.c.l.b16 %v3770
    %v4444 = vunpack.c.h.b16 %v3770
    %v4445 = vunpack.c.l.b16 %v3771
    %v4446 = vunpack.c.h.b16 %v3771
    %v4447 = vunpack.c.l.b16 %v3772
    %v4448 = vunpack.c.h.b16 %v3772
    %v4449 = vunpack.c.l.b16 %v3773
    %v4450 = vunpack.c.h.b16 %v3773
    %v4451 = vunpack.c.l.b16 %v3774
    %v4452 = vunpack.c.h.b16 %v3774
    %v4453 = vunpack.c.l.b16 %v3775
    %v4454 = vunpack.c.h.b16 %v3775
    %v4455 = vunpack.c.l.b16 %v3776
    %v4456 = vunpack.c.h.b16 %v3776
    %v4457 = vunpack.c.l.b16 %v3777
    %v4458 = vunpack.c.h.b16 %v3777
    %v4459 = vunpack.c.l.b16 %v3778
    %v4460 = vunpack.c.h.b16 %v3778
    %v4461 = vunpack.c.l.b16 %v3779
    %v4462 = vunpack.c.h.b16 %v3779
    %v4463 = vunpack.c.l.b16 %v3780
    %v4464 = vunpack.c.h.b16 %v3780
    %v4465 = vunpack.c.l.b16 %v3781
    %v4466 = vunpack.c.h.b16 %v3781
    %v4467 = vunpack.c.l.b16 %v3782
    %v4468 = vunpack.c.h.b16 %v3782
    %v4469 = vunpack.c.l.b16 %v3783
    %v4470 = vunpack.c.h.b16 %v3783
    %v4471 = vunpack.c.l.b16 %v3784
    %v4472 = vunpack.c.h.b16 %v3784
    %v4473 = vunpack.c.l.b16 %v3785
    %v4474 = vunpack.c.h.b16 %v3785
    %v4475 = vunpack.c.l.b16 %v3786
    %v4476 = vunpack.c.h.b16 %v3786
    %v4477 = vunpack.c.l.b16 %v3787
    %v4478 = vunpack.c.h.b16 %v3787
    %v4479 = vunpack.c.l.b16 %v3788
    %v4480 = vunpack.c.h.b16 %v3788
    %v4481 = vunpack.c.l.b16 %v3789
    %v4482 = vunpack.c.h.b16 %v3789
    %v4483 = vunpack.c.l.b16 %v3790
    %v4484 = vunpack.c.h.b16 %v3790
    %v4485 = vunpack.c.l.b16 %v3791
    %v4486 = vunpack.c.h.b16 %v3791
    %v4487 = vunpack.c.l.b16 %v3792
    %v4488 = vunpack.c.h.b16 %v3792
    %v4489 = vunpack.c.l.b16 %v3793
    %v4490 = vunpack.c.h.b16 %v3793
    %v4491 = vunpack.c.l.b16 %v3794
    %v4492 = vunpack.c.h.b16 %v3794
    %v4493 = vunpack.c.l.b16 %v3795
    %v4494 = vunpack.c.h.b16 %v3795
    %v4495 = vunpack.c.l.b16 %v3796
    %v4496 = vunpack.c.h.b16 %v3796
    %v4497 = vunpack.c.l.b16 %v3797
    %v4498 = vunpack.c.h.b16 %v3797
    %v4499 = vunpack.c.l.b16 %v3798
    %v4500 = vunpack.c.h.b16 %v3798
    %v4501 = vunpack.c.l.b16 %v3799
    %v4502 = vunpack.c.h.b16 %v3799
    %v4503 = vunpack.c.l.b16 %v3800
    %v4504 = vunpack.c.h.b16 %v3800
    %v4505 = vunpack.c.l.b16 %v3801
    %v4506 = vunpack.c.h.b16 %v3801
    %v4507 = vunpack.c.l.b16 %v3802
    %v4508 = vunpack.c.h.b16 %v3802
    %v4509 = vunpack.c.l.b16 %v3803
    %v4510 = vunpack.c.h.b16 %v3803
    %v4511 = vunpack.c.l.b16 %v3804
    %v4512 = vunpack.c.h.b16 %v3804
    %v4513 = vunpack.c.l.b16 %v3805
    %v4514 = vunpack.c.h.b16 %v3805
    %v4515 = vunpack.c.l.b16 %v3806
    %v4516 = vunpack.c.h.b16 %v3806
    %v4517 = vunpack.c.l.b16 %v3807
    %v4518 = vunpack.c.h.b16 %v3807
    %v4519 = vunpack.c.l.b16 %v3808
    %v4520 = vunpack.c.h.b16 %v3808
    %v4521 = vunpack.c.l.b16 %v3809
    %v4522 = vunpack.c.h.b16 %v3809
    %v4523 = vunpack.c.l.b16 %v3810
    %v4524 = vunpack.c.h.b16 %v3810
    %v4525 = vunpack.c.l.b16 %v3811
    %v4526 = vunpack.c.h.b16 %v3811
    %v4527 = vunpack.c.l.b16 %v3812
    %v4528 = vunpack.c.h.b16 %v3812
    %v4529 = vunpack.c.l.b16 %v3813
    %v4530 = vunpack.c.h.b16 %v3813
    %v4531 = vunpack.c.l.b16 %v3814
    %v4532 = vunpack.c.h.b16 %v3814
    %v4533 = vunpack.c.l.b16 %v3815
    %v4534 = vunpack.c.h.b16 %v3815
    %v4535 = vunpack.c.l.b16 %v3816
    %v4536 = vunpack.c.h.b16 %v3816
    %v4537 = vunpack.c.l.b16 %v3817
    %v4538 = vunpack.c.h.b16 %v3817
    %v4539 = vunpack.c.l.b16 %v3818
    %v4540 = vunpack.c.h.b16 %v3818
    %v4541 = vunpack.c.l.b16 %v3819
    %v4542 = vunpack.c.h.b16 %v3819
    %v4543 = vunpack.c.l.b16 %v3820
    %v4544 = vunpack.c.h.b16 %v3820
    %v4545 = vunpack.c.l.b16 %v3821
    %v4546 = vunpack.c.h.b16 %v3821
    %v4547 = vunpack.c.l.b16 %v3822
    %v4548 = vunpack.c.h.b16 %v3822
    %v4549 = vunpack.c.l.b16 %v3823
    %v4550 = vunpack.c.h.b16 %v3823
    %v4551 = vunpack.c.l.b16 %v3824
    %v4552 = vunpack.c.h.b16 %v3824
    %v4553 = vunpack.c.l.b16 %v3825
    %v4554 = vunpack.c.h.b16 %v3825
    %v4555 = vunpack.c.l.b16 %v3826
    %v4556 = vunpack.c.h.b16 %v3826
    %v4557 = vunpack.c.l.b16 %v3827
    %v4558 = vunpack.c.h.b16 %v3827
    %v4559 = vunpack.c.l.b16 %v3828
    %v4560 = vunpack.c.h.b16 %v3828
    %v4561 = vunpack.c.l.b16 %v3829
    %v4562 = vunpack.c.h.b16 %v3829
    %v4563 = vunpack.c.l.b16 %v3830
    %v4564 = vunpack.c.h.b16 %v3830
    %v4565 = vunpack.c.l.b16 %v3831
    %v4566 = vunpack.c.h.b16 %v3831
    %v4567 = vunpack.c.l.b16 %v3832
    %v4568 = vunpack.c.h.b16 %v3832
    %v4569 = vunpack.c.l.b16 %v3833
    %v4570 = vunpack.c.h.b16 %v3833
    %v4571 = vunpack.c.l.b16 %v3834
    %v4572 = vunpack.c.h.b16 %v3834
    %v4573 = vunpack.c.l.b16 %v3835
    %v4574 = vunpack.c.h.b16 %v3835
    %v4575 = vunpack.c.l.b16 %v3836
    %v4576 = vunpack.c.h.b16 %v3836
    %v4577 = vunpack.c.l.b16 %v3837
    %v4578 = vunpack.c.h.b16 %v3837
    %v4579 = vunpack.c.l.b16 %v3838
    %v4580 = vunpack.c.h.b16 %v3838
    %v4581 = vunpack.c.l.b16 %v3839
    %v4582 = vunpack.c.h.b16 %v3839
    %v4583 = vunpack.c.l.b16 %v3840
    %v4584 = vunpack.c.h.b16 %v3840
    %v4585 = vunpack.c.l.b16 %v3841
    %v4586 = vunpack.c.h.b16 %v3841
    %v4587 = vunpack.c.l.b16 %v3842
    %v4588 = vunpack.c.h.b16 %v3842
    %v4589 = vunpack.c.l.b16 %v3843
    %v4590 = vunpack.c.h.b16 %v3843
    %v4591 = vunpack.c.l.b16 %v3844
    %v4592 = vunpack.c.h.b16 %v3844
    %v4593 = vunpack.c.l.b16 %v3845
    %v4594 = vunpack.c.h.b16 %v3845
    %v4595 = vunpack.c.l.b16 %v3846
    %v4596 = vunpack.c.h.b16 %v3846
    %v4597 = vunpack.c.l.b16 %v3847
    %v4598 = vunpack.c.h.b16 %v3847
    %v4599 = vunpack.c.l.b16 %v3848
    %v4600 = vunpack.c.h.b16 %v3848
    %v4601 = vunpack.c.l.b16 %v3849
    %v4602 = vunpack.c.h.b16 %v3849
    %v4603 = vunpack.c.l.b16 %v3850
    %v4604 = vunpack.c.h.b16 %v3850
    %v4605 = vunpack.c.l.b16 %v3851
    %v4606 = vunpack.c.h.b16 %v3851
    %v4607 = vunpack.c.l.b16 %v3852
    %v4608 = vunpack.c.h.b16 %v3852
    %v4609 = vunpack.c.l.b16 %v3853
    %v4610 = vunpack.c.h.b16 %v3853
    %v4611 = vunpack.c.l.b16 %v3854
    %v4612 = vunpack.c.h.b16 %v3854
    %v4613 = vunpack.c.l.b16 %v3855
    %v4614 = vunpack.c.h.b16 %v3855
    %v4615 = vunpack.c.l.b16 %v3856
    %v4616 = vunpack.c.h.b16 %v3856
    %v4617 = vunpack.c.l.b16 %v3857
    %v4618 = vunpack.c.h.b16 %v3857
    %v4619 = vunpack.c.l.b16 %v3858
    %v4620 = vunpack.c.h.b16 %v3858
    %v4621 = vunpack.c.l.b16 %v3859
    %v4622 = vunpack.c.h.b16 %v3859
    %v4623 = vunpack.c.l.b16 %v3860
    %v4624 = vunpack.c.h.b16 %v3860
    %v4625 = vunpack.c.l.b16 %v3861
    %v4626 = vunpack.c.h.b16 %v3861
    %v4627 = vunpack.c.l.b16 %v3862
    %v4628 = vunpack.c.h.b16 %v3862
    %v4629 = vunpack.c.l.b16 %v3863
    %v4630 = vunpack.c.h.b16 %v3863
    %v4631 = vunpack.c.l.b16 %v3864
    %v4632 = vunpack.c.h.b16 %v3864
    %v4633 = vunpack.c.l.b16 %v3865
    %v4634 = vunpack.c.h.b16 %v3865
    %v4635 = vunpack.c.l.b16 %v3866
    %v4636 = vunpack.c.h.b16 %v3866
    %v4637 = vunpack.c.l.b16 %v3867
    %v4638 = vunpack.c.h.b16 %v3867
    %v4639 = vunpack.c.l.b16 %v3868
    %v4640 = vunpack.c.h.b16 %v3868
    %v4641 = vunpack.c.l.b16 %v3869
    %v4642 = vunpack.c.h.b16 %v3869
    %v4643 = vunpack.c.l.b16 %v3870
    %v4644 = vunpack.c.h.b16 %v3870
    %v4645 = vunpack.c.l.b16 %v3871
    %v4646 = vunpack.c.h.b16 %v3871
    %v4647 = vunpack.c.l.b16 %v3872
    %v4648 = vunpack.c.h.b16 %v3872
    %v4649 = vunpack.c.l.b16 %v3873
    %v4650 = vunpack.c.h.b16 %v3873
    %v4651 = vunpack.c.l.b16 %v3874
    %v4652 = vunpack.c.h.b16 %v3874
    %v4653 = vunpack.c.l.b16 %v3875
    %v4654 = vunpack.c.h.b16 %v3875
    %v4655 = vunpack.c.l.b16 %v3876
    %v4656 = vunpack.c.h.b16 %v3876
    %v4657 = vunpack.c.l.b16 %v3877
    %v4658 = vunpack.c.h.b16 %v3877
    %v4659 = vunpack.c.l.b16 %v3878
    %v4660 = vunpack.c.h.b16 %v3878
    %v4661 = vunpack.c.l.b16 %v3879
    %v4662 = vunpack.c.h.b16 %v3879
    %v4663 = vunpack.c.l.b16 %v3880
    %v4664 = vunpack.c.h.b16 %v3880
    %v4665 = vunpack.c.l.b16 %v3881
    %v4666 = vunpack.c.h.b16 %v3881
    %v4667 = vunpack.c.l.b16 %v3882
    %v4668 = vunpack.c.h.b16 %v3882
    %v4669 = vunpack.c.l.b16 %v3883
    %v4670 = vunpack.c.h.b16 %v3883
    %v4671 = vunpack.c.l.b16 %v3884
    %v4672 = vunpack.c.h.b16 %v3884
    %v4673 = vunpack.c.l.b16 %v3885
    %v4674 = vunpack.c.h.b16 %v3885
    %v4675 = vunpack.c.l.b16 %v3886
    %v4676 = vunpack.c.h.b16 %v3886
    %v4677 = vunpack.c.l.b16 %v3887
    %v4678 = vunpack.c.h.b16 %v3887
    %v4679 = vunpack.c.l.b16 %v3888
    %v4680 = vunpack.c.h.b16 %v3888
    %v4681 = vunpack.c.l.b16 %v3889
    %v4682 = vunpack.c.h.b16 %v3889
    %v4683 = vunpack.c.l.b16 %v3890
    %v4684 = vunpack.c.h.b16 %v3890
    %v4685 = vunpack.c.l.b16 %v3891
    %v4686 = vunpack.c.h.b16 %v3891
    %v4687 = vunpack.c.l.b16 %v3892
    %v4688 = vunpack.c.h.b16 %v3892
    %v4689 = vunpack.c.l.b16 %v3893
    %v4690 = vunpack.c.h.b16 %v3893
    %v4691 = vunpack.c.l.b16 %v3894
    %v4692 = vunpack.c.h.b16 %v3894
    %v4693 = vunpack.c.l.b16 %v3895
    %v4694 = vunpack.c.h.b16 %v3895
    %v4695 = vunpack.c.l.b16 %v3896
    %v4696 = vunpack.c.h.b16 %v3896
    %v4697 = vunpack.c.l.b16 %v3897
    %v4698 = vunpack.c.h.b16 %v3897
    %v4699 = vunpack.c.l.b16 %v3898
    %v4700 = vunpack.c.h.b16 %v3898
    %v4701 = vunpack.c.l.b16 %v3899
    %v4702 = vunpack.c.h.b16 %v3899
    %v4703 = vunpack.c.l.b16 %v3900
    %v4704 = vunpack.c.h.b16 %v3900
    %v4705 = vunpack.c.l.b16 %v3901
    %v4706 = vunpack.c.h.b16 %v3901
    %v4707 = vunpack.c.l.b16 %v3902
    %v4708 = vunpack.c.h.b16 %v3902
    %v4709 = vunpack.c.l.b16 %v3903
    %v4710 = vunpack.c.h.b16 %v3903
    %v4711 = vunpack.c.l.b16 %v3904
    %v4712 = vunpack.c.h.b16 %v3904
    %v4713 = vunpack.c.l.b16 %v3905
    %v4714 = vunpack.c.h.b16 %v3905
    %v4715 = vunpack.c.l.b16 %v3906
    %v4716 = vunpack.c.h.b16 %v3906
    %v4717 = vpack.c.b16 %v4213, %v4205
    %v4718 = vpack.c.b16 %v4214, %v4206
    %v4719 = vpack.c.b16 %v4215, %v4207
    %v4720 = vpack.c.b16 %v4216, %v4208
    %v4721 = vpack.c.b16 %v4217, %v4209
    %v4722 = vpack.c.b16 %v4218, %v4210
    %v4723 = vpack.c.b16 %v4219, %v4211
    %v4724 = vpack.c.b16 %v4220, %v4212
    %v4725 = vpack.c.b16 %v4229, %v4221
    %v4726 = vpack.c.b16 %v4230, %v4222
    %v4727 = vpack.c.b16 %v4231, %v4223
    %v4728 = vpack.c.b16 %v4232, %v4224
    %v4729 = vpack.c.b16 %v4233, %v4225
    %v4730 = vpack.c.b16 %v4234, %v4226
    %v4731 = vpack.c.b16 %v4235, %v4227
    %v4732 = vpack.c.b16 %v4236, %v4228
    %v4733 = vpack.c.b16 %v4245, %v4237
    %v4734 = vpack.c.b16 %v4246, %v4238
    %v4735 = vpack.c.b16 %v4247, %v4239
    %v4736 = vpack.c.b16 %v4248, %v4240
    %v4737 = vpack.c.b16 %v4249, %v4241
    %v4738 = vpack.c.b16 %v4250, %v4242
    %v4739 = vpack.c.b16 %v4251, %v4243
    %v4740 = vpack.c.b16 %v4252, %v4244
    %v4741 = vpack.c.b16 %v4261, %v4253
    %v4742 = vpack.c.b16 %v4262, %v4254
    %v4743 = vpack.c.b16 %v4263, %v4255
    %v4744 = vpack.c.b16 %v4264, %v4256
    %v4745 = vpack.c.b16 %v4265, %v4257
    %v4746 = vpack.c.b16 %v4266, %v4258
    %v4747 = vpack.c.b16 %v4267, %v4259
    %v4748 = vpack.c.b16 %v4268, %v4260
    %v4749 = vpack.c.b16 %v4277, %v4269
    %v4750 = vpack.c.b16 %v4278, %v4270
    %v4751 = vpack.c.b16 %v4279, %v4271
    %v4752 = vpack.c.b16 %v4280, %v4272
    %v4753 = vpack.c.b16 %v4281, %v4273
    %v4754 = vpack.c.b16 %v4282, %v4274
    %v4755 = vpack.c.b16 %v4283, %v4275
    %v4756 = vpack.c.b16 %v4284, %v4276
    %v4757 = vpack.c.b16 %v4293, %v4285
    %v4758 = vpack.c.b16 %v4294, %v4286
    %v4759 = vpack.c.b16 %v4295, %v4287
    %v4760 = vpack.c.b16 %v4296, %v4288
    %v4761 = vpack.c.b16 %v4297, %v4289
    %v4762 = vpack.c.b16 %v4298, %v4290
    %v4763 = vpack.c.b16 %v4299, %v4291
    %v4764 = vpack.c.b16 %v4300, %v4292
    %v4765 = vpack.c.b16 %v4309, %v4301
    %v4766 = vpack.c.b16 %v4310, %v4302
    %v4767 = vpack.c.b16 %v4311, %v4303
    %v4768 = vpack.c.b16 %v4312, %v4304
    %v4769 = vpack.c.b16 %v4313, %v4305
    %v4770 = vpack.c.b16 %v4314, %v4306
    %v4771 = vpack.c.b16 %v4315, %v4307
    %v4772 = vpack.c.b16 %v4316, %v4308
    %v4773 = vpack.c.b16 %v4325, %v4317
    %v4774 = vpack.c.b16 %v4326, %v4318
    %v4775 = vpack.c.b16 %v4327, %v4319
    %v4776 = vpack.c.b16 %v4328, %v4320
    %v4777 = vpack.c.b16 %v4329, %v4321
    %v4778 = vpack.c.b16 %v4330, %v4322
    %v4779 = vpack.c.b16 %v4331, %v4323
    %v4780 = vpack.c.b16 %v4332, %v4324
    %v4781 = vpack.c.b16 %v4341, %v4333
    %v4782 = vpack.c.b16 %v4342, %v4334
    %v4783 = vpack.c.b16 %v4343, %v4335
    %v4784 = vpack.c.b16 %v4344, %v4336
    %v4785 = vpack.c.b16 %v4345, %v4337
    %v4786 = vpack.c.b16 %v4346, %v4338
    %v4787 = vpack.c.b16 %v4347, %v4339
    %v4788 = vpack.c.b16 %v4348, %v4340
    %v4789 = vpack.c.b16 %v4357, %v4349
    %v4790 = vpack.c.b16 %v4358, %v4350
    %v4791 = vpack.c.b16 %v4359, %v4351
    %v4792 = vpack.c.b16 %v4360, %v4352
    %v4793 = vpack.c.b16 %v4361, %v4353
    %v4794 = vpack.c.b16 %v4362, %v4354
    %v4795 = vpack.c.b16 %v4363, %v4355
    %v4796 = vpack.c.b16 %v4364, %v4356
    %v4797 = vpack.c.b16 %v4373, %v4365
    %v4798 = vpack.c.b16 %v4374, %v4366
    %v4799 = vpack.c.b16 %v4375, %v4367
    %v4800 = vpack.c.b16 %v4376, %v4368
    %v4801 = vpack.c.b16 %v4377, %v4369
    %v4802 = vpack.c.b16 %v4378, %v4370
    %v4803 = vpack.c.b16 %v4379, %v4371
    %v4804 = vpack.c.b16 %v4380, %v4372
    %v4805 = vpack.c.b16 %v4389, %v4381
    %v4806 = vpack.c.b16 %v4390, %v4382
    %v4807 = vpack.c.b16 %v4391, %v4383
    %v4808 = vpack.c.b16 %v4392, %v4384
    %v4809 = vpack.c.b16 %v4393, %v4385
    %v4810 = vpack.c.b16 %v4394, %v4386
    %v4811 = vpack.c.b16 %v4395, %v4387
    %v4812 = vpack.c.b16 %v4396, %v4388
    %v4813 = vpack.c.b16 %v4405, %v4397
    %v4814 = vpack.c.b16 %v4406, %v4398
    %v4815 = vpack.c.b16 %v4407, %v4399
    %v4816 = vpack.c.b16 %v4408, %v4400
    %v4817 = vpack.c.b16 %v4409, %v4401
    %v4818 = vpack.c.b16 %v4410, %v4402
    %v4819 = vpack.c.b16 %v4411, %v4403
    %v4820 = vpack.c.b16 %v4412, %v4404
    %v4821 = vpack.c.b16 %v4421, %v4413
    %v4822 = vpack.c.b16 %v4422, %v4414
    %v4823 = vpack.c.b16 %v4423, %v4415
    %v4824 = vpack.c.b16 %v4424, %v4416
    %v4825 = vpack.c.b16 %v4425, %v4417
    %v4826 = vpack.c.b16 %v4426, %v4418
    %v4827 = vpack.c.b16 %v4427, %v4419
    %v4828 = vpack.c.b16 %v4428, %v4420
    %v4829 = vpack.c.b16 %v4437, %v4429
    %v4830 = vpack.c.b16 %v4438, %v4430
    %v4831 = vpack.c.b16 %v4439, %v4431
    %v4832 = vpack.c.b16 %v4440, %v4432
    %v4833 = vpack.c.b16 %v4441, %v4433
    %v4834 = vpack.c.b16 %v4442, %v4434
    %v4835 = vpack.c.b16 %v4443, %v4435
    %v4836 = vpack.c.b16 %v4444, %v4436
    %v4837 = vpack.c.b16 %v4453, %v4445
    %v4838 = vpack.c.b16 %v4454, %v4446
    %v4839 = vpack.c.b16 %v4455, %v4447
    %v4840 = vpack.c.b16 %v4456, %v4448
    %v4841 = vpack.c.b16 %v4457, %v4449
    %v4842 = vpack.c.b16 %v4458, %v4450
    %v4843 = vpack.c.b16 %v4459, %v4451
    %v4844 = vpack.c.b16 %v4460, %v4452
    %v4845 = vpack.c.b16 %v4469, %v4461
    %v4846 = vpack.c.b16 %v4470, %v4462
    %v4847 = vpack.c.b16 %v4471, %v4463
    %v4848 = vpack.c.b16 %v4472, %v4464
    %v4849 = vpack.c.b16 %v4473, %v4465
    %v4850 = vpack.c.b16 %v4474, %v4466
    %v4851 = vpack.c.b16 %v4475, %v4467
    %v4852 = vpack.c.b16 %v4476, %v4468
    %v4853 = vpack.c.b16 %v4485, %v4477
    %v4854 = vpack.c.b16 %v4486, %v4478
    %v4855 = vpack.c.b16 %v4487, %v4479
    %v4856 = vpack.c.b16 %v4488, %v4480
    %v4857 = vpack.c.b16 %v4489, %v4481
    %v4858 = vpack.c.b16 %v4490, %v4482
    %v4859 = vpack.c.b16 %v4491, %v4483
    %v4860 = vpack.c.b16 %v4492, %v4484
    %v4861 = vpack.c.b16 %v4501, %v4493
    %v4862 = vpack.c.b16 %v4502, %v4494
    %v4863 = vpack.c.b16 %v4503, %v4495
    %v4864 = vpack.c.b16 %v4504, %v4496
    %v4865 = vpack.c.b16 %v4505, %v4497
    %v4866 = vpack.c.b16 %v4506, %v4498
    %v4867 = vpack.c.b16 %v4507, %v4499
    %v4868 = vpack.c.b16 %v4508, %v4500
    %v4869 = vpack.c.b16 %v4517, %v4509
    %v4870 = vpack.c.b16 %v4518, %v4510
    %v4871 = vpack.c.b16 %v4519, %v4511
    %v4872 = vpack.c.b16 %v4520, %v4512
    %v4873 = vpack.c.b16 %v4521, %v4513
    %v4874 = vpack.c.b16 %v4522, %v4514
    %v4875 = vpack.c.b16 %v4523, %v4515
    %v4876 = vpack.c.b16 %v4524, %v4516
    %v4877 = vpack.c.b16 %v4533, %v4525
    %v4878 = vpack.c.b16 %v4534, %v4526
    %v4879 = vpack.c.b16 %v4535, %v4527
    %v4880 = vpack.c.b16 %v4536, %v4528
    %v4881 = vpack.c.b16 %v4537, %v4529
    %v4882 = vpack.c.b16 %v4538, %v4530
    %v4883 = vpack.c.b16 %v4539, %v4531
    %v4884 = vpack.c.b16 %v4540, %v4532
    %v4885 = vpack.c.b16 %v4549, %v4541
    %v4886 = vpack.c.b16 %v4550, %v4542
    %v4887 = vpack.c.b16 %v4551, %v4543
    %v4888 = vpack.c.b16 %v4552, %v4544
    %v4889 = vpack.c.b16 %v4553, %v4545
    %v4890 = vpack.c.b16 %v4554, %v4546
    %v4891 = vpack.c.b16 %v4555, %v4547
    %v4892 = vpack.c.b16 %v4556, %v4548
    %v4893 = vpack.c.b16 %v4565, %v4557
    %v4894 = vpack.c.b16 %v4566, %v4558
    %v4895 = vpack.c.b16 %v4567, %v4559
    %v4896 = vpack.c.b16 %v4568, %v4560
    %v4897 = vpack.c.b16 %v4569, %v4561
    %v4898 = vpack.c.b16 %v4570, %v4562
    %v4899 = vpack.c.b16 %v4571, %v4563
    %v4900 = vpack.c.b16 %v4572, %v4564
    %v4901 = vpack.c.b16 %v4581, %v4573
    %v4902 = vpack.c.b16 %v4582, %v4574
    %v4903 = vpack.c.b16 %v4583, %v4575
    %v4904 = vpack.c.b16 %v4584, %v4576
    %v4905 = vpack.c.b16 %v4585, %v4577
    %v4906 = vpack.c.b16 %v4586, %v4578
    %v4907 = vpack.c.b16 %v4587, %v4579
    %v4908 = vpack.c.b16 %v4588, %v4580
    %v4909 = vpack.c.b16 %v4597, %v4589
    %v4910 = vpack.c.b16 %v4598, %v4590
    %v4911 = vpack.c.b16 %v4599, %v4591
    %v4912 = vpack.c.b16 %v4600, %v4592
    %v4913 = vpack.c.b16 %v4601, %v4593
    %v4914 = vpack.c.b16 %v4602, %v4594
    %v4915 = vpack.c.b16 %v4603, %v4595
    %v4916 = vpack.c.b16 %v4604, %v4596
    %v4917 = vpack.c.b16 %v4613, %v4605
    %v4918 = vpack.c.b16 %v4614, %v4606
    %v4919 = vpack.c.b16 %v4615, %v4607
    %v4920 = vpack.c.b16 %v4616, %v4608
    %v4921 = vpack.c.b16 %v4617, %v4609
    %v4922 = vpack.c.b16 %v4618, %v4610
    %v4923 = vpack.c.b16 %v4619, %v4611
    %v4924 = vpack.c.b16 %v4620, %v4612
    %v4925 = vpack.c.b16 %v4629, %v4621
    %v4926 = vpack.c.b16 %v4630, %v4622
    %v4927 = vpack.c.b16 %v4631, %v4623
    %v4928 = vpack.c.b16 %v4632, %v4624
    %v4929 = vpack.c.b16 %v4633, %v4625
    %v4930 = vpack.c.b16 %v4634, %v4626
    %v4931 = vpack.c.b16 %v4635, %v4627
    %v4932 = vpack.c.b16 %v4636, %v4628
    %v4933 = vpack.c.b16 %v4645, %v4637
    %v4934 = vpack.c.b16 %v4646, %v4638
    %v4935 = vpack.c.b16 %v4647, %v4639
    %v4936 = vpack.c.b16 %v4648, %v4640
    %v4937 = vpack.c.b16 %v4649, %v4641
    %v4938 = vpack.c.b16 %v4650, %v4642
    %v4939 = vpack.c.b16 %v4651, %v4643
    %v4940 = vpack.c.b16 %v4652, %v4644
    %v4941 = vpack.c.b16 %v4661, %v4653
    %v4942 = vpack.c.b16 %v4662, %v4654
    %v4943 = vpack.c.b16 %v4663, %v4655
    %v4944 = vpack.c.b16 %v4664, %v4656
    %v4945 = vpack.c.b16 %v4665, %v4657
    %v4946 = vpack.c.b16 %v4666, %v4658
    %v4947 = vpack.c.b16 %v4667, %v4659
    %v4948 = vpack.c.b16 %v4668, %v4660
    %v4949 = vpack.c.b16 %v4677, %v4669
    %v4950 = vpack.c.b16 %v4678, %v4670
    %v4951 = vpack.c.b16 %v4679, %v4671
    %v4952 = vpack.c.b16 %v4680, %v4672
    %v4953 = vpack.c.b16 %v4681, %v4673
    %v4954 = vpack.c.b16 %v4682, %v4674
    %v4955 = vpack.c.b16 %v4683, %v4675
    %v4956 = vpack.c.b16 %v4684, %v4676
    %v4957 = vpack.c.b16 %v4693, %v4685
    %v4958 = vpack.c.b16 %v4694, %v4686
    %v4959 = vpack.c.b16 %v4695, %v4687
    %v4960 = vpack.c.b16 %v4696, %v4688
    %v4961 = vpack.c.b16 %v4697, %v4689
    %v4962 = vpack.c.b16 %v4698, %v4690
    %v4963 = vpack.c.b16 %v4699, %v4691
    %v4964 = vpack.c.b16 %v4700, %v4692
    %v4965 = vpack.c.b16 %v4709, %v4701
    %v4966 = vpack.c.b16 %v4710, %v4702
    %v4967 = vpack.c.b16 %v4711, %v4703
    %v4968 = vpack.c.b16 %v4712, %v4704
    %v4969 = vpack.c.b16 %v4713, %v4705
    %v4970 = vpack.c.b16 %v4714, %v4706
    %v4971 = vpack.c.b16 %v4715, %v4707
    %v4972 = vpack.c.b16 %v4716, %v4708
    %5229 = vmatprep.subr.bf16.mxu0 %v4718
    %5230 = vmatpush1.bf16.msra.mxu0 %v4717
    %5231 = vmatprep.subr.bf16.mxu0 %v4726
    %5232 = vmatpush1.bf16.msra.mxu0 %v4725
    %5233 = vmatprep.subr.bf16.mxu0 %v4734
    %5234 = vmatpush1.bf16.msra.mxu0 %v4733
    %5235 = vmatprep.subr.bf16.mxu0 %v4742
    %5236 = vmatpush1.bf16.msra.mxu0 %v4741
    %5237 = vmatprep.subr.bf16.mxu0 %v4750
    %5238 = vmatpush1.bf16.msra.mxu0 %v4749
    %5239 = vmatprep.subr.bf16.mxu0 %v4758
    %5240 = vmatpush1.bf16.msra.mxu0 %v4757
    %5241 = vmatprep.subr.bf16.mxu0 %v4766
    %5242 = vmatpush1.bf16.msra.mxu0 %v4765
    %5243 = vmatprep.subr.bf16.mxu0 %v4774
    %5244 = vmatpush1.bf16.msra.mxu0 %v4773
    %5245 = vmatprep.subr.bf16.mxu0 %v4782
    %5246 = vmatpush1.bf16.msra.mxu0 %v4781
    %5247 = vmatprep.subr.bf16.mxu0 %v4790
    %5248 = vmatpush1.bf16.msra.mxu0 %v4789
    %5249 = vmatprep.subr.bf16.mxu0 %v4798
    %5250 = vmatpush1.bf16.msra.mxu0 %v4797
    %5251 = vmatprep.subr.bf16.mxu0 %v4806
    %5252 = vmatpush1.bf16.msra.mxu0 %v4805
    %5253 = vmatprep.subr.bf16.mxu0 %v4814
    %5254 = vmatpush1.bf16.msra.mxu0 %v4813
    %5255 = vmatprep.subr.bf16.mxu0 %v4822
    %5256 = vmatpush1.bf16.msra.mxu0 %v4821
    %5257 = vmatprep.subr.bf16.mxu0 %v4830
    %5258 = vmatpush1.bf16.msra.mxu0 %v4829
    %5259 = vmatprep.subr.bf16.mxu0 %v4838
    %5260 = vmatpush1.bf16.msra.mxu0 %v4837
    %5261 = vmatprep.mubr.bf16.mxu0 %v3648
    %5262 = vmatmul.mubr.bf16.gmra.mrb[0].mxu0 %v3647
    %v5263 = vpop.f32.mrb[0].mxu0
    %v5264 = vadd.f32 %v3912, %v5263
    %v5265 = vpop.f32.mrb[0].mxu0
    %v5266 = vadd.f32 %v3916, %v5265
    %v5267 = vpop.f32.mrb[0].mxu0
    %v5268 = vadd.f32 %v3912, %v5267
    %v5269 = vpop.f32.mrb[0].mxu0
    %v5270 = vadd.f32 %v3916, %v5269
    %5271 = vdwg.mxu0
    %5272 = vmatprep.subr.bf16.mxu0 %v4846
    %5273 = vmatpush1.bf16.msra.mxu0 %v4845
    %5274 = vmatprep.subr.bf16.mxu0 %v4854
    %5275 = vmatpush1.bf16.msra.mxu0 %v4853
    %5276 = vmatprep.subr.bf16.mxu0 %v4862
    %5277 = vmatpush1.bf16.msra.mxu0 %v4861
    %5278 = vmatprep.subr.bf16.mxu0 %v4870
    %5279 = vmatpush1.bf16.msra.mxu0 %v4869
    %5280 = vmatprep.subr.bf16.mxu0 %v4878
    %5281 = vmatpush1.bf16.msra.mxu0 %v4877
    %5282 = vmatprep.subr.bf16.mxu0 %v4886
    %5283 = vmatpush1.bf16.msra.mxu0 %v4885
    %5284 = vmatprep.subr.bf16.mxu0 %v4894
    %5285 = vmatpush1.bf16.msra.mxu0 %v4893
    %5286 = vmatprep.subr.bf16.mxu0 %v4902
    %5287 = vmatpush1.bf16.msra.mxu0 %v4901
    %5288 = vmatprep.subr.bf16.mxu0 %v4910
    %5289 = vmatpush1.bf16.msra.mxu0 %v4909
    %5290 = vmatprep.subr.bf16.mxu0 %v4918
    %5291 = vmatpush1.bf16.msra.mxu0 %v4917
    %5292 = vmatprep.subr.bf16.mxu0 %v4926
    %5293 = vmatpush1.bf16.msra.mxu0 %v4925
    %5294 = vmatprep.subr.bf16.mxu0 %v4934
    %5295 = vmatpush1.bf16.msra.mxu0 %v4933
    %5296 = vmatprep.subr.bf16.mxu0 %v4942
    %5297 = vmatpush1.bf16.msra.mxu0 %v4941
    %5298 = vmatprep.subr.bf16.mxu0 %v4950
    %5299 = vmatpush1.bf16.msra.mxu0 %v4949
    %5300 = vmatprep.subr.bf16.mxu0 %v4958
    %5301 = vmatpush1.bf16.msra.mxu0 %v4957
    %5302 = vmatprep.subr.bf16.mxu0 %v4966
    %5303 = vmatpush1.bf16.msra.mxu0 %v4965
    %5304 = vmatprep.mubr.bf16.mxu0 %v3650
    %5305 = vmatmul.mubr.bf16.gmra.mrb[0].mxu0 %v3649
    %v5306 = vpop.f32.mrb[0].mxu0
    %v5307 = vadd.f32 %v5264, %v5306
    %v5308 = vpop.f32.mrb[0].mxu0
    %v5309 = vadd.f32 %v5266, %v5308
    %v5310 = vpop.f32.mrb[0].mxu0
    %v5311 = vadd.f32 %v5268, %v5310
    %v5312 = vpop.f32.mrb[0].mxu0
    %v5313 = vadd.f32 %v5270, %v5312
    %5314 = vdwg.mxu0
    %5315 = vmatprep.subr.bf16.mxu0 %v4720
    %5316 = vmatpush1.bf16.msra.mxu0 %v4719
    %5317 = vmatprep.subr.bf16.mxu0 %v4728
    %5318 = vmatpush1.bf16.msra.mxu0 %v4727
    %5319 = vmatprep.subr.bf16.mxu0 %v4736
    %5320 = vmatpush1.bf16.msra.mxu0 %v4735
    %5321 = vmatprep.subr.bf16.mxu0 %v4744
    %5322 = vmatpush1.bf16.msra.mxu0 %v4743
    %5323 = vmatprep.subr.bf16.mxu0 %v4752
    %5324 = vmatpush1.bf16.msra.mxu0 %v4751
    %5325 = vmatprep.subr.bf16.mxu0 %v4760
    %5326 = vmatpush1.bf16.msra.mxu0 %v4759
    %5327 = vmatprep.subr.bf16.mxu0 %v4768
    %5328 = vmatpush1.bf16.msra.mxu0 %v4767
    %5329 = vmatprep.subr.bf16.mxu0 %v4776
    %5330 = vmatpush1.bf16.msra.mxu0 %v4775
    %5331 = vmatprep.subr.bf16.mxu0 %v4784
    %5332 = vmatpush1.bf16.msra.mxu0 %v4783
    %5333 = vmatprep.subr.bf16.mxu0 %v4792
    %5334 = vmatpush1.bf16.msra.mxu0 %v4791
    %5335 = vmatprep.subr.bf16.mxu0 %v4800
    %5336 = vmatpush1.bf16.msra.mxu0 %v4799
    %5337 = vmatprep.subr.bf16.mxu0 %v4808
    %5338 = vmatpush1.bf16.msra.mxu0 %v4807
    %5339 = vmatprep.subr.bf16.mxu0 %v4816
    %5340 = vmatpush1.bf16.msra.mxu0 %v4815
    %5341 = vmatprep.subr.bf16.mxu0 %v4824
    %5342 = vmatpush1.bf16.msra.mxu0 %v4823
    %5343 = vmatprep.subr.bf16.mxu0 %v4832
    %5344 = vmatpush1.bf16.msra.mxu0 %v4831
    %5345 = vmatprep.subr.bf16.mxu0 %v4840
    %5346 = vmatpush1.bf16.msra.mxu0 %v4839
    %5347 = vmatprep.mubr.bf16.mxu0 %v3648
    %5348 = vmatmul.mubr.bf16.gmra.mrb[0].mxu0 %v3647
    %v5349 = vpop.f32.mrb[0].mxu0
    %v5350 = vadd.f32 %v3920, %v5349
    %v5351 = vpop.f32.mrb[0].mxu0
    %v5352 = vadd.f32 %v3924, %v5351
    %v5353 = vpop.f32.mrb[0].mxu0
    %v5354 = vadd.f32 %v3920, %v5353
    %v5355 = vpop.f32.mrb[0].mxu0
    %v5356 = vadd.f32 %v3924, %v5355
    %5357 = vdwg.mxu0
    %5358 = vmatprep.subr.bf16.mxu0 %v4848
    %5359 = vmatpush1.bf16.msra.mxu0 %v4847
    %5360 = vmatprep.subr.bf16.mxu0 %v4856
    %5361 = vmatpush1.bf16.msra.mxu0 %v4855
    %5362 = vmatprep.subr.bf16.mxu0 %v4864
    %5363 = vmatpush1.bf16.msra.mxu0 %v4863
    %5364 = vmatprep.subr.bf16.mxu0 %v4872
    %5365 = vmatpush1.bf16.msra.mxu0 %v4871
    %5366 = vmatprep.subr.bf16.mxu0 %v4880
    %5367 = vmatpush1.bf16.msra.mxu0 %v4879
    %5368 = vmatprep.subr.bf16.mxu0 %v4888
    %5369 = vmatpush1.bf16.msra.mxu0 %v4887
    %5370 = vmatprep.subr.bf16.mxu0 %v4896
    %5371 = vmatpush1.bf16.msra.mxu0 %v4895
    %5372 = vmatprep.subr.bf16.mxu0 %v4904
    %5373 = vmatpush1.bf16.msra.mxu0 %v4903
    %5374 = vmatprep.subr.bf16.mxu0 %v4912
    %5375 = vmatpush1.bf16.msra.mxu0 %v4911
    %5376 = vmatprep.subr.bf16.mxu0 %v4920
    %5377 = vmatpush1.bf16.msra.mxu0 %v4919
    %5378 = vmatprep.subr.bf16.mxu0 %v4928
    %5379 = vmatpush1.bf16.msra.mxu0 %v4927
    %5380 = vmatprep.subr.bf16.mxu0 %v4936
    %5381 = vmatpush1.bf16.msra.mxu0 %v4935
    %5382 = vmatprep.subr.bf16.mxu0 %v4944
    %5383 = vmatpush1.bf16.msra.mxu0 %v4943
    %5384 = vmatprep.subr.bf16.mxu0 %v4952
    %5385 = vmatpush1.bf16.msra.mxu0 %v4951
    %5386 = vmatprep.subr.bf16.mxu0 %v4960
    %5387 = vmatpush1.bf16.msra.mxu0 %v4959
    %5388 = vmatprep.subr.bf16.mxu0 %v4968
    %5389 = vmatpush1.bf16.msra.mxu0 %v4967
    %5390 = vmatprep.mubr.bf16.mxu0 %v3650
    %5391 = vmatmul.mubr.bf16.gmra.mrb[0].mxu0 %v3649
    %v5392 = vpop.f32.mrb[0].mxu0
    %v5393 = vadd.f32 %v5350, %v5392
    %v5394 = vpop.f32.mrb[0].mxu0
    %v5395 = vadd.f32 %v5352, %v5394
    %v5396 = vpop.f32.mrb[0].mxu0
    %v5397 = vadd.f32 %v5354, %v5396
    %v5398 = vpop.f32.mrb[0].mxu0
    %v5399 = vadd.f32 %v5356, %v5398
    %5400 = vdwg.mxu0
    %5401 = vmatprep.subr.bf16.mxu0 %v4722
    %5402 = vmatpush1.bf16.msra.mxu0 %v4721
    %5403 = vmatprep.subr.bf16.mxu0 %v4730
    %5404 = vmatpush1.bf16.msra.mxu0 %v4729
    %5405 = vmatprep.subr.bf16.mxu0 %v4738
    %5406 = vmatpush1.bf16.msra.mxu0 %v4737
    %5407 = vmatprep.subr.bf16.mxu0 %v4746
    %5408 = vmatpush1.bf16.msra.mxu0 %v4745
    %5409 = vmatprep.subr.bf16.mxu0 %v4754
    %5410 = vmatpush1.bf16.msra.mxu0 %v4753
    %5411 = vmatprep.subr.bf16.mxu0 %v4762
    %5412 = vmatpush1.bf16.msra.mxu0 %v4761
    %5413 = vmatprep.subr.bf16.mxu0 %v4770
    %5414 = vmatpush1.bf16.msra.mxu0 %v4769
    %5415 = vmatprep.subr.bf16.mxu0 %v4778
    %5416 = vmatpush1.bf16.msra.mxu0 %v4777
    %5417 = vmatprep.subr.bf16.mxu0 %v4786
    %5418 = vmatpush1.bf16.msra.mxu0 %v4785
    %5419 = vmatprep.subr.bf16.mxu0 %v4794
    %5420 = vmatpush1.bf16.msra.mxu0 %v4793
    %5421 = vmatprep.subr.bf16.mxu0 %v4802
    %5422 = vmatpush1.bf16.msra.mxu0 %v4801
    %5423 = vmatprep.subr.bf16.mxu0 %v4810
    %5424 = vmatpush1.bf16.msra.mxu0 %v4809
    %5425 = vmatprep.subr.bf16.mxu0 %v4818
    %5426 = vmatpush1.bf16.msra.mxu0 %v4817
    %5427 = vmatprep.subr.bf16.mxu0 %v4826
    %5428 = vmatpush1.bf16.msra.mxu0 %v4825
    %5429 = vmatprep.subr.bf16.mxu0 %v4834
    %5430 = vmatpush1.bf16.msra.mxu0 %v4833
    %5431 = vmatprep.subr.bf16.mxu0 %v4842
    %5432 = vmatpush1.bf16.msra.mxu0 %v4841
    %5433 = vmatprep.mubr.bf16.mxu0 %v3648
    %5434 = vmatmul.mubr.bf16.gmra.mrb[0].mxu0 %v3647
    %v5435 = vpop.f32.mrb[0].mxu0
    %v5436 = vadd.f32 %v3928, %v5435
    %v5437 = vpop.f32.mrb[0].mxu0
    %v5438 = vadd.f32 %v3932, %v5437
    %v5439 = vpop.f32.mrb[0].mxu0
    %v5440 = vadd.f32 %v3928, %v5439
    %v5441 = vpop.f32.mrb[0].mxu0
    %v5442 = vadd.f32 %v3932, %v5441
    %5443 = vdwg.mxu0
    %5444 = vmatprep.subr.bf16.mxu0 %v4850
    %5445 = vmatpush1.bf16.msra.mxu0 %v4849
    %5446 = vmatprep.subr.bf16.mxu0 %v4858
    %5447 = vmatpush1.bf16.msra.mxu0 %v4857
    %5448 = vmatprep.subr.bf16.mxu0 %v4866
    %5449 = vmatpush1.bf16.msra.mxu0 %v4865
    %5450 = vmatprep.subr.bf16.mxu0 %v4874
    %5451 = vmatpush1.bf16.msra.mxu0 %v4873
    %5452 = vmatprep.subr.bf16.mxu0 %v4882
    %5453 = vmatpush1.bf16.msra.mxu0 %v4881
    %5454 = vmatprep.subr.bf16.mxu0 %v4890
    %5455 = vmatpush1.bf16.msra.mxu0 %v4889
    %5456 = vmatprep.subr.bf16.mxu0 %v4898
    %5457 = vmatpush1.bf16.msra.mxu0 %v4897
    %5458 = vmatprep.subr.bf16.mxu0 %v4906
    %5459 = vmatpush1.bf16.msra.mxu0 %v4905
    %5460 = vmatprep.subr.bf16.mxu0 %v4914
    %5461 = vmatpush1.bf16.msra.mxu0 %v4913
    %5462 = vmatprep.subr.bf16.mxu0 %v4922
    %5463 = vmatpush1.bf16.msra.mxu0 %v4921
    %5464 = vmatprep.subr.bf16.mxu0 %v4930
    %5465 = vmatpush1.bf16.msra.mxu0 %v4929
    %5466 = vmatprep.subr.bf16.mxu0 %v4938
    %5467 = vmatpush1.bf16.msra.mxu0 %v4937
    %5468 = vmatprep.subr.bf16.mxu0 %v4946
    %5469 = vmatpush1.bf16.msra.mxu0 %v4945
    %5470 = vmatprep.subr.bf16.mxu0 %v4954
    %5471 = vmatpush1.bf16.msra.mxu0 %v4953
    %5472 = vmatprep.subr.bf16.mxu0 %v4962
    %5473 = vmatpush1.bf16.msra.mxu0 %v4961
    %5474 = vmatprep.subr.bf16.mxu0 %v4970
    %5475 = vmatpush1.bf16.msra.mxu0 %v4969
    %5476 = vmatprep.mubr.bf16.mxu0 %v3650
    %5477 = vmatmul.mubr.bf16.gmra.mrb[0].mxu0 %v3649
    %v5478 = vpop.f32.mrb[0].mxu0
    %v5479 = vadd.f32 %v5436, %v5478
    %v5480 = vpop.f32.mrb[0].mxu0
    %v5481 = vadd.f32 %v5438, %v5480
    %v5482 = vpop.f32.mrb[0].mxu0
    %v5483 = vadd.f32 %v5440, %v5482
    %v5484 = vpop.f32.mrb[0].mxu0
    %v5485 = vadd.f32 %v5442, %v5484
    %5486 = vdwg.mxu0
    %5487 = vmatprep.subr.bf16.mxu0 %v4724
    %5488 = vmatpush1.bf16.msra.mxu0 %v4723
    %5489 = vmatprep.subr.bf16.mxu0 %v4732
    %5490 = vmatpush1.bf16.msra.mxu0 %v4731
    %5491 = vmatprep.subr.bf16.mxu0 %v4740
    %5492 = vmatpush1.bf16.msra.mxu0 %v4739
    %5493 = vmatprep.subr.bf16.mxu0 %v4748
    %5494 = vmatpush1.bf16.msra.mxu0 %v4747
    %5495 = vmatprep.subr.bf16.mxu0 %v4756
    %5496 = vmatpush1.bf16.msra.mxu0 %v4755
    %5497 = vmatprep.subr.bf16.mxu0 %v4764
    %5498 = vmatpush1.bf16.msra.mxu0 %v4763
    %5499 = vmatprep.subr.bf16.mxu0 %v4772
    %5500 = vmatpush1.bf16.msra.mxu0 %v4771
    %5501 = vmatprep.subr.bf16.mxu0 %v4780
    %5502 = vmatpush1.bf16.msra.mxu0 %v4779
    %5503 = vmatprep.subr.bf16.mxu0 %v4788
    %5504 = vmatpush1.bf16.msra.mxu0 %v4787
    %5505 = vmatprep.subr.bf16.mxu0 %v4796
    %5506 = vmatpush1.bf16.msra.mxu0 %v4795
    %5507 = vmatprep.subr.bf16.mxu0 %v4804
    %5508 = vmatpush1.bf16.msra.mxu0 %v4803
    %5509 = vmatprep.subr.bf16.mxu0 %v4812
    %5510 = vmatpush1.bf16.msra.mxu0 %v4811
    %5511 = vmatprep.subr.bf16.mxu0 %v4820
    %5512 = vmatpush1.bf16.msra.mxu0 %v4819
    %5513 = vmatprep.subr.bf16.mxu0 %v4828
    %5514 = vmatpush1.bf16.msra.mxu0 %v4827
    %5515 = vmatprep.subr.bf16.mxu0 %v4836
    %5516 = vmatpush1.bf16.msra.mxu0 %v4835
    %5517 = vmatprep.subr.bf16.mxu0 %v4844
    %5518 = vmatpush1.bf16.msra.mxu0 %v4843
    %5519 = vmatprep.mubr.bf16.mxu0 %v3648
    %5520 = vmatmul.mubr.bf16.gmra.mrb[0].mxu0 %v3647
    %v5521 = vpop.f32.mrb[0].mxu0
    %v5522 = vadd.f32 %v3936, %v5521
    %v5523 = vpop.f32.mrb[0].mxu0
    %v5524 = vadd.f32 %v3940, %v5523
    %v5525 = vpop.f32.mrb[0].mxu0
    %v5526 = vadd.f32 %v3936, %v5525
    %v5527 = vpop.f32.mrb[0].mxu0
    %v5528 = vadd.f32 %v3940, %v5527
    %5529 = vdwg.mxu0
    %5530 = vmatprep.subr.bf16.mxu0 %v4852
    %5531 = vmatpush1.bf16.msra.mxu0 %v4851
    %5532 = vmatprep.subr.bf16.mxu0 %v4860
    %5533 = vmatpush1.bf16.msra.mxu0 %v4859
    %5534 = vmatprep.subr.bf16.mxu0 %v4868
    %5535 = vmatpush1.bf16.msra.mxu0 %v4867
    %5536 = vmatprep.subr.bf16.mxu0 %v4876
    %5537 = vmatpush1.bf16.msra.mxu0 %v4875
    %5538 = vmatprep.subr.bf16.mxu0 %v4884
    %5539 = vmatpush1.bf16.msra.mxu0 %v4883
    %5540 = vmatprep.subr.bf16.mxu0 %v4892
    %5541 = vmatpush1.bf16.msra.mxu0 %v4891
    %5542 = vmatprep.subr.bf16.mxu0 %v4900
    %5543 = vmatpush1.bf16.msra.mxu0 %v4899
    %5544 = vmatprep.subr.bf16.mxu0 %v4908
    %5545 = vmatpush1.bf16.msra.mxu0 %v4907
    %5546 = vmatprep.subr.bf16.mxu0 %v4916
    %5547 = vmatpush1.bf16.msra.mxu0 %v4915
    %5548 = vmatprep.subr.bf16.mxu0 %v4924
    %5549 = vmatpush1.bf16.msra.mxu0 %v4923
    %5550 = vmatprep.subr.bf16.mxu0 %v4932
    %5551 = vmatpush1.bf16.msra.mxu0 %v4931
    %5552 = vmatprep.subr.bf16.mxu0 %v4940
    %5553 = vmatpush1.bf16.msra.mxu0 %v4939
    %5554 = vmatprep.subr.bf16.mxu0 %v4948
    %5555 = vmatpush1.bf16.msra.mxu0 %v4947
    %5556 = vmatprep.subr.bf16.mxu0 %v4956
    %5557 = vmatpush1.bf16.msra.mxu0 %v4955
    %5558 = vmatprep.subr.bf16.mxu0 %v4964
    %5559 = vmatpush1.bf16.msra.mxu0 %v4963
    %5560 = vmatprep.subr.bf16.mxu0 %v4972
    %5561 = vmatpush1.bf16.msra.mxu0 %v4971
    %5562 = vmatprep.mubr.bf16.mxu0 %v3650
    %5563 = vmatmul.mubr.bf16.gmra.mrb[0].mxu0 %v3649
    %v5564 = vpop.f32.mrb[0].mxu0
    %v5565 = vadd.f32 %v5522, %v5564
    %v5566 = vpop.f32.mrb[0].mxu0
    %v5567 = vadd.f32 %v5524, %v5566
    %v5568 = vpop.f32.mrb[0].mxu0
    %v5569 = vadd.f32 %v5526, %v5568
    %v5570 = vpop.f32.mrb[0].mxu0
    %v5571 = vadd.f32 %v5528, %v5570
    %5572 = vdwg.mxu0
    %v5573 = vmax.f32 %v5307, 0.0
    %v5574 = vmax.f32 %v5309, 0.0
    %v5575 = vmax.f32 %v5393, 0.0
    %v5576 = vmax.f32 %v5395, 0.0
    %v5577 = vmax.f32 %v5479, 0.0
    %v5578 = vmax.f32 %v5481, 0.0
    %v5579 = vmax.f32 %v5565, 0.0
    %v5580 = vmax.f32 %v5567, 0.0
    %v5581 = vmax.f32 %v5311, 0.0
    %v5582 = vmax.f32 %v5313, 0.0
    %v5583 = vmax.f32 %v5397, 0.0
    %v5584 = vmax.f32 %v5399, 0.0
    %v5585 = vmax.f32 %v5483, 0.0
    %v5586 = vmax.f32 %v5485, 0.0
    %v5587 = vmax.f32 %v5569, 0.0
    %v5588 = vmax.f32 %v5571, 0.0
    %v5589 = vpack.c.bf16 %v5581, %v5573
    %v5590 = vpack.c.bf16 %v5582, %v5574
    %v5591 = vpack.c.bf16 %v5583, %v5575
    %v5592 = vpack.c.bf16 %v5584, %v5576
    %v5593 = vpack.c.bf16 %v5585, %v5577
    %v5594 = vpack.c.bf16 %v5586, %v5578
    %v5595 = vpack.c.bf16 %v5587, %v5579
    %v5596 = vpack.c.bf16 %v5588, %v5580
    %v5597 = vld [vmem:[#allocation12] sm:$0xff]
    %v5598 = vld [vmem:[#allocation12 + $0x8] sm:$0xff]
    %v5599 = vld [vmem:[#allocation12 + $0x10] sm:$0xff]
    %v5600 = vld [vmem:[#allocation12 + $0x18] sm:$0xff]
    %v5601 = vld [vmem:[#allocation12 + $0x20] sm:$0xff]
    %v5602 = vld [vmem:[#allocation12 + $0x28] sm:$0xff]
    %v5603 = vld [vmem:[#allocation12 + $0x30] sm:$0xff]
    %v5604 = vld [vmem:[#allocation12 + $0x38] sm:$0xff]
    %v5605 = vld [vmem:[#allocation12 + $0x40] sm:$0xff]
    %v5606 = vld [vmem:[#allocation12 + $0x48] sm:$0xff]
    %v5607 = vld [vmem:[#allocation12 + $0x50] sm:$0xff]
    %v5608 = vld [vmem:[#allocation12 + $0x58] sm:$0xff]
    %v5609 = vld [vmem:[#allocation12 + $0x60] sm:$0xff]
    %v5610 = vld [vmem:[#allocation12 + $0x68] sm:$0xff]
    %v5611 = vld [vmem:[#allocation12 + $0x70] sm:$0xff]
    %v5612 = vld [vmem:[#allocation12 + $0x78] sm:$0xff]
    %v5613 = vld [vmem:[#allocation12 + $0x80] sm:$0xff]
    %v5614 = vld [vmem:[#allocation12 + $0x88] sm:$0xff]
    %v5615 = vld [vmem:[#allocation12 + $0x90] sm:$0xff]
    %v5616 = vld [vmem:[#allocation12 + $0x98] sm:$0xff]
    %v5617 = vld [vmem:[#allocation12 + $0xa0] sm:$0xff]
    %v5618 = vld [vmem:[#allocation12 + $0xa8] sm:$0xff]
    %v5619 = vld [vmem:[#allocation12 + $0xb0] sm:$0xff]
    %v5620 = vld [vmem:[#allocation12 + $0xb8] sm:$0xff]
    %v5621 = vld [vmem:[#allocation12 + $0xc0] sm:$0xff]
    %v5622 = vld [vmem:[#allocation12 + $0xc8] sm:$0xff]
    %v5623 = vld [vmem:[#allocation12 + $0xd0] sm:$0xff]
    %v5624 = vld [vmem:[#allocation12 + $0xd8] sm:$0xff]
    %v5625 = vld [vmem:[#allocation12 + $0xe0] sm:$0xff]
    %v5626 = vld [vmem:[#allocation12 + $0xe8] sm:$0xff]
    %v5627 = vld [vmem:[#allocation12 + $0xf0] sm:$0xff]
    %v5628 = vld [vmem:[#allocation12 + $0xf8] sm:$0xff]
    %v5629 = vld [vmem:[#allocation12 + $0x100] sm:$0xff]
    %v5630 = vld [vmem:[#allocation12 + $0x108] sm:$0xff]
    %v5631 = vld [vmem:[#allocation12 + $0x110] sm:$0xff]
    %v5632 = vld [vmem:[#allocation12 + $0x118] sm:$0xff]
    %v5633 = vld [vmem:[#allocation12 + $0x120] sm:$0xff]
    %v5634 = vld [vmem:[#allocation12 + $0x128] sm:$0xff]
    %v5635 = vld [vmem:[#allocation12 + $0x130] sm:$0xff]
    %v5636 = vld [vmem:[#allocation12 + $0x138] sm:$0xff]
    %v5637 = vld [vmem:[#allocation12 + $0x140] sm:$0xff]
    %v5638 = vld [vmem:[#allocation12 + $0x148] sm:$0xff]
    %v5639 = vld [vmem:[#allocation12 + $0x150] sm:$0xff]
    %v5640 = vld [vmem:[#allocation12 + $0x158] sm:$0xff]
    %v5641 = vld [vmem:[#allocation12 + $0x160] sm:$0xff]
    %v5642 = vld [vmem:[#allocation12 + $0x168] sm:$0xff]
    %v5643 = vld [vmem:[#allocation12 + $0x170] sm:$0xff]
    %v5644 = vld [vmem:[#allocation12 + $0x178] sm:$0xff]
    %v5645 = vld [vmem:[#allocation12 + $0x180] sm:$0xff]
    %v5646 = vld [vmem:[#allocation12 + $0x188] sm:$0xff]
    %v5647 = vld [vmem:[#allocation12 + $0x190] sm:$0xff]
    %v5648 = vld [vmem:[#allocation12 + $0x198] sm:$0xff]
    %v5649 = vld [vmem:[#allocation12 + $0x1a0] sm:$0xff]
    %v5650 = vld [vmem:[#allocation12 + $0x1a8] sm:$0xff]
    %v5651 = vld [vmem:[#allocation12 + $0x1b0] sm:$0xff]
    %v5652 = vld [vmem:[#allocation12 + $0x1b8] sm:$0xff]
    %v5653 = vld [vmem:[#allocation12 + $0x1c0] sm:$0xff]
    %v5654 = vld [vmem:[#allocation12 + $0x1c8] sm:$0xff]
    %v5655 = vld [vmem:[#allocation12 + $0x1d0] sm:$0xff]
    %v5656 = vld [vmem:[#allocation12 + $0x1d8] sm:$0xff]
    %v5657 = vld [vmem:[#allocation12 + $0x1e0] sm:$0xff]
    %v5658 = vld [vmem:[#allocation12 + $0x1e8] sm:$0xff]
    %v5659 = vld [vmem:[#allocation12 + $0x1f0] sm:$0xff]
    %v5660 = vld [vmem:[#allocation12 + $0x1f8] sm:$0xff]
    %v5661 = vld [vmem:[#allocation12 + $0x200] sm:$0xff]
    %v5662 = vld [vmem:[#allocation12 + $0x208] sm:$0xff]
    %v5663 = vld [vmem:[#allocation12 + $0x210] sm:$0xff]
    %v5664 = vld [vmem:[#allocation12 + $0x218] sm:$0xff]
    %v5665 = vld [vmem:[#allocation12 + $0x220] sm:$0xff]
    %v5666 = vld [vmem:[#allocation12 + $0x228] sm:$0xff]
    %v5667 = vld [vmem:[#allocation12 + $0x230] sm:$0xff]
    %v5668 = vld [vmem:[#allocation12 + $0x238] sm:$0xff]
    %v5669 = vld [vmem:[#allocation12 + $0x240] sm:$0xff]
    %v5670 = vld [vmem:[#allocation12 + $0x248] sm:$0xff]
    %v5671 = vld [vmem:[#allocation12 + $0x250] sm:$0xff]
    %v5672 = vld [vmem:[#allocation12 + $0x258] sm:$0xff]
    %v5673 = vld [vmem:[#allocation12 + $0x260] sm:$0xff]
    %v5674 = vld [vmem:[#allocation12 + $0x268] sm:$0xff]
    %v5675 = vld [vmem:[#allocation12 + $0x270] sm:$0xff]
    %v5676 = vld [vmem:[#allocation12 + $0x278] sm:$0xff]
    %v5677 = vld [vmem:[#allocation12 + $0x280] sm:$0xff]
    %v5678 = vld [vmem:[#allocation12 + $0x288] sm:$0xff]
    %v5679 = vld [vmem:[#allocation12 + $0x290] sm:$0xff]
    %v5680 = vld [vmem:[#allocation12 + $0x298] sm:$0xff]
    %v5681 = vld [vmem:[#allocation12 + $0x2a0] sm:$0xff]
    %v5682 = vld [vmem:[#allocation12 + $0x2a8] sm:$0xff]
    %v5683 = vld [vmem:[#allocation12 + $0x2b0] sm:$0xff]
    %v5684 = vld [vmem:[#allocation12 + $0x2b8] sm:$0xff]
    %v5685 = vld [vmem:[#allocation12 + $0x2c0] sm:$0xff]
    %v5686 = vld [vmem:[#allocation12 + $0x2c8] sm:$0xff]
    %v5687 = vld [vmem:[#allocation12 + $0x2d0] sm:$0xff]
    %v5688 = vld [vmem:[#allocation12 + $0x2d8] sm:$0xff]
    %v5689 = vld [vmem:[#allocation12 + $0x2e0] sm:$0xff]
    %v5690 = vld [vmem:[#allocation12 + $0x2e8] sm:$0xff]
    %v5691 = vld [vmem:[#allocation12 + $0x2f0] sm:$0xff]
    %v5692 = vld [vmem:[#allocation12 + $0x2f8] sm:$0xff]
    %v5693 = vld [vmem:[#allocation12 + $0x300] sm:$0xff]
    %v5694 = vld [vmem:[#allocation12 + $0x308] sm:$0xff]
    %v5695 = vld [vmem:[#allocation12 + $0x310] sm:$0xff]
    %v5696 = vld [vmem:[#allocation12 + $0x318] sm:$0xff]
    %v5697 = vld [vmem:[#allocation12 + $0x320] sm:$0xff]
    %v5698 = vld [vmem:[#allocation12 + $0x328] sm:$0xff]
    %v5699 = vld [vmem:[#allocation12 + $0x330] sm:$0xff]
    %v5700 = vld [vmem:[#allocation12 + $0x338] sm:$0xff]
    %v5701 = vld [vmem:[#allocation12 + $0x340] sm:$0xff]
    %v5702 = vld [vmem:[#allocation12 + $0x348] sm:$0xff]
    %v5703 = vld [vmem:[#allocation12 + $0x350] sm:$0xff]
    %v5704 = vld [vmem:[#allocation12 + $0x358] sm:$0xff]
    %v5705 = vld [vmem:[#allocation12 + $0x360] sm:$0xff]
    %v5706 = vld [vmem:[#allocation12 + $0x368] sm:$0xff]
    %v5707 = vld [vmem:[#allocation12 + $0x370] sm:$0xff]
    %v5708 = vld [vmem:[#allocation12 + $0x378] sm:$0xff]
    %v5709 = vld [vmem:[#allocation12 + $0x380] sm:$0xff]
    %v5710 = vld [vmem:[#allocation12 + $0x388] sm:$0xff]
    %v5711 = vld [vmem:[#allocation12 + $0x390] sm:$0xff]
    %v5712 = vld [vmem:[#allocation12 + $0x398] sm:$0xff]
    %v5713 = vld [vmem:[#allocation12 + $0x3a0] sm:$0xff]
    %v5714 = vld [vmem:[#allocation12 + $0x3a8] sm:$0xff]
    %v5715 = vld [vmem:[#allocation12 + $0x3b0] sm:$0xff]
    %v5716 = vld [vmem:[#allocation12 + $0x3b8] sm:$0xff]
    %v5717 = vld [vmem:[#allocation12 + $0x3c0] sm:$0xff]
    %v5718 = vld [vmem:[#allocation12 + $0x3c8] sm:$0xff]
    %v5719 = vld [vmem:[#allocation12 + $0x3d0] sm:$0xff]
    %v5720 = vld [vmem:[#allocation12 + $0x3d8] sm:$0xff]
    %v5721 = vld [vmem:[#allocation12 + $0x3e0] sm:$0xff]
    %v5722 = vld [vmem:[#allocation12 + $0x3e8] sm:$0xff]
    %v5723 = vld [vmem:[#allocation12 + $0x3f0] sm:$0xff]
    %v5724 = vld [vmem:[#allocation12 + $0x3f8] sm:$0xff]
    %v5725 = vld [vmem:[#allocation12 + $0x400] sm:$0xff]
    %v5726 = vld [vmem:[#allocation12 + $0x408] sm:$0xff]
    %v5727 = vld [vmem:[#allocation12 + $0x410] sm:$0xff]
    %v5728 = vld [vmem:[#allocation12 + $0x418] sm:$0xff]
    %v5729 = vld [vmem:[#allocation12 + $0x420] sm:$0xff]
    %v5730 = vld [vmem:[#allocation12 + $0x428] sm:$0xff]
    %v5731 = vld [vmem:[#allocation12 + $0x430] sm:$0xff]
    %v5732 = vld [vmem:[#allocation12 + $0x438] sm:$0xff]
    %v5733 = vld [vmem:[#allocation12 + $0x440] sm:$0xff]
    %v5734 = vld [vmem:[#allocation12 + $0x448] sm:$0xff]
    %v5735 = vld [vmem:[#allocation12 + $0x450] sm:$0xff]
    %v5736 = vld [vmem:[#allocation12 + $0x458] sm:$0xff]
    %v5737 = vld [vmem:[#allocation12 + $0x460] sm:$0xff]
    %v5738 = vld [vmem:[#allocation12 + $0x468] sm:$0xff]
    %v5739 = vld [vmem:[#allocation12 + $0x470] sm:$0xff]
    %v5740 = vld [vmem:[#allocation12 + $0x478] sm:$0xff]
    %v5741 = vld [vmem:[#allocation12 + $0x480] sm:$0xff]
    %v5742 = vld [vmem:[#allocation12 + $0x488] sm:$0xff]
    %v5743 = vld [vmem:[#allocation12 + $0x490] sm:$0xff]
    %v5744 = vld [vmem:[#allocation12 + $0x498] sm:$0xff]
    %v5745 = vld [vmem:[#allocation12 + $0x4a0] sm:$0xff]
    %v5746 = vld [vmem:[#allocation12 + $0x4a8] sm:$0xff]
    %v5747 = vld [vmem:[#allocation12 + $0x4b0] sm:$0xff]
    %v5748 = vld [vmem:[#allocation12 + $0x4b8] sm:$0xff]
    %v5749 = vld [vmem:[#allocation12 + $0x4c0] sm:$0xff]
    %v5750 = vld [vmem:[#allocation12 + $0x4c8] sm:$0xff]
    %v5751 = vld [vmem:[#allocation12 + $0x4d0] sm:$0xff]
    %v5752 = vld [vmem:[#allocation12 + $0x4d8] sm:$0xff]
    %v5753 = vld [vmem:[#allocation12 + $0x4e0] sm:$0xff]
    %v5754 = vld [vmem:[#allocation12 + $0x4e8] sm:$0xff]
    %v5755 = vld [vmem:[#allocation12 + $0x4f0] sm:$0xff]
    %v5756 = vld [vmem:[#allocation12 + $0x4f8] sm:$0xff]
    %v5757 = vld [vmem:[#allocation12 + $0x500] sm:$0xff]
    %v5758 = vld [vmem:[#allocation12 + $0x508] sm:$0xff]
    %v5759 = vld [vmem:[#allocation12 + $0x510] sm:$0xff]
    %v5760 = vld [vmem:[#allocation12 + $0x518] sm:$0xff]
    %v5761 = vld [vmem:[#allocation12 + $0x520] sm:$0xff]
    %v5762 = vld [vmem:[#allocation12 + $0x528] sm:$0xff]
    %v5763 = vld [vmem:[#allocation12 + $0x530] sm:$0xff]
    %v5764 = vld [vmem:[#allocation12 + $0x538] sm:$0xff]
    %v5765 = vld [vmem:[#allocation12 + $0x540] sm:$0xff]
    %v5766 = vld [vmem:[#allocation12 + $0x548] sm:$0xff]
    %v5767 = vld [vmem:[#allocation12 + $0x550] sm:$0xff]
    %v5768 = vld [vmem:[#allocation12 + $0x558] sm:$0xff]
    %v5769 = vld [vmem:[#allocation12 + $0x560] sm:$0xff]
    %v5770 = vld [vmem:[#allocation12 + $0x568] sm:$0xff]
    %v5771 = vld [vmem:[#allocation12 + $0x570] sm:$0xff]
    %v5772 = vld [vmem:[#allocation12 + $0x578] sm:$0xff]
    %v5773 = vld [vmem:[#allocation12 + $0x580] sm:$0xff]
    %v5774 = vld [vmem:[#allocation12 + $0x588] sm:$0xff]
    %v5775 = vld [vmem:[#allocation12 + $0x590] sm:$0xff]
    %v5776 = vld [vmem:[#allocation12 + $0x598] sm:$0xff]
    %v5777 = vld [vmem:[#allocation12 + $0x5a0] sm:$0xff]
    %v5778 = vld [vmem:[#allocation12 + $0x5a8] sm:$0xff]
    %v5779 = vld [vmem:[#allocation12 + $0x5b0] sm:$0xff]
    %v5780 = vld [vmem:[#allocation12 + $0x5b8] sm:$0xff]
    %v5781 = vld [vmem:[#allocation12 + $0x5c0] sm:$0xff]
    %v5782 = vld [vmem:[#allocation12 + $0x5c8] sm:$0xff]
    %v5783 = vld [vmem:[#allocation12 + $0x5d0] sm:$0xff]
    %v5784 = vld [vmem:[#allocation12 + $0x5d8] sm:$0xff]
    %v5785 = vld [vmem:[#allocation12 + $0x5e0] sm:$0xff]
    %v5786 = vld [vmem:[#allocation12 + $0x5e8] sm:$0xff]
    %v5787 = vld [vmem:[#allocation12 + $0x5f0] sm:$0xff]
    %v5788 = vld [vmem:[#allocation12 + $0x5f8] sm:$0xff]
    %v5789 = vld [vmem:[#allocation12 + $0x600] sm:$0xff]
    %v5790 = vld [vmem:[#allocation12 + $0x608] sm:$0xff]
    %v5791 = vld [vmem:[#allocation12 + $0x610] sm:$0xff]
    %v5792 = vld [vmem:[#allocation12 + $0x618] sm:$0xff]
    %v5793 = vld [vmem:[#allocation12 + $0x620] sm:$0xff]
    %v5794 = vld [vmem:[#allocation12 + $0x628] sm:$0xff]
    %v5795 = vld [vmem:[#allocation12 + $0x630] sm:$0xff]
    %v5796 = vld [vmem:[#allocation12 + $0x638] sm:$0xff]
    %v5797 = vld [vmem:[#allocation12 + $0x640] sm:$0xff]
    %v5798 = vld [vmem:[#allocation12 + $0x648] sm:$0xff]
    %v5799 = vld [vmem:[#allocation12 + $0x650] sm:$0xff]
    %v5800 = vld [vmem:[#allocation12 + $0x658] sm:$0xff]
    %v5801 = vld [vmem:[#allocation12 + $0x660] sm:$0xff]
    %v5802 = vld [vmem:[#allocation12 + $0x668] sm:$0xff]
    %v5803 = vld [vmem:[#allocation12 + $0x670] sm:$0xff]
    %v5804 = vld [vmem:[#allocation12 + $0x678] sm:$0xff]
    %v5805 = vld [vmem:[#allocation12 + $0x680] sm:$0xff]
    %v5806 = vld [vmem:[#allocation12 + $0x688] sm:$0xff]
    %v5807 = vld [vmem:[#allocation12 + $0x690] sm:$0xff]
    %v5808 = vld [vmem:[#allocation12 + $0x698] sm:$0xff]
    %v5809 = vld [vmem:[#allocation12 + $0x6a0] sm:$0xff]
    %v5810 = vld [vmem:[#allocation12 + $0x6a8] sm:$0xff]
    %v5811 = vld [vmem:[#allocation12 + $0x6b0] sm:$0xff]
    %v5812 = vld [vmem:[#allocation12 + $0x6b8] sm:$0xff]
    %v5813 = vld [vmem:[#allocation12 + $0x6c0] sm:$0xff]
    %v5814 = vld [vmem:[#allocation12 + $0x6c8] sm:$0xff]
    %v5815 = vld [vmem:[#allocation12 + $0x6d0] sm:$0xff]
    %v5816 = vld [vmem:[#allocation12 + $0x6d8] sm:$0xff]
    %v5817 = vld [vmem:[#allocation12 + $0x6e0] sm:$0xff]
    %v5818 = vld [vmem:[#allocation12 + $0x6e8] sm:$0xff]
    %v5819 = vld [vmem:[#allocation12 + $0x6f0] sm:$0xff]
    %v5820 = vld [vmem:[#allocation12 + $0x6f8] sm:$0xff]
    %v5821 = vld [vmem:[#allocation12 + $0x700] sm:$0xff]
    %v5822 = vld [vmem:[#allocation12 + $0x708] sm:$0xff]
    %v5823 = vld [vmem:[#allocation12 + $0x710] sm:$0xff]
    %v5824 = vld [vmem:[#allocation12 + $0x718] sm:$0xff]
    %v5825 = vld [vmem:[#allocation12 + $0x720] sm:$0xff]
    %v5826 = vld [vmem:[#allocation12 + $0x728] sm:$0xff]
    %v5827 = vld [vmem:[#allocation12 + $0x730] sm:$0xff]
    %v5828 = vld [vmem:[#allocation12 + $0x738] sm:$0xff]
    %v5829 = vld [vmem:[#allocation12 + $0x740] sm:$0xff]
    %v5830 = vld [vmem:[#allocation12 + $0x748] sm:$0xff]
    %v5831 = vld [vmem:[#allocation12 + $0x750] sm:$0xff]
    %v5832 = vld [vmem:[#allocation12 + $0x758] sm:$0xff]
    %v5833 = vld [vmem:[#allocation12 + $0x760] sm:$0xff]
    %v5834 = vld [vmem:[#allocation12 + $0x768] sm:$0xff]
    %v5835 = vld [vmem:[#allocation12 + $0x770] sm:$0xff]
    %v5836 = vld [vmem:[#allocation12 + $0x778] sm:$0xff]
    %v5837 = vld [vmem:[#allocation12 + $0x780] sm:$0xff]
    %v5838 = vld [vmem:[#allocation12 + $0x788] sm:$0xff]
    %v5839 = vld [vmem:[#allocation12 + $0x790] sm:$0xff]
    %v5840 = vld [vmem:[#allocation12 + $0x798] sm:$0xff]
    %v5841 = vld [vmem:[#allocation12 + $0x7a0] sm:$0xff]
    %v5842 = vld [vmem:[#allocation12 + $0x7a8] sm:$0xff]
    %v5843 = vld [vmem:[#allocation12 + $0x7b0] sm:$0xff]
    %v5844 = vld [vmem:[#allocation12 + $0x7b8] sm:$0xff]
    %v5845 = vld [vmem:[#allocation12 + $0x7c0] sm:$0xff]
    %v5846 = vld [vmem:[#allocation12 + $0x7c8] sm:$0xff]
    %v5847 = vld [vmem:[#allocation12 + $0x7d0] sm:$0xff]
    %v5848 = vld [vmem:[#allocation12 + $0x7d8] sm:$0xff]
    %v5849 = vld [vmem:[#allocation12 + $0x7e0] sm:$0xff]
    %v5850 = vld [vmem:[#allocation12 + $0x7e8] sm:$0xff]
    %v5851 = vld [vmem:[#allocation12 + $0x7f0] sm:$0xff]
    %v5852 = vld [vmem:[#allocation12 + $0x7f8] sm:$0xff]
    %v5853 = vld [vmem:[#allocation13] sm:$0xf]
    %v5855 = vlaneseq
    %v5856 = vshrl.u32 %v5855, 7
    %v5857 = vsub.s32 0, %v5856
    %v5858 = vrot.slane %v5853, %v5857
    %v5859 = vlaneseq
    %v5860 = vshrl.u32 %v5859, 7
    %v5861 = vsub.s32 1, %v5860
    %v5862 = vrot.slane %v5853, %v5861
    %v5863 = vlaneseq
    %v5864 = vshrl.u32 %v5863, 7
    %v5865 = vsub.s32 2, %v5864
    %v5866 = vrot.slane %v5853, %v5865
    %v5867 = vlaneseq
    %v5868 = vshrl.u32 %v5867, 7
    %v5869 = vsub.s32 3, %v5868
    %v5870 = vrot.slane %v5853, %v5869
    %v6131 = vunpack.c.l.b16 %v5597
    %v6132 = vunpack.c.h.b16 %v5597
    %v6133 = vunpack.c.l.b16 %v5598
    %v6134 = vunpack.c.h.b16 %v5598
    %v6135 = vunpack.c.l.b16 %v5599
    %v6136 = vunpack.c.h.b16 %v5599
    %v6137 = vunpack.c.l.b16 %v5600
    %v6138 = vunpack.c.h.b16 %v5600
    %v6139 = vunpack.c.l.b16 %v5601
    %v6140 = vunpack.c.h.b16 %v5601
    %v6141 = vunpack.c.l.b16 %v5602
    %v6142 = vunpack.c.h.b16 %v5602
    %v6143 = vunpack.c.l.b16 %v5603
    %v6144 = vunpack.c.h.b16 %v5603
    %v6145 = vunpack.c.l.b16 %v5604
    %v6146 = vunpack.c.h.b16 %v5604
    %v6147 = vunpack.c.l.b16 %v5605
    %v6148 = vunpack.c.h.b16 %v5605
    %v6149 = vunpack.c.l.b16 %v5606
    %v6150 = vunpack.c.h.b16 %v5606
    %v6151 = vunpack.c.l.b16 %v5607
    %v6152 = vunpack.c.h.b16 %v5607
    %v6153 = vunpack.c.l.b16 %v5608
    %v6154 = vunpack.c.h.b16 %v5608
    %v6155 = vunpack.c.l.b16 %v5609
    %v6156 = vunpack.c.h.b16 %v5609
    %v6157 = vunpack.c.l.b16 %v5610
    %v6158 = vunpack.c.h.b16 %v5610
    %v6159 = vunpack.c.l.b16 %v5611
    %v6160 = vunpack.c.h.b16 %v5611
    %v6161 = vunpack.c.l.b16 %v5612
    %v6162 = vunpack.c.h.b16 %v5612
    %v6163 = vunpack.c.l.b16 %v5613
    %v6164 = vunpack.c.h.b16 %v5613
    %v6165 = vunpack.c.l.b16 %v5614
    %v6166 = vunpack.c.h.b16 %v5614
    %v6167 = vunpack.c.l.b16 %v5615
    %v6168 = vunpack.c.h.b16 %v5615
    %v6169 = vunpack.c.l.b16 %v5616
    %v6170 = vunpack.c.h.b16 %v5616
    %v6171 = vunpack.c.l.b16 %v5617
    %v6172 = vunpack.c.h.b16 %v5617
    %v6173 = vunpack.c.l.b16 %v5618
    %v6174 = vunpack.c.h.b16 %v5618
    %v6175 = vunpack.c.l.b16 %v5619
    %v6176 = vunpack.c.h.b16 %v5619
    %v6177 = vunpack.c.l.b16 %v5620
    %v6178 = vunpack.c.h.b16 %v5620
    %v6179 = vunpack.c.l.b16 %v5621
    %v6180 = vunpack.c.h.b16 %v5621
    %v6181 = vunpack.c.l.b16 %v5622
    %v6182 = vunpack.c.h.b16 %v5622
    %v6183 = vunpack.c.l.b16 %v5623
    %v6184 = vunpack.c.h.b16 %v5623
    %v6185 = vunpack.c.l.b16 %v5624
    %v6186 = vunpack.c.h.b16 %v5624
    %v6187 = vunpack.c.l.b16 %v5625
    %v6188 = vunpack.c.h.b16 %v5625
    %v6189 = vunpack.c.l.b16 %v5626
    %v6190 = vunpack.c.h.b16 %v5626
    %v6191 = vunpack.c.l.b16 %v5627
    %v6192 = vunpack.c.h.b16 %v5627
    %v6193 = vunpack.c.l.b16 %v5628
    %v6194 = vunpack.c.h.b16 %v5628
    %v6195 = vunpack.c.l.b16 %v5629
    %v6196 = vunpack.c.h.b16 %v5629
    %v6197 = vunpack.c.l.b16 %v5630
    %v6198 = vunpack.c.h.b16 %v5630
    %v6199 = vunpack.c.l.b16 %v5631
    %v6200 = vunpack.c.h.b16 %v5631
    %v6201 = vunpack.c.l.b16 %v5632
    %v6202 = vunpack.c.h.b16 %v5632
    %v6203 = vunpack.c.l.b16 %v5633
    %v6204 = vunpack.c.h.b16 %v5633
    %v6205 = vunpack.c.l.b16 %v5634
    %v6206 = vunpack.c.h.b16 %v5634
    %v6207 = vunpack.c.l.b16 %v5635
    %v6208 = vunpack.c.h.b16 %v5635
    %v6209 = vunpack.c.l.b16 %v5636
    %v6210 = vunpack.c.h.b16 %v5636
    %v6211 = vunpack.c.l.b16 %v5637
    %v6212 = vunpack.c.h.b16 %v5637
    %v6213 = vunpack.c.l.b16 %v5638
    %v6214 = vunpack.c.h.b16 %v5638
    %v6215 = vunpack.c.l.b16 %v5639
    %v6216 = vunpack.c.h.b16 %v5639
    %v6217 = vunpack.c.l.b16 %v5640
    %v6218 = vunpack.c.h.b16 %v5640
    %v6219 = vunpack.c.l.b16 %v5641
    %v6220 = vunpack.c.h.b16 %v5641
    %v6221 = vunpack.c.l.b16 %v5642
    %v6222 = vunpack.c.h.b16 %v5642
    %v6223 = vunpack.c.l.b16 %v5643
    %v6224 = vunpack.c.h.b16 %v5643
    %v6225 = vunpack.c.l.b16 %v5644
    %v6226 = vunpack.c.h.b16 %v5644
    %v6227 = vunpack.c.l.b16 %v5645
    %v6228 = vunpack.c.h.b16 %v5645
    %v6229 = vunpack.c.l.b16 %v5646
    %v6230 = vunpack.c.h.b16 %v5646
    %v6231 = vunpack.c.l.b16 %v5647
    %v6232 = vunpack.c.h.b16 %v5647
    %v6233 = vunpack.c.l.b16 %v5648
    %v6234 = vunpack.c.h.b16 %v5648
    %v6235 = vunpack.c.l.b16 %v5649
    %v6236 = vunpack.c.h.b16 %v5649
    %v6237 = vunpack.c.l.b16 %v5650
    %v6238 = vunpack.c.h.b16 %v5650
    %v6239 = vunpack.c.l.b16 %v5651
    %v6240 = vunpack.c.h.b16 %v5651
    %v6241 = vunpack.c.l.b16 %v5652
    %v6242 = vunpack.c.h.b16 %v5652
    %v6243 = vunpack.c.l.b16 %v5653
    %v6244 = vunpack.c.h.b16 %v5653
    %v6245 = vunpack.c.l.b16 %v5654
    %v6246 = vunpack.c.h.b16 %v5654
    %v6247 = vunpack.c.l.b16 %v5655
    %v6248 = vunpack.c.h.b16 %v5655
    %v6249 = vunpack.c.l.b16 %v5656
    %v6250 = vunpack.c.h.b16 %v5656
    %v6251 = vunpack.c.l.b16 %v5657
    %v6252 = vunpack.c.h.b16 %v5657
    %v6253 = vunpack.c.l.b16 %v5658
    %v6254 = vunpack.c.h.b16 %v5658
    %v6255 = vunpack.c.l.b16 %v5659
    %v6256 = vunpack.c.h.b16 %v5659
    %v6257 = vunpack.c.l.b16 %v5660
    %v6258 = vunpack.c.h.b16 %v5660
    %v6259 = vunpack.c.l.b16 %v5661
    %v6260 = vunpack.c.h.b16 %v5661
    %v6261 = vunpack.c.l.b16 %v5662
    %v6262 = vunpack.c.h.b16 %v5662
    %v6263 = vunpack.c.l.b16 %v5663
    %v6264 = vunpack.c.h.b16 %v5663
    %v6265 = vunpack.c.l.b16 %v5664
    %v6266 = vunpack.c.h.b16 %v5664
    %v6267 = vunpack.c.l.b16 %v5665
    %v6268 = vunpack.c.h.b16 %v5665
    %v6269 = vunpack.c.l.b16 %v5666
    %v6270 = vunpack.c.h.b16 %v5666
    %v6271 = vunpack.c.l.b16 %v5667
    %v6272 = vunpack.c.h.b16 %v5667
    %v6273 = vunpack.c.l.b16 %v5668
    %v6274 = vunpack.c.h.b16 %v5668
    %v6275 = vunpack.c.l.b16 %v5669
    %v6276 = vunpack.c.h.b16 %v5669
    %v6277 = vunpack.c.l.b16 %v5670
    %v6278 = vunpack.c.h.b16 %v5670
    %v6279 = vunpack.c.l.b16 %v5671
    %v6280 = vunpack.c.h.b16 %v5671
    %v6281 = vunpack.c.l.b16 %v5672
    %v6282 = vunpack.c.h.b16 %v5672
    %v6283 = vunpack.c.l.b16 %v5673
    %v6284 = vunpack.c.h.b16 %v5673
    %v6285 = vunpack.c.l.b16 %v5674
    %v6286 = vunpack.c.h.b16 %v5674
    %v6287 = vunpack.c.l.b16 %v5675
    %v6288 = vunpack.c.h.b16 %v5675
    %v6289 = vunpack.c.l.b16 %v5676
    %v6290 = vunpack.c.h.b16 %v5676
    %v6291 = vunpack.c.l.b16 %v5677
    %v6292 = vunpack.c.h.b16 %v5677
    %v6293 = vunpack.c.l.b16 %v5678
    %v6294 = vunpack.c.h.b16 %v5678
    %v6295 = vunpack.c.l.b16 %v5679
    %v6296 = vunpack.c.h.b16 %v5679
    %v6297 = vunpack.c.l.b16 %v5680
    %v6298 = vunpack.c.h.b16 %v5680
    %v6299 = vunpack.c.l.b16 %v5681
    %v6300 = vunpack.c.h.b16 %v5681
    %v6301 = vunpack.c.l.b16 %v5682
    %v6302 = vunpack.c.h.b16 %v5682
    %v6303 = vunpack.c.l.b16 %v5683
    %v6304 = vunpack.c.h.b16 %v5683
    %v6305 = vunpack.c.l.b16 %v5684
    %v6306 = vunpack.c.h.b16 %v5684
    %v6307 = vunpack.c.l.b16 %v5685
    %v6308 = vunpack.c.h.b16 %v5685
    %v6309 = vunpack.c.l.b16 %v5686
    %v6310 = vunpack.c.h.b16 %v5686
    %v6311 = vunpack.c.l.b16 %v5687
    %v6312 = vunpack.c.h.b16 %v5687
    %v6313 = vunpack.c.l.b16 %v5688
    %v6314 = vunpack.c.h.b16 %v5688
    %v6315 = vunpack.c.l.b16 %v5689
    %v6316 = vunpack.c.h.b16 %v5689
    %v6317 = vunpack.c.l.b16 %v5690
    %v6318 = vunpack.c.h.b16 %v5690
    %v6319 = vunpack.c.l.b16 %v5691
    %v6320 = vunpack.c.h.b16 %v5691
    %v6321 = vunpack.c.l.b16 %v5692
    %v6322 = vunpack.c.h.b16 %v5692
    %v6323 = vunpack.c.l.b16 %v5693
    %v6324 = vunpack.c.h.b16 %v5693
    %v6325 = vunpack.c.l.b16 %v5694
    %v6326 = vunpack.c.h.b16 %v5694
    %v6327 = vunpack.c.l.b16 %v5695
    %v6328 = vunpack.c.h.b16 %v5695
    %v6329 = vunpack.c.l.b16 %v5696
    %v6330 = vunpack.c.h.b16 %v5696
    %v6331 = vunpack.c.l.b16 %v5697
    %v6332 = vunpack.c.h.b16 %v5697
    %v6333 = vunpack.c.l.b16 %v5698
    %v6334 = vunpack.c.h.b16 %v5698
    %v6335 = vunpack.c.l.b16 %v5699
    %v6336 = vunpack.c.h.b16 %v5699
    %v6337 = vunpack.c.l.b16 %v5700
    %v6338 = vunpack.c.h.b16 %v5700
    %v6339 = vunpack.c.l.b16 %v5701
    %v6340 = vunpack.c.h.b16 %v5701
    %v6341 = vunpack.c.l.b16 %v5702
    %v6342 = vunpack.c.h.b16 %v5702
    %v6343 = vunpack.c.l.b16 %v5703
    %v6344 = vunpack.c.h.b16 %v5703
    %v6345 = vunpack.c.l.b16 %v5704
    %v6346 = vunpack.c.h.b16 %v5704
    %v6347 = vunpack.c.l.b16 %v5705
    %v6348 = vunpack.c.h.b16 %v5705
    %v6349 = vunpack.c.l.b16 %v5706
    %v6350 = vunpack.c.h.b16 %v5706
    %v6351 = vunpack.c.l.b16 %v5707
    %v6352 = vunpack.c.h.b16 %v5707
    %v6353 = vunpack.c.l.b16 %v5708
    %v6354 = vunpack.c.h.b16 %v5708
    %v6355 = vunpack.c.l.b16 %v5709
    %v6356 = vunpack.c.h.b16 %v5709
    %v6357 = vunpack.c.l.b16 %v5710
    %v6358 = vunpack.c.h.b16 %v5710
    %v6359 = vunpack.c.l.b16 %v5711
    %v6360 = vunpack.c.h.b16 %v5711
    %v6361 = vunpack.c.l.b16 %v5712
    %v6362 = vunpack.c.h.b16 %v5712
    %v6363 = vunpack.c.l.b16 %v5713
    %v6364 = vunpack.c.h.b16 %v5713
    %v6365 = vunpack.c.l.b16 %v5714
    %v6366 = vunpack.c.h.b16 %v5714
    %v6367 = vunpack.c.l.b16 %v5715
    %v6368 = vunpack.c.h.b16 %v5715
    %v6369 = vunpack.c.l.b16 %v5716
    %v6370 = vunpack.c.h.b16 %v5716
    %v6371 = vunpack.c.l.b16 %v5717
    %v6372 = vunpack.c.h.b16 %v5717
    %v6373 = vunpack.c.l.b16 %v5718
    %v6374 = vunpack.c.h.b16 %v5718
    %v6375 = vunpack.c.l.b16 %v5719
    %v6376 = vunpack.c.h.b16 %v5719
    %v6377 = vunpack.c.l.b16 %v5720
    %v6378 = vunpack.c.h.b16 %v5720
    %v6379 = vunpack.c.l.b16 %v5721
    %v6380 = vunpack.c.h.b16 %v5721
    %v6381 = vunpack.c.l.b16 %v5722
    %v6382 = vunpack.c.h.b16 %v5722
    %v6383 = vunpack.c.l.b16 %v5723
    %v6384 = vunpack.c.h.b16 %v5723
    %v6385 = vunpack.c.l.b16 %v5724
    %v6386 = vunpack.c.h.b16 %v5724
    %v6387 = vunpack.c.l.b16 %v5725
    %v6388 = vunpack.c.h.b16 %v5725
    %v6389 = vunpack.c.l.b16 %v5726
    %v6390 = vunpack.c.h.b16 %v5726
    %v6391 = vunpack.c.l.b16 %v5727
    %v6392 = vunpack.c.h.b16 %v5727
    %v6393 = vunpack.c.l.b16 %v5728
    %v6394 = vunpack.c.h.b16 %v5728
    %v6395 = vunpack.c.l.b16 %v5729
    %v6396 = vunpack.c.h.b16 %v5729
    %v6397 = vunpack.c.l.b16 %v5730
    %v6398 = vunpack.c.h.b16 %v5730
    %v6399 = vunpack.c.l.b16 %v5731
    %v6400 = vunpack.c.h.b16 %v5731
    %v6401 = vunpack.c.l.b16 %v5732
    %v6402 = vunpack.c.h.b16 %v5732
    %v6403 = vunpack.c.l.b16 %v5733
    %v6404 = vunpack.c.h.b16 %v5733
    %v6405 = vunpack.c.l.b16 %v5734
    %v6406 = vunpack.c.h.b16 %v5734
    %v6407 = vunpack.c.l.b16 %v5735
    %v6408 = vunpack.c.h.b16 %v5735
    %v6409 = vunpack.c.l.b16 %v5736
    %v6410 = vunpack.c.h.b16 %v5736
    %v6411 = vunpack.c.l.b16 %v5737
    %v6412 = vunpack.c.h.b16 %v5737
    %v6413 = vunpack.c.l.b16 %v5738
    %v6414 = vunpack.c.h.b16 %v5738
    %v6415 = vunpack.c.l.b16 %v5739
    %v6416 = vunpack.c.h.b16 %v5739
    %v6417 = vunpack.c.l.b16 %v5740
    %v6418 = vunpack.c.h.b16 %v5740
    %v6419 = vunpack.c.l.b16 %v5741
    %v6420 = vunpack.c.h.b16 %v5741
    %v6421 = vunpack.c.l.b16 %v5742
    %v6422 = vunpack.c.h.b16 %v5742
    %v6423 = vunpack.c.l.b16 %v5743
    %v6424 = vunpack.c.h.b16 %v5743
    %v6425 = vunpack.c.l.b16 %v5744
    %v6426 = vunpack.c.h.b16 %v5744
    %v6427 = vunpack.c.l.b16 %v5745
    %v6428 = vunpack.c.h.b16 %v5745
    %v6429 = vunpack.c.l.b16 %v5746
    %v6430 = vunpack.c.h.b16 %v5746
    %v6431 = vunpack.c.l.b16 %v5747
    %v6432 = vunpack.c.h.b16 %v5747
    %v6433 = vunpack.c.l.b16 %v5748
    %v6434 = vunpack.c.h.b16 %v5748
    %v6435 = vunpack.c.l.b16 %v5749
    %v6436 = vunpack.c.h.b16 %v5749
    %v6437 = vunpack.c.l.b16 %v5750
    %v6438 = vunpack.c.h.b16 %v5750
    %v6439 = vunpack.c.l.b16 %v5751
    %v6440 = vunpack.c.h.b16 %v5751
    %v6441 = vunpack.c.l.b16 %v5752
    %v6442 = vunpack.c.h.b16 %v5752
    %v6443 = vunpack.c.l.b16 %v5753
    %v6444 = vunpack.c.h.b16 %v5753
    %v6445 = vunpack.c.l.b16 %v5754
    %v6446 = vunpack.c.h.b16 %v5754
    %v6447 = vunpack.c.l.b16 %v5755
    %v6448 = vunpack.c.h.b16 %v5755
    %v6449 = vunpack.c.l.b16 %v5756
    %v6450 = vunpack.c.h.b16 %v5756
    %v6451 = vunpack.c.l.b16 %v5757
    %v6452 = vunpack.c.h.b16 %v5757
    %v6453 = vunpack.c.l.b16 %v5758
    %v6454 = vunpack.c.h.b16 %v5758
    %v6455 = vunpack.c.l.b16 %v5759
    %v6456 = vunpack.c.h.b16 %v5759
    %v6457 = vunpack.c.l.b16 %v5760
    %v6458 = vunpack.c.h.b16 %v5760
    %v6459 = vunpack.c.l.b16 %v5761
    %v6460 = vunpack.c.h.b16 %v5761
    %v6461 = vunpack.c.l.b16 %v5762
    %v6462 = vunpack.c.h.b16 %v5762
    %v6463 = vunpack.c.l.b16 %v5763
    %v6464 = vunpack.c.h.b16 %v5763
    %v6465 = vunpack.c.l.b16 %v5764
    %v6466 = vunpack.c.h.b16 %v5764
    %v6467 = vunpack.c.l.b16 %v5765
    %v6468 = vunpack.c.h.b16 %v5765
    %v6469 = vunpack.c.l.b16 %v5766
    %v6470 = vunpack.c.h.b16 %v5766
    %v6471 = vunpack.c.l.b16 %v5767
    %v6472 = vunpack.c.h.b16 %v5767
    %v6473 = vunpack.c.l.b16 %v5768
    %v6474 = vunpack.c.h.b16 %v5768
    %v6475 = vunpack.c.l.b16 %v5769
    %v6476 = vunpack.c.h.b16 %v5769
    %v6477 = vunpack.c.l.b16 %v5770
    %v6478 = vunpack.c.h.b16 %v5770
    %v6479 = vunpack.c.l.b16 %v5771
    %v6480 = vunpack.c.h.b16 %v5771
    %v6481 = vunpack.c.l.b16 %v5772
    %v6482 = vunpack.c.h.b16 %v5772
    %v6483 = vunpack.c.l.b16 %v5773
    %v6484 = vunpack.c.h.b16 %v5773
    %v6485 = vunpack.c.l.b16 %v5774
    %v6486 = vunpack.c.h.b16 %v5774
    %v6487 = vunpack.c.l.b16 %v5775
    %v6488 = vunpack.c.h.b16 %v5775
    %v6489 = vunpack.c.l.b16 %v5776
    %v6490 = vunpack.c.h.b16 %v5776
    %v6491 = vunpack.c.l.b16 %v5777
    %v6492 = vunpack.c.h.b16 %v5777
    %v6493 = vunpack.c.l.b16 %v5778
    %v6494 = vunpack.c.h.b16 %v5778
    %v6495 = vunpack.c.l.b16 %v5779
    %v6496 = vunpack.c.h.b16 %v5779
    %v6497 = vunpack.c.l.b16 %v5780
    %v6498 = vunpack.c.h.b16 %v5780
    %v6499 = vunpack.c.l.b16 %v5781
    %v6500 = vunpack.c.h.b16 %v5781
    %v6501 = vunpack.c.l.b16 %v5782
    %v6502 = vunpack.c.h.b16 %v5782
    %v6503 = vunpack.c.l.b16 %v5783
    %v6504 = vunpack.c.h.b16 %v5783
    %v6505 = vunpack.c.l.b16 %v5784
    %v6506 = vunpack.c.h.b16 %v5784
    %v6507 = vunpack.c.l.b16 %v5785
    %v6508 = vunpack.c.h.b16 %v5785
    %v6509 = vunpack.c.l.b16 %v5786
    %v6510 = vunpack.c.h.b16 %v5786
    %v6511 = vunpack.c.l.b16 %v5787
    %v6512 = vunpack.c.h.b16 %v5787
    %v6513 = vunpack.c.l.b16 %v5788
    %v6514 = vunpack.c.h.b16 %v5788
    %v6515 = vunpack.c.l.b16 %v5789
    %v6516 = vunpack.c.h.b16 %v5789
    %v6517 = vunpack.c.l.b16 %v5790
    %v6518 = vunpack.c.h.b16 %v5790
    %v6519 = vunpack.c.l.b16 %v5791
    %v6520 = vunpack.c.h.b16 %v5791
    %v6521 = vunpack.c.l.b16 %v5792
    %v6522 = vunpack.c.h.b16 %v5792
    %v6523 = vunpack.c.l.b16 %v5793
    %v6524 = vunpack.c.h.b16 %v5793
    %v6525 = vunpack.c.l.b16 %v5794
    %v6526 = vunpack.c.h.b16 %v5794
    %v6527 = vunpack.c.l.b16 %v5795
    %v6528 = vunpack.c.h.b16 %v5795
    %v6529 = vunpack.c.l.b16 %v5796
    %v6530 = vunpack.c.h.b16 %v5796
    %v6531 = vunpack.c.l.b16 %v5797
    %v6532 = vunpack.c.h.b16 %v5797
    %v6533 = vunpack.c.l.b16 %v5798
    %v6534 = vunpack.c.h.b16 %v5798
    %v6535 = vunpack.c.l.b16 %v5799
    %v6536 = vunpack.c.h.b16 %v5799
    %v6537 = vunpack.c.l.b16 %v5800
    %v6538 = vunpack.c.h.b16 %v5800
    %v6539 = vunpack.c.l.b16 %v5801
    %v6540 = vunpack.c.h.b16 %v5801
    %v6541 = vunpack.c.l.b16 %v5802
    %v6542 = vunpack.c.h.b16 %v5802
    %v6543 = vunpack.c.l.b16 %v5803
    %v6544 = vunpack.c.h.b16 %v5803
    %v6545 = vunpack.c.l.b16 %v5804
    %v6546 = vunpack.c.h.b16 %v5804
    %v6547 = vunpack.c.l.b16 %v5805
    %v6548 = vunpack.c.h.b16 %v5805
    %v6549 = vunpack.c.l.b16 %v5806
    %v6550 = vunpack.c.h.b16 %v5806
    %v6551 = vunpack.c.l.b16 %v5807
    %v6552 = vunpack.c.h.b16 %v5807
    %v6553 = vunpack.c.l.b16 %v5808
    %v6554 = vunpack.c.h.b16 %v5808
    %v6555 = vunpack.c.l.b16 %v5809
    %v6556 = vunpack.c.h.b16 %v5809
    %v6557 = vunpack.c.l.b16 %v5810
    %v6558 = vunpack.c.h.b16 %v5810
    %v6559 = vunpack.c.l.b16 %v5811
    %v6560 = vunpack.c.h.b16 %v5811
    %v6561 = vunpack.c.l.b16 %v5812
    %v6562 = vunpack.c.h.b16 %v5812
    %v6563 = vunpack.c.l.b16 %v5813
    %v6564 = vunpack.c.h.b16 %v5813
    %v6565 = vunpack.c.l.b16 %v5814
    %v6566 = vunpack.c.h.b16 %v5814
    %v6567 = vunpack.c.l.b16 %v5815
    %v6568 = vunpack.c.h.b16 %v5815
    %v6569 = vunpack.c.l.b16 %v5816
    %v6570 = vunpack.c.h.b16 %v5816
    %v6571 = vunpack.c.l.b16 %v5817
    %v6572 = vunpack.c.h.b16 %v5817
    %v6573 = vunpack.c.l.b16 %v5818
    %v6574 = vunpack.c.h.b16 %v5818
    %v6575 = vunpack.c.l.b16 %v5819
    %v6576 = vunpack.c.h.b16 %v5819
    %v6577 = vunpack.c.l.b16 %v5820
    %v6578 = vunpack.c.h.b16 %v5820
    %v6579 = vunpack.c.l.b16 %v5821
    %v6580 = vunpack.c.h.b16 %v5821
    %v6581 = vunpack.c.l.b16 %v5822
    %v6582 = vunpack.c.h.b16 %v5822
    %v6583 = vunpack.c.l.b16 %v5823
    %v6584 = vunpack.c.h.b16 %v5823
    %v6585 = vunpack.c.l.b16 %v5824
    %v6586 = vunpack.c.h.b16 %v5824
    %v6587 = vunpack.c.l.b16 %v5825
    %v6588 = vunpack.c.h.b16 %v5825
    %v6589 = vunpack.c.l.b16 %v5826
    %v6590 = vunpack.c.h.b16 %v5826
    %v6591 = vunpack.c.l.b16 %v5827
    %v6592 = vunpack.c.h.b16 %v5827
    %v6593 = vunpack.c.l.b16 %v5828
    %v6594 = vunpack.c.h.b16 %v5828
    %v6595 = vunpack.c.l.b16 %v5829
    %v6596 = vunpack.c.h.b16 %v5829
    %v6597 = vunpack.c.l.b16 %v5830
    %v6598 = vunpack.c.h.b16 %v5830
    %v6599 = vunpack.c.l.b16 %v5831
    %v6600 = vunpack.c.h.b16 %v5831
    %v6601 = vunpack.c.l.b16 %v5832
    %v6602 = vunpack.c.h.b16 %v5832
    %v6603 = vunpack.c.l.b16 %v5833
    %v6604 = vunpack.c.h.b16 %v5833
    %v6605 = vunpack.c.l.b16 %v5834
    %v6606 = vunpack.c.h.b16 %v5834
    %v6607 = vunpack.c.l.b16 %v5835
    %v6608 = vunpack.c.h.b16 %v5835
    %v6609 = vunpack.c.l.b16 %v5836
    %v6610 = vunpack.c.h.b16 %v5836
    %v6611 = vunpack.c.l.b16 %v5837
    %v6612 = vunpack.c.h.b16 %v5837
    %v6613 = vunpack.c.l.b16 %v5838
    %v6614 = vunpack.c.h.b16 %v5838
    %v6615 = vunpack.c.l.b16 %v5839
    %v6616 = vunpack.c.h.b16 %v5839
    %v6617 = vunpack.c.l.b16 %v5840
    %v6618 = vunpack.c.h.b16 %v5840
    %v6619 = vunpack.c.l.b16 %v5841
    %v6620 = vunpack.c.h.b16 %v5841
    %v6621 = vunpack.c.l.b16 %v5842
    %v6622 = vunpack.c.h.b16 %v5842
    %v6623 = vunpack.c.l.b16 %v5843
    %v6624 = vunpack.c.h.b16 %v5843
    %v6625 = vunpack.c.l.b16 %v5844
    %v6626 = vunpack.c.h.b16 %v5844
    %v6627 = vunpack.c.l.b16 %v5845
    %v6628 = vunpack.c.h.b16 %v5845
    %v6629 = vunpack.c.l.b16 %v5846
    %v6630 = vunpack.c.h.b16 %v5846
    %v6631 = vunpack.c.l.b16 %v5847
    %v6632 = vunpack.c.h.b16 %v5847
    %v6633 = vunpack.c.l.b16 %v5848
    %v6634 = vunpack.c.h.b16 %v5848
    %v6635 = vunpack.c.l.b16 %v5849
    %v6636 = vunpack.c.h.b16 %v5849
    %v6637 = vunpack.c.l.b16 %v5850
    %v6638 = vunpack.c.h.b16 %v5850
    %v6639 = vunpack.c.l.b16 %v5851
    %v6640 = vunpack.c.h.b16 %v5851
    %v6641 = vunpack.c.l.b16 %v5852
    %v6642 = vunpack.c.h.b16 %v5852
    %v6643 = vpack.c.b16 %v6135, %v6131
    %v6644 = vpack.c.b16 %v6136, %v6132
    %v6645 = vpack.c.b16 %v6137, %v6133
    %v6646 = vpack.c.b16 %v6138, %v6134
    %v6647 = vpack.c.b16 %v6143, %v6139
    %v6648 = vpack.c.b16 %v6144, %v6140
    %v6649 = vpack.c.b16 %v6145, %v6141
    %v6650 = vpack.c.b16 %v6146, %v6142
    %v6651 = vpack.c.b16 %v6151, %v6147
    %v6652 = vpack.c.b16 %v6152, %v6148
    %v6653 = vpack.c.b16 %v6153, %v6149
    %v6654 = vpack.c.b16 %v6154, %v6150
    %v6655 = vpack.c.b16 %v6159, %v6155
    %v6656 = vpack.c.b16 %v6160, %v6156
    %v6657 = vpack.c.b16 %v6161, %v6157
    %v6658 = vpack.c.b16 %v6162, %v6158
    %v6659 = vpack.c.b16 %v6167, %v6163
    %v6660 = vpack.c.b16 %v6168, %v6164
    %v6661 = vpack.c.b16 %v6169, %v6165
    %v6662 = vpack.c.b16 %v6170, %v6166
    %v6663 = vpack.c.b16 %v6175, %v6171
    %v6664 = vpack.c.b16 %v6176, %v6172
    %v6665 = vpack.c.b16 %v6177, %v6173
    %v6666 = vpack.c.b16 %v6178, %v6174
    %v6667 = vpack.c.b16 %v6183, %v6179
    %v6668 = vpack.c.b16 %v6184, %v6180
    %v6669 = vpack.c.b16 %v6185, %v6181
    %v6670 = vpack.c.b16 %v6186, %v6182
    %v6671 = vpack.c.b16 %v6191, %v6187
    %v6672 = vpack.c.b16 %v6192, %v6188
    %v6673 = vpack.c.b16 %v6193, %v6189
    %v6674 = vpack.c.b16 %v6194, %v6190
    %v6675 = vpack.c.b16 %v6199, %v6195
    %v6676 = vpack.c.b16 %v6200, %v6196
    %v6677 = vpack.c.b16 %v6201, %v6197
    %v6678 = vpack.c.b16 %v6202, %v6198
    %v6679 = vpack.c.b16 %v6207, %v6203
    %v6680 = vpack.c.b16 %v6208, %v6204
    %v6681 = vpack.c.b16 %v6209, %v6205
    %v6682 = vpack.c.b16 %v6210, %v6206
    %v6683 = vpack.c.b16 %v6215, %v6211
    %v6684 = vpack.c.b16 %v6216, %v6212
    %v6685 = vpack.c.b16 %v6217, %v6213
    %v6686 = vpack.c.b16 %v6218, %v6214
    %v6687 = vpack.c.b16 %v6223, %v6219
    %v6688 = vpack.c.b16 %v6224, %v6220
    %v6689 = vpack.c.b16 %v6225, %v6221
    %v6690 = vpack.c.b16 %v6226, %v6222
    %v6691 = vpack.c.b16 %v6231, %v6227
    %v6692 = vpack.c.b16 %v6232, %v6228
    %v6693 = vpack.c.b16 %v6233, %v6229
    %v6694 = vpack.c.b16 %v6234, %v6230
    %v6695 = vpack.c.b16 %v6239, %v6235
    %v6696 = vpack.c.b16 %v6240, %v6236
    %v6697 = vpack.c.b16 %v6241, %v6237
    %v6698 = vpack.c.b16 %v6242, %v6238
    %v6699 = vpack.c.b16 %v6247, %v6243
    %v6700 = vpack.c.b16 %v6248, %v6244
    %v6701 = vpack.c.b16 %v6249, %v6245
    %v6702 = vpack.c.b16 %v6250, %v6246
    %v6703 = vpack.c.b16 %v6255, %v6251
    %v6704 = vpack.c.b16 %v6256, %v6252
    %v6705 = vpack.c.b16 %v6257, %v6253
    %v6706 = vpack.c.b16 %v6258, %v6254
    %v6707 = vpack.c.b16 %v6263, %v6259
    %v6708 = vpack.c.b16 %v6264, %v6260
    %v6709 = vpack.c.b16 %v6265, %v6261
    %v6710 = vpack.c.b16 %v6266, %v6262
    %v6711 = vpack.c.b16 %v6271, %v6267
    %v6712 = vpack.c.b16 %v6272, %v6268
    %v6713 = vpack.c.b16 %v6273, %v6269
    %v6714 = vpack.c.b16 %v6274, %v6270
    %v6715 = vpack.c.b16 %v6279, %v6275
    %v6716 = vpack.c.b16 %v6280, %v6276
    %v6717 = vpack.c.b16 %v6281, %v6277
    %v6718 = vpack.c.b16 %v6282, %v6278
    %v6719 = vpack.c.b16 %v6287, %v6283
    %v6720 = vpack.c.b16 %v6288, %v6284
    %v6721 = vpack.c.b16 %v6289, %v6285
    %v6722 = vpack.c.b16 %v6290, %v6286
    %v6723 = vpack.c.b16 %v6295, %v6291
    %v6724 = vpack.c.b16 %v6296, %v6292
    %v6725 = vpack.c.b16 %v6297, %v6293
    %v6726 = vpack.c.b16 %v6298, %v6294
    %v6727 = vpack.c.b16 %v6303, %v6299
    %v6728 = vpack.c.b16 %v6304, %v6300
    %v6729 = vpack.c.b16 %v6305, %v6301
    %v6730 = vpack.c.b16 %v6306, %v6302
    %v6731 = vpack.c.b16 %v6311, %v6307
    %v6732 = vpack.c.b16 %v6312, %v6308
    %v6733 = vpack.c.b16 %v6313, %v6309
    %v6734 = vpack.c.b16 %v6314, %v6310
    %v6735 = vpack.c.b16 %v6319, %v6315
    %v6736 = vpack.c.b16 %v6320, %v6316
    %v6737 = vpack.c.b16 %v6321, %v6317
    %v6738 = vpack.c.b16 %v6322, %v6318
    %v6739 = vpack.c.b16 %v6327, %v6323
    %v6740 = vpack.c.b16 %v6328, %v6324
    %v6741 = vpack.c.b16 %v6329, %v6325
    %v6742 = vpack.c.b16 %v6330, %v6326
    %v6743 = vpack.c.b16 %v6335, %v6331
    %v6744 = vpack.c.b16 %v6336, %v6332
    %v6745 = vpack.c.b16 %v6337, %v6333
    %v6746 = vpack.c.b16 %v6338, %v6334
    %v6747 = vpack.c.b16 %v6343, %v6339
    %v6748 = vpack.c.b16 %v6344, %v6340
    %v6749 = vpack.c.b16 %v6345, %v6341
    %v6750 = vpack.c.b16 %v6346, %v6342
    %v6751 = vpack.c.b16 %v6351, %v6347
    %v6752 = vpack.c.b16 %v6352, %v6348
    %v6753 = vpack.c.b16 %v6353, %v6349
    %v6754 = vpack.c.b16 %v6354, %v6350
    %v6755 = vpack.c.b16 %v6359, %v6355
    %v6756 = vpack.c.b16 %v6360, %v6356
    %v6757 = vpack.c.b16 %v6361, %v6357
    %v6758 = vpack.c.b16 %v6362, %v6358
    %v6759 = vpack.c.b16 %v6367, %v6363
    %v6760 = vpack.c.b16 %v6368, %v6364
    %v6761 = vpack.c.b16 %v6369, %v6365
    %v6762 = vpack.c.b16 %v6370, %v6366
    %v6763 = vpack.c.b16 %v6375, %v6371
    %v6764 = vpack.c.b16 %v6376, %v6372
    %v6765 = vpack.c.b16 %v6377, %v6373
    %v6766 = vpack.c.b16 %v6378, %v6374
    %v6767 = vpack.c.b16 %v6383, %v6379
    %v6768 = vpack.c.b16 %v6384, %v6380
    %v6769 = vpack.c.b16 %v6385, %v6381
    %v6770 = vpack.c.b16 %v6386, %v6382
    %v6771 = vpack.c.b16 %v6391, %v6387
    %v6772 = vpack.c.b16 %v6392, %v6388
    %v6773 = vpack.c.b16 %v6393, %v6389
    %v6774 = vpack.c.b16 %v6394, %v6390
    %v6775 = vpack.c.b16 %v6399, %v6395
    %v6776 = vpack.c.b16 %v6400, %v6396
    %v6777 = vpack.c.b16 %v6401, %v6397
    %v6778 = vpack.c.b16 %v6402, %v6398
    %v6779 = vpack.c.b16 %v6407, %v6403
    %v6780 = vpack.c.b16 %v6408, %v6404
    %v6781 = vpack.c.b16 %v6409, %v6405
    %v6782 = vpack.c.b16 %v6410, %v6406
    %v6783 = vpack.c.b16 %v6415, %v6411
    %v6784 = vpack.c.b16 %v6416, %v6412
    %v6785 = vpack.c.b16 %v6417, %v6413
    %v6786 = vpack.c.b16 %v6418, %v6414
    %v6787 = vpack.c.b16 %v6423, %v6419
    %v6788 = vpack.c.b16 %v6424, %v6420
    %v6789 = vpack.c.b16 %v6425, %v6421
    %v6790 = vpack.c.b16 %v6426, %v6422
    %v6791 = vpack.c.b16 %v6431, %v6427
    %v6792 = vpack.c.b16 %v6432, %v6428
    %v6793 = vpack.c.b16 %v6433, %v6429
    %v6794 = vpack.c.b16 %v6434, %v6430
    %v6795 = vpack.c.b16 %v6439, %v6435
    %v6796 = vpack.c.b16 %v6440, %v6436
    %v6797 = vpack.c.b16 %v6441, %v6437
    %v6798 = vpack.c.b16 %v6442, %v6438
    %v6799 = vpack.c.b16 %v6447, %v6443
    %v6800 = vpack.c.b16 %v6448, %v6444
    %v6801 = vpack.c.b16 %v6449, %v6445
    %v6802 = vpack.c.b16 %v6450, %v6446
    %v6803 = vpack.c.b16 %v6455, %v6451
    %v6804 = vpack.c.b16 %v6456, %v6452
    %v6805 = vpack.c.b16 %v6457, %v6453
    %v6806 = vpack.c.b16 %v6458, %v6454
    %v6807 = vpack.c.b16 %v6463, %v6459
    %v6808 = vpack.c.b16 %v6464, %v6460
    %v6809 = vpack.c.b16 %v6465, %v6461
    %v6810 = vpack.c.b16 %v6466, %v6462
    %v6811 = vpack.c.b16 %v6471, %v6467
    %v6812 = vpack.c.b16 %v6472, %v6468
    %v6813 = vpack.c.b16 %v6473, %v6469
    %v6814 = vpack.c.b16 %v6474, %v6470
    %v6815 = vpack.c.b16 %v6479, %v6475
    %v6816 = vpack.c.b16 %v6480, %v6476
    %v6817 = vpack.c.b16 %v6481, %v6477
    %v6818 = vpack.c.b16 %v6482, %v6478
    %v6819 = vpack.c.b16 %v6487, %v6483
    %v6820 = vpack.c.b16 %v6488, %v6484
    %v6821 = vpack.c.b16 %v6489, %v6485
    %v6822 = vpack.c.b16 %v6490, %v6486
    %v6823 = vpack.c.b16 %v6495, %v6491
    %v6824 = vpack.c.b16 %v6496, %v6492
    %v6825 = vpack.c.b16 %v6497, %v6493
    %v6826 = vpack.c.b16 %v6498, %v6494
    %v6827 = vpack.c.b16 %v6503, %v6499
    %v6828 = vpack.c.b16 %v6504, %v6500
    %v6829 = vpack.c.b16 %v6505, %v6501
    %v6830 = vpack.c.b16 %v6506, %v6502
    %v6831 = vpack.c.b16 %v6511, %v6507
    %v6832 = vpack.c.b16 %v6512, %v6508
    %v6833 = vpack.c.b16 %v6513, %v6509
    %v6834 = vpack.c.b16 %v6514, %v6510
    %v6835 = vpack.c.b16 %v6519, %v6515
    %v6836 = vpack.c.b16 %v6520, %v6516
    %v6837 = vpack.c.b16 %v6521, %v6517
    %v6838 = vpack.c.b16 %v6522, %v6518
    %v6839 = vpack.c.b16 %v6527, %v6523
    %v6840 = vpack.c.b16 %v6528, %v6524
    %v6841 = vpack.c.b16 %v6529, %v6525
    %v6842 = vpack.c.b16 %v6530, %v6526
    %v6843 = vpack.c.b16 %v6535, %v6531
    %v6844 = vpack.c.b16 %v6536, %v6532
    %v6845 = vpack.c.b16 %v6537, %v6533
    %v6846 = vpack.c.b16 %v6538, %v6534
    %v6847 = vpack.c.b16 %v6543, %v6539
    %v6848 = vpack.c.b16 %v6544, %v6540
    %v6849 = vpack.c.b16 %v6545, %v6541
    %v6850 = vpack.c.b16 %v6546, %v6542
    %v6851 = vpack.c.b16 %v6551, %v6547
    %v6852 = vpack.c.b16 %v6552, %v6548
    %v6853 = vpack.c.b16 %v6553, %v6549
    %v6854 = vpack.c.b16 %v6554, %v6550
    %v6855 = vpack.c.b16 %v6559, %v6555
    %v6856 = vpack.c.b16 %v6560, %v6556
    %v6857 = vpack.c.b16 %v6561, %v6557
    %v6858 = vpack.c.b16 %v6562, %v6558
    %v6859 = vpack.c.b16 %v6567, %v6563
    %v6860 = vpack.c.b16 %v6568, %v6564
    %v6861 = vpack.c.b16 %v6569, %v6565
    %v6862 = vpack.c.b16 %v6570, %v6566
    %v6863 = vpack.c.b16 %v6575, %v6571
    %v6864 = vpack.c.b16 %v6576, %v6572
    %v6865 = vpack.c.b16 %v6577, %v6573
    %v6866 = vpack.c.b16 %v6578, %v6574
    %v6867 = vpack.c.b16 %v6583, %v6579
    %v6868 = vpack.c.b16 %v6584, %v6580
    %v6869 = vpack.c.b16 %v6585, %v6581
    %v6870 = vpack.c.b16 %v6586, %v6582
    %v6871 = vpack.c.b16 %v6591, %v6587
    %v6872 = vpack.c.b16 %v6592, %v6588
    %v6873 = vpack.c.b16 %v6593, %v6589
    %v6874 = vpack.c.b16 %v6594, %v6590
    %v6875 = vpack.c.b16 %v6599, %v6595
    %v6876 = vpack.c.b16 %v6600, %v6596
    %v6877 = vpack.c.b16 %v6601, %v6597
    %v6878 = vpack.c.b16 %v6602, %v6598
    %v6879 = vpack.c.b16 %v6607, %v6603
    %v6880 = vpack.c.b16 %v6608, %v6604
    %v6881 = vpack.c.b16 %v6609, %v6605
    %v6882 = vpack.c.b16 %v6610, %v6606
    %v6883 = vpack.c.b16 %v6615, %v6611
    %v6884 = vpack.c.b16 %v6616, %v6612
    %v6885 = vpack.c.b16 %v6617, %v6613
    %v6886 = vpack.c.b16 %v6618, %v6614
    %v6887 = vpack.c.b16 %v6623, %v6619
    %v6888 = vpack.c.b16 %v6624, %v6620
    %v6889 = vpack.c.b16 %v6625, %v6621
    %v6890 = vpack.c.b16 %v6626, %v6622
    %v6891 = vpack.c.b16 %v6631, %v6627
    %v6892 = vpack.c.b16 %v6632, %v6628
    %v6893 = vpack.c.b16 %v6633, %v6629
    %v6894 = vpack.c.b16 %v6634, %v6630
    %v6895 = vpack.c.b16 %v6639, %v6635
    %v6896 = vpack.c.b16 %v6640, %v6636
    %v6897 = vpack.c.b16 %v6641, %v6637
    %v6898 = vpack.c.b16 %v6642, %v6638
    %7155 = vmatprep.subr.bf16.mxu0 %v6644
    %7156 = vmatpush1.bf16.msra.mxu0 %v6643
    %7157 = vmatprep.subr.bf16.mxu0 %v6648
    %7158 = vmatpush1.bf16.msra.mxu0 %v6647
    %7159 = vmatprep.subr.bf16.mxu0 %v6652
    %7160 = vmatpush1.bf16.msra.mxu0 %v6651
    %7161 = vmatprep.subr.bf16.mxu0 %v6656
    %7162 = vmatpush1.bf16.msra.mxu0 %v6655
    %7163 = vmatprep.subr.bf16.mxu0 %v6660
    %7164 = vmatpush1.bf16.msra.mxu0 %v6659
    %7165 = vmatprep.subr.bf16.mxu0 %v6664
    %7166 = vmatpush1.bf16.msra.mxu0 %v6663
    %7167 = vmatprep.subr.bf16.mxu0 %v6668
    %7168 = vmatpush1.bf16.msra.mxu0 %v6667
    %7169 = vmatprep.subr.bf16.mxu0 %v6672
    %7170 = vmatpush1.bf16.msra.mxu0 %v6671
    %7171 = vmatprep.subr.bf16.mxu0 %v6676
    %7172 = vmatpush1.bf16.msra.mxu0 %v6675
    %7173 = vmatprep.subr.bf16.mxu0 %v6680
    %7174 = vmatpush1.bf16.msra.mxu0 %v6679
    %7175 = vmatprep.subr.bf16.mxu0 %v6684
    %7176 = vmatpush1.bf16.msra.mxu0 %v6683
    %7177 = vmatprep.subr.bf16.mxu0 %v6688
    %7178 = vmatpush1.bf16.msra.mxu0 %v6687
    %7179 = vmatprep.subr.bf16.mxu0 %v6692
    %7180 = vmatpush1.bf16.msra.mxu0 %v6691
    %7181 = vmatprep.subr.bf16.mxu0 %v6696
    %7182 = vmatpush1.bf16.msra.mxu0 %v6695
    %7183 = vmatprep.subr.bf16.mxu0 %v6700
    %7184 = vmatpush1.bf16.msra.mxu0 %v6699
    %7185 = vmatprep.subr.bf16.mxu0 %v6704
    %7186 = vmatpush1.bf16.msra.mxu0 %v6703
    %7187 = vmatprep.mubr.bf16.mxu0 %v5590
    %7188 = vmatmul.mubr.bf16.gmra.mrb[0].mxu0 %v5589
    %v7189 = vpop.f32.mrb[0].mxu0
    %v7190 = vadd.f32 %v5858, %v7189
    %v7191 = vpop.f32.mrb[0].mxu0
    %v7192 = vadd.f32 %v5862, %v7191
    %v7193 = vpop.f32.mrb[0].mxu0
    %v7194 = vadd.f32 %v5858, %v7193
    %v7195 = vpop.f32.mrb[0].mxu0
    %v7196 = vadd.f32 %v5862, %v7195
    %7197 = vdwg.mxu0
    %7198 = vmatprep.subr.bf16.mxu0 %v6708
    %7199 = vmatpush1.bf16.msra.mxu0 %v6707
    %7200 = vmatprep.subr.bf16.mxu0 %v6712
    %7201 = vmatpush1.bf16.msra.mxu0 %v6711
    %7202 = vmatprep.subr.bf16.mxu0 %v6716
    %7203 = vmatpush1.bf16.msra.mxu0 %v6715
    %7204 = vmatprep.subr.bf16.mxu0 %v6720
    %7205 = vmatpush1.bf16.msra.mxu0 %v6719
    %7206 = vmatprep.subr.bf16.mxu0 %v6724
    %7207 = vmatpush1.bf16.msra.mxu0 %v6723
    %7208 = vmatprep.subr.bf16.mxu0 %v6728
    %7209 = vmatpush1.bf16.msra.mxu0 %v6727
    %7210 = vmatprep.subr.bf16.mxu0 %v6732
    %7211 = vmatpush1.bf16.msra.mxu0 %v6731
    %7212 = vmatprep.subr.bf16.mxu0 %v6736
    %7213 = vmatpush1.bf16.msra.mxu0 %v6735
    %7214 = vmatprep.subr.bf16.mxu0 %v6740
    %7215 = vmatpush1.bf16.msra.mxu0 %v6739
    %7216 = vmatprep.subr.bf16.mxu0 %v6744
    %7217 = vmatpush1.bf16.msra.mxu0 %v6743
    %7218 = vmatprep.subr.bf16.mxu0 %v6748
    %7219 = vmatpush1.bf16.msra.mxu0 %v6747
    %7220 = vmatprep.subr.bf16.mxu0 %v6752
    %7221 = vmatpush1.bf16.msra.mxu0 %v6751
    %7222 = vmatprep.subr.bf16.mxu0 %v6756
    %7223 = vmatpush1.bf16.msra.mxu0 %v6755
    %7224 = vmatprep.subr.bf16.mxu0 %v6760
    %7225 = vmatpush1.bf16.msra.mxu0 %v6759
    %7226 = vmatprep.subr.bf16.mxu0 %v6764
    %7227 = vmatpush1.bf16.msra.mxu0 %v6763
    %7228 = vmatprep.subr.bf16.mxu0 %v6768
    %7229 = vmatpush1.bf16.msra.mxu0 %v6767
    %7230 = vmatprep.mubr.bf16.mxu0 %v5592
    %7231 = vmatmul.mubr.bf16.gmra.mrb[0].mxu0 %v5591
    %v7232 = vpop.f32.mrb[0].mxu0
    %v7233 = vadd.f32 %v7190, %v7232
    %v7234 = vpop.f32.mrb[0].mxu0
    %v7235 = vadd.f32 %v7192, %v7234
    %v7236 = vpop.f32.mrb[0].mxu0
    %v7237 = vadd.f32 %v7194, %v7236
    %v7238 = vpop.f32.mrb[0].mxu0
    %v7239 = vadd.f32 %v7196, %v7238
    %7240 = vdwg.mxu0
    %7241 = vmatprep.subr.bf16.mxu0 %v6772
    %7242 = vmatpush1.bf16.msra.mxu0 %v6771
    %7243 = vmatprep.subr.bf16.mxu0 %v6776
    %7244 = vmatpush1.bf16.msra.mxu0 %v6775
    %7245 = vmatprep.subr.bf16.mxu0 %v6780
    %7246 = vmatpush1.bf16.msra.mxu0 %v6779
    %7247 = vmatprep.subr.bf16.mxu0 %v6784
    %7248 = vmatpush1.bf16.msra.mxu0 %v6783
    %7249 = vmatprep.subr.bf16.mxu0 %v6788
    %7250 = vmatpush1.bf16.msra.mxu0 %v6787
    %7251 = vmatprep.subr.bf16.mxu0 %v6792
    %7252 = vmatpush1.bf16.msra.mxu0 %v6791
    %7253 = vmatprep.subr.bf16.mxu0 %v6796
    %7254 = vmatpush1.bf16.msra.mxu0 %v6795
    %7255 = vmatprep.subr.bf16.mxu0 %v6800
    %7256 = vmatpush1.bf16.msra.mxu0 %v6799
    %7257 = vmatprep.subr.bf16.mxu0 %v6804
    %7258 = vmatpush1.bf16.msra.mxu0 %v6803
    %7259 = vmatprep.subr.bf16.mxu0 %v6808
    %7260 = vmatpush1.bf16.msra.mxu0 %v6807
    %7261 = vmatprep.subr.bf16.mxu0 %v6812
    %7262 = vmatpush1.bf16.msra.mxu0 %v6811
    %7263 = vmatprep.subr.bf16.mxu0 %v6816
    %7264 = vmatpush1.bf16.msra.mxu0 %v6815
    %7265 = vmatprep.subr.bf16.mxu0 %v6820
    %7266 = vmatpush1.bf16.msra.mxu0 %v6819
    %7267 = vmatprep.subr.bf16.mxu0 %v6824
    %7268 = vmatpush1.bf16.msra.mxu0 %v6823
    %7269 = vmatprep.subr.bf16.mxu0 %v6828
    %7270 = vmatpush1.bf16.msra.mxu0 %v6827
    %7271 = vmatprep.subr.bf16.mxu0 %v6832
    %7272 = vmatpush1.bf16.msra.mxu0 %v6831
    %7273 = vmatprep.mubr.bf16.mxu0 %v5594
    %7274 = vmatmul.mubr.bf16.gmra.mrb[0].mxu0 %v5593
    %v7275 = vpop.f32.mrb[0].mxu0
    %v7276 = vadd.f32 %v7233, %v7275
    %v7277 = vpop.f32.mrb[0].mxu0
    %v7278 = vadd.f32 %v7235, %v7277
    %v7279 = vpop.f32.mrb[0].mxu0
    %v7280 = vadd.f32 %v7237, %v7279
    %v7281 = vpop.f32.mrb[0].mxu0
    %v7282 = vadd.f32 %v7239, %v7281
    %7283 = vdwg.mxu0
    %7284 = vmatprep.subr.bf16.mxu0 %v6836
    %7285 = vmatpush1.bf16.msra.mxu0 %v6835
    %7286 = vmatprep.subr.bf16.mxu0 %v6840
    %7287 = vmatpush1.bf16.msra.mxu0 %v6839
    %7288 = vmatprep.subr.bf16.mxu0 %v6844
    %7289 = vmatpush1.bf16.msra.mxu0 %v6843
    %7290 = vmatprep.subr.bf16.mxu0 %v6848
    %7291 = vmatpush1.bf16.msra.mxu0 %v6847
    %7292 = vmatprep.subr.bf16.mxu0 %v6852
    %7293 = vmatpush1.bf16.msra.mxu0 %v6851
    %7294 = vmatprep.subr.bf16.mxu0 %v6856
    %7295 = vmatpush1.bf16.msra.mxu0 %v6855
    %7296 = vmatprep.subr.bf16.mxu0 %v6860
    %7297 = vmatpush1.bf16.msra.mxu0 %v6859
    %7298 = vmatprep.subr.bf16.mxu0 %v6864
    %7299 = vmatpush1.bf16.msra.mxu0 %v6863
    %7300 = vmatprep.subr.bf16.mxu0 %v6868
    %7301 = vmatpush1.bf16.msra.mxu0 %v6867
    %7302 = vmatprep.subr.bf16.mxu0 %v6872
    %7303 = vmatpush1.bf16.msra.mxu0 %v6871
    %7304 = vmatprep.subr.bf16.mxu0 %v6876
    %7305 = vmatpush1.bf16.msra.mxu0 %v6875
    %7306 = vmatprep.subr.bf16.mxu0 %v6880
    %7307 = vmatpush1.bf16.msra.mxu0 %v6879
    %7308 = vmatprep.subr.bf16.mxu0 %v6884
    %7309 = vmatpush1.bf16.msra.mxu0 %v6883
    %7310 = vmatprep.subr.bf16.mxu0 %v6888
    %7311 = vmatpush1.bf16.msra.mxu0 %v6887
    %7312 = vmatprep.subr.bf16.mxu0 %v6892
    %7313 = vmatpush1.bf16.msra.mxu0 %v6891
    %7314 = vmatprep.subr.bf16.mxu0 %v6896
    %7315 = vmatpush1.bf16.msra.mxu0 %v6895
    %7316 = vmatprep.mubr.bf16.mxu0 %v5596
    %7317 = vmatmul.mubr.bf16.gmra.mrb[0].mxu0 %v5595
    %v7318 = vpop.f32.mrb[0].mxu0
    %v7319 = vadd.f32 %v7276, %v7318
    %v7320 = vpop.f32.mrb[0].mxu0
    %v7321 = vadd.f32 %v7278, %v7320
    %v7322 = vpop.f32.mrb[0].mxu0
    %v7323 = vadd.f32 %v7280, %v7322
    %v7324 = vpop.f32.mrb[0].mxu0
    %v7325 = vadd.f32 %v7282, %v7324
    %7326 = vdwg.mxu0
    %7327 = vmatprep.subr.bf16.mxu0 %v6646
    %7328 = vmatpush1.bf16.msra.mxu0 %v6645
    %7329 = vmatprep.subr.bf16.mxu0 %v6650
    %7330 = vmatpush1.bf16.msra.mxu0 %v6649
    %7331 = vmatprep.subr.bf16.mxu0 %v6654
    %7332 = vmatpush1.bf16.msra.mxu0 %v6653
    %7333 = vmatprep.subr.bf16.mxu0 %v6658
    %7334 = vmatpush1.bf16.msra.mxu0 %v6657
    %7335 = vmatprep.subr.bf16.mxu0 %v6662
    %7336 = vmatpush1.bf16.msra.mxu0 %v6661
    %7337 = vmatprep.subr.bf16.mxu0 %v6666
    %7338 = vmatpush1.bf16.msra.mxu0 %v6665
    %7339 = vmatprep.subr.bf16.mxu0 %v6670
    %7340 = vmatpush1.bf16.msra.mxu0 %v6669
    %7341 = vmatprep.subr.bf16.mxu0 %v6674
    %7342 = vmatpush1.bf16.msra.mxu0 %v6673
    %7343 = vmatprep.subr.bf16.mxu0 %v6678
    %7344 = vmatpush1.bf16.msra.mxu0 %v6677
    %7345 = vmatprep.subr.bf16.mxu0 %v6682
    %7346 = vmatpush1.bf16.msra.mxu0 %v6681
    %7347 = vmatprep.subr.bf16.mxu0 %v6686
    %7348 = vmatpush1.bf16.msra.mxu0 %v6685
    %7349 = vmatprep.subr.bf16.mxu0 %v6690
    %7350 = vmatpush1.bf16.msra.mxu0 %v6689
    %7351 = vmatprep.subr.bf16.mxu0 %v6694
    %7352 = vmatpush1.bf16.msra.mxu0 %v6693
    %7353 = vmatprep.subr.bf16.mxu0 %v6698
    %7354 = vmatpush1.bf16.msra.mxu0 %v6697
    %7355 = vmatprep.subr.bf16.mxu0 %v6702
    %7356 = vmatpush1.bf16.msra.mxu0 %v6701
    %7357 = vmatprep.subr.bf16.mxu0 %v6706
    %7358 = vmatpush1.bf16.msra.mxu0 %v6705
    %7359 = vmatprep.mubr.bf16.mxu0 %v5590
    %7360 = vmatmul.mubr.bf16.gmra.mrb[0].mxu0 %v5589
    %v7361 = vpop.f32.mrb[0].mxu0
    %v7362 = vadd.f32 %v5866, %v7361
    %v7363 = vpop.f32.mrb[0].mxu0
    %v7364 = vadd.f32 %v5870, %v7363
    %v7365 = vpop.f32.mrb[0].mxu0
    %v7366 = vadd.f32 %v5866, %v7365
    %v7367 = vpop.f32.mrb[0].mxu0
    %v7368 = vadd.f32 %v5870, %v7367
    %7369 = vdwg.mxu0
    %7370 = vmatprep.subr.bf16.mxu0 %v6710
    %7371 = vmatpush1.bf16.msra.mxu0 %v6709
    %7372 = vmatprep.subr.bf16.mxu0 %v6714
    %7373 = vmatpush1.bf16.msra.mxu0 %v6713
    %7374 = vmatprep.subr.bf16.mxu0 %v6718
    %7375 = vmatpush1.bf16.msra.mxu0 %v6717
    %7376 = vmatprep.subr.bf16.mxu0 %v6722
    %7377 = vmatpush1.bf16.msra.mxu0 %v6721
    %7378 = vmatprep.subr.bf16.mxu0 %v6726
    %7379 = vmatpush1.bf16.msra.mxu0 %v6725
    %7380 = vmatprep.subr.bf16.mxu0 %v6730
    %7381 = vmatpush1.bf16.msra.mxu0 %v6729
    %7382 = vmatprep.subr.bf16.mxu0 %v6734
    %7383 = vmatpush1.bf16.msra.mxu0 %v6733
    %7384 = vmatprep.subr.bf16.mxu0 %v6738
    %7385 = vmatpush1.bf16.msra.mxu0 %v6737
    %7386 = vmatprep.subr.bf16.mxu0 %v6742
    %7387 = vmatpush1.bf16.msra.mxu0 %v6741
    %7388 = vmatprep.subr.bf16.mxu0 %v6746
    %7389 = vmatpush1.bf16.msra.mxu0 %v6745
    %7390 = vmatprep.subr.bf16.mxu0 %v6750
    %7391 = vmatpush1.bf16.msra.mxu0 %v6749
    %7392 = vmatprep.subr.bf16.mxu0 %v6754
    %7393 = vmatpush1.bf16.msra.mxu0 %v6753
    %7394 = vmatprep.subr.bf16.mxu0 %v6758
    %7395 = vmatpush1.bf16.msra.mxu0 %v6757
    %7396 = vmatprep.subr.bf16.mxu0 %v6762
    %7397 = vmatpush1.bf16.msra.mxu0 %v6761
    %7398 = vmatprep.subr.bf16.mxu0 %v6766
    %7399 = vmatpush1.bf16.msra.mxu0 %v6765
    %7400 = vmatprep.subr.bf16.mxu0 %v6770
    %7401 = vmatpush1.bf16.msra.mxu0 %v6769
    %7402 = vmatprep.mubr.bf16.mxu0 %v5592
    %7403 = vmatmul.mubr.bf16.gmra.mrb[0].mxu0 %v5591
    %v7404 = vpop.f32.mrb[0].mxu0
    %v7405 = vadd.f32 %v7362, %v7404
    %v7406 = vpop.f32.mrb[0].mxu0
    %v7407 = vadd.f32 %v7364, %v7406
    %v7408 = vpop.f32.mrb[0].mxu0
    %v7409 = vadd.f32 %v7366, %v7408
    %v7410 = vpop.f32.mrb[0].mxu0
    %v7411 = vadd.f32 %v7368, %v7410
    %7412 = vdwg.mxu0
    %7413 = vmatprep.subr.bf16.mxu0 %v6774
    %7414 = vmatpush1.bf16.msra.mxu0 %v6773
    %7415 = vmatprep.subr.bf16.mxu0 %v6778
    %7416 = vmatpush1.bf16.msra.mxu0 %v6777
    %7417 = vmatprep.subr.bf16.mxu0 %v6782
    %7418 = vmatpush1.bf16.msra.mxu0 %v6781
    %7419 = vmatprep.subr.bf16.mxu0 %v6786
    %7420 = vmatpush1.bf16.msra.mxu0 %v6785
    %7421 = vmatprep.subr.bf16.mxu0 %v6790
    %7422 = vmatpush1.bf16.msra.mxu0 %v6789
    %7423 = vmatprep.subr.bf16.mxu0 %v6794
    %7424 = vmatpush1.bf16.msra.mxu0 %v6793
    %7425 = vmatprep.subr.bf16.mxu0 %v6798
    %7426 = vmatpush1.bf16.msra.mxu0 %v6797
    %7427 = vmatprep.subr.bf16.mxu0 %v6802
    %7428 = vmatpush1.bf16.msra.mxu0 %v6801
    %7429 = vmatprep.subr.bf16.mxu0 %v6806
    %7430 = vmatpush1.bf16.msra.mxu0 %v6805
    %7431 = vmatprep.subr.bf16.mxu0 %v6810
    %7432 = vmatpush1.bf16.msra.mxu0 %v6809
    %7433 = vmatprep.subr.bf16.mxu0 %v6814
    %7434 = vmatpush1.bf16.msra.mxu0 %v6813
    %7435 = vmatprep.subr.bf16.mxu0 %v6818
    %7436 = vmatpush1.bf16.msra.mxu0 %v6817
    %7437 = vmatprep.subr.bf16.mxu0 %v6822
    %7438 = vmatpush1.bf16.msra.mxu0 %v6821
    %7439 = vmatprep.subr.bf16.mxu0 %v6826
    %7440 = vmatpush1.bf16.msra.mxu0 %v6825
    %7441 = vmatprep.subr.bf16.mxu0 %v6830
    %7442 = vmatpush1.bf16.msra.mxu0 %v6829
    %7443 = vmatprep.subr.bf16.mxu0 %v6834
    %7444 = vmatpush1.bf16.msra.mxu0 %v6833
    %7445 = vmatprep.mubr.bf16.mxu0 %v5594
    %7446 = vmatmul.mubr.bf16.gmra.mrb[0].mxu0 %v5593
    %v7447 = vpop.f32.mrb[0].mxu0
    %v7448 = vadd.f32 %v7405, %v7447
    %v7449 = vpop.f32.mrb[0].mxu0
    %v7450 = vadd.f32 %v7407, %v7449
    %v7451 = vpop.f32.mrb[0].mxu0
    %v7452 = vadd.f32 %v7409, %v7451
    %v7453 = vpop.f32.mrb[0].mxu0
    %v7454 = vadd.f32 %v7411, %v7453
    %7455 = vdwg.mxu0
    %7456 = vmatprep.subr.bf16.mxu0 %v6838
    %7457 = vmatpush1.bf16.msra.mxu0 %v6837
    %7458 = vmatprep.subr.bf16.mxu0 %v6842
    %7459 = vmatpush1.bf16.msra.mxu0 %v6841
    %7460 = vmatprep.subr.bf16.mxu0 %v6846
    %7461 = vmatpush1.bf16.msra.mxu0 %v6845
    %7462 = vmatprep.subr.bf16.mxu0 %v6850
    %7463 = vmatpush1.bf16.msra.mxu0 %v6849
    %7464 = vmatprep.subr.bf16.mxu0 %v6854
    %7465 = vmatpush1.bf16.msra.mxu0 %v6853
    %7466 = vmatprep.subr.bf16.mxu0 %v6858
    %7467 = vmatpush1.bf16.msra.mxu0 %v6857
    %7468 = vmatprep.subr.bf16.mxu0 %v6862
    %7469 = vmatpush1.bf16.msra.mxu0 %v6861
    %7470 = vmatprep.subr.bf16.mxu0 %v6866
    %7471 = vmatpush1.bf16.msra.mxu0 %v6865
    %7472 = vmatprep.subr.bf16.mxu0 %v6870
    %7473 = vmatpush1.bf16.msra.mxu0 %v6869
    %7474 = vmatprep.subr.bf16.mxu0 %v6874
    %7475 = vmatpush1.bf16.msra.mxu0 %v6873
    %7476 = vmatprep.subr.bf16.mxu0 %v6878
    %7477 = vmatpush1.bf16.msra.mxu0 %v6877
    %7478 = vmatprep.subr.bf16.mxu0 %v6882
    %7479 = vmatpush1.bf16.msra.mxu0 %v6881
    %7480 = vmatprep.subr.bf16.mxu0 %v6886
    %7481 = vmatpush1.bf16.msra.mxu0 %v6885
    %7482 = vmatprep.subr.bf16.mxu0 %v6890
    %7483 = vmatpush1.bf16.msra.mxu0 %v6889
    %7484 = vmatprep.subr.bf16.mxu0 %v6894
    %7485 = vmatpush1.bf16.msra.mxu0 %v6893
    %7486 = vmatprep.subr.bf16.mxu0 %v6898
    %7487 = vmatpush1.bf16.msra.mxu0 %v6897
    %7488 = vmatprep.mubr.bf16.mxu0 %v5596
    %7489 = vmatmul.mubr.bf16.gmra.mrb[0].mxu0 %v5595
    %v7490 = vpop.f32.mrb[0].mxu0
    %v7491 = vadd.f32 %v7448, %v7490
    %v7492 = vpop.f32.mrb[0].mxu0
    %v7493 = vadd.f32 %v7450, %v7492
    %v7494 = vpop.f32.mrb[0].mxu0
    %v7495 = vadd.f32 %v7452, %v7494
    %v7496 = vpop.f32.mrb[0].mxu0
    %v7497 = vadd.f32 %v7454, %v7496
    %7498 = vdwg.mxu0
    %v7499 = vmax.f32 %v7319, 0.0
    %v7500 = vmax.f32 %v7321, 0.0
    %v7501 = vmax.f32 %v7491, 0.0
    %v7502 = vmax.f32 %v7493, 0.0
    %v7503 = vmax.f32 %v7323, 0.0
    %v7504 = vmax.f32 %v7325, 0.0
    %v7505 = vmax.f32 %v7495, 0.0
    %v7506 = vmax.f32 %v7497, 0.0
    %v7507 = vpack.c.bf16 %v7503, %v7499
    %v7508 = vpack.c.bf16 %v7504, %v7500
    %v7509 = vpack.c.bf16 %v7505, %v7501
    %v7510 = vpack.c.bf16 %v7506, %v7502
    %v7511 = vld [vmem:[#allocation15] sm:$0xf]
    %v7512 = vld [vmem:[#allocation15 + $0x4] sm:$0xf]
    %v7513 = vld [vmem:[#allocation15 + $0x8] sm:$0xf]
    %v7514 = vld [vmem:[#allocation15 + $0xc] sm:$0xf]
    %v7515 = vld [vmem:[#allocation15 + $0x10] sm:$0xf]
    %v7516 = vld [vmem:[#allocation15 + $0x14] sm:$0xf]
    %v7517 = vld [vmem:[#allocation15 + $0x18] sm:$0xf]
    %v7518 = vld [vmem:[#allocation15 + $0x1c] sm:$0xf]
    %v7519 = vld [vmem:[#allocation15 + $0x20] sm:$0xf]
    %v7520 = vld [vmem:[#allocation15 + $0x24] sm:$0xf]
    %v7521 = vld [vmem:[#allocation15 + $0x28] sm:$0xf]
    %v7522 = vld [vmem:[#allocation15 + $0x2c] sm:$0xf]
    %v7523 = vld [vmem:[#allocation15 + $0x30] sm:$0xf]
    %v7524 = vld [vmem:[#allocation15 + $0x34] sm:$0xf]
    %v7525 = vld [vmem:[#allocation15 + $0x38] sm:$0xf]
    %v7526 = vld [vmem:[#allocation15 + $0x3c] sm:$0xf]
    %v7527 = vld [vmem:[#allocation15 + $0x40] sm:$0xf]
    %v7528 = vld [vmem:[#allocation15 + $0x44] sm:$0xf]
    %v7529 = vld [vmem:[#allocation15 + $0x48] sm:$0xf]
    %v7530 = vld [vmem:[#allocation15 + $0x4c] sm:$0xf]
    %v7531 = vld [vmem:[#allocation15 + $0x50] sm:$0xf]
    %v7532 = vld [vmem:[#allocation15 + $0x54] sm:$0xf]
    %v7533 = vld [vmem:[#allocation15 + $0x58] sm:$0xf]
    %v7534 = vld [vmem:[#allocation15 + $0x5c] sm:$0xf]
    %v7535 = vld [vmem:[#allocation15 + $0x60] sm:$0xf]
    %v7536 = vld [vmem:[#allocation15 + $0x64] sm:$0xf]
    %v7537 = vld [vmem:[#allocation15 + $0x68] sm:$0xf]
    %v7538 = vld [vmem:[#allocation15 + $0x6c] sm:$0xf]
    %v7539 = vld [vmem:[#allocation15 + $0x70] sm:$0xf]
    %v7540 = vld [vmem:[#allocation15 + $0x74] sm:$0xf]
    %v7541 = vld [vmem:[#allocation15 + $0x78] sm:$0xf]
    %v7542 = vld [vmem:[#allocation15 + $0x7c] sm:$0xf]
    %v7543 = vld [vmem:[#allocation15 + $0x80] sm:$0xf]
    %v7544 = vld [vmem:[#allocation15 + $0x84] sm:$0xf]
    %v7545 = vld [vmem:[#allocation15 + $0x88] sm:$0xf]
    %v7546 = vld [vmem:[#allocation15 + $0x8c] sm:$0xf]
    %v7547 = vld [vmem:[#allocation15 + $0x90] sm:$0xf]
    %v7548 = vld [vmem:[#allocation15 + $0x94] sm:$0xf]
    %v7549 = vld [vmem:[#allocation15 + $0x98] sm:$0xf]
    %v7550 = vld [vmem:[#allocation15 + $0x9c] sm:$0xf]
    %v7551 = vld [vmem:[#allocation15 + $0xa0] sm:$0xf]
    %v7552 = vld [vmem:[#allocation15 + $0xa4] sm:$0xf]
    %v7553 = vld [vmem:[#allocation15 + $0xa8] sm:$0xf]
    %v7554 = vld [vmem:[#allocation15 + $0xac] sm:$0xf]
    %v7555 = vld [vmem:[#allocation15 + $0xb0] sm:$0xf]
    %v7556 = vld [vmem:[#allocation15 + $0xb4] sm:$0xf]
    %v7557 = vld [vmem:[#allocation15 + $0xb8] sm:$0xf]
    %v7558 = vld [vmem:[#allocation15 + $0xbc] sm:$0xf]
    %v7559 = vld [vmem:[#allocation15 + $0xc0] sm:$0xf]
    %v7560 = vld [vmem:[#allocation15 + $0xc4] sm:$0xf]
    %v7561 = vld [vmem:[#allocation15 + $0xc8] sm:$0xf]
    %v7562 = vld [vmem:[#allocation15 + $0xcc] sm:$0xf]
    %v7563 = vld [vmem:[#allocation15 + $0xd0] sm:$0xf]
    %v7564 = vld [vmem:[#allocation15 + $0xd4] sm:$0xf]
    %v7565 = vld [vmem:[#allocation15 + $0xd8] sm:$0xf]
    %v7566 = vld [vmem:[#allocation15 + $0xdc] sm:$0xf]
    %v7567 = vld [vmem:[#allocation15 + $0xe0] sm:$0xf]
    %v7568 = vld [vmem:[#allocation15 + $0xe4] sm:$0xf]
    %v7569 = vld [vmem:[#allocation15 + $0xe8] sm:$0xf]
    %v7570 = vld [vmem:[#allocation15 + $0xec] sm:$0xf]
    %v7571 = vld [vmem:[#allocation15 + $0xf0] sm:$0xf]
    %v7572 = vld [vmem:[#allocation15 + $0xf4] sm:$0xf]
    %v7573 = vld [vmem:[#allocation15 + $0xf8] sm:$0xf]
    %v7574 = vld [vmem:[#allocation15 + $0xfc] sm:$0xf]
    %v7575 = vld [vmem:[#allocation16] sm:$0x1]
    %v7577 = vlaneseq
    %v7578 = vshrl.u32 %v7577, 7
    %v7579 = vsub.s32 0, %v7578
    %v7580 = vrot.slane %v7575, %v7579
    %v7646 = vunpack.c.l.b16 %v7511
    %v7647 = vunpack.c.l.b16 %v7512
    %v7648 = vunpack.c.l.b16 %v7513
    %v7649 = vunpack.c.l.b16 %v7514
    %v7650 = vunpack.c.l.b16 %v7515
    %v7651 = vunpack.c.l.b16 %v7516
    %v7652 = vunpack.c.l.b16 %v7517
    %v7653 = vunpack.c.l.b16 %v7518
    %v7654 = vunpack.c.l.b16 %v7519
    %v7655 = vunpack.c.l.b16 %v7520
    %v7656 = vunpack.c.l.b16 %v7521
    %v7657 = vunpack.c.l.b16 %v7522
    %v7658 = vunpack.c.l.b16 %v7523
    %v7659 = vunpack.c.l.b16 %v7524
    %v7660 = vunpack.c.l.b16 %v7525
    %v7661 = vunpack.c.l.b16 %v7526
    %v7662 = vunpack.c.l.b16 %v7527
    %v7663 = vunpack.c.l.b16 %v7528
    %v7664 = vunpack.c.l.b16 %v7529
    %v7665 = vunpack.c.l.b16 %v7530
    %v7666 = vunpack.c.l.b16 %v7531
    %v7667 = vunpack.c.l.b16 %v7532
    %v7668 = vunpack.c.l.b16 %v7533
    %v7669 = vunpack.c.l.b16 %v7534
    %v7670 = vunpack.c.l.b16 %v7535
    %v7671 = vunpack.c.l.b16 %v7536
    %v7672 = vunpack.c.l.b16 %v7537
    %v7673 = vunpack.c.l.b16 %v7538
    %v7674 = vunpack.c.l.b16 %v7539
    %v7675 = vunpack.c.l.b16 %v7540
    %v7676 = vunpack.c.l.b16 %v7541
    %v7677 = vunpack.c.l.b16 %v7542
    %v7678 = vunpack.c.l.b16 %v7543
    %v7679 = vunpack.c.l.b16 %v7544
    %v7680 = vunpack.c.l.b16 %v7545
    %v7681 = vunpack.c.l.b16 %v7546
    %v7682 = vunpack.c.l.b16 %v7547
    %v7683 = vunpack.c.l.b16 %v7548
    %v7684 = vunpack.c.l.b16 %v7549
    %v7685 = vunpack.c.l.b16 %v7550
    %v7686 = vunpack.c.l.b16 %v7551
    %v7687 = vunpack.c.l.b16 %v7552
    %v7688 = vunpack.c.l.b16 %v7553
    %v7689 = vunpack.c.l.b16 %v7554
    %v7690 = vunpack.c.l.b16 %v7555
    %v7691 = vunpack.c.l.b16 %v7556
    %v7692 = vunpack.c.l.b16 %v7557
    %v7693 = vunpack.c.l.b16 %v7558
    %v7694 = vunpack.c.l.b16 %v7559
    %v7695 = vunpack.c.l.b16 %v7560
    %v7696 = vunpack.c.l.b16 %v7561
    %v7697 = vunpack.c.l.b16 %v7562
    %v7698 = vunpack.c.l.b16 %v7563
    %v7699 = vunpack.c.l.b16 %v7564
    %v7700 = vunpack.c.l.b16 %v7565
    %v7701 = vunpack.c.l.b16 %v7566
    %v7702 = vunpack.c.l.b16 %v7567
    %v7703 = vunpack.c.l.b16 %v7568
    %v7704 = vunpack.c.l.b16 %v7569
    %v7705 = vunpack.c.l.b16 %v7570
    %v7706 = vunpack.c.l.b16 %v7571
    %v7707 = vunpack.c.l.b16 %v7572
    %v7708 = vunpack.c.l.b16 %v7573
    %v7709 = vunpack.c.l.b16 %v7574
    %v7710 = vpack.c.b16 %v7647, %v7646
    %v7711 = vpack.c.b16 %v7649, %v7648
    %v7712 = vpack.c.b16 %v7651, %v7650
    %v7713 = vpack.c.b16 %v7653, %v7652
    %v7714 = vpack.c.b16 %v7655, %v7654
    %v7715 = vpack.c.b16 %v7657, %v7656
    %v7716 = vpack.c.b16 %v7659, %v7658
    %v7717 = vpack.c.b16 %v7661, %v7660
    %v7718 = vpack.c.b16 %v7663, %v7662
    %v7719 = vpack.c.b16 %v7665, %v7664
    %v7720 = vpack.c.b16 %v7667, %v7666
    %v7721 = vpack.c.b16 %v7669, %v7668
    %v7722 = vpack.c.b16 %v7671, %v7670
    %v7723 = vpack.c.b16 %v7673, %v7672
    %v7724 = vpack.c.b16 %v7675, %v7674
    %v7725 = vpack.c.b16 %v7677, %v7676
    %v7726 = vpack.c.b16 %v7679, %v7678
    %v7727 = vpack.c.b16 %v7681, %v7680
    %v7728 = vpack.c.b16 %v7683, %v7682
    %v7729 = vpack.c.b16 %v7685, %v7684
    %v7730 = vpack.c.b16 %v7687, %v7686
    %v7731 = vpack.c.b16 %v7689, %v7688
    %v7732 = vpack.c.b16 %v7691, %v7690
    %v7733 = vpack.c.b16 %v7693, %v7692
    %v7734 = vpack.c.b16 %v7695, %v7694
    %v7735 = vpack.c.b16 %v7697, %v7696
    %v7736 = vpack.c.b16 %v7699, %v7698
    %v7737 = vpack.c.b16 %v7701, %v7700
    %v7738 = vpack.c.b16 %v7703, %v7702
    %v7739 = vpack.c.b16 %v7705, %v7704
    %v7740 = vpack.c.b16 %v7707, %v7706
    %v7741 = vpack.c.b16 %v7709, %v7708
    %7774 = vmatprep.subr.bf16.mxu0 0
    %7775 = vmatpush1.bf16.msra.mxu0 %v7710
    %7776 = vmatprep.subr.bf16.mxu0 0
    %7777 = vmatpush1.bf16.msra.mxu0 %v7711
    %7778 = vmatprep.subr.bf16.mxu0 0
    %7779 = vmatpush1.bf16.msra.mxu0 %v7712
    %7780 = vmatprep.subr.bf16.mxu0 0
    %7781 = vmatpush1.bf16.msra.mxu0 %v7713
    %7782 = vmatprep.subr.bf16.mxu0 0
    %7783 = vmatpush1.bf16.msra.mxu0 %v7714
    %7784 = vmatprep.subr.bf16.mxu0 0
    %7785 = vmatpush1.bf16.msra.mxu0 %v7715
    %7786 = vmatprep.subr.bf16.mxu0 0
    %7787 = vmatpush1.bf16.msra.mxu0 %v7716
    %7788 = vmatprep.subr.bf16.mxu0 0
    %7789 = vmatpush1.bf16.msra.mxu0 %v7717
    %7790 = vmatprep.subr.bf16.mxu0 0
    %7791 = vmatpush1.bf16.msra.mxu0 %v7718
    %7792 = vmatprep.subr.bf16.mxu0 0
    %7793 = vmatpush1.bf16.msra.mxu0 %v7719
    %7794 = vmatprep.subr.bf16.mxu0 0
    %7795 = vmatpush1.bf16.msra.mxu0 %v7720
    %7796 = vmatprep.subr.bf16.mxu0 0
    %7797 = vmatpush1.bf16.msra.mxu0 %v7721
    %7798 = vmatprep.subr.bf16.mxu0 0
    %7799 = vmatpush1.bf16.msra.mxu0 %v7722
    %7800 = vmatprep.subr.bf16.mxu0 0
    %7801 = vmatpush1.bf16.msra.mxu0 %v7723
    %7802 = vmatprep.subr.bf16.mxu0 0
    %7803 = vmatpush1.bf16.msra.mxu0 %v7724
    %7804 = vmatprep.subr.bf16.mxu0 0
    %7805 = vmatpush1.bf16.msra.mxu0 %v7725
    %7806 = vmatprep.mubr.bf16.mxu0 %v7508
    %7807 = vmatmul.mubr.bf16.gmra.mrb[0].mxu0 %v7507
    %v7808 = vpop.f32.mrb[0].mxu0
    %v7809 = vadd.f32 %v7580, %v7808
    %v7810 = vpop.f32.mrb[0].mxu0
    %v7811 = vpop.f32.mrb[0].mxu0
    %v7812 = vadd.f32 %v7580, %v7811
    %v7813 = vpop.f32.mrb[0].mxu0
    %7814 = vdwg.mxu0
    %7815 = vmatprep.subr.bf16.mxu0 0
    %7816 = vmatpush1.bf16.msra.mxu0 %v7726
    %7817 = vmatprep.subr.bf16.mxu0 0
    %7818 = vmatpush1.bf16.msra.mxu0 %v7727
    %7819 = vmatprep.subr.bf16.mxu0 0
    %7820 = vmatpush1.bf16.msra.mxu0 %v7728
    %7821 = vmatprep.subr.bf16.mxu0 0
    %7822 = vmatpush1.bf16.msra.mxu0 %v7729
    %7823 = vmatprep.subr.bf16.mxu0 0
    %7824 = vmatpush1.bf16.msra.mxu0 %v7730
    %7825 = vmatprep.subr.bf16.mxu0 0
    %7826 = vmatpush1.bf16.msra.mxu0 %v7731
    %7827 = vmatprep.subr.bf16.mxu0 0
    %7828 = vmatpush1.bf16.msra.mxu0 %v7732
    %7829 = vmatprep.subr.bf16.mxu0 0
    %7830 = vmatpush1.bf16.msra.mxu0 %v7733
    %7831 = vmatprep.subr.bf16.mxu0 0
    %7832 = vmatpush1.bf16.msra.mxu0 %v7734
    %7833 = vmatprep.subr.bf16.mxu0 0
    %7834 = vmatpush1.bf16.msra.mxu0 %v7735
    %7835 = vmatprep.subr.bf16.mxu0 0
    %7836 = vmatpush1.bf16.msra.mxu0 %v7736
    %7837 = vmatprep.subr.bf16.mxu0 0
    %7838 = vmatpush1.bf16.msra.mxu0 %v7737
    %7839 = vmatprep.subr.bf16.mxu0 0
    %7840 = vmatpush1.bf16.msra.mxu0 %v7738
    %7841 = vmatprep.subr.bf16.mxu0 0
    %7842 = vmatpush1.bf16.msra.mxu0 %v7739
    %7843 = vmatprep.subr.bf16.mxu0 0
    %7844 = vmatpush1.bf16.msra.mxu0 %v7740
    %7845 = vmatprep.subr.bf16.mxu0 0
    %7846 = vmatpush1.bf16.msra.mxu0 %v7741
    %7847 = vmatprep.mubr.bf16.mxu0 %v7510
    %7848 = vmatmul.mubr.bf16.gmra.mrb[0].mxu0 %v7509
    %v7849 = vpop.f32.mrb[0].mxu0
    %v7850 = vadd.f32 %v7809, %v7849
    %v7851 = vpop.f32.mrb[0].mxu0
    %v7852 = vpop.f32.mrb[0].mxu0
    %v7853 = vadd.f32 %v7812, %v7852
    %v7854 = vpop.f32.mrb[0].mxu0
    %7855 = vdwg.mxu0
    %v7856 = vmax.f32 %v7850, 0.0
    %v7857 = vmax.f32 %v7853, 0.0
    %7858 = vst [vmem:[%s11] sm:$0xff] %v7856
    %7859 = vst [vmem:[%s11 + $0x8] sm:$0xff] %v7857
    // Predicated region
    $region86: #{simple_nn_forward.1} parent=1 // pred_check
      _
    $region87: #{simple_nn_forward.1} parent=1 // pred_check_branch
      %7861 = sbr.rel (0) target = $region89
    $region88: #{simple_nn_forward.1} parent=1 // pred_region
      _
    $region89: #{simple_nn_forward.1} parent=1 // pred_fallthru
      _
    // Predicated region
    $region90: #{simple_nn_forward.1} parent=1 // pred_check
      _
    $region91: #{simple_nn_forward.1} parent=1 // pred_check_branch
      %7863 = sbr.rel (0) target = $region93
    $region92: #{simple_nn_forward.1} parent=1 // pred_region
      _
    $region93: #{simple_nn_forward.1} parent=1 // pred_fallthru
      _
    %7864 = vsyncpa [#allocation3], 1
    %7865 = vsyncpa [#allocation5], 1
    %7866 = vsyncpa [#allocation8], 1
    %7867 = vsyncpa [#allocation11], 1
    %7868 = vsyncpa [#allocation14], 1
    %7869 = vsyncpa [#allocation17], 1

</llo_original>
